<compile_context>
chip_gen: v7x
topology: tpu7x:2x2x1
jax: 0.10.0
libtpu: 0.0.40
codegen_flags: <defaults>
</compile_context>

<pallas_src>
import functools

import jax
import jax.numpy as jnp
from jax import lax
from jax.experimental import pallas as pl
from jax.experimental.pallas import tpu as pltpu


def _resnet_block_kernel(x_ref, w1_ref, b1_ref, w2_ref, b2_ref, o_ref, xpad_ref,
                         *, TB, H, W, C):
    # x_ref   : VMEM (TB, H, W, C)        f32  channels-last input tile
    # w1_ref  : VMEM (9, C, C)            f32  conv1 taps, [kh*3+kw] -> (C_in, C_out)
    # b1_ref  : VMEM (1, C)               f32
    # w2_ref  : VMEM (9, C, C)            f32  conv2 taps
    # b2_ref  : VMEM (1, C)               f32
    # o_ref   : VMEM (TB, H, W, C)        f32
    # xpad_ref: VMEM (TB, H+2, W+2, C)    f32  zero-padded work buffer (scratch)
    R = TB * H * W

    # ---- conv1: padding=1 realized by the zero frame of the scratch --------
    xpad_ref[...] = jnp.zeros_like(xpad_ref)
    xpad_ref[:, 1:H + 1, 1:W + 1, :] = x_ref[...]

    acc = jnp.broadcast_to(b1_ref[...], (R, C))          # bias, hoisted out of loop
    for kh in range(3):
        for kw in range(3):
            win = xpad_ref[:, kh:kh + H, kw:kw + W, :]    # (TB, H, W, C) ref load
            acc = acc + jnp.dot(win.reshape(R, C), w1_ref[kh * 3 + kw],
                                preferred_element_type=jnp.float32)
    hidden = jnp.maximum(acc, 0.0)

    # ---- conv2 on hidden (frame of the scratch stays zero) + residual ------
    xpad_ref[:, 1:H + 1, 1:W + 1, :] = hidden.reshape(TB, H, W, C)

    acc2 = x_ref[...].reshape(R, C) + jnp.broadcast_to(b2_ref[...], (R, C))
    for kh in range(3):
        for kw in range(3):
            win = xpad_ref[:, kh:kh + H, kw:kw + W, :]
            acc2 = acc2 + jnp.dot(win.reshape(R, C), w2_ref[kh * 3 + kw],
                                  preferred_element_type=jnp.float32)

    o_ref[...] = acc2.reshape(TB, H, W, C).astype(o_ref.dtype)


def resnet_block(x, w1, b1, w2, b2, *, batch_tile=None,
                 vmem_limit_bytes=48 * 1024 * 1024):
    """x: (N, C, H, W); w1/w2: (C, C, 3, 3) OIHW; b1/b2: (C,) -> (N, C, H, W)."""
    N, C, H, W = x.shape
    assert w1.shape == (C, C, 3, 3) and w2.shape == (C, C, 3, 3)
    assert b1.shape == (C,) and b2.shape == (C,)
    assert W % 8 == 0, "W must be a multiple of 8 (sublane tiling) for this kernel"

    # Layout plumbing (cheap wrapper-side XLA ops, not kernel work):
    # channels-last activations; weights as (kh*3+kw, C_in, C_out) matmul taps.
    x_nhwc = jnp.transpose(x, (0, 2, 3, 1)).astype(jnp.float32)
    w1_k = jnp.transpose(w1, (2, 3, 1, 0)).reshape(9, C, C).astype(jnp.float32)
    w2_k = jnp.transpose(w2, (2, 3, 1, 0)).reshape(9, C, C).astype(jnp.float32)
    b1_r = b1.reshape(1, C).astype(jnp.float32)
    b2_r = b2.reshape(1, C).astype(jnp.float32)

    if batch_tile is None:
        # Amortize per-grid-step overhead, keep the block small enough to
        # double-buffer within scoped VMEM on every generation (incl. v7x's
        # 64 MiB physical VMEM) and keep >= 2 grid steps for megacore sharding.
        per_img_bytes = H * W * C * 4
        budget = 2 * 1024 * 1024
        batch_tile = max(1, min(max(N // 2, 1), budget // max(per_img_bytes, 1)))
    while N % batch_tile:
        batch_tile -= 1
    TB = batch_tile

    kernel = functools.partial(_resnet_block_kernel, TB=TB, H=H, W=W, C=C)

    flops = 4 * N * H * W * C * C * 9 + 4 * N * H * W * C
    bytes_accessed = 2 * N * H * W * C * 4 + 2 * 9 * C * C * 4 + 2 * C * 4

    out_nhwc = pl.pallas_call(
        kernel,
        out_shape=jax.ShapeDtypeStruct((N, H, W, C), jnp.float32),
        grid_spec=pltpu.PrefetchScalarGridSpec(
            num_scalar_prefetch=0,
            grid=(N // TB,),
            in_specs=[
                pl.BlockSpec((TB, H, W, C), lambda n: (n, 0, 0, 0)),   # x tile
                pl.BlockSpec((9, C, C), lambda n: (0, 0, 0)),          # conv1 W
                pl.BlockSpec((1, C), lambda n: (0, 0)),                # conv1 b
                pl.BlockSpec((9, C, C), lambda n: (0, 0, 0)),          # conv2 W
                pl.BlockSpec((1, C), lambda n: (0, 0)),                # conv2 b
            ],
            out_specs=pl.BlockSpec((TB, H, W, C), lambda n: (n, 0, 0, 0)),
            scratch_shapes=[pltpu.VMEM((TB, H + 2, W + 2, C), jnp.float32)],
        ),
        compiler_params=pltpu.CompilerParams(
            dimension_semantics=("parallel",),
            vmem_limit_bytes=vmem_limit_bytes),
        cost_estimate=pl.CostEstimate(
            flops=flops, transcendentals=0, bytes_accessed=bytes_accessed),
    )(x_nhwc, w1_k, b1_r, w2_k, b2_r)

    return jnp.transpose(out_nhwc, (0, 3, 1, 2)).astype(x.dtype)


def _reference(x, w1, b1, w2, b2):
    """Plain-JAX reference matching the PyTorch ResnetBlock forward."""
    dn = ("NCHW", "OIHW", "NCHW")
    y = lax.conv_general_dilated(x, w1, window_strides=(1, 1),
                                 padding=((1, 1), (1, 1)), dimension_numbers=dn)
    y = jnp.maximum(y + b1.reshape(1, -1, 1, 1), 0.0)
    y = lax.conv_general_dilated(y, w2, window_strides=(1, 1),
                                 padding=((1, 1), (1, 1)), dimension_numbers=dn)
    y = y + b2.reshape(1, -1, 1, 1)
    return x + y


if __name__ == "__main__":
    key = jax.random.PRNGKey(0)
    kx, k1, kb1, k2, kb2 = jax.random.split(key, 5)

    # Small shapes consistent with the module: batch=2, dim=4 channels, 16x16.
    N, C, H, W = 2, 4, 16, 16
    x = jax.random.normal(kx, (N, C, H, W), dtype=jnp.float32)
    w1 = jax.random.normal(k1, (C, C, 3, 3), dtype=jnp.float32) * 0.1
    b1 = jax.random.normal(kb1, (C,), dtype=jnp.float32) * 0.1
    w2 = jax.random.normal(k2, (C, C, 3, 3), dtype=jnp.float32) * 0.1
    b2 = jax.random.normal(kb2, (C,), dtype=jnp.float32) * 0.1

    out = jax.block_until_ready(resnet_block(x, w1, b1, w2, b2))
    ref = jax.block_until_ready(_reference(x, w1, b1, w2, b2))

    assert out.shape == (N, C, H, W), out.shape
    max_err = float(jnp.max(jnp.abs(out - ref)))
    assert jnp.allclose(out, ref, atol=1e-4, rtol=1e-4), max_err

    print("KERNEL_OK")
</pallas_src>

<mosaic_0001>
module attributes {stable_mosaic.version = 11 : i64} {
  func.func @_resnet_block_kernel(%arg0: i32, %arg1: memref<1x16x16x4xf32, #tpu.memory_space<vmem>>, %arg2: memref<9x4x4xf32, #tpu.memory_space<vmem>>, %arg3: memref<1x4xf32, #tpu.memory_space<vmem>>, %arg4: memref<9x4x4xf32, #tpu.memory_space<vmem>>, %arg5: memref<1x4xf32, #tpu.memory_space<vmem>>, %arg6: memref<1x16x16x4xf32, #tpu.memory_space<vmem>>, %arg7: memref<1x18x18x4xf32, #tpu.memory_space<vmem>>) attributes {dimension_semantics = [#tpu.dimension_semantics<parallel>], iteration_bounds = array<i64: 2>, scalar_prefetch = 0 : i64, scratch_operands = 1 : i64, tpu.core_type = #tpu.core_type<tc>, window_params = [{transform_indices = @transform_0, window_bounds = array<i64: 1, 16, 16, 4>}, {pipeline_mode = #tpu.pipeline_mode<synchronous>, transform_indices = @transform_1, window_bounds = array<i64: 9, 4, 4>}, {pipeline_mode = #tpu.pipeline_mode<synchronous>, transform_indices = @transform_2, window_bounds = array<i64: 1, 4>}, {pipeline_mode = #tpu.pipeline_mode<synchronous>, transform_indices = @transform_3, window_bounds = array<i64: 9, 4, 4>}, {pipeline_mode = #tpu.pipeline_mode<synchronous>, transform_indices = @transform_4, window_bounds = array<i64: 1, 4>}, {transform_indices = @transform_5, window_bounds = array<i64: 1, 16, 16, 4>}]} {
    %cst = arith.constant 0.000000e+00 : f32
    %0 = vector.broadcast %cst : f32 to vector<1x18x18x4xf32>
    %c0 = arith.constant 0 : index
    %c0_0 = arith.constant 0 : index
    %c0_1 = arith.constant 0 : index
    %c0_2 = arith.constant 0 : index
    %1 = vector.load %arg7[%c0, %c0_0, %c0_1, %c0_2] : memref<1x18x18x4xf32, #tpu.memory_space<vmem>>, vector<1x18x18x4xf32>
    tpu.vector_store %arg7[%c0, %c0_0, %c0_1, %c0_2], %0 {strides = array<i32>} : memref<1x18x18x4xf32, #tpu.memory_space<vmem>>, vector<1x18x18x4xf32>,
    %c0_3 = arith.constant 0 : index
    %c0_4 = arith.constant 0 : index
    %c0_5 = arith.constant 0 : index
    %c0_6 = arith.constant 0 : index
    %2 = vector.load %arg1[%c0_3, %c0_4, %c0_5, %c0_6] : memref<1x16x16x4xf32, #tpu.memory_space<vmem>>, vector<1x16x16x4xf32>
    %c0_7 = arith.constant 0 : index
    %c1 = arith.constant 1 : index
    %c1_8 = arith.constant 1 : index
    %c0_9 = arith.constant 0 : index
    %3 = vector.load %arg7[%c0_7, %c1, %c1_8, %c0_9] : memref<1x18x18x4xf32, #tpu.memory_space<vmem>>, vector<1x16x16x4xf32>
    tpu.vector_store %arg7[%c0_7, %c1, %c1_8, %c0_9], %2 {strides = array<i32>} : memref<1x18x18x4xf32, #tpu.memory_space<vmem>>, vector<1x16x16x4xf32>,
    %c0_10 = arith.constant 0 : index
    %c0_11 = arith.constant 0 : index
    %4 = vector.load %arg3[%c0_10, %c0_11] : memref<1x4xf32, #tpu.memory_space<vmem>>, vector<1x4xf32>
    %5 = vector.shape_cast %4 : vector<1x4xf32> to vector<1x4xf32>
    %6 = vector.broadcast %5 : vector<1x4xf32> to vector<256x4xf32>
    %c0_12 = arith.constant 0 : index
    %c0_13 = arith.constant 0 : index
    %c0_14 = arith.constant 0 : index
    %c0_15 = arith.constant 0 : index
    %7 = vector.load %arg7[%c0_12, %c0_13, %c0_14, %c0_15] : memref<1x18x18x4xf32, #tpu.memory_space<vmem>>, vector<1x16x16x4xf32>
    %8 = vector.shape_cast %7 : vector<1x16x16x4xf32> to vector<256x4xf32>
    %c0_16 = arith.constant 0 : index
    %c0_17 = arith.constant 0 : index
    %c0_18 = arith.constant 0 : index
    %9 = vector.load %arg2[%c0_16, %c0_17, %c0_18] : memref<9x4x4xf32, #tpu.memory_space<vmem>>, vector<1x4x4xf32>
    %10 = vector.shape_cast %9 : vector<1x4x4xf32> to vector<4x4xf32>
    %cst_19 = arith.constant dense<0.000000e+00> : vector<256x4xf32>
    %11 = tpu.matmul %8, %10, %cst_19 {dimension_numbers = #tpu.dot_dimension_numbers<[1], [0], [0], [1], [0, 0, 1, 1], [], []>} : vector<256x4xf32>, vector<4x4xf32>, vector<256x4xf32> -> vector<256x4xf32>
    %12 = arith.addf %6, %11 : vector<256x4xf32>
    %c0_20 = arith.constant 0 : index
    %c0_21 = arith.constant 0 : index
    %c1_22 = arith.constant 1 : index
    %c0_23 = arith.constant 0 : index
    %13 = vector.load %arg7[%c0_20, %c0_21, %c1_22, %c0_23] : memref<1x18x18x4xf32, #tpu.memory_space<vmem>>, vector<1x16x16x4xf32>
    %14 = vector.shape_cast %13 : vector<1x16x16x4xf32> to vector<256x4xf32>
    %c1_24 = arith.constant 1 : index
    %c0_25 = arith.constant 0 : index
    %c0_26 = arith.constant 0 : index
    %15 = vector.load %arg2[%c1_24, %c0_25, %c0_26] : memref<9x4x4xf32, #tpu.memory_space<vmem>>, vector<1x4x4xf32>
    %16 = vector.shape_cast %15 : vector<1x4x4xf32> to vector<4x4xf32>
    %cst_27 = arith.constant dense<0.000000e+00> : vector<256x4xf32>
    %17 = tpu.matmul %14, %16, %cst_27 {dimension_numbers = #tpu.dot_dimension_numbers<[1], [0], [0], [1], [0, 0, 1, 1], [], []>} : vector<256x4xf32>, vector<4x4xf32>, vector<256x4xf32> -> vector<256x4xf32>
    %18 = arith.addf %12, %17 : vector<256x4xf32>
    %c0_28 = arith.constant 0 : index
    %c0_29 = arith.constant 0 : index
    %c2 = arith.constant 2 : index
    %c0_30 = arith.constant 0 : index
    %19 = vector.load %arg7[%c0_28, %c0_29, %c2, %c0_30] : memref<1x18x18x4xf32, #tpu.memory_space<vmem>>, vector<1x16x16x4xf32>
    %20 = vector.shape_cast %19 : vector<1x16x16x4xf32> to vector<256x4xf32>
    %c2_31 = arith.constant 2 : index
    %c0_32 = arith.constant 0 : index
    %c0_33 = arith.constant 0 : index
    %21 = vector.load %arg2[%c2_31, %c0_32, %c0_33] : memref<9x4x4xf32, #tpu.memory_space<vmem>>, vector<1x4x4xf32>
    %22 = vector.shape_cast %21 : vector<1x4x4xf32> to vector<4x4xf32>
    %cst_34 = arith.constant dense<0.000000e+00> : vector<256x4xf32>
    %23 = tpu.matmul %20, %22, %cst_34 {dimension_numbers = #tpu.dot_dimension_numbers<[1], [0], [0], [1], [0, 0, 1, 1], [], []>} : vector<256x4xf32>, vector<4x4xf32>, vector<256x4xf32> -> vector<256x4xf32>
    %24 = arith.addf %18, %23 : vector<256x4xf32>
    %c0_35 = arith.constant 0 : index
    %c1_36 = arith.constant 1 : index
    %c0_37 = arith.constant 0 : index
    %c0_38 = arith.constant 0 : index
    %25 = vector.load %arg7[%c0_35, %c1_36, %c0_37, %c0_38] : memref<1x18x18x4xf32, #tpu.memory_space<vmem>>, vector<1x16x16x4xf32>
    %26 = vector.shape_cast %25 : vector<1x16x16x4xf32> to vector<256x4xf32>
    %c3 = arith.constant 3 : index
    %c0_39 = arith.constant 0 : index
    %c0_40 = arith.constant 0 : index
    %27 = vector.load %arg2[%c3, %c0_39, %c0_40] : memref<9x4x4xf32, #tpu.memory_space<vmem>>, vector<1x4x4xf32>
    %28 = vector.shape_cast %27 : vector<1x4x4xf32> to vector<4x4xf32>
    %cst_41 = arith.constant dense<0.000000e+00> : vector<256x4xf32>
    %29 = tpu.matmul %26, %28, %cst_41 {dimension_numbers = #tpu.dot_dimension_numbers<[1], [0], [0], [1], [0, 0, 1, 1], [], []>} : vector<256x4xf32>, vector<4x4xf32>, vector<256x4xf32> -> vector<256x4xf32>
    %30 = arith.addf %24, %29 : vector<256x4xf32>
    %c0_42 = arith.constant 0 : index
    %c1_43 = arith.constant 1 : index
    %c1_44 = arith.constant 1 : index
    %c0_45 = arith.constant 0 : index
    %31 = vector.load %arg7[%c0_42, %c1_43, %c1_44, %c0_45] : memref<1x18x18x4xf32, #tpu.memory_space<vmem>>, vector<1x16x16x4xf32>
    %32 = vector.shape_cast %31 : vector<1x16x16x4xf32> to vector<256x4xf32>
    %c4 = arith.constant 4 : index
    %c0_46 = arith.constant 0 : index
    %c0_47 = arith.constant 0 : index
    %33 = vector.load %arg2[%c4, %c0_46, %c0_47] : memref<9x4x4xf32, #tpu.memory_space<vmem>>, vector<1x4x4xf32>
    %34 = vector.shape_cast %33 : vector<1x4x4xf32> to vector<4x4xf32>
    %cst_48 = arith.constant dense<0.000000e+00> : vector<256x4xf32>
    %35 = tpu.matmul %32, %34, %cst_48 {dimension_numbers = #tpu.dot_dimension_numbers<[1], [0], [0], [1], [0, 0, 1, 1], [], []>} : vector<256x4xf32>, vector<4x4xf32>, vector<256x4xf32> -> vector<256x4xf32>
    %36 = arith.addf %30, %35 : vector<256x4xf32>
    %c0_49 = arith.constant 0 : index
    %c1_50 = arith.constant 1 : index
    %c2_51 = arith.constant 2 : index
    %c0_52 = arith.constant 0 : index
    %37 = vector.load %arg7[%c0_49, %c1_50, %c2_51, %c0_52] : memref<1x18x18x4xf32, #tpu.memory_space<vmem>>, vector<1x16x16x4xf32>
    %38 = vector.shape_cast %37 : vector<1x16x16x4xf32> to vector<256x4xf32>
    %c5 = arith.constant 5 : index
    %c0_53 = arith.constant 0 : index
    %c0_54 = arith.constant 0 : index
    %39 = vector.load %arg2[%c5, %c0_53, %c0_54] : memref<9x4x4xf32, #tpu.memory_space<vmem>>, vector<1x4x4xf32>
    %40 = vector.shape_cast %39 : vector<1x4x4xf32> to vector<4x4xf32>
    %cst_55 = arith.constant dense<0.000000e+00> : vector<256x4xf32>
    %41 = tpu.matmul %38, %40, %cst_55 {dimension_numbers = #tpu.dot_dimension_numbers<[1], [0], [0], [1], [0, 0, 1, 1], [], []>} : vector<256x4xf32>, vector<4x4xf32>, vector<256x4xf32> -> vector<256x4xf32>
    %42 = arith.addf %36, %41 : vector<256x4xf32>
    %c0_56 = arith.constant 0 : index
    %c2_57 = arith.constant 2 : index
    %c0_58 = arith.constant 0 : index
    %c0_59 = arith.constant 0 : index
    %43 = vector.load %arg7[%c0_56, %c2_57, %c0_58, %c0_59] : memref<1x18x18x4xf32, #tpu.memory_space<vmem>>, vector<1x16x16x4xf32>
    %44 = vector.shape_cast %43 : vector<1x16x16x4xf32> to vector<256x4xf32>
    %c6 = arith.constant 6 : index
    %c0_60 = arith.constant 0 : index
    %c0_61 = arith.constant 0 : index
    %45 = vector.load %arg2[%c6, %c0_60, %c0_61] : memref<9x4x4xf32, #tpu.memory_space<vmem>>, vector<1x4x4xf32>
    %46 = vector.shape_cast %45 : vector<1x4x4xf32> to vector<4x4xf32>
    %cst_62 = arith.constant dense<0.000000e+00> : vector<256x4xf32>
    %47 = tpu.matmul %44, %46, %cst_62 {dimension_numbers = #tpu.dot_dimension_numbers<[1], [0], [0], [1], [0, 0, 1, 1], [], []>} : vector<256x4xf32>, vector<4x4xf32>, vector<256x4xf32> -> vector<256x4xf32>
    %48 = arith.addf %42, %47 : vector<256x4xf32>
    %c0_63 = arith.constant 0 : index
    %c2_64 = arith.constant 2 : index
    %c1_65 = arith.constant 1 : index
    %c0_66 = arith.constant 0 : index
    %49 = vector.load %arg7[%c0_63, %c2_64, %c1_65, %c0_66] : memref<1x18x18x4xf32, #tpu.memory_space<vmem>>, vector<1x16x16x4xf32>
    %50 = vector.shape_cast %49 : vector<1x16x16x4xf32> to vector<256x4xf32>
    %c7 = arith.constant 7 : index
    %c0_67 = arith.constant 0 : index
    %c0_68 = arith.constant 0 : index
    %51 = vector.load %arg2[%c7, %c0_67, %c0_68] : memref<9x4x4xf32, #tpu.memory_space<vmem>>, vector<1x4x4xf32>
    %52 = vector.shape_cast %51 : vector<1x4x4xf32> to vector<4x4xf32>
    %cst_69 = arith.constant dense<0.000000e+00> : vector<256x4xf32>
    %53 = tpu.matmul %50, %52, %cst_69 {dimension_numbers = #tpu.dot_dimension_numbers<[1], [0], [0], [1], [0, 0, 1, 1], [], []>} : vector<256x4xf32>, vector<4x4xf32>, vector<256x4xf32> -> vector<256x4xf32>
    %54 = arith.addf %48, %53 : vector<256x4xf32>
    %c0_70 = arith.constant 0 : index
    %c2_71 = arith.constant 2 : index
    %c2_72 = arith.constant 2 : index
    %c0_73 = arith.constant 0 : index
    %55 = vector.load %arg7[%c0_70, %c2_71, %c2_72, %c0_73] : memref<1x18x18x4xf32, #tpu.memory_space<vmem>>, vector<1x16x16x4xf32>
    %56 = vector.shape_cast %55 : vector<1x16x16x4xf32> to vector<256x4xf32>
    %c8 = arith.constant 8 : index
    %c0_74 = arith.constant 0 : index
    %c0_75 = arith.constant 0 : index
    %57 = vector.load %arg2[%c8, %c0_74, %c0_75] : memref<9x4x4xf32, #tpu.memory_space<vmem>>, vector<1x4x4xf32>
    %58 = vector.shape_cast %57 : vector<1x4x4xf32> to vector<4x4xf32>
    %cst_76 = arith.constant dense<0.000000e+00> : vector<256x4xf32>
    %59 = tpu.matmul %56, %58, %cst_76 {dimension_numbers = #tpu.dot_dimension_numbers<[1], [0], [0], [1], [0, 0, 1, 1], [], []>} : vector<256x4xf32>, vector<4x4xf32>, vector<256x4xf32> -> vector<256x4xf32>
    %60 = arith.addf %54, %59 : vector<256x4xf32>
    %cst_77 = arith.constant 0.000000e+00 : f32
    %61 = vector.broadcast %cst_77 : f32 to vector<256x4xf32>
    %62 = arith.maximumf %60, %61 : vector<256x4xf32>
    %63 = vector.shape_cast %62 : vector<256x4xf32> to vector<1x16x16x4xf32>
    %c0_78 = arith.constant 0 : index
    %c1_79 = arith.constant 1 : index
    %c1_80 = arith.constant 1 : index
    %c0_81 = arith.constant 0 : index
    %64 = vector.load %arg7[%c0_78, %c1_79, %c1_80, %c0_81] : memref<1x18x18x4xf32, #tpu.memory_space<vmem>>, vector<1x16x16x4xf32>
    tpu.vector_store %arg7[%c0_78, %c1_79, %c1_80, %c0_81], %63 {strides = array<i32>} : memref<1x18x18x4xf32, #tpu.memory_space<vmem>>, vector<1x16x16x4xf32>,
    %c0_82 = arith.constant 0 : index
    %c0_83 = arith.constant 0 : index
    %c0_84 = arith.constant 0 : index
    %c0_85 = arith.constant 0 : index
    %65 = vector.load %arg1[%c0_82, %c0_83, %c0_84, %c0_85] : memref<1x16x16x4xf32, #tpu.memory_space<vmem>>, vector<1x16x16x4xf32>
    %66 = vector.shape_cast %65 : vector<1x16x16x4xf32> to vector<256x4xf32>
    %c0_86 = arith.constant 0 : index
    %c0_87 = arith.constant 0 : index
    %67 = vector.load %arg5[%c0_86, %c0_87] : memref<1x4xf32, #tpu.memory_space<vmem>>, vector<1x4xf32>
    %68 = vector.shape_cast %67 : vector<1x4xf32> to vector<1x4xf32>
    %69 = vector.broadcast %68 : vector<1x4xf32> to vector<256x4xf32>
    %70 = arith.addf %66, %69 : vector<256x4xf32>
    %c0_88 = arith.constant 0 : index
    %c0_89 = arith.constant 0 : index
    %c0_90 = arith.constant 0 : index
    %c0_91 = arith.constant 0 : index
    %71 = vector.load %arg7[%c0_88, %c0_89, %c0_90, %c0_91] : memref<1x18x18x4xf32, #tpu.memory_space<vmem>>, vector<1x16x16x4xf32>
    %72 = vector.shape_cast %71 : vector<1x16x16x4xf32> to vector<256x4xf32>
    %c0_92 = arith.constant 0 : index
    %c0_93 = arith.constant 0 : index
    %c0_94 = arith.constant 0 : index
    %73 = vector.load %arg4[%c0_92, %c0_93, %c0_94] : memref<9x4x4xf32, #tpu.memory_space<vmem>>, vector<1x4x4xf32>
    %74 = vector.shape_cast %73 : vector<1x4x4xf32> to vector<4x4xf32>
    %cst_95 = arith.constant dense<0.000000e+00> : vector<256x4xf32>
    %75 = tpu.matmul %72, %74, %cst_95 {dimension_numbers = #tpu.dot_dimension_numbers<[1], [0], [0], [1], [0, 0, 1, 1], [], []>} : vector<256x4xf32>, vector<4x4xf32>, vector<256x4xf32> -> vector<256x4xf32>
    %76 = arith.addf %70, %75 : vector<256x4xf32>
    %c0_96 = arith.constant 0 : index
    %c0_97 = arith.constant 0 : index
    %c1_98 = arith.constant 1 : index
    %c0_99 = arith.constant 0 : index
    %77 = vector.load %arg7[%c0_96, %c0_97, %c1_98, %c0_99] : memref<1x18x18x4xf32, #tpu.memory_space<vmem>>, vector<1x16x16x4xf32>
    %78 = vector.shape_cast %77 : vector<1x16x16x4xf32> to vector<256x4xf32>
    %c1_100 = arith.constant 1 : index
    %c0_101 = arith.constant 0 : index
    %c0_102 = arith.constant 0 : index
    %79 = vector.load %arg4[%c1_100, %c0_101, %c0_102] : memref<9x4x4xf32, #tpu.memory_space<vmem>>, vector<1x4x4xf32>
    %80 = vector.shape_cast %79 : vector<1x4x4xf32> to vector<4x4xf32>
    %cst_103 = arith.constant dense<0.000000e+00> : vector<256x4xf32>
    %81 = tpu.matmul %78, %80, %cst_103 {dimension_numbers = #tpu.dot_dimension_numbers<[1], [0], [0], [1], [0, 0, 1, 1], [], []>} : vector<256x4xf32>, vector<4x4xf32>, vector<256x4xf32> -> vector<256x4xf32>
    %82 = arith.addf %76, %81 : vector<256x4xf32>
    %c0_104 = arith.constant 0 : index
    %c0_105 = arith.constant 0 : index
    %c2_106 = arith.constant 2 : index
    %c0_107 = arith.constant 0 : index
    %83 = vector.load %arg7[%c0_104, %c0_105, %c2_106, %c0_107] : memref<1x18x18x4xf32, #tpu.memory_space<vmem>>, vector<1x16x16x4xf32>
    %84 = vector.shape_cast %83 : vector<1x16x16x4xf32> to vector<256x4xf32>
    %c2_108 = arith.constant 2 : index
    %c0_109 = arith.constant 0 : index
    %c0_110 = arith.constant 0 : index
    %85 = vector.load %arg4[%c2_108, %c0_109, %c0_110] : memref<9x4x4xf32, #tpu.memory_space<vmem>>, vector<1x4x4xf32>
    %86 = vector.shape_cast %85 : vector<1x4x4xf32> to vector<4x4xf32>
    %cst_111 = arith.constant dense<0.000000e+00> : vector<256x4xf32>
    %87 = tpu.matmul %84, %86, %cst_111 {dimension_numbers = #tpu.dot_dimension_numbers<[1], [0], [0], [1], [0, 0, 1, 1], [], []>} : vector<256x4xf32>, vector<4x4xf32>, vector<256x4xf32> -> vector<256x4xf32>
    %88 = arith.addf %82, %87 : vector<256x4xf32>
    %c0_112 = arith.constant 0 : index
    %c1_113 = arith.constant 1 : index
    %c0_114 = arith.constant 0 : index
    %c0_115 = arith.constant 0 : index
    %89 = vector.load %arg7[%c0_112, %c1_113, %c0_114, %c0_115] : memref<1x18x18x4xf32, #tpu.memory_space<vmem>>, vector<1x16x16x4xf32>
    %90 = vector.shape_cast %89 : vector<1x16x16x4xf32> to vector<256x4xf32>
    %c3_116 = arith.constant 3 : index
    %c0_117 = arith.constant 0 : index
    %c0_118 = arith.constant 0 : index
    %91 = vector.load %arg4[%c3_116, %c0_117, %c0_118] : memref<9x4x4xf32, #tpu.memory_space<vmem>>, vector<1x4x4xf32>
    %92 = vector.shape_cast %91 : vector<1x4x4xf32> to vector<4x4xf32>
    %cst_119 = arith.constant dense<0.000000e+00> : vector<256x4xf32>
    %93 = tpu.matmul %90, %92, %cst_119 {dimension_numbers = #tpu.dot_dimension_numbers<[1], [0], [0], [1], [0, 0, 1, 1], [], []>} : vector<256x4xf32>, vector<4x4xf32>, vector<256x4xf32> -> vector<256x4xf32>
    %94 = arith.addf %88, %93 : vector<256x4xf32>
    %c0_120 = arith.constant 0 : index
    %c1_121 = arith.constant 1 : index
    %c1_122 = arith.constant 1 : index
    %c0_123 = arith.constant 0 : index
    %95 = vector.load %arg7[%c0_120, %c1_121, %c1_122, %c0_123] : memref<1x18x18x4xf32, #tpu.memory_space<vmem>>, vector<1x16x16x4xf32>
    %96 = vector.shape_cast %95 : vector<1x16x16x4xf32> to vector<256x4xf32>
    %c4_124 = arith.constant 4 : index
    %c0_125 = arith.constant 0 : index
    %c0_126 = arith.constant 0 : index
    %97 = vector.load %arg4[%c4_124, %c0_125, %c0_126] : memref<9x4x4xf32, #tpu.memory_space<vmem>>, vector<1x4x4xf32>
    %98 = vector.shape_cast %97 : vector<1x4x4xf32> to vector<4x4xf32>
    %cst_127 = arith.constant dense<0.000000e+00> : vector<256x4xf32>
    %99 = tpu.matmul %96, %98, %cst_127 {dimension_numbers = #tpu.dot_dimension_numbers<[1], [0], [0], [1], [0, 0, 1, 1], [], []>} : vector<256x4xf32>, vector<4x4xf32>, vector<256x4xf32> -> vector<256x4xf32>
    %100 = arith.addf %94, %99 : vector<256x4xf32>
    %c0_128 = arith.constant 0 : index
    %c1_129 = arith.constant 1 : index
    %c2_130 = arith.constant 2 : index
    %c0_131 = arith.constant 0 : index
    %101 = vector.load %arg7[%c0_128, %c1_129, %c2_130, %c0_131] : memref<1x18x18x4xf32, #tpu.memory_space<vmem>>, vector<1x16x16x4xf32>
    %102 = vector.shape_cast %101 : vector<1x16x16x4xf32> to vector<256x4xf32>
    %c5_132 = arith.constant 5 : index
    %c0_133 = arith.constant 0 : index
    %c0_134 = arith.constant 0 : index
    %103 = vector.load %arg4[%c5_132, %c0_133, %c0_134] : memref<9x4x4xf32, #tpu.memory_space<vmem>>, vector<1x4x4xf32>
    %104 = vector.shape_cast %103 : vector<1x4x4xf32> to vector<4x4xf32>
    %cst_135 = arith.constant dense<0.000000e+00> : vector<256x4xf32>
    %105 = tpu.matmul %102, %104, %cst_135 {dimension_numbers = #tpu.dot_dimension_numbers<[1], [0], [0], [1], [0, 0, 1, 1], [], []>} : vector<256x4xf32>, vector<4x4xf32>, vector<256x4xf32> -> vector<256x4xf32>
    %106 = arith.addf %100, %105 : vector<256x4xf32>
    %c0_136 = arith.constant 0 : index
    %c2_137 = arith.constant 2 : index
    %c0_138 = arith.constant 0 : index
    %c0_139 = arith.constant 0 : index
    %107 = vector.load %arg7[%c0_136, %c2_137, %c0_138, %c0_139] : memref<1x18x18x4xf32, #tpu.memory_space<vmem>>, vector<1x16x16x4xf32>
    %108 = vector.shape_cast %107 : vector<1x16x16x4xf32> to vector<256x4xf32>
    %c6_140 = arith.constant 6 : index
    %c0_141 = arith.constant 0 : index
    %c0_142 = arith.constant 0 : index
    %109 = vector.load %arg4[%c6_140, %c0_141, %c0_142] : memref<9x4x4xf32, #tpu.memory_space<vmem>>, vector<1x4x4xf32>
    %110 = vector.shape_cast %109 : vector<1x4x4xf32> to vector<4x4xf32>
    %cst_143 = arith.constant dense<0.000000e+00> : vector<256x4xf32>
    %111 = tpu.matmul %108, %110, %cst_143 {dimension_numbers = #tpu.dot_dimension_numbers<[1], [0], [0], [1], [0, 0, 1, 1], [], []>} : vector<256x4xf32>, vector<4x4xf32>, vector<256x4xf32> -> vector<256x4xf32>
    %112 = arith.addf %106, %111 : vector<256x4xf32>
    %c0_144 = arith.constant 0 : index
    %c2_145 = arith.constant 2 : index
    %c1_146 = arith.constant 1 : index
    %c0_147 = arith.constant 0 : index
    %113 = vector.load %arg7[%c0_144, %c2_145, %c1_146, %c0_147] : memref<1x18x18x4xf32, #tpu.memory_space<vmem>>, vector<1x16x16x4xf32>
    %114 = vector.shape_cast %113 : vector<1x16x16x4xf32> to vector<256x4xf32>
    %c7_148 = arith.constant 7 : index
    %c0_149 = arith.constant 0 : index
    %c0_150 = arith.constant 0 : index
    %115 = vector.load %arg4[%c7_148, %c0_149, %c0_150] : memref<9x4x4xf32, #tpu.memory_space<vmem>>, vector<1x4x4xf32>
    %116 = vector.shape_cast %115 : vector<1x4x4xf32> to vector<4x4xf32>
    %cst_151 = arith.constant dense<0.000000e+00> : vector<256x4xf32>
    %117 = tpu.matmul %114, %116, %cst_151 {dimension_numbers = #tpu.dot_dimension_numbers<[1], [0], [0], [1], [0, 0, 1, 1], [], []>} : vector<256x4xf32>, vector<4x4xf32>, vector<256x4xf32> -> vector<256x4xf32>
    %118 = arith.addf %112, %117 : vector<256x4xf32>
    %c0_152 = arith.constant 0 : index
    %c2_153 = arith.constant 2 : index
    %c2_154 = arith.constant 2 : index
    %c0_155 = arith.constant 0 : index
    %119 = vector.load %arg7[%c0_152, %c2_153, %c2_154, %c0_155] : memref<1x18x18x4xf32, #tpu.memory_space<vmem>>, vector<1x16x16x4xf32>
    %120 = vector.shape_cast %119 : vector<1x16x16x4xf32> to vector<256x4xf32>
    %c8_156 = arith.constant 8 : index
    %c0_157 = arith.constant 0 : index
    %c0_158 = arith.constant 0 : index
    %121 = vector.load %arg4[%c8_156, %c0_157, %c0_158] : memref<9x4x4xf32, #tpu.memory_space<vmem>>, vector<1x4x4xf32>
    %122 = vector.shape_cast %121 : vector<1x4x4xf32> to vector<4x4xf32>
    %cst_159 = arith.constant dense<0.000000e+00> : vector<256x4xf32>
    %123 = tpu.matmul %120, %122, %cst_159 {dimension_numbers = #tpu.dot_dimension_numbers<[1], [0], [0], [1], [0, 0, 1, 1], [], []>} : vector<256x4xf32>, vector<4x4xf32>, vector<256x4xf32> -> vector<256x4xf32>
    %124 = arith.addf %118, %123 : vector<256x4xf32>
    %125 = vector.shape_cast %124 : vector<256x4xf32> to vector<1x16x16x4xf32>
    %c0_160 = arith.constant 0 : index
    %c0_161 = arith.constant 0 : index
    %c0_162 = arith.constant 0 : index
    %c0_163 = arith.constant 0 : index
    %126 = vector.load %arg6[%c0_160, %c0_161, %c0_162, %c0_163] : memref<1x16x16x4xf32, #tpu.memory_space<vmem>>, vector<1x16x16x4xf32>
    tpu.vector_store %arg6[%c0_160, %c0_161, %c0_162, %c0_163], %125 {strides = array<i32>} : memref<1x16x16x4xf32, #tpu.memory_space<vmem>>, vector<1x16x16x4xf32>,
    return
  }
  func.func @transform_0(%arg0: i32) -> (i32, i32, i32, i32) {
    %c0_i32 = arith.constant 0 : i32
    %c0_i32_0 = arith.constant 0 : i32
    %c0_i32_1 = arith.constant 0 : i32
    %c0_i32_2 = arith.constant 0 : i32
    return %arg0, %c0_i32, %c0_i32_0, %c0_i32_1 : i32, i32, i32, i32
  }
  func.func @transform_1(%arg0: i32) -> (i32, i32, i32) {
    %c0_i32 = arith.constant 0 : i32
    %c0_i32_0 = arith.constant 0 : i32
    %c0_i32_1 = arith.constant 0 : i32
    %c0_i32_2 = arith.constant 0 : i32
    return %c0_i32, %c0_i32_0, %c0_i32_1 : i32, i32, i32
  }
  func.func @transform_2(%arg0: i32) -> (i32, i32) {
    %c0_i32 = arith.constant 0 : i32
    %c0_i32_0 = arith.constant 0 : i32
    %c0_i32_1 = arith.constant 0 : i32
    return %c0_i32, %c0_i32_0 : i32, i32
  }
  func.func @transform_3(%arg0: i32) -> (i32, i32, i32) {
    %c0_i32 = arith.constant 0 : i32
    %c0_i32_0 = arith.constant 0 : i32
    %c0_i32_1 = arith.constant 0 : i32
    %c0_i32_2 = arith.constant 0 : i32
    return %c0_i32, %c0_i32_0, %c0_i32_1 : i32, i32, i32
  }
  func.func @transform_4(%arg0: i32) -> (i32, i32) {
    %c0_i32 = arith.constant 0 : i32
    %c0_i32_0 = arith.constant 0 : i32
    %c0_i32_1 = arith.constant 0 : i32
    return %c0_i32, %c0_i32_0 : i32, i32
  }
  func.func @transform_5(%arg0: i32) -> (i32, i32, i32, i32) {
    %c0_i32 = arith.constant 0 : i32
    %c0_i32_0 = arith.constant 0 : i32
    %c0_i32_1 = arith.constant 0 : i32
    %c0_i32_2 = arith.constant 0 : i32
    return %arg0, %c0_i32, %c0_i32_0, %c0_i32_1 : i32, i32, i32, i32
  }
}

</mosaic_0001>

<llo_original>
// kernel: tpu_custom_call.1
$region0: #{tpu_custom_call.1}
  #allocation0 [shape = 'u32[]', space=smem, size = 0x4, offset = 0x4, fixed_abs, tag = 'smem constant byte address 0x4 - core index']
  #allocation1 [shape = 'u32[144,128]{1,0:T(1,128)}', space=vmem, size = 0x12000, scoped, tag = 'internal scratch']
  #allocation2 [shape = 'f32[1,18,18,4]{3,2,1,0:T(8,128)}', space=vmem, size = 0x36000, scoped, tag = 'scratch operand']
  %s0 = inlined_call_operand.vmem [shape: f32[2,16,16,4], index: 0, kind: input, shape index: {}]
  %s1 = inlined_call_operand.vmem [shape: f32[9,4,4], index: 1, kind: input, shape index: {}]
  %s2 = inlined_call_operand.vmem [shape: f32[1,4], index: 2, kind: input, shape index: {}]
  %s3 = inlined_call_operand.vmem [shape: f32[9,4,4], index: 3, kind: input, shape index: {}]
  %s4 = inlined_call_operand.vmem [shape: f32[1,4], index: 4, kind: input, shape index: {}]
  %s5 = inlined_call_operand.vmem [shape: f32[2,16,16,4], index: 5, kind: output, shape index: {}]
  %s6 = sld [smem:[#allocation0]]
  $region53: #{tpu_custom_call.1} parent=0
    _
  %s8 = ssub.s32 1, %s6
  %s9 = scalar_select 0, %s8, %s6
  loop: start=0, step=1, limit=4
  $region2: #{tpu_custom_call.1} parent=0 // loop_pre_header
    _
  $region3: #{tpu_custom_call.1} parent=0 // loop_header
    %s11 = sphi 0, %s15
    %p12 = scmp.ge.s32.totalorder %s11, 4
    %s21 = sphi 0, %s23
    %s24 = sphi 0, %s21
    %s25 = sphi 0, %s24
    %s41 = sphi 0, %s25
    %s45 = sphi 0, %s45
    %s47 = sphi 0, %s45
    %s48 = sphi 0, %s47
    %s62 = sphi 0, %s48
    %s66 = sphi 0, %s66
    %s68 = sphi 0, %s66
    %s69 = sphi 0, %s68
    %s83 = sphi 0, %s69
    %s87 = sphi 0, %s87
    %s89 = sphi 0, %s87
    %s90 = sphi 0, %s89
    %s104 = sphi 0, %s90
    %s108 = sphi 0, %s108
    %s110 = sphi 0, %s108
    %s111 = sphi 0, %s110
    %s125 = sphi 0, %s111
    %s131 = sphi 0, %s133
    %s134 = sphi 0, %s131
    %s135 = sphi 0, %s134
    %s151 = sphi 0, %s135
  $region4: #{tpu_custom_call.1} parent=0 // loop_header_branch
    %14 = sbr.rel (%p12) target = $region8
  $region5: #{tpu_custom_call.1} parent=0 // loop_body
    %s16 = ssub.s32 %s11, 1
    %s17 = ssub.s32 %s11, 2
    %s18 = sadd.s32 %s11, 1
    %s19 = ssub.s32 %s11, %s18
    %p20 = scmp.eq.s32.totalorder %s19, 0
    %s22 = sadd.s32 %s21, 1
    %s23 = scalar_select %p20, %s21, %s22
    %p26 = pneg %p20
    %p27 = scmp.eq.s32.totalorder %s11, 1
    %p28 = por %p26, %p27
    %p29 = scmp.ne.s32.totalorder %s21, %s24
    %p30 = scmp.eq.s32.totalorder %s11, 0
    %p31 = por %p29, %p30
    %p32 = scmp.ne.s32.totalorder %s21, %s24
    %p33 = scmp.eq.s32.totalorder %s16, 1
    %p34 = por %p32, %p33
    %p35 = scmp.ne.s32.totalorder %s24, %s25
    %p36 = scmp.eq.s32.totalorder %s16, 0
    %p37 = por %p35, %p36
    %p38 = scmp.ne.s32.totalorder %s24, %s25
    %p39 = scmp.eq.s32.totalorder %s17, 1
    %p40 = por %p38, %p39
    %p42 = scmp.ne.s32.totalorder %s25, %s41
    %p43 = scmp.eq.s32.totalorder %s17, 0
    %p44 = por %p42, %p43
    %s46 = sadd.s32 %s45, 1
    %p49 = scmp.eq.s32.totalorder %s11, 1
    %p50 = scmp.ne.s32.totalorder %s45, %s47
    %p51 = scmp.eq.s32.totalorder %s11, 0
    %p52 = por %p50, %p51
    %p53 = scmp.ne.s32.totalorder %s45, %s47
    %p54 = scmp.eq.s32.totalorder %s16, 1
    %p55 = por %p53, %p54
    %p56 = scmp.ne.s32.totalorder %s47, %s48
    %p57 = scmp.eq.s32.totalorder %s16, 0
    %p58 = por %p56, %p57
    %p59 = scmp.ne.s32.totalorder %s47, %s48
    %p60 = scmp.eq.s32.totalorder %s17, 1
    %p61 = por %p59, %p60
    %p63 = scmp.ne.s32.totalorder %s48, %s62
    %p64 = scmp.eq.s32.totalorder %s17, 0
    %p65 = por %p63, %p64
    %s67 = sadd.s32 %s66, 1
    %p70 = scmp.eq.s32.totalorder %s11, 1
    %p71 = scmp.ne.s32.totalorder %s66, %s68
    %p72 = scmp.eq.s32.totalorder %s11, 0
    %p73 = por %p71, %p72
    %p74 = scmp.ne.s32.totalorder %s66, %s68
    %p75 = scmp.eq.s32.totalorder %s16, 1
    %p76 = por %p74, %p75
    %p77 = scmp.ne.s32.totalorder %s68, %s69
    %p78 = scmp.eq.s32.totalorder %s16, 0
    %p79 = por %p77, %p78
    %p80 = scmp.ne.s32.totalorder %s68, %s69
    %p81 = scmp.eq.s32.totalorder %s17, 1
    %p82 = por %p80, %p81
    %p84 = scmp.ne.s32.totalorder %s69, %s83
    %p85 = scmp.eq.s32.totalorder %s17, 0
    %p86 = por %p84, %p85
    %s88 = sadd.s32 %s87, 1
    %p91 = scmp.eq.s32.totalorder %s11, 1
    %p92 = scmp.ne.s32.totalorder %s87, %s89
    %p93 = scmp.eq.s32.totalorder %s11, 0
    %p94 = por %p92, %p93
    %p95 = scmp.ne.s32.totalorder %s87, %s89
    %p96 = scmp.eq.s32.totalorder %s16, 1
    %p97 = por %p95, %p96
    %p98 = scmp.ne.s32.totalorder %s89, %s90
    %p99 = scmp.eq.s32.totalorder %s16, 0
    %p100 = por %p98, %p99
    %p101 = scmp.ne.s32.totalorder %s89, %s90
    %p102 = scmp.eq.s32.totalorder %s17, 1
    %p103 = por %p101, %p102
    %p105 = scmp.ne.s32.totalorder %s90, %s104
    %p106 = scmp.eq.s32.totalorder %s17, 0
    %p107 = por %p105, %p106
    %s109 = sadd.s32 %s108, 1
    %p112 = scmp.eq.s32.totalorder %s11, 1
    %p113 = scmp.ne.s32.totalorder %s108, %s110
    %p114 = scmp.eq.s32.totalorder %s11, 0
    %p115 = por %p113, %p114
    %p116 = scmp.ne.s32.totalorder %s108, %s110
    %p117 = scmp.eq.s32.totalorder %s16, 1
    %p118 = por %p116, %p117
    %p119 = scmp.ne.s32.totalorder %s110, %s111
    %p120 = scmp.eq.s32.totalorder %s16, 0
    %p121 = por %p119, %p120
    %p122 = scmp.ne.s32.totalorder %s110, %s111
    %p123 = scmp.eq.s32.totalorder %s17, 1
    %p124 = por %p122, %p123
    %p126 = scmp.ne.s32.totalorder %s111, %s125
    %p127 = scmp.eq.s32.totalorder %s17, 0
    %p128 = por %p126, %p127
    %s129 = ssub.s32 %s11, %s18
    %p130 = scmp.eq.s32.totalorder %s129, 0
    %s132 = sadd.s32 %s131, 1
    %s133 = scalar_select %p130, %s131, %s132
    %p136 = pneg %p130
    %p137 = scmp.eq.s32.totalorder %s11, 1
    %p138 = por %p136, %p137
    %p139 = scmp.ne.s32.totalorder %s131, %s134
    %p140 = scmp.eq.s32.totalorder %s11, 0
    %p141 = por %p139, %p140
    %p142 = scmp.ne.s32.totalorder %s131, %s134
    %p143 = scmp.eq.s32.totalorder %s16, 1
    %p144 = por %p142, %p143
    %p145 = scmp.ne.s32.totalorder %s134, %s135
    %p146 = scmp.eq.s32.totalorder %s16, 0
    %p147 = por %p145, %p146
    %p148 = scmp.ne.s32.totalorder %s134, %s135
    %p149 = scmp.eq.s32.totalorder %s17, 1
    %p150 = por %p148, %p149
    %p152 = scmp.ne.s32.totalorder %s135, %s151
    %p153 = scmp.eq.s32.totalorder %s17, 0
    %p154 = por %p152, %p153
    %p155 = scmp.le.s32.totalorder 1, %s11
    %p156 = scmp.lt.s32.totalorder %s11, 3
    %p157 = pnand %p155, %p156
    %p158 = pneg %p157
    // Predicated region
    $region9: #{tpu_custom_call.1} parent=5 // pred_check
      _
    $region10: #{tpu_custom_call.1} parent=5 // pred_check_branch
      %160 = sbr.rel (%p157) target = $region12
    $region11: #{tpu_custom_call.1} parent=5 // pred_region
      %s161 = ssub.s32 %s11, 1
      // Predicated region
      $region13: #{tpu_custom_call.1} parent=11 // pred_check
        %p162 = pneg %p58
      $region14: #{tpu_custom_call.1} parent=11 // pred_check_branch
        %164 = sbr.rel (%p162) target = $region16
      $region15: #{tpu_custom_call.1} parent=11 // pred_region
        _
      $region16: #{tpu_custom_call.1} parent=11 // pred_fallthru
        _
      // Predicated region
      $region17: #{tpu_custom_call.1} parent=11 // pred_check
        %p165 = pneg %p79
      $region18: #{tpu_custom_call.1} parent=11 // pred_check_branch
        %167 = sbr.rel (%p165) target = $region20
      $region19: #{tpu_custom_call.1} parent=11 // pred_region
        _
      $region20: #{tpu_custom_call.1} parent=11 // pred_fallthru
        _
      // Predicated region
      $region21: #{tpu_custom_call.1} parent=11 // pred_check
        %p168 = pneg %p100
      $region22: #{tpu_custom_call.1} parent=11 // pred_check_branch
        %170 = sbr.rel (%p168) target = $region24
      $region23: #{tpu_custom_call.1} parent=11 // pred_region
        _
      $region24: #{tpu_custom_call.1} parent=11 // pred_fallthru
        _
      // Predicated region
      $region25: #{tpu_custom_call.1} parent=11 // pred_check
        %p171 = pneg %p121
      $region26: #{tpu_custom_call.1} parent=11 // pred_check_branch
        %173 = sbr.rel (%p171) target = $region28
      $region27: #{tpu_custom_call.1} parent=11 // pred_region
        _
      $region28: #{tpu_custom_call.1} parent=11 // pred_fallthru
        _
    $region12: #{tpu_custom_call.1} parent=5 // pred_fallthru
      _
    %p174 = scmp.lt.s32.totalorder %s11, 2
    // Predicated region
    $region29: #{tpu_custom_call.1} parent=5 // pred_check
      %p175 = pneg %p174
    $region30: #{tpu_custom_call.1} parent=5 // pred_check_branch
      %177 = sbr.rel (%p175) target = $region32
    $region31: #{tpu_custom_call.1} parent=5 // pred_region
      // Predicated region
      $region33: #{tpu_custom_call.1} parent=31 // pred_check
        %p178 = pneg %p31
      $region34: #{tpu_custom_call.1} parent=31 // pred_check_branch
        %180 = sbr.rel (%p178) target = $region36
      $region35: #{tpu_custom_call.1} parent=31 // pred_region
        %p181 = scmp.lt.s32.totalorder %s11, 1
        %s182 = scalar_select %p181, %s11, 1
        %s183 = smul.addr %s182, 32
        %s184 = smul.addr %s183, 8
        %s185 = scalar_lea.vmem %s0, %s184
      $region36: #{tpu_custom_call.1} parent=31 // pred_fallthru
        _
    $region32: #{tpu_custom_call.1} parent=5 // pred_fallthru
      _
    %p186 = scmp.le.s32.totalorder 1, %s11
    %p187 = scmp.lt.s32.totalorder %s11, 3
    %p188 = pnand %p186, %p187
    %p189 = pneg %p188
    // Predicated region
    $region37: #{tpu_custom_call.1} parent=5 // pred_check
      _
    $region38: #{tpu_custom_call.1} parent=5 // pred_check_branch
      %191 = sbr.rel (%p188) target = $region40
    $region39: #{tpu_custom_call.1} parent=5 // pred_region
      %s192 = ssub.s32 %s11, 1
      %p193 = scmp.lt.s32.totalorder %s16, 1
      %s194 = scalar_select %p193, %s16, 1
      %s195 = smul.addr %s194, 32
      %s196 = smul.addr %s195, 8
      %s197 = scalar_lea.vmem %s0, %s196
      %p198 = pneg %p37
      %p199 = pneg %p34
      %p200 = pneg %p58
      %p201 = pneg %p55
      %p202 = pneg %p79
      %p203 = pneg %p76
      %p204 = pneg %p100
      %p205 = pneg %p97
      %p206 = pneg %p121
      %p207 = pneg %p118
      %p208 = pneg %p147
      %p209 = pneg %p144
      %p210 = scmp.lt.s32.totalorder %s16, 1
      %s211 = scalar_select %p210, %s16, 1
      %s212 = smul.addr %s211, 32
      %s213 = smul.addr %s212, 8
      %s214 = scalar_lea.vmem %s5, %s213
      %p215 = scmp.lt.s32.totalorder %s16, 1
      %s216 = scalar_select %p215, %s16, 1
      %s217 = smul.addr %s216, 32
      %s218 = smul.addr %s217, 8
      %s219 = scalar_lea.vmem %s0, %s218
      %p220 = scmp.lt.s32.totalorder %s16, 1
      %s221 = scalar_select %p220, %s16, 1
      %s222 = smul.addr %s221, 32
      %s223 = smul.addr %s222, 8
      %s224 = scalar_lea.vmem %s5, %s223
      %vm225 = vcmask 31744
      %226 = vst.msk [vmem:[#allocation2] sm:$0xff] %vm225, 0.0
      %227 = vst.msk [vmem:[#allocation2 + $0x8] sm:$0xff] %vm225, 0.0
      %vm228 = vcmask 25600
      %229 = vst.msk [vmem:[#allocation2 + $0x10] sm:$0x3] %vm228, 0.0
      %230 = vst.msk [vmem:[#allocation2 + $0x18] sm:$0xff] %vm225, 0.0
      %231 = vst.msk [vmem:[#allocation2 + $0x20] sm:$0xff] %vm225, 0.0
      %232 = vst.msk [vmem:[#allocation2 + $0x28] sm:$0x3] %vm228, 0.0
      %233 = vst.msk [vmem:[#allocation2 + $0x30] sm:$0xff] %vm225, 0.0
      %234 = vst.msk [vmem:[#allocation2 + $0x38] sm:$0xff] %vm225, 0.0
      %235 = vst.msk [vmem:[#allocation2 + $0x40] sm:$0x3] %vm228, 0.0
      %236 = vst.msk [vmem:[#allocation2 + $0x48] sm:$0xff] %vm225, 0.0
      %237 = vst.msk [vmem:[#allocation2 + $0x50] sm:$0xff] %vm225, 0.0
      %238 = vst.msk [vmem:[#allocation2 + $0x58] sm:$0x3] %vm228, 0.0
      %239 = vst.msk [vmem:[#allocation2 + $0x60] sm:$0xff] %vm225, 0.0
      %240 = vst.msk [vmem:[#allocation2 + $0x68] sm:$0xff] %vm225, 0.0
      %241 = vst.msk [vmem:[#allocation2 + $0x70] sm:$0x3] %vm228, 0.0
      %242 = vst.msk [vmem:[#allocation2 + $0x78] sm:$0xff] %vm225, 0.0
      %243 = vst.msk [vmem:[#allocation2 + $0x80] sm:$0xff] %vm225, 0.0
      %244 = vst.msk [vmem:[#allocation2 + $0x88] sm:$0x3] %vm228, 0.0
      %245 = vst.msk [vmem:[#allocation2 + $0x90] sm:$0xff] %vm225, 0.0
      %246 = vst.msk [vmem:[#allocation2 + $0x98] sm:$0xff] %vm225, 0.0
      %247 = vst.msk [vmem:[#allocation2 + $0xa0] sm:$0x3] %vm228, 0.0
      %248 = vst.msk [vmem:[#allocation2 + $0xa8] sm:$0xff] %vm225, 0.0
      %249 = vst.msk [vmem:[#allocation2 + $0xb0] sm:$0xff] %vm225, 0.0
      %250 = vst.msk [vmem:[#allocation2 + $0xb8] sm:$0x3] %vm228, 0.0
      %251 = vst.msk [vmem:[#allocation2 + $0xc0] sm:$0xff] %vm225, 0.0
      %252 = vst.msk [vmem:[#allocation2 + $0xc8] sm:$0xff] %vm225, 0.0
      %253 = vst.msk [vmem:[#allocation2 + $0xd0] sm:$0x3] %vm228, 0.0
      %254 = vst.msk [vmem:[#allocation2 + $0xd8] sm:$0xff] %vm225, 0.0
      %255 = vst.msk [vmem:[#allocation2 + $0xe0] sm:$0xff] %vm225, 0.0
      %256 = vst.msk [vmem:[#allocation2 + $0xe8] sm:$0x3] %vm228, 0.0
      %257 = vst.msk [vmem:[#allocation2 + $0xf0] sm:$0xff] %vm225, 0.0
      %258 = vst.msk [vmem:[#allocation2 + $0xf8] sm:$0xff] %vm225, 0.0
      %259 = vst.msk [vmem:[#allocation2 + $0x100] sm:$0x3] %vm228, 0.0
      %260 = vst.msk [vmem:[#allocation2 + $0x108] sm:$0xff] %vm225, 0.0
      %261 = vst.msk [vmem:[#allocation2 + $0x110] sm:$0xff] %vm225, 0.0
      %262 = vst.msk [vmem:[#allocation2 + $0x118] sm:$0x3] %vm228, 0.0
      %263 = vst.msk [vmem:[#allocation2 + $0x120] sm:$0xff] %vm225, 0.0
      %264 = vst.msk [vmem:[#allocation2 + $0x128] sm:$0xff] %vm225, 0.0
      %265 = vst.msk [vmem:[#allocation2 + $0x130] sm:$0x3] %vm228, 0.0
      %266 = vst.msk [vmem:[#allocation2 + $0x138] sm:$0xff] %vm225, 0.0
      %267 = vst.msk [vmem:[#allocation2 + $0x140] sm:$0xff] %vm225, 0.0
      %268 = vst.msk [vmem:[#allocation2 + $0x148] sm:$0x3] %vm228, 0.0
      %269 = vst.msk [vmem:[#allocation2 + $0x150] sm:$0xff] %vm225, 0.0
      %270 = vst.msk [vmem:[#allocation2 + $0x158] sm:$0xff] %vm225, 0.0
      %271 = vst.msk [vmem:[#allocation2 + $0x160] sm:$0x3] %vm228, 0.0
      %272 = vst.msk [vmem:[#allocation2 + $0x168] sm:$0xff] %vm225, 0.0
      %273 = vst.msk [vmem:[#allocation2 + $0x170] sm:$0xff] %vm225, 0.0
      %274 = vst.msk [vmem:[#allocation2 + $0x178] sm:$0x3] %vm228, 0.0
      %275 = vst.msk [vmem:[#allocation2 + $0x180] sm:$0xff] %vm225, 0.0
      %276 = vst.msk [vmem:[#allocation2 + $0x188] sm:$0xff] %vm225, 0.0
      %277 = vst.msk [vmem:[#allocation2 + $0x190] sm:$0x3] %vm228, 0.0
      %278 = vst.msk [vmem:[#allocation2 + $0x198] sm:$0xff] %vm225, 0.0
      %279 = vst.msk [vmem:[#allocation2 + $0x1a0] sm:$0xff] %vm225, 0.0
      %280 = vst.msk [vmem:[#allocation2 + $0x1a8] sm:$0x3] %vm228, 0.0
      %v281 = vld [vmem:[%s219] sm:$0xff]
      %v282 = vld [vmem:[%s219 + $0x8] sm:$0xff]
      %v283 = vld [vmem:[%s219 + $0x10] sm:$0xff]
      %v284 = vld [vmem:[%s219 + $0x18] sm:$0xff]
      %v285 = vld [vmem:[%s219 + $0x20] sm:$0xff]
      %v286 = vld [vmem:[%s219 + $0x28] sm:$0xff]
      %v287 = vld [vmem:[%s219 + $0x30] sm:$0xff]
      %v288 = vld [vmem:[%s219 + $0x38] sm:$0xff]
      %v289 = vld [vmem:[%s219 + $0x40] sm:$0xff]
      %v290 = vld [vmem:[%s219 + $0x48] sm:$0xff]
      %v291 = vld [vmem:[%s219 + $0x50] sm:$0xff]
      %v292 = vld [vmem:[%s219 + $0x58] sm:$0xff]
      %v293 = vld [vmem:[%s219 + $0x60] sm:$0xff]
      %v294 = vld [vmem:[%s219 + $0x68] sm:$0xff]
      %v295 = vld [vmem:[%s219 + $0x70] sm:$0xff]
      %v296 = vld [vmem:[%s219 + $0x78] sm:$0xff]
      %v297 = vld [vmem:[%s219 + $0x80] sm:$0xff]
      %v298 = vld [vmem:[%s219 + $0x88] sm:$0xff]
      %v299 = vld [vmem:[%s219 + $0x90] sm:$0xff]
      %v300 = vld [vmem:[%s219 + $0x98] sm:$0xff]
      %v301 = vld [vmem:[%s219 + $0xa0] sm:$0xff]
      %v302 = vld [vmem:[%s219 + $0xa8] sm:$0xff]
      %v303 = vld [vmem:[%s219 + $0xb0] sm:$0xff]
      %v304 = vld [vmem:[%s219 + $0xb8] sm:$0xff]
      %v305 = vld [vmem:[%s219 + $0xc0] sm:$0xff]
      %v306 = vld [vmem:[%s219 + $0xc8] sm:$0xff]
      %v307 = vld [vmem:[%s219 + $0xd0] sm:$0xff]
      %v308 = vld [vmem:[%s219 + $0xd8] sm:$0xff]
      %v309 = vld [vmem:[%s219 + $0xe0] sm:$0xff]
      %v310 = vld [vmem:[%s219 + $0xe8] sm:$0xff]
      %v311 = vld [vmem:[%s219 + $0xf0] sm:$0xff]
      %v312 = vld [vmem:[%s219 + $0xf8] sm:$0xff]
      %s313 = scalar_lea.vmem [#allocation2], 24
      %314 = vst.msk [vmem:[%s313 + $0x1] sm:$0xff] %vm225, %v281
      %315 = vst.msk [vmem:[%s313 + $0x9] sm:$0xff] %vm225, %v282
      %316 = vst.msk [vmem:[%s313 + $0x19] sm:$0xff] %vm225, %v283
      %317 = vst.msk [vmem:[%s313 + $0x21] sm:$0xff] %vm225, %v284
      %318 = vst.msk [vmem:[%s313 + $0x31] sm:$0xff] %vm225, %v285
      %319 = vst.msk [vmem:[%s313 + $0x39] sm:$0xff] %vm225, %v286
      %320 = vst.msk [vmem:[%s313 + $0x49] sm:$0xff] %vm225, %v287
      %321 = vst.msk [vmem:[%s313 + $0x51] sm:$0xff] %vm225, %v288
      %322 = vst.msk [vmem:[%s313 + $0x61] sm:$0xff] %vm225, %v289
      %323 = vst.msk [vmem:[%s313 + $0x69] sm:$0xff] %vm225, %v290
      %324 = vst.msk [vmem:[%s313 + $0x79] sm:$0xff] %vm225, %v291
      %325 = vst.msk [vmem:[%s313 + $0x81] sm:$0xff] %vm225, %v292
      %326 = vst.msk [vmem:[%s313 + $0x91] sm:$0xff] %vm225, %v293
      %327 = vst.msk [vmem:[%s313 + $0x99] sm:$0xff] %vm225, %v294
      %328 = vst.msk [vmem:[%s313 + $0xa9] sm:$0xff] %vm225, %v295
      %329 = vst.msk [vmem:[%s313 + $0xb1] sm:$0xff] %vm225, %v296
      %330 = vst.msk [vmem:[%s313 + $0xc1] sm:$0xff] %vm225, %v297
      %331 = vst.msk [vmem:[%s313 + $0xc9] sm:$0xff] %vm225, %v298
      %332 = vst.msk [vmem:[%s313 + $0xd9] sm:$0xff] %vm225, %v299
      %333 = vst.msk [vmem:[%s313 + $0xe1] sm:$0xff] %vm225, %v300
      %334 = vst.msk [vmem:[%s313 + $0xf1] sm:$0xff] %vm225, %v301
      %335 = vst.msk [vmem:[%s313 + $0xf9] sm:$0xff] %vm225, %v302
      %336 = vst.msk [vmem:[%s313 + $0x109] sm:$0xff] %vm225, %v303
      %337 = vst.msk [vmem:[%s313 + $0x111] sm:$0xff] %vm225, %v304
      %338 = vst.msk [vmem:[%s313 + $0x121] sm:$0xff] %vm225, %v305
      %339 = vst.msk [vmem:[%s313 + $0x129] sm:$0xff] %vm225, %v306
      %340 = vst.msk [vmem:[%s313 + $0x139] sm:$0xff] %vm225, %v307
      %341 = vst.msk [vmem:[%s313 + $0x141] sm:$0xff] %vm225, %v308
      %342 = vst.msk [vmem:[%s313 + $0x151] sm:$0xff] %vm225, %v309
      %343 = vst.msk [vmem:[%s313 + $0x159] sm:$0xff] %vm225, %v310
      %344 = vst.msk [vmem:[%s313 + $0x169] sm:$0xff] %vm225, %v311
      %345 = vst.msk [vmem:[%s313 + $0x171] sm:$0xff] %vm225, %v312
      %v346 = vld [vmem:[%s2] sm:$0x1]
      %v348 = vlaneseq
      %v349 = vshrl.u32 %v348, 7
      %v350 = vsub.s32 0, %v349
      %v351 = vrot.slane %v346, %v350
      %v353 = vld [vmem:[#allocation2] sm:$0xff]
      %v354 = vld [vmem:[#allocation2 + $0x8] sm:$0xff]
      %v355 = vld [vmem:[#allocation2 + $0x18] sm:$0xff]
      %v356 = vld [vmem:[#allocation2 + $0x20] sm:$0xff]
      %v357 = vld [vmem:[#allocation2 + $0x30] sm:$0xff]
      %v358 = vld [vmem:[#allocation2 + $0x38] sm:$0xff]
      %v359 = vld [vmem:[#allocation2 + $0x48] sm:$0xff]
      %v360 = vld [vmem:[#allocation2 + $0x50] sm:$0xff]
      %v361 = vld [vmem:[#allocation2 + $0x60] sm:$0xff]
      %v362 = vld [vmem:[#allocation2 + $0x68] sm:$0xff]
      %v363 = vld [vmem:[#allocation2 + $0x78] sm:$0xff]
      %v364 = vld [vmem:[#allocation2 + $0x80] sm:$0xff]
      %v365 = vld [vmem:[#allocation2 + $0x90] sm:$0xff]
      %v366 = vld [vmem:[#allocation2 + $0x98] sm:$0xff]
      %v367 = vld [vmem:[#allocation2 + $0xa8] sm:$0xff]
      %v368 = vld [vmem:[#allocation2 + $0xb0] sm:$0xff]
      %v369 = vld [vmem:[#allocation2 + $0xc0] sm:$0xff]
      %v370 = vld [vmem:[#allocation2 + $0xc8] sm:$0xff]
      %v371 = vld [vmem:[#allocation2 + $0xd8] sm:$0xff]
      %v372 = vld [vmem:[#allocation2 + $0xe0] sm:$0xff]
      %v373 = vld [vmem:[#allocation2 + $0xf0] sm:$0xff]
      %v374 = vld [vmem:[#allocation2 + $0xf8] sm:$0xff]
      %v375 = vld [vmem:[#allocation2 + $0x108] sm:$0xff]
      %v376 = vld [vmem:[#allocation2 + $0x110] sm:$0xff]
      %v377 = vld [vmem:[#allocation2 + $0x120] sm:$0xff]
      %v378 = vld [vmem:[#allocation2 + $0x128] sm:$0xff]
      %v379 = vld [vmem:[#allocation2 + $0x138] sm:$0xff]
      %v380 = vld [vmem:[#allocation2 + $0x140] sm:$0xff]
      %v381 = vld [vmem:[#allocation2 + $0x150] sm:$0xff]
      %v382 = vld [vmem:[#allocation2 + $0x158] sm:$0xff]
      %v383 = vld [vmem:[#allocation2 + $0x168] sm:$0xff]
      %v384 = vld [vmem:[#allocation2 + $0x170] sm:$0xff]
      %v385 = vld [vmem:[%s1] sm:$0xf]
      %v387 = vsel %vm225, %v353, 0
      %v390 = vsel %vm225, %v354, 0
      %v393 = vsel %vm225, %v355, 0
      %v396 = vsel %vm225, %v356, 0
      %v399 = vsel %vm225, %v357, 0
      %v402 = vsel %vm225, %v358, 0
      %v405 = vsel %vm225, %v359, 0
      %v408 = vsel %vm225, %v360, 0
      %v411 = vsel %vm225, %v361, 0
      %v414 = vsel %vm225, %v362, 0
      %v417 = vsel %vm225, %v363, 0
      %v420 = vsel %vm225, %v364, 0
      %v423 = vsel %vm225, %v365, 0
      %v426 = vsel %vm225, %v366, 0
      %v429 = vsel %vm225, %v367, 0
      %v432 = vsel %vm225, %v368, 0
      %v435 = vsel %vm225, %v369, 0
      %v438 = vsel %vm225, %v370, 0
      %v441 = vsel %vm225, %v371, 0
      %v444 = vsel %vm225, %v372, 0
      %v447 = vsel %vm225, %v373, 0
      %v450 = vsel %vm225, %v374, 0
      %v453 = vsel %vm225, %v375, 0
      %v456 = vsel %vm225, %v376, 0
      %v459 = vsel %vm225, %v377, 0
      %v462 = vsel %vm225, %v378, 0
      %v465 = vsel %vm225, %v379, 0
      %v468 = vsel %vm225, %v380, 0
      %v471 = vsel %vm225, %v381, 0
      %v474 = vsel %vm225, %v382, 0
      %v477 = vsel %vm225, %v383, 0
      %v480 = vsel %vm225, %v384, 0
      %vm482 = vcmask 1043456
      %v484 = vsel %vm482, %v385, 0
      %486 = vmatprep.subr.mxu0 0.0
      %487 = vmatpush1.msra.mxu0 %v484
      %488 = vmatprep.subr.mxu0 0.0
      %489 = vmatpush1.msra.mxu0 0.0
      %490 = vmatprep.subr.mxu0 0.0
      %491 = vmatpush1.msra.mxu0 0.0
      %492 = vmatprep.subr.mxu0 0.0
      %493 = vmatpush1.msra.mxu0 0.0
      %494 = vmatprep.subr.mxu0 0.0
      %495 = vmatpush1.msra.mxu0 0.0
      %496 = vmatprep.subr.mxu0 0.0
      %497 = vmatpush1.msra.mxu0 0.0
      %498 = vmatprep.subr.mxu0 0.0
      %499 = vmatpush1.msra.mxu0 0.0
      %500 = vmatprep.subr.mxu0 0.0
      %501 = vmatpush1.msra.mxu0 0.0
      %502 = vmatprep.subr.mxu0 0.0
      %503 = vmatpush1.msra.mxu0 0.0
      %504 = vmatprep.subr.mxu0 0.0
      %505 = vmatpush1.msra.mxu0 0.0
      %506 = vmatprep.subr.mxu0 0.0
      %507 = vmatpush1.msra.mxu0 0.0
      %508 = vmatprep.subr.mxu0 0.0
      %509 = vmatpush1.msra.mxu0 0.0
      %510 = vmatprep.subr.mxu0 0.0
      %511 = vmatpush1.msra.mxu0 0.0
      %512 = vmatprep.subr.mxu0 0.0
      %513 = vmatpush1.msra.mxu0 0.0
      %514 = vmatprep.subr.mxu0 0.0
      %515 = vmatpush1.msra.mxu0 0.0
      %516 = vmatprep.subr.mxu0 0.0
      %517 = vmatpush1.msra.mxu0 0.0
      %518 = vmatprep.subr.mxu0 0.0
      %519 = vmatpush1.msra.mxu0 0.0
      %520 = vmatprep.subr.mxu0 0.0
      %521 = vmatpush1.msra.mxu0 0.0
      %522 = vmatprep.subr.mxu0 0.0
      %523 = vmatpush1.msra.mxu0 0.0
      %524 = vmatprep.subr.mxu0 0.0
      %525 = vmatpush1.msra.mxu0 0.0
      %526 = vmatprep.subr.mxu0 0.0
      %527 = vmatpush1.msra.mxu0 0.0
      %528 = vmatprep.subr.mxu0 0.0
      %529 = vmatpush1.msra.mxu0 0.0
      %530 = vmatprep.subr.mxu0 0.0
      %531 = vmatpush1.msra.mxu0 0.0
      %532 = vmatprep.subr.mxu0 0.0
      %533 = vmatpush1.msra.mxu0 0.0
      %534 = vmatprep.subr.mxu0 0.0
      %535 = vmatpush1.msra.mxu0 0.0
      %536 = vmatprep.subr.mxu0 0.0
      %537 = vmatpush1.msra.mxu0 0.0
      %538 = vmatprep.subr.mxu0 0.0
      %539 = vmatpush1.msra.mxu0 0.0
      %540 = vmatprep.subr.mxu0 0.0
      %541 = vmatpush1.msra.mxu0 0.0
      %542 = vmatprep.subr.mxu0 0.0
      %543 = vmatpush1.msra.mxu0 0.0
      %544 = vmatprep.subr.mxu0 0.0
      %545 = vmatpush1.msra.mxu0 0.0
      %546 = vmatprep.subr.mxu0 0.0
      %547 = vmatpush1.msra.mxu0 0.0
      %548 = vmatprep.subr.mxu0 0.0
      %549 = vmatpush1.msra.mxu0 0.0
      %550 = vmatprep.mubr.f32.mxu0 0.0
      %551 = vmatmul.mubr.f32.gmra.mrb[0].mxu0 %v387
      %v552 = vpop.f32.mrb[0].mxu0
      %v553 = vadd.f32 0.0, %v552
      %v554 = vpop.f32.mrb[0].mxu0
      %555 = vmatprep.mubr.f32.mxu0 0.0
      %556 = vmatmul.mubr.f32.gmra.mrb[0].mxu0 %v390
      %v557 = vpop.f32.mrb[0].mxu0
      %v558 = vadd.f32 0.0, %v557
      %v559 = vpop.f32.mrb[0].mxu0
      %560 = vmatprep.mubr.f32.mxu0 0.0
      %561 = vmatmul.mubr.f32.gmra.mrb[0].mxu0 %v393
      %v562 = vpop.f32.mrb[0].mxu0
      %v563 = vadd.f32 0.0, %v562
      %v564 = vpop.f32.mrb[0].mxu0
      %565 = vmatprep.mubr.f32.mxu0 0.0
      %566 = vmatmul.mubr.f32.gmra.mrb[0].mxu0 %v396
      %v567 = vpop.f32.mrb[0].mxu0
      %v568 = vadd.f32 0.0, %v567
      %v569 = vpop.f32.mrb[0].mxu0
      %570 = vmatprep.mubr.f32.mxu0 0.0
      %571 = vmatmul.mubr.f32.gmra.mrb[0].mxu0 %v399
      %v572 = vpop.f32.mrb[0].mxu0
      %v573 = vadd.f32 0.0, %v572
      %v574 = vpop.f32.mrb[0].mxu0
      %575 = vmatprep.mubr.f32.mxu0 0.0
      %576 = vmatmul.mubr.f32.gmra.mrb[0].mxu0 %v402
      %v577 = vpop.f32.mrb[0].mxu0
      %v578 = vadd.f32 0.0, %v577
      %v579 = vpop.f32.mrb[0].mxu0
      %580 = vmatprep.mubr.f32.mxu0 0.0
      %581 = vmatmul.mubr.f32.gmra.mrb[0].mxu0 %v405
      %v582 = vpop.f32.mrb[0].mxu0
      %v583 = vadd.f32 0.0, %v582
      %v584 = vpop.f32.mrb[0].mxu0
      %585 = vmatprep.mubr.f32.mxu0 0.0
      %586 = vmatmul.mubr.f32.gmra.mrb[0].mxu0 %v408
      %v587 = vpop.f32.mrb[0].mxu0
      %v588 = vadd.f32 0.0, %v587
      %v589 = vpop.f32.mrb[0].mxu0
      %590 = vmatprep.mubr.f32.mxu0 0.0
      %591 = vmatmul.mubr.f32.gmra.mrb[0].mxu0 %v411
      %v592 = vpop.f32.mrb[0].mxu0
      %v593 = vadd.f32 0.0, %v592
      %v594 = vpop.f32.mrb[0].mxu0
      %595 = vmatprep.mubr.f32.mxu0 0.0
      %596 = vmatmul.mubr.f32.gmra.mrb[0].mxu0 %v414
      %v597 = vpop.f32.mrb[0].mxu0
      %v598 = vadd.f32 0.0, %v597
      %v599 = vpop.f32.mrb[0].mxu0
      %600 = vmatprep.mubr.f32.mxu0 0.0
      %601 = vmatmul.mubr.f32.gmra.mrb[0].mxu0 %v417
      %v602 = vpop.f32.mrb[0].mxu0
      %v603 = vadd.f32 0.0, %v602
      %v604 = vpop.f32.mrb[0].mxu0
      %605 = vmatprep.mubr.f32.mxu0 0.0
      %606 = vmatmul.mubr.f32.gmra.mrb[0].mxu0 %v420
      %v607 = vpop.f32.mrb[0].mxu0
      %v608 = vadd.f32 0.0, %v607
      %v609 = vpop.f32.mrb[0].mxu0
      %610 = vmatprep.mubr.f32.mxu0 0.0
      %611 = vmatmul.mubr.f32.gmra.mrb[0].mxu0 %v423
      %v612 = vpop.f32.mrb[0].mxu0
      %v613 = vadd.f32 0.0, %v612
      %v614 = vpop.f32.mrb[0].mxu0
      %615 = vmatprep.mubr.f32.mxu0 0.0
      %616 = vmatmul.mubr.f32.gmra.mrb[0].mxu0 %v426
      %v617 = vpop.f32.mrb[0].mxu0
      %v618 = vadd.f32 0.0, %v617
      %v619 = vpop.f32.mrb[0].mxu0
      %620 = vmatprep.mubr.f32.mxu0 0.0
      %621 = vmatmul.mubr.f32.gmra.mrb[0].mxu0 %v429
      %v622 = vpop.f32.mrb[0].mxu0
      %v623 = vadd.f32 0.0, %v622
      %v624 = vpop.f32.mrb[0].mxu0
      %625 = vmatprep.mubr.f32.mxu0 0.0
      %626 = vmatmul.mubr.f32.gmra.mrb[0].mxu0 %v432
      %v627 = vpop.f32.mrb[0].mxu0
      %v628 = vadd.f32 0.0, %v627
      %v629 = vpop.f32.mrb[0].mxu0
      %630 = vmatprep.mubr.f32.mxu0 0.0
      %631 = vmatmul.mubr.f32.gmra.mrb[0].mxu0 %v435
      %v632 = vpop.f32.mrb[0].mxu0
      %v633 = vadd.f32 0.0, %v632
      %v634 = vpop.f32.mrb[0].mxu0
      %635 = vmatprep.mubr.f32.mxu0 0.0
      %636 = vmatmul.mubr.f32.gmra.mrb[0].mxu0 %v438
      %v637 = vpop.f32.mrb[0].mxu0
      %v638 = vadd.f32 0.0, %v637
      %v639 = vpop.f32.mrb[0].mxu0
      %640 = vmatprep.mubr.f32.mxu0 0.0
      %641 = vmatmul.mubr.f32.gmra.mrb[0].mxu0 %v441
      %v642 = vpop.f32.mrb[0].mxu0
      %v643 = vadd.f32 0.0, %v642
      %v644 = vpop.f32.mrb[0].mxu0
      %645 = vmatprep.mubr.f32.mxu0 0.0
      %646 = vmatmul.mubr.f32.gmra.mrb[0].mxu0 %v444
      %v647 = vpop.f32.mrb[0].mxu0
      %v648 = vadd.f32 0.0, %v647
      %v649 = vpop.f32.mrb[0].mxu0
      %650 = vmatprep.mubr.f32.mxu0 0.0
      %651 = vmatmul.mubr.f32.gmra.mrb[0].mxu0 %v447
      %v652 = vpop.f32.mrb[0].mxu0
      %v653 = vadd.f32 0.0, %v652
      %v654 = vpop.f32.mrb[0].mxu0
      %655 = vmatprep.mubr.f32.mxu0 0.0
      %656 = vmatmul.mubr.f32.gmra.mrb[0].mxu0 %v450
      %v657 = vpop.f32.mrb[0].mxu0
      %v658 = vadd.f32 0.0, %v657
      %v659 = vpop.f32.mrb[0].mxu0
      %660 = vmatprep.mubr.f32.mxu0 0.0
      %661 = vmatmul.mubr.f32.gmra.mrb[0].mxu0 %v453
      %v662 = vpop.f32.mrb[0].mxu0
      %v663 = vadd.f32 0.0, %v662
      %v664 = vpop.f32.mrb[0].mxu0
      %665 = vmatprep.mubr.f32.mxu0 0.0
      %666 = vmatmul.mubr.f32.gmra.mrb[0].mxu0 %v456
      %v667 = vpop.f32.mrb[0].mxu0
      %v668 = vadd.f32 0.0, %v667
      %v669 = vpop.f32.mrb[0].mxu0
      %670 = vmatprep.mubr.f32.mxu0 0.0
      %671 = vmatmul.mubr.f32.gmra.mrb[0].mxu0 %v459
      %v672 = vpop.f32.mrb[0].mxu0
      %v673 = vadd.f32 0.0, %v672
      %v674 = vpop.f32.mrb[0].mxu0
      %675 = vmatprep.mubr.f32.mxu0 0.0
      %676 = vmatmul.mubr.f32.gmra.mrb[0].mxu0 %v462
      %v677 = vpop.f32.mrb[0].mxu0
      %v678 = vadd.f32 0.0, %v677
      %v679 = vpop.f32.mrb[0].mxu0
      %680 = vmatprep.mubr.f32.mxu0 0.0
      %681 = vmatmul.mubr.f32.gmra.mrb[0].mxu0 %v465
      %v682 = vpop.f32.mrb[0].mxu0
      %v683 = vadd.f32 0.0, %v682
      %v684 = vpop.f32.mrb[0].mxu0
      %685 = vmatprep.mubr.f32.mxu0 0.0
      %686 = vmatmul.mubr.f32.gmra.mrb[0].mxu0 %v468
      %v687 = vpop.f32.mrb[0].mxu0
      %v688 = vadd.f32 0.0, %v687
      %v689 = vpop.f32.mrb[0].mxu0
      %690 = vmatprep.mubr.f32.mxu0 0.0
      %691 = vmatmul.mubr.f32.gmra.mrb[0].mxu0 %v471
      %v692 = vpop.f32.mrb[0].mxu0
      %v693 = vadd.f32 0.0, %v692
      %v694 = vpop.f32.mrb[0].mxu0
      %695 = vmatprep.mubr.f32.mxu0 0.0
      %696 = vmatmul.mubr.f32.gmra.mrb[0].mxu0 %v474
      %v697 = vpop.f32.mrb[0].mxu0
      %v698 = vadd.f32 0.0, %v697
      %v699 = vpop.f32.mrb[0].mxu0
      %700 = vmatprep.mubr.f32.mxu0 0.0
      %701 = vmatmul.mubr.f32.gmra.mrb[0].mxu0 %v477
      %v702 = vpop.f32.mrb[0].mxu0
      %v703 = vadd.f32 0.0, %v702
      %v704 = vpop.f32.mrb[0].mxu0
      %705 = vmatprep.mubr.f32.mxu0 0.0
      %706 = vmatmul.mubr.f32.gmra.mrb[0].mxu0 %v480
      %v707 = vpop.f32.mrb[0].mxu0
      %v708 = vadd.f32 0.0, %v707
      %v709 = vpop.f32.mrb[0].mxu0
      %710 = vdwg.mxu0
      %v711 = vadd.f32 %v351, %v553
      %v712 = vadd.f32 %v351, %v558
      %v713 = vadd.f32 %v351, %v563
      %v714 = vadd.f32 %v351, %v568
      %v715 = vadd.f32 %v351, %v573
      %v716 = vadd.f32 %v351, %v578
      %v717 = vadd.f32 %v351, %v583
      %v718 = vadd.f32 %v351, %v588
      %v719 = vadd.f32 %v351, %v593
      %v720 = vadd.f32 %v351, %v598
      %v721 = vadd.f32 %v351, %v603
      %v722 = vadd.f32 %v351, %v608
      %v723 = vadd.f32 %v351, %v613
      %v724 = vadd.f32 %v351, %v618
      %v725 = vadd.f32 %v351, %v623
      %v726 = vadd.f32 %v351, %v628
      %v727 = vadd.f32 %v351, %v633
      %v728 = vadd.f32 %v351, %v638
      %v729 = vadd.f32 %v351, %v643
      %v730 = vadd.f32 %v351, %v648
      %v731 = vadd.f32 %v351, %v653
      %v732 = vadd.f32 %v351, %v658
      %v733 = vadd.f32 %v351, %v663
      %v734 = vadd.f32 %v351, %v668
      %v735 = vadd.f32 %v351, %v673
      %v736 = vadd.f32 %v351, %v678
      %v737 = vadd.f32 %v351, %v683
      %v738 = vadd.f32 %v351, %v688
      %v739 = vadd.f32 %v351, %v693
      %v740 = vadd.f32 %v351, %v698
      %v741 = vadd.f32 %v351, %v703
      %v742 = vadd.f32 %v351, %v708
      %v743 = vld [vmem:[#allocation2 + $0x1] sm:$0xff]
      %v744 = vld [vmem:[#allocation2 + $0x9] sm:$0xff]
      %v745 = vld [vmem:[#allocation2 + $0x19] sm:$0xff]
      %v746 = vld [vmem:[#allocation2 + $0x21] sm:$0xff]
      %v747 = vld [vmem:[#allocation2 + $0x31] sm:$0xff]
      %v748 = vld [vmem:[#allocation2 + $0x39] sm:$0xff]
      %v749 = vld [vmem:[#allocation2 + $0x49] sm:$0xff]
      %v750 = vld [vmem:[#allocation2 + $0x51] sm:$0xff]
      %v751 = vld [vmem:[#allocation2 + $0x61] sm:$0xff]
      %v752 = vld [vmem:[#allocation2 + $0x69] sm:$0xff]
      %v753 = vld [vmem:[#allocation2 + $0x79] sm:$0xff]
      %v754 = vld [vmem:[#allocation2 + $0x81] sm:$0xff]
      %v755 = vld [vmem:[#allocation2 + $0x91] sm:$0xff]
      %v756 = vld [vmem:[#allocation2 + $0x99] sm:$0xff]
      %v757 = vld [vmem:[#allocation2 + $0xa9] sm:$0xff]
      %v758 = vld [vmem:[#allocation2 + $0xb1] sm:$0xff]
      %v759 = vld [vmem:[#allocation2 + $0xc1] sm:$0xff]
      %v760 = vld [vmem:[#allocation2 + $0xc9] sm:$0xff]
      %v761 = vld [vmem:[#allocation2 + $0xd9] sm:$0xff]
      %v762 = vld [vmem:[#allocation2 + $0xe1] sm:$0xff]
      %v763 = vld [vmem:[#allocation2 + $0xf1] sm:$0xff]
      %v764 = vld [vmem:[#allocation2 + $0xf9] sm:$0xff]
      %v765 = vld [vmem:[#allocation2 + $0x109] sm:$0xff]
      %v766 = vld [vmem:[#allocation2 + $0x111] sm:$0xff]
      %v767 = vld [vmem:[#allocation2 + $0x121] sm:$0xff]
      %v768 = vld [vmem:[#allocation2 + $0x129] sm:$0xff]
      %v769 = vld [vmem:[#allocation2 + $0x139] sm:$0xff]
      %v770 = vld [vmem:[#allocation2 + $0x141] sm:$0xff]
      %v771 = vld [vmem:[#allocation2 + $0x151] sm:$0xff]
      %v772 = vld [vmem:[#allocation2 + $0x159] sm:$0xff]
      %v773 = vld [vmem:[#allocation2 + $0x169] sm:$0xff]
      %v774 = vld [vmem:[#allocation2 + $0x171] sm:$0xff]
      %s775 = scalar_lea.vmem %s1, 4
      %v776 = vld [vmem:[%s775] sm:$0xf]
      %v778 = vsel %vm225, %v743, 0
      %v781 = vsel %vm225, %v744, 0
      %v784 = vsel %vm225, %v745, 0
      %v787 = vsel %vm225, %v746, 0
      %v790 = vsel %vm225, %v747, 0
      %v793 = vsel %vm225, %v748, 0
      %v796 = vsel %vm225, %v749, 0
      %v799 = vsel %vm225, %v750, 0
      %v802 = vsel %vm225, %v751, 0
      %v805 = vsel %vm225, %v752, 0
      %v808 = vsel %vm225, %v753, 0
      %v811 = vsel %vm225, %v754, 0
      %v814 = vsel %vm225, %v755, 0
      %v817 = vsel %vm225, %v756, 0
      %v820 = vsel %vm225, %v757, 0
      %v823 = vsel %vm225, %v758, 0
      %v826 = vsel %vm225, %v759, 0
      %v829 = vsel %vm225, %v760, 0
      %v832 = vsel %vm225, %v761, 0
      %v835 = vsel %vm225, %v762, 0
      %v838 = vsel %vm225, %v763, 0
      %v841 = vsel %vm225, %v764, 0
      %v844 = vsel %vm225, %v765, 0
      %v847 = vsel %vm225, %v766, 0
      %v850 = vsel %vm225, %v767, 0
      %v853 = vsel %vm225, %v768, 0
      %v856 = vsel %vm225, %v769, 0
      %v859 = vsel %vm225, %v770, 0
      %v862 = vsel %vm225, %v771, 0
      %v865 = vsel %vm225, %v772, 0
      %v868 = vsel %vm225, %v773, 0
      %v871 = vsel %vm225, %v774, 0
      %v874 = vsel %vm482, %v776, 0
      %876 = vmatprep.subr.mxu0 0.0
      %877 = vmatpush1.msra.mxu0 %v874
      %878 = vmatprep.subr.mxu0 0.0
      %879 = vmatpush1.msra.mxu0 0.0
      %880 = vmatprep.subr.mxu0 0.0
      %881 = vmatpush1.msra.mxu0 0.0
      %882 = vmatprep.subr.mxu0 0.0
      %883 = vmatpush1.msra.mxu0 0.0
      %884 = vmatprep.subr.mxu0 0.0
      %885 = vmatpush1.msra.mxu0 0.0
      %886 = vmatprep.subr.mxu0 0.0
      %887 = vmatpush1.msra.mxu0 0.0
      %888 = vmatprep.subr.mxu0 0.0
      %889 = vmatpush1.msra.mxu0 0.0
      %890 = vmatprep.subr.mxu0 0.0
      %891 = vmatpush1.msra.mxu0 0.0
      %892 = vmatprep.subr.mxu0 0.0
      %893 = vmatpush1.msra.mxu0 0.0
      %894 = vmatprep.subr.mxu0 0.0
      %895 = vmatpush1.msra.mxu0 0.0
      %896 = vmatprep.subr.mxu0 0.0
      %897 = vmatpush1.msra.mxu0 0.0
      %898 = vmatprep.subr.mxu0 0.0
      %899 = vmatpush1.msra.mxu0 0.0
      %900 = vmatprep.subr.mxu0 0.0
      %901 = vmatpush1.msra.mxu0 0.0
      %902 = vmatprep.subr.mxu0 0.0
      %903 = vmatpush1.msra.mxu0 0.0
      %904 = vmatprep.subr.mxu0 0.0
      %905 = vmatpush1.msra.mxu0 0.0
      %906 = vmatprep.subr.mxu0 0.0
      %907 = vmatpush1.msra.mxu0 0.0
      %908 = vmatprep.subr.mxu0 0.0
      %909 = vmatpush1.msra.mxu0 0.0
      %910 = vmatprep.subr.mxu0 0.0
      %911 = vmatpush1.msra.mxu0 0.0
      %912 = vmatprep.subr.mxu0 0.0
      %913 = vmatpush1.msra.mxu0 0.0
      %914 = vmatprep.subr.mxu0 0.0
      %915 = vmatpush1.msra.mxu0 0.0
      %916 = vmatprep.subr.mxu0 0.0
      %917 = vmatpush1.msra.mxu0 0.0
      %918 = vmatprep.subr.mxu0 0.0
      %919 = vmatpush1.msra.mxu0 0.0
      %920 = vmatprep.subr.mxu0 0.0
      %921 = vmatpush1.msra.mxu0 0.0
      %922 = vmatprep.subr.mxu0 0.0
      %923 = vmatpush1.msra.mxu0 0.0
      %924 = vmatprep.subr.mxu0 0.0
      %925 = vmatpush1.msra.mxu0 0.0
      %926 = vmatprep.subr.mxu0 0.0
      %927 = vmatpush1.msra.mxu0 0.0
      %928 = vmatprep.subr.mxu0 0.0
      %929 = vmatpush1.msra.mxu0 0.0
      %930 = vmatprep.subr.mxu0 0.0
      %931 = vmatpush1.msra.mxu0 0.0
      %932 = vmatprep.subr.mxu0 0.0
      %933 = vmatpush1.msra.mxu0 0.0
      %934 = vmatprep.subr.mxu0 0.0
      %935 = vmatpush1.msra.mxu0 0.0
      %936 = vmatprep.subr.mxu0 0.0
      %937 = vmatpush1.msra.mxu0 0.0
      %938 = vmatprep.subr.mxu0 0.0
      %939 = vmatpush1.msra.mxu0 0.0
      %940 = vmatprep.mubr.f32.mxu0 0.0
      %941 = vmatmul.mubr.f32.gmra.mrb[0].mxu0 %v778
      %v942 = vpop.f32.mrb[0].mxu0
      %v943 = vadd.f32 0.0, %v942
      %v944 = vpop.f32.mrb[0].mxu0
      %945 = vmatprep.mubr.f32.mxu0 0.0
      %946 = vmatmul.mubr.f32.gmra.mrb[0].mxu0 %v781
      %v947 = vpop.f32.mrb[0].mxu0
      %v948 = vadd.f32 0.0, %v947
      %v949 = vpop.f32.mrb[0].mxu0
      %950 = vmatprep.mubr.f32.mxu0 0.0
      %951 = vmatmul.mubr.f32.gmra.mrb[0].mxu0 %v784
      %v952 = vpop.f32.mrb[0].mxu0
      %v953 = vadd.f32 0.0, %v952
      %v954 = vpop.f32.mrb[0].mxu0
      %955 = vmatprep.mubr.f32.mxu0 0.0
      %956 = vmatmul.mubr.f32.gmra.mrb[0].mxu0 %v787
      %v957 = vpop.f32.mrb[0].mxu0
      %v958 = vadd.f32 0.0, %v957
      %v959 = vpop.f32.mrb[0].mxu0
      %960 = vmatprep.mubr.f32.mxu0 0.0
      %961 = vmatmul.mubr.f32.gmra.mrb[0].mxu0 %v790
      %v962 = vpop.f32.mrb[0].mxu0
      %v963 = vadd.f32 0.0, %v962
      %v964 = vpop.f32.mrb[0].mxu0
      %965 = vmatprep.mubr.f32.mxu0 0.0
      %966 = vmatmul.mubr.f32.gmra.mrb[0].mxu0 %v793
      %v967 = vpop.f32.mrb[0].mxu0
      %v968 = vadd.f32 0.0, %v967
      %v969 = vpop.f32.mrb[0].mxu0
      %970 = vmatprep.mubr.f32.mxu0 0.0
      %971 = vmatmul.mubr.f32.gmra.mrb[0].mxu0 %v796
      %v972 = vpop.f32.mrb[0].mxu0
      %v973 = vadd.f32 0.0, %v972
      %v974 = vpop.f32.mrb[0].mxu0
      %975 = vmatprep.mubr.f32.mxu0 0.0
      %976 = vmatmul.mubr.f32.gmra.mrb[0].mxu0 %v799
      %v977 = vpop.f32.mrb[0].mxu0
      %v978 = vadd.f32 0.0, %v977
      %v979 = vpop.f32.mrb[0].mxu0
      %980 = vmatprep.mubr.f32.mxu0 0.0
      %981 = vmatmul.mubr.f32.gmra.mrb[0].mxu0 %v802
      %v982 = vpop.f32.mrb[0].mxu0
      %v983 = vadd.f32 0.0, %v982
      %v984 = vpop.f32.mrb[0].mxu0
      %985 = vmatprep.mubr.f32.mxu0 0.0
      %986 = vmatmul.mubr.f32.gmra.mrb[0].mxu0 %v805
      %v987 = vpop.f32.mrb[0].mxu0
      %v988 = vadd.f32 0.0, %v987
      %v989 = vpop.f32.mrb[0].mxu0
      %990 = vmatprep.mubr.f32.mxu0 0.0
      %991 = vmatmul.mubr.f32.gmra.mrb[0].mxu0 %v808
      %v992 = vpop.f32.mrb[0].mxu0
      %v993 = vadd.f32 0.0, %v992
      %v994 = vpop.f32.mrb[0].mxu0
      %995 = vmatprep.mubr.f32.mxu0 0.0
      %996 = vmatmul.mubr.f32.gmra.mrb[0].mxu0 %v811
      %v997 = vpop.f32.mrb[0].mxu0
      %v998 = vadd.f32 0.0, %v997
      %v999 = vpop.f32.mrb[0].mxu0
      %1000 = vmatprep.mubr.f32.mxu0 0.0
      %1001 = vmatmul.mubr.f32.gmra.mrb[0].mxu0 %v814
      %v1002 = vpop.f32.mrb[0].mxu0
      %v1003 = vadd.f32 0.0, %v1002
      %v1004 = vpop.f32.mrb[0].mxu0
      %1005 = vmatprep.mubr.f32.mxu0 0.0
      %1006 = vmatmul.mubr.f32.gmra.mrb[0].mxu0 %v817
      %v1007 = vpop.f32.mrb[0].mxu0
      %v1008 = vadd.f32 0.0, %v1007
      %v1009 = vpop.f32.mrb[0].mxu0
      %1010 = vmatprep.mubr.f32.mxu0 0.0
      %1011 = vmatmul.mubr.f32.gmra.mrb[0].mxu0 %v820
      %v1012 = vpop.f32.mrb[0].mxu0
      %v1013 = vadd.f32 0.0, %v1012
      %v1014 = vpop.f32.mrb[0].mxu0
      %1015 = vmatprep.mubr.f32.mxu0 0.0
      %1016 = vmatmul.mubr.f32.gmra.mrb[0].mxu0 %v823
      %v1017 = vpop.f32.mrb[0].mxu0
      %v1018 = vadd.f32 0.0, %v1017
      %v1019 = vpop.f32.mrb[0].mxu0
      %1020 = vmatprep.mubr.f32.mxu0 0.0
      %1021 = vmatmul.mubr.f32.gmra.mrb[0].mxu0 %v826
      %v1022 = vpop.f32.mrb[0].mxu0
      %v1023 = vadd.f32 0.0, %v1022
      %v1024 = vpop.f32.mrb[0].mxu0
      %1025 = vmatprep.mubr.f32.mxu0 0.0
      %1026 = vmatmul.mubr.f32.gmra.mrb[0].mxu0 %v829
      %v1027 = vpop.f32.mrb[0].mxu0
      %v1028 = vadd.f32 0.0, %v1027
      %v1029 = vpop.f32.mrb[0].mxu0
      %1030 = vmatprep.mubr.f32.mxu0 0.0
      %1031 = vmatmul.mubr.f32.gmra.mrb[0].mxu0 %v832
      %v1032 = vpop.f32.mrb[0].mxu0
      %v1033 = vadd.f32 0.0, %v1032
      %v1034 = vpop.f32.mrb[0].mxu0
      %1035 = vmatprep.mubr.f32.mxu0 0.0
      %1036 = vmatmul.mubr.f32.gmra.mrb[0].mxu0 %v835
      %v1037 = vpop.f32.mrb[0].mxu0
      %v1038 = vadd.f32 0.0, %v1037
      %v1039 = vpop.f32.mrb[0].mxu0
      %1040 = vmatprep.mubr.f32.mxu0 0.0
      %1041 = vmatmul.mubr.f32.gmra.mrb[0].mxu0 %v838
      %v1042 = vpop.f32.mrb[0].mxu0
      %v1043 = vadd.f32 0.0, %v1042
      %v1044 = vpop.f32.mrb[0].mxu0
      %1045 = vmatprep.mubr.f32.mxu0 0.0
      %1046 = vmatmul.mubr.f32.gmra.mrb[0].mxu0 %v841
      %v1047 = vpop.f32.mrb[0].mxu0
      %v1048 = vadd.f32 0.0, %v1047
      %v1049 = vpop.f32.mrb[0].mxu0
      %1050 = vmatprep.mubr.f32.mxu0 0.0
      %1051 = vmatmul.mubr.f32.gmra.mrb[0].mxu0 %v844
      %v1052 = vpop.f32.mrb[0].mxu0
      %v1053 = vadd.f32 0.0, %v1052
      %v1054 = vpop.f32.mrb[0].mxu0
      %1055 = vmatprep.mubr.f32.mxu0 0.0
      %1056 = vmatmul.mubr.f32.gmra.mrb[0].mxu0 %v847
      %v1057 = vpop.f32.mrb[0].mxu0
      %v1058 = vadd.f32 0.0, %v1057
      %v1059 = vpop.f32.mrb[0].mxu0
      %1060 = vmatprep.mubr.f32.mxu0 0.0
      %1061 = vmatmul.mubr.f32.gmra.mrb[0].mxu0 %v850
      %v1062 = vpop.f32.mrb[0].mxu0
      %v1063 = vadd.f32 0.0, %v1062
      %v1064 = vpop.f32.mrb[0].mxu0
      %1065 = vmatprep.mubr.f32.mxu0 0.0
      %1066 = vmatmul.mubr.f32.gmra.mrb[0].mxu0 %v853
      %v1067 = vpop.f32.mrb[0].mxu0
      %v1068 = vadd.f32 0.0, %v1067
      %v1069 = vpop.f32.mrb[0].mxu0
      %1070 = vmatprep.mubr.f32.mxu0 0.0
      %1071 = vmatmul.mubr.f32.gmra.mrb[0].mxu0 %v856
      %v1072 = vpop.f32.mrb[0].mxu0
      %v1073 = vadd.f32 0.0, %v1072
      %v1074 = vpop.f32.mrb[0].mxu0
      %1075 = vmatprep.mubr.f32.mxu0 0.0
      %1076 = vmatmul.mubr.f32.gmra.mrb[0].mxu0 %v859
      %v1077 = vpop.f32.mrb[0].mxu0
      %v1078 = vadd.f32 0.0, %v1077
      %v1079 = vpop.f32.mrb[0].mxu0
      %1080 = vmatprep.mubr.f32.mxu0 0.0
      %1081 = vmatmul.mubr.f32.gmra.mrb[0].mxu0 %v862
      %v1082 = vpop.f32.mrb[0].mxu0
      %v1083 = vadd.f32 0.0, %v1082
      %v1084 = vpop.f32.mrb[0].mxu0
      %1085 = vmatprep.mubr.f32.mxu0 0.0
      %1086 = vmatmul.mubr.f32.gmra.mrb[0].mxu0 %v865
      %v1087 = vpop.f32.mrb[0].mxu0
      %v1088 = vadd.f32 0.0, %v1087
      %v1089 = vpop.f32.mrb[0].mxu0
      %1090 = vmatprep.mubr.f32.mxu0 0.0
      %1091 = vmatmul.mubr.f32.gmra.mrb[0].mxu0 %v868
      %v1092 = vpop.f32.mrb[0].mxu0
      %v1093 = vadd.f32 0.0, %v1092
      %v1094 = vpop.f32.mrb[0].mxu0
      %1095 = vmatprep.mubr.f32.mxu0 0.0
      %1096 = vmatmul.mubr.f32.gmra.mrb[0].mxu0 %v871
      %v1097 = vpop.f32.mrb[0].mxu0
      %v1098 = vadd.f32 0.0, %v1097
      %v1099 = vpop.f32.mrb[0].mxu0
      %1100 = vdwg.mxu0
      %v1101 = vadd.f32 %v711, %v943
      %v1102 = vadd.f32 %v712, %v948
      %v1103 = vadd.f32 %v713, %v953
      %v1104 = vadd.f32 %v714, %v958
      %v1105 = vadd.f32 %v715, %v963
      %v1106 = vadd.f32 %v716, %v968
      %v1107 = vadd.f32 %v717, %v973
      %v1108 = vadd.f32 %v718, %v978
      %v1109 = vadd.f32 %v719, %v983
      %v1110 = vadd.f32 %v720, %v988
      %v1111 = vadd.f32 %v721, %v993
      %v1112 = vadd.f32 %v722, %v998
      %v1113 = vadd.f32 %v723, %v1003
      %v1114 = vadd.f32 %v724, %v1008
      %v1115 = vadd.f32 %v725, %v1013
      %v1116 = vadd.f32 %v726, %v1018
      %v1117 = vadd.f32 %v727, %v1023
      %v1118 = vadd.f32 %v728, %v1028
      %v1119 = vadd.f32 %v729, %v1033
      %v1120 = vadd.f32 %v730, %v1038
      %v1121 = vadd.f32 %v731, %v1043
      %v1122 = vadd.f32 %v732, %v1048
      %v1123 = vadd.f32 %v733, %v1053
      %v1124 = vadd.f32 %v734, %v1058
      %v1125 = vadd.f32 %v735, %v1063
      %v1126 = vadd.f32 %v736, %v1068
      %v1127 = vadd.f32 %v737, %v1073
      %v1128 = vadd.f32 %v738, %v1078
      %v1129 = vadd.f32 %v739, %v1083
      %v1130 = vadd.f32 %v740, %v1088
      %v1131 = vadd.f32 %v741, %v1093
      %v1132 = vadd.f32 %v742, %v1098
      %v1133 = vld [vmem:[#allocation2 + $0x2] sm:$0xff]
      %v1134 = vld [vmem:[#allocation2 + $0xa] sm:$0xff]
      %v1135 = vld [vmem:[#allocation2 + $0x1a] sm:$0xff]
      %v1136 = vld [vmem:[#allocation2 + $0x22] sm:$0xff]
      %v1137 = vld [vmem:[#allocation2 + $0x32] sm:$0xff]
      %v1138 = vld [vmem:[#allocation2 + $0x3a] sm:$0xff]
      %v1139 = vld [vmem:[#allocation2 + $0x4a] sm:$0xff]
      %v1140 = vld [vmem:[#allocation2 + $0x52] sm:$0xff]
      %v1141 = vld [vmem:[#allocation2 + $0x62] sm:$0xff]
      %v1142 = vld [vmem:[#allocation2 + $0x6a] sm:$0xff]
      %v1143 = vld [vmem:[#allocation2 + $0x7a] sm:$0xff]
      %v1144 = vld [vmem:[#allocation2 + $0x82] sm:$0xff]
      %v1145 = vld [vmem:[#allocation2 + $0x92] sm:$0xff]
      %v1146 = vld [vmem:[#allocation2 + $0x9a] sm:$0xff]
      %v1147 = vld [vmem:[#allocation2 + $0xaa] sm:$0xff]
      %v1148 = vld [vmem:[#allocation2 + $0xb2] sm:$0xff]
      %v1149 = vld [vmem:[#allocation2 + $0xc2] sm:$0xff]
      %v1150 = vld [vmem:[#allocation2 + $0xca] sm:$0xff]
      %v1151 = vld [vmem:[#allocation2 + $0xda] sm:$0xff]
      %v1152 = vld [vmem:[#allocation2 + $0xe2] sm:$0xff]
      %v1153 = vld [vmem:[#allocation2 + $0xf2] sm:$0xff]
      %v1154 = vld [vmem:[#allocation2 + $0xfa] sm:$0xff]
      %v1155 = vld [vmem:[#allocation2 + $0x10a] sm:$0xff]
      %v1156 = vld [vmem:[#allocation2 + $0x112] sm:$0xff]
      %v1157 = vld [vmem:[#allocation2 + $0x122] sm:$0xff]
      %v1158 = vld [vmem:[#allocation2 + $0x12a] sm:$0xff]
      %v1159 = vld [vmem:[#allocation2 + $0x13a] sm:$0xff]
      %v1160 = vld [vmem:[#allocation2 + $0x142] sm:$0xff]
      %v1161 = vld [vmem:[#allocation2 + $0x152] sm:$0xff]
      %v1162 = vld [vmem:[#allocation2 + $0x15a] sm:$0xff]
      %v1163 = vld [vmem:[#allocation2 + $0x16a] sm:$0xff]
      %v1164 = vld [vmem:[#allocation2 + $0x172] sm:$0xff]
      %s1165 = scalar_lea.vmem %s1, 8
      %v1166 = vld [vmem:[%s1165] sm:$0xf]
      %v1168 = vsel %vm225, %v1133, 0
      %v1171 = vsel %vm225, %v1134, 0
      %v1174 = vsel %vm225, %v1135, 0
      %v1177 = vsel %vm225, %v1136, 0
      %v1180 = vsel %vm225, %v1137, 0
      %v1183 = vsel %vm225, %v1138, 0
      %v1186 = vsel %vm225, %v1139, 0
      %v1189 = vsel %vm225, %v1140, 0
      %v1192 = vsel %vm225, %v1141, 0
      %v1195 = vsel %vm225, %v1142, 0
      %v1198 = vsel %vm225, %v1143, 0
      %v1201 = vsel %vm225, %v1144, 0
      %v1204 = vsel %vm225, %v1145, 0
      %v1207 = vsel %vm225, %v1146, 0
      %v1210 = vsel %vm225, %v1147, 0
      %v1213 = vsel %vm225, %v1148, 0
      %v1216 = vsel %vm225, %v1149, 0
      %v1219 = vsel %vm225, %v1150, 0
      %v1222 = vsel %vm225, %v1151, 0
      %v1225 = vsel %vm225, %v1152, 0
      %v1228 = vsel %vm225, %v1153, 0
      %v1231 = vsel %vm225, %v1154, 0
      %v1234 = vsel %vm225, %v1155, 0
      %v1237 = vsel %vm225, %v1156, 0
      %v1240 = vsel %vm225, %v1157, 0
      %v1243 = vsel %vm225, %v1158, 0
      %v1246 = vsel %vm225, %v1159, 0
      %v1249 = vsel %vm225, %v1160, 0
      %v1252 = vsel %vm225, %v1161, 0
      %v1255 = vsel %vm225, %v1162, 0
      %v1258 = vsel %vm225, %v1163, 0
      %v1261 = vsel %vm225, %v1164, 0
      %v1264 = vsel %vm482, %v1166, 0
      %1266 = vmatprep.subr.mxu0 0.0
      %1267 = vmatpush1.msra.mxu0 %v1264
      %1268 = vmatprep.subr.mxu0 0.0
      %1269 = vmatpush1.msra.mxu0 0.0
      %1270 = vmatprep.subr.mxu0 0.0
      %1271 = vmatpush1.msra.mxu0 0.0
      %1272 = vmatprep.subr.mxu0 0.0
      %1273 = vmatpush1.msra.mxu0 0.0
      %1274 = vmatprep.subr.mxu0 0.0
      %1275 = vmatpush1.msra.mxu0 0.0
      %1276 = vmatprep.subr.mxu0 0.0
      %1277 = vmatpush1.msra.mxu0 0.0
      %1278 = vmatprep.subr.mxu0 0.0
      %1279 = vmatpush1.msra.mxu0 0.0
      %1280 = vmatprep.subr.mxu0 0.0
      %1281 = vmatpush1.msra.mxu0 0.0
      %1282 = vmatprep.subr.mxu0 0.0
      %1283 = vmatpush1.msra.mxu0 0.0
      %1284 = vmatprep.subr.mxu0 0.0
      %1285 = vmatpush1.msra.mxu0 0.0
      %1286 = vmatprep.subr.mxu0 0.0
      %1287 = vmatpush1.msra.mxu0 0.0
      %1288 = vmatprep.subr.mxu0 0.0
      %1289 = vmatpush1.msra.mxu0 0.0
      %1290 = vmatprep.subr.mxu0 0.0
      %1291 = vmatpush1.msra.mxu0 0.0
      %1292 = vmatprep.subr.mxu0 0.0
      %1293 = vmatpush1.msra.mxu0 0.0
      %1294 = vmatprep.subr.mxu0 0.0
      %1295 = vmatpush1.msra.mxu0 0.0
      %1296 = vmatprep.subr.mxu0 0.0
      %1297 = vmatpush1.msra.mxu0 0.0
      %1298 = vmatprep.subr.mxu0 0.0
      %1299 = vmatpush1.msra.mxu0 0.0
      %1300 = vmatprep.subr.mxu0 0.0
      %1301 = vmatpush1.msra.mxu0 0.0
      %1302 = vmatprep.subr.mxu0 0.0
      %1303 = vmatpush1.msra.mxu0 0.0
      %1304 = vmatprep.subr.mxu0 0.0
      %1305 = vmatpush1.msra.mxu0 0.0
      %1306 = vmatprep.subr.mxu0 0.0
      %1307 = vmatpush1.msra.mxu0 0.0
      %1308 = vmatprep.subr.mxu0 0.0
      %1309 = vmatpush1.msra.mxu0 0.0
      %1310 = vmatprep.subr.mxu0 0.0
      %1311 = vmatpush1.msra.mxu0 0.0
      %1312 = vmatprep.subr.mxu0 0.0
      %1313 = vmatpush1.msra.mxu0 0.0
      %1314 = vmatprep.subr.mxu0 0.0
      %1315 = vmatpush1.msra.mxu0 0.0
      %1316 = vmatprep.subr.mxu0 0.0
      %1317 = vmatpush1.msra.mxu0 0.0
      %1318 = vmatprep.subr.mxu0 0.0
      %1319 = vmatpush1.msra.mxu0 0.0
      %1320 = vmatprep.subr.mxu0 0.0
      %1321 = vmatpush1.msra.mxu0 0.0
      %1322 = vmatprep.subr.mxu0 0.0
      %1323 = vmatpush1.msra.mxu0 0.0
      %1324 = vmatprep.subr.mxu0 0.0
      %1325 = vmatpush1.msra.mxu0 0.0
      %1326 = vmatprep.subr.mxu0 0.0
      %1327 = vmatpush1.msra.mxu0 0.0
      %1328 = vmatprep.subr.mxu0 0.0
      %1329 = vmatpush1.msra.mxu0 0.0
      %1330 = vmatprep.mubr.f32.mxu0 0.0
      %1331 = vmatmul.mubr.f32.gmra.mrb[0].mxu0 %v1168
      %v1332 = vpop.f32.mrb[0].mxu0
      %v1333 = vadd.f32 0.0, %v1332
      %v1334 = vpop.f32.mrb[0].mxu0
      %1335 = vmatprep.mubr.f32.mxu0 0.0
      %1336 = vmatmul.mubr.f32.gmra.mrb[0].mxu0 %v1171
      %v1337 = vpop.f32.mrb[0].mxu0
      %v1338 = vadd.f32 0.0, %v1337
      %v1339 = vpop.f32.mrb[0].mxu0
      %1340 = vmatprep.mubr.f32.mxu0 0.0
      %1341 = vmatmul.mubr.f32.gmra.mrb[0].mxu0 %v1174
      %v1342 = vpop.f32.mrb[0].mxu0
      %v1343 = vadd.f32 0.0, %v1342
      %v1344 = vpop.f32.mrb[0].mxu0
      %1345 = vmatprep.mubr.f32.mxu0 0.0
      %1346 = vmatmul.mubr.f32.gmra.mrb[0].mxu0 %v1177
      %v1347 = vpop.f32.mrb[0].mxu0
      %v1348 = vadd.f32 0.0, %v1347
      %v1349 = vpop.f32.mrb[0].mxu0
      %1350 = vmatprep.mubr.f32.mxu0 0.0
      %1351 = vmatmul.mubr.f32.gmra.mrb[0].mxu0 %v1180
      %v1352 = vpop.f32.mrb[0].mxu0
      %v1353 = vadd.f32 0.0, %v1352
      %v1354 = vpop.f32.mrb[0].mxu0
      %1355 = vmatprep.mubr.f32.mxu0 0.0
      %1356 = vmatmul.mubr.f32.gmra.mrb[0].mxu0 %v1183
      %v1357 = vpop.f32.mrb[0].mxu0
      %v1358 = vadd.f32 0.0, %v1357
      %v1359 = vpop.f32.mrb[0].mxu0
      %1360 = vmatprep.mubr.f32.mxu0 0.0
      %1361 = vmatmul.mubr.f32.gmra.mrb[0].mxu0 %v1186
      %v1362 = vpop.f32.mrb[0].mxu0
      %v1363 = vadd.f32 0.0, %v1362
      %v1364 = vpop.f32.mrb[0].mxu0
      %1365 = vmatprep.mubr.f32.mxu0 0.0
      %1366 = vmatmul.mubr.f32.gmra.mrb[0].mxu0 %v1189
      %v1367 = vpop.f32.mrb[0].mxu0
      %v1368 = vadd.f32 0.0, %v1367
      %v1369 = vpop.f32.mrb[0].mxu0
      %1370 = vmatprep.mubr.f32.mxu0 0.0
      %1371 = vmatmul.mubr.f32.gmra.mrb[0].mxu0 %v1192
      %v1372 = vpop.f32.mrb[0].mxu0
      %v1373 = vadd.f32 0.0, %v1372
      %v1374 = vpop.f32.mrb[0].mxu0
      %1375 = vmatprep.mubr.f32.mxu0 0.0
      %1376 = vmatmul.mubr.f32.gmra.mrb[0].mxu0 %v1195
      %v1377 = vpop.f32.mrb[0].mxu0
      %v1378 = vadd.f32 0.0, %v1377
      %v1379 = vpop.f32.mrb[0].mxu0
      %1380 = vmatprep.mubr.f32.mxu0 0.0
      %1381 = vmatmul.mubr.f32.gmra.mrb[0].mxu0 %v1198
      %v1382 = vpop.f32.mrb[0].mxu0
      %v1383 = vadd.f32 0.0, %v1382
      %v1384 = vpop.f32.mrb[0].mxu0
      %1385 = vmatprep.mubr.f32.mxu0 0.0
      %1386 = vmatmul.mubr.f32.gmra.mrb[0].mxu0 %v1201
      %v1387 = vpop.f32.mrb[0].mxu0
      %v1388 = vadd.f32 0.0, %v1387
      %v1389 = vpop.f32.mrb[0].mxu0
      %1390 = vmatprep.mubr.f32.mxu0 0.0
      %1391 = vmatmul.mubr.f32.gmra.mrb[0].mxu0 %v1204
      %v1392 = vpop.f32.mrb[0].mxu0
      %v1393 = vadd.f32 0.0, %v1392
      %v1394 = vpop.f32.mrb[0].mxu0
      %1395 = vmatprep.mubr.f32.mxu0 0.0
      %1396 = vmatmul.mubr.f32.gmra.mrb[0].mxu0 %v1207
      %v1397 = vpop.f32.mrb[0].mxu0
      %v1398 = vadd.f32 0.0, %v1397
      %v1399 = vpop.f32.mrb[0].mxu0
      %1400 = vmatprep.mubr.f32.mxu0 0.0
      %1401 = vmatmul.mubr.f32.gmra.mrb[0].mxu0 %v1210
      %v1402 = vpop.f32.mrb[0].mxu0
      %v1403 = vadd.f32 0.0, %v1402
      %v1404 = vpop.f32.mrb[0].mxu0
      %1405 = vmatprep.mubr.f32.mxu0 0.0
      %1406 = vmatmul.mubr.f32.gmra.mrb[0].mxu0 %v1213
      %v1407 = vpop.f32.mrb[0].mxu0
      %v1408 = vadd.f32 0.0, %v1407
      %v1409 = vpop.f32.mrb[0].mxu0
      %1410 = vmatprep.mubr.f32.mxu0 0.0
      %1411 = vmatmul.mubr.f32.gmra.mrb[0].mxu0 %v1216
      %v1412 = vpop.f32.mrb[0].mxu0
      %v1413 = vadd.f32 0.0, %v1412
      %v1414 = vpop.f32.mrb[0].mxu0
      %1415 = vmatprep.mubr.f32.mxu0 0.0
      %1416 = vmatmul.mubr.f32.gmra.mrb[0].mxu0 %v1219
      %v1417 = vpop.f32.mrb[0].mxu0
      %v1418 = vadd.f32 0.0, %v1417
      %v1419 = vpop.f32.mrb[0].mxu0
      %1420 = vmatprep.mubr.f32.mxu0 0.0
      %1421 = vmatmul.mubr.f32.gmra.mrb[0].mxu0 %v1222
      %v1422 = vpop.f32.mrb[0].mxu0
      %v1423 = vadd.f32 0.0, %v1422
      %v1424 = vpop.f32.mrb[0].mxu0
      %1425 = vmatprep.mubr.f32.mxu0 0.0
      %1426 = vmatmul.mubr.f32.gmra.mrb[0].mxu0 %v1225
      %v1427 = vpop.f32.mrb[0].mxu0
      %v1428 = vadd.f32 0.0, %v1427
      %v1429 = vpop.f32.mrb[0].mxu0
      %1430 = vmatprep.mubr.f32.mxu0 0.0
      %1431 = vmatmul.mubr.f32.gmra.mrb[0].mxu0 %v1228
      %v1432 = vpop.f32.mrb[0].mxu0
      %v1433 = vadd.f32 0.0, %v1432
      %v1434 = vpop.f32.mrb[0].mxu0
      %1435 = vmatprep.mubr.f32.mxu0 0.0
      %1436 = vmatmul.mubr.f32.gmra.mrb[0].mxu0 %v1231
      %v1437 = vpop.f32.mrb[0].mxu0
      %v1438 = vadd.f32 0.0, %v1437
      %v1439 = vpop.f32.mrb[0].mxu0
      %1440 = vmatprep.mubr.f32.mxu0 0.0
      %1441 = vmatmul.mubr.f32.gmra.mrb[0].mxu0 %v1234
      %v1442 = vpop.f32.mrb[0].mxu0
      %v1443 = vadd.f32 0.0, %v1442
      %v1444 = vpop.f32.mrb[0].mxu0
      %1445 = vmatprep.mubr.f32.mxu0 0.0
      %1446 = vmatmul.mubr.f32.gmra.mrb[0].mxu0 %v1237
      %v1447 = vpop.f32.mrb[0].mxu0
      %v1448 = vadd.f32 0.0, %v1447
      %v1449 = vpop.f32.mrb[0].mxu0
      %1450 = vmatprep.mubr.f32.mxu0 0.0
      %1451 = vmatmul.mubr.f32.gmra.mrb[0].mxu0 %v1240
      %v1452 = vpop.f32.mrb[0].mxu0
      %v1453 = vadd.f32 0.0, %v1452
      %v1454 = vpop.f32.mrb[0].mxu0
      %1455 = vmatprep.mubr.f32.mxu0 0.0
      %1456 = vmatmul.mubr.f32.gmra.mrb[0].mxu0 %v1243
      %v1457 = vpop.f32.mrb[0].mxu0
      %v1458 = vadd.f32 0.0, %v1457
      %v1459 = vpop.f32.mrb[0].mxu0
      %1460 = vmatprep.mubr.f32.mxu0 0.0
      %1461 = vmatmul.mubr.f32.gmra.mrb[0].mxu0 %v1246
      %v1462 = vpop.f32.mrb[0].mxu0
      %v1463 = vadd.f32 0.0, %v1462
      %v1464 = vpop.f32.mrb[0].mxu0
      %1465 = vmatprep.mubr.f32.mxu0 0.0
      %1466 = vmatmul.mubr.f32.gmra.mrb[0].mxu0 %v1249
      %v1467 = vpop.f32.mrb[0].mxu0
      %v1468 = vadd.f32 0.0, %v1467
      %v1469 = vpop.f32.mrb[0].mxu0
      %1470 = vmatprep.mubr.f32.mxu0 0.0
      %1471 = vmatmul.mubr.f32.gmra.mrb[0].mxu0 %v1252
      %v1472 = vpop.f32.mrb[0].mxu0
      %v1473 = vadd.f32 0.0, %v1472
      %v1474 = vpop.f32.mrb[0].mxu0
      %1475 = vmatprep.mubr.f32.mxu0 0.0
      %1476 = vmatmul.mubr.f32.gmra.mrb[0].mxu0 %v1255
      %v1477 = vpop.f32.mrb[0].mxu0
      %v1478 = vadd.f32 0.0, %v1477
      %v1479 = vpop.f32.mrb[0].mxu0
      %1480 = vmatprep.mubr.f32.mxu0 0.0
      %1481 = vmatmul.mubr.f32.gmra.mrb[0].mxu0 %v1258
      %v1482 = vpop.f32.mrb[0].mxu0
      %v1483 = vadd.f32 0.0, %v1482
      %v1484 = vpop.f32.mrb[0].mxu0
      %1485 = vmatprep.mubr.f32.mxu0 0.0
      %1486 = vmatmul.mubr.f32.gmra.mrb[0].mxu0 %v1261
      %v1487 = vpop.f32.mrb[0].mxu0
      %v1488 = vadd.f32 0.0, %v1487
      %v1489 = vpop.f32.mrb[0].mxu0
      %1490 = vdwg.mxu0
      %v1491 = vadd.f32 %v1101, %v1333
      %v1492 = vadd.f32 %v1102, %v1338
      %v1493 = vadd.f32 %v1103, %v1343
      %v1494 = vadd.f32 %v1104, %v1348
      %v1495 = vadd.f32 %v1105, %v1353
      %v1496 = vadd.f32 %v1106, %v1358
      %v1497 = vadd.f32 %v1107, %v1363
      %v1498 = vadd.f32 %v1108, %v1368
      %v1499 = vadd.f32 %v1109, %v1373
      %v1500 = vadd.f32 %v1110, %v1378
      %v1501 = vadd.f32 %v1111, %v1383
      %v1502 = vadd.f32 %v1112, %v1388
      %v1503 = vadd.f32 %v1113, %v1393
      %v1504 = vadd.f32 %v1114, %v1398
      %v1505 = vadd.f32 %v1115, %v1403
      %v1506 = vadd.f32 %v1116, %v1408
      %v1507 = vadd.f32 %v1117, %v1413
      %v1508 = vadd.f32 %v1118, %v1418
      %v1509 = vadd.f32 %v1119, %v1423
      %v1510 = vadd.f32 %v1120, %v1428
      %v1511 = vadd.f32 %v1121, %v1433
      %v1512 = vadd.f32 %v1122, %v1438
      %v1513 = vadd.f32 %v1123, %v1443
      %v1514 = vadd.f32 %v1124, %v1448
      %v1515 = vadd.f32 %v1125, %v1453
      %v1516 = vadd.f32 %v1126, %v1458
      %v1517 = vadd.f32 %v1127, %v1463
      %v1518 = vadd.f32 %v1128, %v1468
      %v1519 = vadd.f32 %v1129, %v1473
      %v1520 = vadd.f32 %v1130, %v1478
      %v1521 = vadd.f32 %v1131, %v1483
      %v1522 = vadd.f32 %v1132, %v1488
      %v1523 = vld [vmem:[%s313] sm:$0xff]
      %v1524 = vld [vmem:[%s313 + $0x8] sm:$0xff]
      %v1525 = vld [vmem:[%s313 + $0x18] sm:$0xff]
      %v1526 = vld [vmem:[%s313 + $0x20] sm:$0xff]
      %v1527 = vld [vmem:[%s313 + $0x30] sm:$0xff]
      %v1528 = vld [vmem:[%s313 + $0x38] sm:$0xff]
      %v1529 = vld [vmem:[%s313 + $0x48] sm:$0xff]
      %v1530 = vld [vmem:[%s313 + $0x50] sm:$0xff]
      %v1531 = vld [vmem:[%s313 + $0x60] sm:$0xff]
      %v1532 = vld [vmem:[%s313 + $0x68] sm:$0xff]
      %v1533 = vld [vmem:[%s313 + $0x78] sm:$0xff]
      %v1534 = vld [vmem:[%s313 + $0x80] sm:$0xff]
      %v1535 = vld [vmem:[%s313 + $0x90] sm:$0xff]
      %v1536 = vld [vmem:[%s313 + $0x98] sm:$0xff]
      %v1537 = vld [vmem:[%s313 + $0xa8] sm:$0xff]
      %v1538 = vld [vmem:[%s313 + $0xb0] sm:$0xff]
      %v1539 = vld [vmem:[%s313 + $0xc0] sm:$0xff]
      %v1540 = vld [vmem:[%s313 + $0xc8] sm:$0xff]
      %v1541 = vld [vmem:[%s313 + $0xd8] sm:$0xff]
      %v1542 = vld [vmem:[%s313 + $0xe0] sm:$0xff]
      %v1543 = vld [vmem:[%s313 + $0xf0] sm:$0xff]
      %v1544 = vld [vmem:[%s313 + $0xf8] sm:$0xff]
      %v1545 = vld [vmem:[%s313 + $0x108] sm:$0xff]
      %v1546 = vld [vmem:[%s313 + $0x110] sm:$0xff]
      %v1547 = vld [vmem:[%s313 + $0x120] sm:$0xff]
      %v1548 = vld [vmem:[%s313 + $0x128] sm:$0xff]
      %v1549 = vld [vmem:[%s313 + $0x138] sm:$0xff]
      %v1550 = vld [vmem:[%s313 + $0x140] sm:$0xff]
      %v1551 = vld [vmem:[%s313 + $0x150] sm:$0xff]
      %v1552 = vld [vmem:[%s313 + $0x158] sm:$0xff]
      %v1553 = vld [vmem:[%s313 + $0x168] sm:$0xff]
      %v1554 = vld [vmem:[%s313 + $0x170] sm:$0xff]
      %s1555 = scalar_lea.vmem %s1, 12
      %v1556 = vld [vmem:[%s1555] sm:$0xf]
      %v1558 = vsel %vm225, %v1523, 0
      %v1561 = vsel %vm225, %v1524, 0
      %v1564 = vsel %vm225, %v1525, 0
      %v1567 = vsel %vm225, %v1526, 0
      %v1570 = vsel %vm225, %v1527, 0
      %v1573 = vsel %vm225, %v1528, 0
      %v1576 = vsel %vm225, %v1529, 0
      %v1579 = vsel %vm225, %v1530, 0
      %v1582 = vsel %vm225, %v1531, 0
      %v1585 = vsel %vm225, %v1532, 0
      %v1588 = vsel %vm225, %v1533, 0
      %v1591 = vsel %vm225, %v1534, 0
      %v1594 = vsel %vm225, %v1535, 0
      %v1597 = vsel %vm225, %v1536, 0
      %v1600 = vsel %vm225, %v1537, 0
      %v1603 = vsel %vm225, %v1538, 0
      %v1606 = vsel %vm225, %v1539, 0
      %v1609 = vsel %vm225, %v1540, 0
      %v1612 = vsel %vm225, %v1541, 0
      %v1615 = vsel %vm225, %v1542, 0
      %v1618 = vsel %vm225, %v1543, 0
      %v1621 = vsel %vm225, %v1544, 0
      %v1624 = vsel %vm225, %v1545, 0
      %v1627 = vsel %vm225, %v1546, 0
      %v1630 = vsel %vm225, %v1547, 0
      %v1633 = vsel %vm225, %v1548, 0
      %v1636 = vsel %vm225, %v1549, 0
      %v1639 = vsel %vm225, %v1550, 0
      %v1642 = vsel %vm225, %v1551, 0
      %v1645 = vsel %vm225, %v1552, 0
      %v1648 = vsel %vm225, %v1553, 0
      %v1651 = vsel %vm225, %v1554, 0
      %v1654 = vsel %vm482, %v1556, 0
      %1656 = vmatprep.subr.mxu0 0.0
      %1657 = vmatpush1.msra.mxu0 %v1654
      %1658 = vmatprep.subr.mxu0 0.0
      %1659 = vmatpush1.msra.mxu0 0.0
      %1660 = vmatprep.subr.mxu0 0.0
      %1661 = vmatpush1.msra.mxu0 0.0
      %1662 = vmatprep.subr.mxu0 0.0
      %1663 = vmatpush1.msra.mxu0 0.0
      %1664 = vmatprep.subr.mxu0 0.0
      %1665 = vmatpush1.msra.mxu0 0.0
      %1666 = vmatprep.subr.mxu0 0.0
      %1667 = vmatpush1.msra.mxu0 0.0
      %1668 = vmatprep.subr.mxu0 0.0
      %1669 = vmatpush1.msra.mxu0 0.0
      %1670 = vmatprep.subr.mxu0 0.0
      %1671 = vmatpush1.msra.mxu0 0.0
      %1672 = vmatprep.subr.mxu0 0.0
      %1673 = vmatpush1.msra.mxu0 0.0
      %1674 = vmatprep.subr.mxu0 0.0
      %1675 = vmatpush1.msra.mxu0 0.0
      %1676 = vmatprep.subr.mxu0 0.0
      %1677 = vmatpush1.msra.mxu0 0.0
      %1678 = vmatprep.subr.mxu0 0.0
      %1679 = vmatpush1.msra.mxu0 0.0
      %1680 = vmatprep.subr.mxu0 0.0
      %1681 = vmatpush1.msra.mxu0 0.0
      %1682 = vmatprep.subr.mxu0 0.0
      %1683 = vmatpush1.msra.mxu0 0.0
      %1684 = vmatprep.subr.mxu0 0.0
      %1685 = vmatpush1.msra.mxu0 0.0
      %1686 = vmatprep.subr.mxu0 0.0
      %1687 = vmatpush1.msra.mxu0 0.0
      %1688 = vmatprep.subr.mxu0 0.0
      %1689 = vmatpush1.msra.mxu0 0.0
      %1690 = vmatprep.subr.mxu0 0.0
      %1691 = vmatpush1.msra.mxu0 0.0
      %1692 = vmatprep.subr.mxu0 0.0
      %1693 = vmatpush1.msra.mxu0 0.0
      %1694 = vmatprep.subr.mxu0 0.0
      %1695 = vmatpush1.msra.mxu0 0.0
      %1696 = vmatprep.subr.mxu0 0.0
      %1697 = vmatpush1.msra.mxu0 0.0
      %1698 = vmatprep.subr.mxu0 0.0
      %1699 = vmatpush1.msra.mxu0 0.0
      %1700 = vmatprep.subr.mxu0 0.0
      %1701 = vmatpush1.msra.mxu0 0.0
      %1702 = vmatprep.subr.mxu0 0.0
      %1703 = vmatpush1.msra.mxu0 0.0
      %1704 = vmatprep.subr.mxu0 0.0
      %1705 = vmatpush1.msra.mxu0 0.0
      %1706 = vmatprep.subr.mxu0 0.0
      %1707 = vmatpush1.msra.mxu0 0.0
      %1708 = vmatprep.subr.mxu0 0.0
      %1709 = vmatpush1.msra.mxu0 0.0
      %1710 = vmatprep.subr.mxu0 0.0
      %1711 = vmatpush1.msra.mxu0 0.0
      %1712 = vmatprep.subr.mxu0 0.0
      %1713 = vmatpush1.msra.mxu0 0.0
      %1714 = vmatprep.subr.mxu0 0.0
      %1715 = vmatpush1.msra.mxu0 0.0
      %1716 = vmatprep.subr.mxu0 0.0
      %1717 = vmatpush1.msra.mxu0 0.0
      %1718 = vmatprep.subr.mxu0 0.0
      %1719 = vmatpush1.msra.mxu0 0.0
      %1720 = vmatprep.mubr.f32.mxu0 0.0
      %1721 = vmatmul.mubr.f32.gmra.mrb[0].mxu0 %v1558
      %v1722 = vpop.f32.mrb[0].mxu0
      %v1723 = vadd.f32 0.0, %v1722
      %v1724 = vpop.f32.mrb[0].mxu0
      %1725 = vmatprep.mubr.f32.mxu0 0.0
      %1726 = vmatmul.mubr.f32.gmra.mrb[0].mxu0 %v1561
      %v1727 = vpop.f32.mrb[0].mxu0
      %v1728 = vadd.f32 0.0, %v1727
      %v1729 = vpop.f32.mrb[0].mxu0
      %1730 = vmatprep.mubr.f32.mxu0 0.0
      %1731 = vmatmul.mubr.f32.gmra.mrb[0].mxu0 %v1564
      %v1732 = vpop.f32.mrb[0].mxu0
      %v1733 = vadd.f32 0.0, %v1732
      %v1734 = vpop.f32.mrb[0].mxu0
      %1735 = vmatprep.mubr.f32.mxu0 0.0
      %1736 = vmatmul.mubr.f32.gmra.mrb[0].mxu0 %v1567
      %v1737 = vpop.f32.mrb[0].mxu0
      %v1738 = vadd.f32 0.0, %v1737
      %v1739 = vpop.f32.mrb[0].mxu0
      %1740 = vmatprep.mubr.f32.mxu0 0.0
      %1741 = vmatmul.mubr.f32.gmra.mrb[0].mxu0 %v1570
      %v1742 = vpop.f32.mrb[0].mxu0
      %v1743 = vadd.f32 0.0, %v1742
      %v1744 = vpop.f32.mrb[0].mxu0
      %1745 = vmatprep.mubr.f32.mxu0 0.0
      %1746 = vmatmul.mubr.f32.gmra.mrb[0].mxu0 %v1573
      %v1747 = vpop.f32.mrb[0].mxu0
      %v1748 = vadd.f32 0.0, %v1747
      %v1749 = vpop.f32.mrb[0].mxu0
      %1750 = vmatprep.mubr.f32.mxu0 0.0
      %1751 = vmatmul.mubr.f32.gmra.mrb[0].mxu0 %v1576
      %v1752 = vpop.f32.mrb[0].mxu0
      %v1753 = vadd.f32 0.0, %v1752
      %v1754 = vpop.f32.mrb[0].mxu0
      %1755 = vmatprep.mubr.f32.mxu0 0.0
      %1756 = vmatmul.mubr.f32.gmra.mrb[0].mxu0 %v1579
      %v1757 = vpop.f32.mrb[0].mxu0
      %v1758 = vadd.f32 0.0, %v1757
      %v1759 = vpop.f32.mrb[0].mxu0
      %1760 = vmatprep.mubr.f32.mxu0 0.0
      %1761 = vmatmul.mubr.f32.gmra.mrb[0].mxu0 %v1582
      %v1762 = vpop.f32.mrb[0].mxu0
      %v1763 = vadd.f32 0.0, %v1762
      %v1764 = vpop.f32.mrb[0].mxu0
      %1765 = vmatprep.mubr.f32.mxu0 0.0
      %1766 = vmatmul.mubr.f32.gmra.mrb[0].mxu0 %v1585
      %v1767 = vpop.f32.mrb[0].mxu0
      %v1768 = vadd.f32 0.0, %v1767
      %v1769 = vpop.f32.mrb[0].mxu0
      %1770 = vmatprep.mubr.f32.mxu0 0.0
      %1771 = vmatmul.mubr.f32.gmra.mrb[0].mxu0 %v1588
      %v1772 = vpop.f32.mrb[0].mxu0
      %v1773 = vadd.f32 0.0, %v1772
      %v1774 = vpop.f32.mrb[0].mxu0
      %1775 = vmatprep.mubr.f32.mxu0 0.0
      %1776 = vmatmul.mubr.f32.gmra.mrb[0].mxu0 %v1591
      %v1777 = vpop.f32.mrb[0].mxu0
      %v1778 = vadd.f32 0.0, %v1777
      %v1779 = vpop.f32.mrb[0].mxu0
      %1780 = vmatprep.mubr.f32.mxu0 0.0
      %1781 = vmatmul.mubr.f32.gmra.mrb[0].mxu0 %v1594
      %v1782 = vpop.f32.mrb[0].mxu0
      %v1783 = vadd.f32 0.0, %v1782
      %v1784 = vpop.f32.mrb[0].mxu0
      %1785 = vmatprep.mubr.f32.mxu0 0.0
      %1786 = vmatmul.mubr.f32.gmra.mrb[0].mxu0 %v1597
      %v1787 = vpop.f32.mrb[0].mxu0
      %v1788 = vadd.f32 0.0, %v1787
      %v1789 = vpop.f32.mrb[0].mxu0
      %1790 = vmatprep.mubr.f32.mxu0 0.0
      %1791 = vmatmul.mubr.f32.gmra.mrb[0].mxu0 %v1600
      %v1792 = vpop.f32.mrb[0].mxu0
      %v1793 = vadd.f32 0.0, %v1792
      %v1794 = vpop.f32.mrb[0].mxu0
      %1795 = vmatprep.mubr.f32.mxu0 0.0
      %1796 = vmatmul.mubr.f32.gmra.mrb[0].mxu0 %v1603
      %v1797 = vpop.f32.mrb[0].mxu0
      %v1798 = vadd.f32 0.0, %v1797
      %v1799 = vpop.f32.mrb[0].mxu0
      %1800 = vmatprep.mubr.f32.mxu0 0.0
      %1801 = vmatmul.mubr.f32.gmra.mrb[0].mxu0 %v1606
      %v1802 = vpop.f32.mrb[0].mxu0
      %v1803 = vadd.f32 0.0, %v1802
      %v1804 = vpop.f32.mrb[0].mxu0
      %1805 = vmatprep.mubr.f32.mxu0 0.0
      %1806 = vmatmul.mubr.f32.gmra.mrb[0].mxu0 %v1609
      %v1807 = vpop.f32.mrb[0].mxu0
      %v1808 = vadd.f32 0.0, %v1807
      %v1809 = vpop.f32.mrb[0].mxu0
      %1810 = vmatprep.mubr.f32.mxu0 0.0
      %1811 = vmatmul.mubr.f32.gmra.mrb[0].mxu0 %v1612
      %v1812 = vpop.f32.mrb[0].mxu0
      %v1813 = vadd.f32 0.0, %v1812
      %v1814 = vpop.f32.mrb[0].mxu0
      %1815 = vmatprep.mubr.f32.mxu0 0.0
      %1816 = vmatmul.mubr.f32.gmra.mrb[0].mxu0 %v1615
      %v1817 = vpop.f32.mrb[0].mxu0
      %v1818 = vadd.f32 0.0, %v1817
      %v1819 = vpop.f32.mrb[0].mxu0
      %1820 = vmatprep.mubr.f32.mxu0 0.0
      %1821 = vmatmul.mubr.f32.gmra.mrb[0].mxu0 %v1618
      %v1822 = vpop.f32.mrb[0].mxu0
      %v1823 = vadd.f32 0.0, %v1822
      %v1824 = vpop.f32.mrb[0].mxu0
      %1825 = vmatprep.mubr.f32.mxu0 0.0
      %1826 = vmatmul.mubr.f32.gmra.mrb[0].mxu0 %v1621
      %v1827 = vpop.f32.mrb[0].mxu0
      %v1828 = vadd.f32 0.0, %v1827
      %v1829 = vpop.f32.mrb[0].mxu0
      %1830 = vmatprep.mubr.f32.mxu0 0.0
      %1831 = vmatmul.mubr.f32.gmra.mrb[0].mxu0 %v1624
      %v1832 = vpop.f32.mrb[0].mxu0
      %v1833 = vadd.f32 0.0, %v1832
      %v1834 = vpop.f32.mrb[0].mxu0
      %1835 = vmatprep.mubr.f32.mxu0 0.0
      %1836 = vmatmul.mubr.f32.gmra.mrb[0].mxu0 %v1627
      %v1837 = vpop.f32.mrb[0].mxu0
      %v1838 = vadd.f32 0.0, %v1837
      %v1839 = vpop.f32.mrb[0].mxu0
      %1840 = vmatprep.mubr.f32.mxu0 0.0
      %1841 = vmatmul.mubr.f32.gmra.mrb[0].mxu0 %v1630
      %v1842 = vpop.f32.mrb[0].mxu0
      %v1843 = vadd.f32 0.0, %v1842
      %v1844 = vpop.f32.mrb[0].mxu0
      %1845 = vmatprep.mubr.f32.mxu0 0.0
      %1846 = vmatmul.mubr.f32.gmra.mrb[0].mxu0 %v1633
      %v1847 = vpop.f32.mrb[0].mxu0
      %v1848 = vadd.f32 0.0, %v1847
      %v1849 = vpop.f32.mrb[0].mxu0
      %1850 = vmatprep.mubr.f32.mxu0 0.0
      %1851 = vmatmul.mubr.f32.gmra.mrb[0].mxu0 %v1636
      %v1852 = vpop.f32.mrb[0].mxu0
      %v1853 = vadd.f32 0.0, %v1852
      %v1854 = vpop.f32.mrb[0].mxu0
      %1855 = vmatprep.mubr.f32.mxu0 0.0
      %1856 = vmatmul.mubr.f32.gmra.mrb[0].mxu0 %v1639
      %v1857 = vpop.f32.mrb[0].mxu0
      %v1858 = vadd.f32 0.0, %v1857
      %v1859 = vpop.f32.mrb[0].mxu0
      %1860 = vmatprep.mubr.f32.mxu0 0.0
      %1861 = vmatmul.mubr.f32.gmra.mrb[0].mxu0 %v1642
      %v1862 = vpop.f32.mrb[0].mxu0
      %v1863 = vadd.f32 0.0, %v1862
      %v1864 = vpop.f32.mrb[0].mxu0
      %1865 = vmatprep.mubr.f32.mxu0 0.0
      %1866 = vmatmul.mubr.f32.gmra.mrb[0].mxu0 %v1645
      %v1867 = vpop.f32.mrb[0].mxu0
      %v1868 = vadd.f32 0.0, %v1867
      %v1869 = vpop.f32.mrb[0].mxu0
      %1870 = vmatprep.mubr.f32.mxu0 0.0
      %1871 = vmatmul.mubr.f32.gmra.mrb[0].mxu0 %v1648
      %v1872 = vpop.f32.mrb[0].mxu0
      %v1873 = vadd.f32 0.0, %v1872
      %v1874 = vpop.f32.mrb[0].mxu0
      %1875 = vmatprep.mubr.f32.mxu0 0.0
      %1876 = vmatmul.mubr.f32.gmra.mrb[0].mxu0 %v1651
      %v1877 = vpop.f32.mrb[0].mxu0
      %v1878 = vadd.f32 0.0, %v1877
      %v1879 = vpop.f32.mrb[0].mxu0
      %1880 = vdwg.mxu0
      %v1881 = vadd.f32 %v1491, %v1723
      %v1882 = vadd.f32 %v1492, %v1728
      %v1883 = vadd.f32 %v1493, %v1733
      %v1884 = vadd.f32 %v1494, %v1738
      %v1885 = vadd.f32 %v1495, %v1743
      %v1886 = vadd.f32 %v1496, %v1748
      %v1887 = vadd.f32 %v1497, %v1753
      %v1888 = vadd.f32 %v1498, %v1758
      %v1889 = vadd.f32 %v1499, %v1763
      %v1890 = vadd.f32 %v1500, %v1768
      %v1891 = vadd.f32 %v1501, %v1773
      %v1892 = vadd.f32 %v1502, %v1778
      %v1893 = vadd.f32 %v1503, %v1783
      %v1894 = vadd.f32 %v1504, %v1788
      %v1895 = vadd.f32 %v1505, %v1793
      %v1896 = vadd.f32 %v1506, %v1798
      %v1897 = vadd.f32 %v1507, %v1803
      %v1898 = vadd.f32 %v1508, %v1808
      %v1899 = vadd.f32 %v1509, %v1813
      %v1900 = vadd.f32 %v1510, %v1818
      %v1901 = vadd.f32 %v1511, %v1823
      %v1902 = vadd.f32 %v1512, %v1828
      %v1903 = vadd.f32 %v1513, %v1833
      %v1904 = vadd.f32 %v1514, %v1838
      %v1905 = vadd.f32 %v1515, %v1843
      %v1906 = vadd.f32 %v1516, %v1848
      %v1907 = vadd.f32 %v1517, %v1853
      %v1908 = vadd.f32 %v1518, %v1858
      %v1909 = vadd.f32 %v1519, %v1863
      %v1910 = vadd.f32 %v1520, %v1868
      %v1911 = vadd.f32 %v1521, %v1873
      %v1912 = vadd.f32 %v1522, %v1878
      %v1913 = vld [vmem:[%s313 + $0x1] sm:$0xff]
      %v1914 = vld [vmem:[%s313 + $0x9] sm:$0xff]
      %v1915 = vld [vmem:[%s313 + $0x19] sm:$0xff]
      %v1916 = vld [vmem:[%s313 + $0x21] sm:$0xff]
      %v1917 = vld [vmem:[%s313 + $0x31] sm:$0xff]
      %v1918 = vld [vmem:[%s313 + $0x39] sm:$0xff]
      %v1919 = vld [vmem:[%s313 + $0x49] sm:$0xff]
      %v1920 = vld [vmem:[%s313 + $0x51] sm:$0xff]
      %v1921 = vld [vmem:[%s313 + $0x61] sm:$0xff]
      %v1922 = vld [vmem:[%s313 + $0x69] sm:$0xff]
      %v1923 = vld [vmem:[%s313 + $0x79] sm:$0xff]
      %v1924 = vld [vmem:[%s313 + $0x81] sm:$0xff]
      %v1925 = vld [vmem:[%s313 + $0x91] sm:$0xff]
      %v1926 = vld [vmem:[%s313 + $0x99] sm:$0xff]
      %v1927 = vld [vmem:[%s313 + $0xa9] sm:$0xff]
      %v1928 = vld [vmem:[%s313 + $0xb1] sm:$0xff]
      %v1929 = vld [vmem:[%s313 + $0xc1] sm:$0xff]
      %v1930 = vld [vmem:[%s313 + $0xc9] sm:$0xff]
      %v1931 = vld [vmem:[%s313 + $0xd9] sm:$0xff]
      %v1932 = vld [vmem:[%s313 + $0xe1] sm:$0xff]
      %v1933 = vld [vmem:[%s313 + $0xf1] sm:$0xff]
      %v1934 = vld [vmem:[%s313 + $0xf9] sm:$0xff]
      %v1935 = vld [vmem:[%s313 + $0x109] sm:$0xff]
      %v1936 = vld [vmem:[%s313 + $0x111] sm:$0xff]
      %v1937 = vld [vmem:[%s313 + $0x121] sm:$0xff]
      %v1938 = vld [vmem:[%s313 + $0x129] sm:$0xff]
      %v1939 = vld [vmem:[%s313 + $0x139] sm:$0xff]
      %v1940 = vld [vmem:[%s313 + $0x141] sm:$0xff]
      %v1941 = vld [vmem:[%s313 + $0x151] sm:$0xff]
      %v1942 = vld [vmem:[%s313 + $0x159] sm:$0xff]
      %v1943 = vld [vmem:[%s313 + $0x169] sm:$0xff]
      %v1944 = vld [vmem:[%s313 + $0x171] sm:$0xff]
      %s1945 = scalar_lea.vmem %s1, 16
      %v1946 = vld [vmem:[%s1945] sm:$0xf]
      %v1948 = vsel %vm225, %v1913, 0
      %v1951 = vsel %vm225, %v1914, 0
      %v1954 = vsel %vm225, %v1915, 0
      %v1957 = vsel %vm225, %v1916, 0
      %v1960 = vsel %vm225, %v1917, 0
      %v1963 = vsel %vm225, %v1918, 0
      %v1966 = vsel %vm225, %v1919, 0
      %v1969 = vsel %vm225, %v1920, 0
      %v1972 = vsel %vm225, %v1921, 0
      %v1975 = vsel %vm225, %v1922, 0
      %v1978 = vsel %vm225, %v1923, 0
      %v1981 = vsel %vm225, %v1924, 0
      %v1984 = vsel %vm225, %v1925, 0
      %v1987 = vsel %vm225, %v1926, 0
      %v1990 = vsel %vm225, %v1927, 0
      %v1993 = vsel %vm225, %v1928, 0
      %v1996 = vsel %vm225, %v1929, 0
      %v1999 = vsel %vm225, %v1930, 0
      %v2002 = vsel %vm225, %v1931, 0
      %v2005 = vsel %vm225, %v1932, 0
      %v2008 = vsel %vm225, %v1933, 0
      %v2011 = vsel %vm225, %v1934, 0
      %v2014 = vsel %vm225, %v1935, 0
      %v2017 = vsel %vm225, %v1936, 0
      %v2020 = vsel %vm225, %v1937, 0
      %v2023 = vsel %vm225, %v1938, 0
      %v2026 = vsel %vm225, %v1939, 0
      %v2029 = vsel %vm225, %v1940, 0
      %v2032 = vsel %vm225, %v1941, 0
      %v2035 = vsel %vm225, %v1942, 0
      %v2038 = vsel %vm225, %v1943, 0
      %v2041 = vsel %vm225, %v1944, 0
      %v2044 = vsel %vm482, %v1946, 0
      %2046 = vmatprep.subr.mxu0 0.0
      %2047 = vmatpush1.msra.mxu0 %v2044
      %2048 = vmatprep.subr.mxu0 0.0
      %2049 = vmatpush1.msra.mxu0 0.0
      %2050 = vmatprep.subr.mxu0 0.0
      %2051 = vmatpush1.msra.mxu0 0.0
      %2052 = vmatprep.subr.mxu0 0.0
      %2053 = vmatpush1.msra.mxu0 0.0
      %2054 = vmatprep.subr.mxu0 0.0
      %2055 = vmatpush1.msra.mxu0 0.0
      %2056 = vmatprep.subr.mxu0 0.0
      %2057 = vmatpush1.msra.mxu0 0.0
      %2058 = vmatprep.subr.mxu0 0.0
      %2059 = vmatpush1.msra.mxu0 0.0
      %2060 = vmatprep.subr.mxu0 0.0
      %2061 = vmatpush1.msra.mxu0 0.0
      %2062 = vmatprep.subr.mxu0 0.0
      %2063 = vmatpush1.msra.mxu0 0.0
      %2064 = vmatprep.subr.mxu0 0.0
      %2065 = vmatpush1.msra.mxu0 0.0
      %2066 = vmatprep.subr.mxu0 0.0
      %2067 = vmatpush1.msra.mxu0 0.0
      %2068 = vmatprep.subr.mxu0 0.0
      %2069 = vmatpush1.msra.mxu0 0.0
      %2070 = vmatprep.subr.mxu0 0.0
      %2071 = vmatpush1.msra.mxu0 0.0
      %2072 = vmatprep.subr.mxu0 0.0
      %2073 = vmatpush1.msra.mxu0 0.0
      %2074 = vmatprep.subr.mxu0 0.0
      %2075 = vmatpush1.msra.mxu0 0.0
      %2076 = vmatprep.subr.mxu0 0.0
      %2077 = vmatpush1.msra.mxu0 0.0
      %2078 = vmatprep.subr.mxu0 0.0
      %2079 = vmatpush1.msra.mxu0 0.0
      %2080 = vmatprep.subr.mxu0 0.0
      %2081 = vmatpush1.msra.mxu0 0.0
      %2082 = vmatprep.subr.mxu0 0.0
      %2083 = vmatpush1.msra.mxu0 0.0
      %2084 = vmatprep.subr.mxu0 0.0
      %2085 = vmatpush1.msra.mxu0 0.0
      %2086 = vmatprep.subr.mxu0 0.0
      %2087 = vmatpush1.msra.mxu0 0.0
      %2088 = vmatprep.subr.mxu0 0.0
      %2089 = vmatpush1.msra.mxu0 0.0
      %2090 = vmatprep.subr.mxu0 0.0
      %2091 = vmatpush1.msra.mxu0 0.0
      %2092 = vmatprep.subr.mxu0 0.0
      %2093 = vmatpush1.msra.mxu0 0.0
      %2094 = vmatprep.subr.mxu0 0.0
      %2095 = vmatpush1.msra.mxu0 0.0
      %2096 = vmatprep.subr.mxu0 0.0
      %2097 = vmatpush1.msra.mxu0 0.0
      %2098 = vmatprep.subr.mxu0 0.0
      %2099 = vmatpush1.msra.mxu0 0.0
      %2100 = vmatprep.subr.mxu0 0.0
      %2101 = vmatpush1.msra.mxu0 0.0
      %2102 = vmatprep.subr.mxu0 0.0
      %2103 = vmatpush1.msra.mxu0 0.0
      %2104 = vmatprep.subr.mxu0 0.0
      %2105 = vmatpush1.msra.mxu0 0.0
      %2106 = vmatprep.subr.mxu0 0.0
      %2107 = vmatpush1.msra.mxu0 0.0
      %2108 = vmatprep.subr.mxu0 0.0
      %2109 = vmatpush1.msra.mxu0 0.0
      %2110 = vmatprep.mubr.f32.mxu0 0.0
      %2111 = vmatmul.mubr.f32.gmra.mrb[0].mxu0 %v1948
      %v2112 = vpop.f32.mrb[0].mxu0
      %v2113 = vadd.f32 0.0, %v2112
      %v2114 = vpop.f32.mrb[0].mxu0
      %2115 = vmatprep.mubr.f32.mxu0 0.0
      %2116 = vmatmul.mubr.f32.gmra.mrb[0].mxu0 %v1951
      %v2117 = vpop.f32.mrb[0].mxu0
      %v2118 = vadd.f32 0.0, %v2117
      %v2119 = vpop.f32.mrb[0].mxu0
      %2120 = vmatprep.mubr.f32.mxu0 0.0
      %2121 = vmatmul.mubr.f32.gmra.mrb[0].mxu0 %v1954
      %v2122 = vpop.f32.mrb[0].mxu0
      %v2123 = vadd.f32 0.0, %v2122
      %v2124 = vpop.f32.mrb[0].mxu0
      %2125 = vmatprep.mubr.f32.mxu0 0.0
      %2126 = vmatmul.mubr.f32.gmra.mrb[0].mxu0 %v1957
      %v2127 = vpop.f32.mrb[0].mxu0
      %v2128 = vadd.f32 0.0, %v2127
      %v2129 = vpop.f32.mrb[0].mxu0
      %2130 = vmatprep.mubr.f32.mxu0 0.0
      %2131 = vmatmul.mubr.f32.gmra.mrb[0].mxu0 %v1960
      %v2132 = vpop.f32.mrb[0].mxu0
      %v2133 = vadd.f32 0.0, %v2132
      %v2134 = vpop.f32.mrb[0].mxu0
      %2135 = vmatprep.mubr.f32.mxu0 0.0
      %2136 = vmatmul.mubr.f32.gmra.mrb[0].mxu0 %v1963
      %v2137 = vpop.f32.mrb[0].mxu0
      %v2138 = vadd.f32 0.0, %v2137
      %v2139 = vpop.f32.mrb[0].mxu0
      %2140 = vmatprep.mubr.f32.mxu0 0.0
      %2141 = vmatmul.mubr.f32.gmra.mrb[0].mxu0 %v1966
      %v2142 = vpop.f32.mrb[0].mxu0
      %v2143 = vadd.f32 0.0, %v2142
      %v2144 = vpop.f32.mrb[0].mxu0
      %2145 = vmatprep.mubr.f32.mxu0 0.0
      %2146 = vmatmul.mubr.f32.gmra.mrb[0].mxu0 %v1969
      %v2147 = vpop.f32.mrb[0].mxu0
      %v2148 = vadd.f32 0.0, %v2147
      %v2149 = vpop.f32.mrb[0].mxu0
      %2150 = vmatprep.mubr.f32.mxu0 0.0
      %2151 = vmatmul.mubr.f32.gmra.mrb[0].mxu0 %v1972
      %v2152 = vpop.f32.mrb[0].mxu0
      %v2153 = vadd.f32 0.0, %v2152
      %v2154 = vpop.f32.mrb[0].mxu0
      %2155 = vmatprep.mubr.f32.mxu0 0.0
      %2156 = vmatmul.mubr.f32.gmra.mrb[0].mxu0 %v1975
      %v2157 = vpop.f32.mrb[0].mxu0
      %v2158 = vadd.f32 0.0, %v2157
      %v2159 = vpop.f32.mrb[0].mxu0
      %2160 = vmatprep.mubr.f32.mxu0 0.0
      %2161 = vmatmul.mubr.f32.gmra.mrb[0].mxu0 %v1978
      %v2162 = vpop.f32.mrb[0].mxu0
      %v2163 = vadd.f32 0.0, %v2162
      %v2164 = vpop.f32.mrb[0].mxu0
      %2165 = vmatprep.mubr.f32.mxu0 0.0
      %2166 = vmatmul.mubr.f32.gmra.mrb[0].mxu0 %v1981
      %v2167 = vpop.f32.mrb[0].mxu0
      %v2168 = vadd.f32 0.0, %v2167
      %v2169 = vpop.f32.mrb[0].mxu0
      %2170 = vmatprep.mubr.f32.mxu0 0.0
      %2171 = vmatmul.mubr.f32.gmra.mrb[0].mxu0 %v1984
      %v2172 = vpop.f32.mrb[0].mxu0
      %v2173 = vadd.f32 0.0, %v2172
      %v2174 = vpop.f32.mrb[0].mxu0
      %2175 = vmatprep.mubr.f32.mxu0 0.0
      %2176 = vmatmul.mubr.f32.gmra.mrb[0].mxu0 %v1987
      %v2177 = vpop.f32.mrb[0].mxu0
      %v2178 = vadd.f32 0.0, %v2177
      %v2179 = vpop.f32.mrb[0].mxu0
      %2180 = vmatprep.mubr.f32.mxu0 0.0
      %2181 = vmatmul.mubr.f32.gmra.mrb[0].mxu0 %v1990
      %v2182 = vpop.f32.mrb[0].mxu0
      %v2183 = vadd.f32 0.0, %v2182
      %v2184 = vpop.f32.mrb[0].mxu0
      %2185 = vmatprep.mubr.f32.mxu0 0.0
      %2186 = vmatmul.mubr.f32.gmra.mrb[0].mxu0 %v1993
      %v2187 = vpop.f32.mrb[0].mxu0
      %v2188 = vadd.f32 0.0, %v2187
      %v2189 = vpop.f32.mrb[0].mxu0
      %2190 = vmatprep.mubr.f32.mxu0 0.0
      %2191 = vmatmul.mubr.f32.gmra.mrb[0].mxu0 %v1996
      %v2192 = vpop.f32.mrb[0].mxu0
      %v2193 = vadd.f32 0.0, %v2192
      %v2194 = vpop.f32.mrb[0].mxu0
      %2195 = vmatprep.mubr.f32.mxu0 0.0
      %2196 = vmatmul.mubr.f32.gmra.mrb[0].mxu0 %v1999
      %v2197 = vpop.f32.mrb[0].mxu0
      %v2198 = vadd.f32 0.0, %v2197
      %v2199 = vpop.f32.mrb[0].mxu0
      %2200 = vmatprep.mubr.f32.mxu0 0.0
      %2201 = vmatmul.mubr.f32.gmra.mrb[0].mxu0 %v2002
      %v2202 = vpop.f32.mrb[0].mxu0
      %v2203 = vadd.f32 0.0, %v2202
      %v2204 = vpop.f32.mrb[0].mxu0
      %2205 = vmatprep.mubr.f32.mxu0 0.0
      %2206 = vmatmul.mubr.f32.gmra.mrb[0].mxu0 %v2005
      %v2207 = vpop.f32.mrb[0].mxu0
      %v2208 = vadd.f32 0.0, %v2207
      %v2209 = vpop.f32.mrb[0].mxu0
      %2210 = vmatprep.mubr.f32.mxu0 0.0
      %2211 = vmatmul.mubr.f32.gmra.mrb[0].mxu0 %v2008
      %v2212 = vpop.f32.mrb[0].mxu0
      %v2213 = vadd.f32 0.0, %v2212
      %v2214 = vpop.f32.mrb[0].mxu0
      %2215 = vmatprep.mubr.f32.mxu0 0.0
      %2216 = vmatmul.mubr.f32.gmra.mrb[0].mxu0 %v2011
      %v2217 = vpop.f32.mrb[0].mxu0
      %v2218 = vadd.f32 0.0, %v2217
      %v2219 = vpop.f32.mrb[0].mxu0
      %2220 = vmatprep.mubr.f32.mxu0 0.0
      %2221 = vmatmul.mubr.f32.gmra.mrb[0].mxu0 %v2014
      %v2222 = vpop.f32.mrb[0].mxu0
      %v2223 = vadd.f32 0.0, %v2222
      %v2224 = vpop.f32.mrb[0].mxu0
      %2225 = vmatprep.mubr.f32.mxu0 0.0
      %2226 = vmatmul.mubr.f32.gmra.mrb[0].mxu0 %v2017
      %v2227 = vpop.f32.mrb[0].mxu0
      %v2228 = vadd.f32 0.0, %v2227
      %v2229 = vpop.f32.mrb[0].mxu0
      %2230 = vmatprep.mubr.f32.mxu0 0.0
      %2231 = vmatmul.mubr.f32.gmra.mrb[0].mxu0 %v2020
      %v2232 = vpop.f32.mrb[0].mxu0
      %v2233 = vadd.f32 0.0, %v2232
      %v2234 = vpop.f32.mrb[0].mxu0
      %2235 = vmatprep.mubr.f32.mxu0 0.0
      %2236 = vmatmul.mubr.f32.gmra.mrb[0].mxu0 %v2023
      %v2237 = vpop.f32.mrb[0].mxu0
      %v2238 = vadd.f32 0.0, %v2237
      %v2239 = vpop.f32.mrb[0].mxu0
      %2240 = vmatprep.mubr.f32.mxu0 0.0
      %2241 = vmatmul.mubr.f32.gmra.mrb[0].mxu0 %v2026
      %v2242 = vpop.f32.mrb[0].mxu0
      %v2243 = vadd.f32 0.0, %v2242
      %v2244 = vpop.f32.mrb[0].mxu0
      %2245 = vmatprep.mubr.f32.mxu0 0.0
      %2246 = vmatmul.mubr.f32.gmra.mrb[0].mxu0 %v2029
      %v2247 = vpop.f32.mrb[0].mxu0
      %v2248 = vadd.f32 0.0, %v2247
      %v2249 = vpop.f32.mrb[0].mxu0
      %2250 = vmatprep.mubr.f32.mxu0 0.0
      %2251 = vmatmul.mubr.f32.gmra.mrb[0].mxu0 %v2032
      %v2252 = vpop.f32.mrb[0].mxu0
      %v2253 = vadd.f32 0.0, %v2252
      %v2254 = vpop.f32.mrb[0].mxu0
      %2255 = vmatprep.mubr.f32.mxu0 0.0
      %2256 = vmatmul.mubr.f32.gmra.mrb[0].mxu0 %v2035
      %v2257 = vpop.f32.mrb[0].mxu0
      %v2258 = vadd.f32 0.0, %v2257
      %v2259 = vpop.f32.mrb[0].mxu0
      %2260 = vmatprep.mubr.f32.mxu0 0.0
      %2261 = vmatmul.mubr.f32.gmra.mrb[0].mxu0 %v2038
      %v2262 = vpop.f32.mrb[0].mxu0
      %v2263 = vadd.f32 0.0, %v2262
      %v2264 = vpop.f32.mrb[0].mxu0
      %2265 = vmatprep.mubr.f32.mxu0 0.0
      %2266 = vmatmul.mubr.f32.gmra.mrb[0].mxu0 %v2041
      %v2267 = vpop.f32.mrb[0].mxu0
      %v2268 = vadd.f32 0.0, %v2267
      %v2269 = vpop.f32.mrb[0].mxu0
      %2270 = vdwg.mxu0
      %v2271 = vadd.f32 %v1881, %v2113
      %v2272 = vadd.f32 %v1882, %v2118
      %v2273 = vadd.f32 %v1883, %v2123
      %v2274 = vadd.f32 %v1884, %v2128
      %v2275 = vadd.f32 %v1885, %v2133
      %v2276 = vadd.f32 %v1886, %v2138
      %v2277 = vadd.f32 %v1887, %v2143
      %v2278 = vadd.f32 %v1888, %v2148
      %v2279 = vadd.f32 %v1889, %v2153
      %v2280 = vadd.f32 %v1890, %v2158
      %v2281 = vadd.f32 %v1891, %v2163
      %v2282 = vadd.f32 %v1892, %v2168
      %v2283 = vadd.f32 %v1893, %v2173
      %v2284 = vadd.f32 %v1894, %v2178
      %v2285 = vadd.f32 %v1895, %v2183
      %v2286 = vadd.f32 %v1896, %v2188
      %v2287 = vadd.f32 %v1897, %v2193
      %v2288 = vadd.f32 %v1898, %v2198
      %v2289 = vadd.f32 %v1899, %v2203
      %v2290 = vadd.f32 %v1900, %v2208
      %v2291 = vadd.f32 %v1901, %v2213
      %v2292 = vadd.f32 %v1902, %v2218
      %v2293 = vadd.f32 %v1903, %v2223
      %v2294 = vadd.f32 %v1904, %v2228
      %v2295 = vadd.f32 %v1905, %v2233
      %v2296 = vadd.f32 %v1906, %v2238
      %v2297 = vadd.f32 %v1907, %v2243
      %v2298 = vadd.f32 %v1908, %v2248
      %v2299 = vadd.f32 %v1909, %v2253
      %v2300 = vadd.f32 %v1910, %v2258
      %v2301 = vadd.f32 %v1911, %v2263
      %v2302 = vadd.f32 %v1912, %v2268
      %v2303 = vld [vmem:[%s313 + $0x2] sm:$0xff]
      %v2304 = vld [vmem:[%s313 + $0xa] sm:$0xff]
      %v2305 = vld [vmem:[%s313 + $0x1a] sm:$0xff]
      %v2306 = vld [vmem:[%s313 + $0x22] sm:$0xff]
      %v2307 = vld [vmem:[%s313 + $0x32] sm:$0xff]
      %v2308 = vld [vmem:[%s313 + $0x3a] sm:$0xff]
      %v2309 = vld [vmem:[%s313 + $0x4a] sm:$0xff]
      %v2310 = vld [vmem:[%s313 + $0x52] sm:$0xff]
      %v2311 = vld [vmem:[%s313 + $0x62] sm:$0xff]
      %v2312 = vld [vmem:[%s313 + $0x6a] sm:$0xff]
      %v2313 = vld [vmem:[%s313 + $0x7a] sm:$0xff]
      %v2314 = vld [vmem:[%s313 + $0x82] sm:$0xff]
      %v2315 = vld [vmem:[%s313 + $0x92] sm:$0xff]
      %v2316 = vld [vmem:[%s313 + $0x9a] sm:$0xff]
      %v2317 = vld [vmem:[%s313 + $0xaa] sm:$0xff]
      %v2318 = vld [vmem:[%s313 + $0xb2] sm:$0xff]
      %v2319 = vld [vmem:[%s313 + $0xc2] sm:$0xff]
      %v2320 = vld [vmem:[%s313 + $0xca] sm:$0xff]
      %v2321 = vld [vmem:[%s313 + $0xda] sm:$0xff]
      %v2322 = vld [vmem:[%s313 + $0xe2] sm:$0xff]
      %v2323 = vld [vmem:[%s313 + $0xf2] sm:$0xff]
      %v2324 = vld [vmem:[%s313 + $0xfa] sm:$0xff]
      %v2325 = vld [vmem:[%s313 + $0x10a] sm:$0xff]
      %v2326 = vld [vmem:[%s313 + $0x112] sm:$0xff]
      %v2327 = vld [vmem:[%s313 + $0x122] sm:$0xff]
      %v2328 = vld [vmem:[%s313 + $0x12a] sm:$0xff]
      %v2329 = vld [vmem:[%s313 + $0x13a] sm:$0xff]
      %v2330 = vld [vmem:[%s313 + $0x142] sm:$0xff]
      %v2331 = vld [vmem:[%s313 + $0x152] sm:$0xff]
      %v2332 = vld [vmem:[%s313 + $0x15a] sm:$0xff]
      %v2333 = vld [vmem:[%s313 + $0x16a] sm:$0xff]
      %v2334 = vld [vmem:[%s313 + $0x172] sm:$0xff]
      %s2335 = scalar_lea.vmem %s1, 20
      %v2336 = vld [vmem:[%s2335] sm:$0xf]
      %v2338 = vsel %vm225, %v2303, 0
      %v2341 = vsel %vm225, %v2304, 0
      %v2344 = vsel %vm225, %v2305, 0
      %v2347 = vsel %vm225, %v2306, 0
      %v2350 = vsel %vm225, %v2307, 0
      %v2353 = vsel %vm225, %v2308, 0
      %v2356 = vsel %vm225, %v2309, 0
      %v2359 = vsel %vm225, %v2310, 0
      %v2362 = vsel %vm225, %v2311, 0
      %v2365 = vsel %vm225, %v2312, 0
      %v2368 = vsel %vm225, %v2313, 0
      %v2371 = vsel %vm225, %v2314, 0
      %v2374 = vsel %vm225, %v2315, 0
      %v2377 = vsel %vm225, %v2316, 0
      %v2380 = vsel %vm225, %v2317, 0
      %v2383 = vsel %vm225, %v2318, 0
      %v2386 = vsel %vm225, %v2319, 0
      %v2389 = vsel %vm225, %v2320, 0
      %v2392 = vsel %vm225, %v2321, 0
      %v2395 = vsel %vm225, %v2322, 0
      %v2398 = vsel %vm225, %v2323, 0
      %v2401 = vsel %vm225, %v2324, 0
      %v2404 = vsel %vm225, %v2325, 0
      %v2407 = vsel %vm225, %v2326, 0
      %v2410 = vsel %vm225, %v2327, 0
      %v2413 = vsel %vm225, %v2328, 0
      %v2416 = vsel %vm225, %v2329, 0
      %v2419 = vsel %vm225, %v2330, 0
      %v2422 = vsel %vm225, %v2331, 0
      %v2425 = vsel %vm225, %v2332, 0
      %v2428 = vsel %vm225, %v2333, 0
      %v2431 = vsel %vm225, %v2334, 0
      %v2434 = vsel %vm482, %v2336, 0
      %2436 = vmatprep.subr.mxu0 0.0
      %2437 = vmatpush1.msra.mxu0 %v2434
      %2438 = vmatprep.subr.mxu0 0.0
      %2439 = vmatpush1.msra.mxu0 0.0
      %2440 = vmatprep.subr.mxu0 0.0
      %2441 = vmatpush1.msra.mxu0 0.0
      %2442 = vmatprep.subr.mxu0 0.0
      %2443 = vmatpush1.msra.mxu0 0.0
      %2444 = vmatprep.subr.mxu0 0.0
      %2445 = vmatpush1.msra.mxu0 0.0
      %2446 = vmatprep.subr.mxu0 0.0
      %2447 = vmatpush1.msra.mxu0 0.0
      %2448 = vmatprep.subr.mxu0 0.0
      %2449 = vmatpush1.msra.mxu0 0.0
      %2450 = vmatprep.subr.mxu0 0.0
      %2451 = vmatpush1.msra.mxu0 0.0
      %2452 = vmatprep.subr.mxu0 0.0
      %2453 = vmatpush1.msra.mxu0 0.0
      %2454 = vmatprep.subr.mxu0 0.0
      %2455 = vmatpush1.msra.mxu0 0.0
      %2456 = vmatprep.subr.mxu0 0.0
      %2457 = vmatpush1.msra.mxu0 0.0
      %2458 = vmatprep.subr.mxu0 0.0
      %2459 = vmatpush1.msra.mxu0 0.0
      %2460 = vmatprep.subr.mxu0 0.0
      %2461 = vmatpush1.msra.mxu0 0.0
      %2462 = vmatprep.subr.mxu0 0.0
      %2463 = vmatpush1.msra.mxu0 0.0
      %2464 = vmatprep.subr.mxu0 0.0
      %2465 = vmatpush1.msra.mxu0 0.0
      %2466 = vmatprep.subr.mxu0 0.0
      %2467 = vmatpush1.msra.mxu0 0.0
      %2468 = vmatprep.subr.mxu0 0.0
      %2469 = vmatpush1.msra.mxu0 0.0
      %2470 = vmatprep.subr.mxu0 0.0
      %2471 = vmatpush1.msra.mxu0 0.0
      %2472 = vmatprep.subr.mxu0 0.0
      %2473 = vmatpush1.msra.mxu0 0.0
      %2474 = vmatprep.subr.mxu0 0.0
      %2475 = vmatpush1.msra.mxu0 0.0
      %2476 = vmatprep.subr.mxu0 0.0
      %2477 = vmatpush1.msra.mxu0 0.0
      %2478 = vmatprep.subr.mxu0 0.0
      %2479 = vmatpush1.msra.mxu0 0.0
      %2480 = vmatprep.subr.mxu0 0.0
      %2481 = vmatpush1.msra.mxu0 0.0
      %2482 = vmatprep.subr.mxu0 0.0
      %2483 = vmatpush1.msra.mxu0 0.0
      %2484 = vmatprep.subr.mxu0 0.0
      %2485 = vmatpush1.msra.mxu0 0.0
      %2486 = vmatprep.subr.mxu0 0.0
      %2487 = vmatpush1.msra.mxu0 0.0
      %2488 = vmatprep.subr.mxu0 0.0
      %2489 = vmatpush1.msra.mxu0 0.0
      %2490 = vmatprep.subr.mxu0 0.0
      %2491 = vmatpush1.msra.mxu0 0.0
      %2492 = vmatprep.subr.mxu0 0.0
      %2493 = vmatpush1.msra.mxu0 0.0
      %2494 = vmatprep.subr.mxu0 0.0
      %2495 = vmatpush1.msra.mxu0 0.0
      %2496 = vmatprep.subr.mxu0 0.0
      %2497 = vmatpush1.msra.mxu0 0.0
      %2498 = vmatprep.subr.mxu0 0.0
      %2499 = vmatpush1.msra.mxu0 0.0
      %2500 = vmatprep.mubr.f32.mxu0 0.0
      %2501 = vmatmul.mubr.f32.gmra.mrb[0].mxu0 %v2338
      %v2502 = vpop.f32.mrb[0].mxu0
      %v2503 = vadd.f32 0.0, %v2502
      %v2504 = vpop.f32.mrb[0].mxu0
      %2505 = vmatprep.mubr.f32.mxu0 0.0
      %2506 = vmatmul.mubr.f32.gmra.mrb[0].mxu0 %v2341
      %v2507 = vpop.f32.mrb[0].mxu0
      %v2508 = vadd.f32 0.0, %v2507
      %v2509 = vpop.f32.mrb[0].mxu0
      %2510 = vmatprep.mubr.f32.mxu0 0.0
      %2511 = vmatmul.mubr.f32.gmra.mrb[0].mxu0 %v2344
      %v2512 = vpop.f32.mrb[0].mxu0
      %v2513 = vadd.f32 0.0, %v2512
      %v2514 = vpop.f32.mrb[0].mxu0
      %2515 = vmatprep.mubr.f32.mxu0 0.0
      %2516 = vmatmul.mubr.f32.gmra.mrb[0].mxu0 %v2347
      %v2517 = vpop.f32.mrb[0].mxu0
      %v2518 = vadd.f32 0.0, %v2517
      %v2519 = vpop.f32.mrb[0].mxu0
      %2520 = vmatprep.mubr.f32.mxu0 0.0
      %2521 = vmatmul.mubr.f32.gmra.mrb[0].mxu0 %v2350
      %v2522 = vpop.f32.mrb[0].mxu0
      %v2523 = vadd.f32 0.0, %v2522
      %v2524 = vpop.f32.mrb[0].mxu0
      %2525 = vmatprep.mubr.f32.mxu0 0.0
      %2526 = vmatmul.mubr.f32.gmra.mrb[0].mxu0 %v2353
      %v2527 = vpop.f32.mrb[0].mxu0
      %v2528 = vadd.f32 0.0, %v2527
      %v2529 = vpop.f32.mrb[0].mxu0
      %2530 = vmatprep.mubr.f32.mxu0 0.0
      %2531 = vmatmul.mubr.f32.gmra.mrb[0].mxu0 %v2356
      %v2532 = vpop.f32.mrb[0].mxu0
      %v2533 = vadd.f32 0.0, %v2532
      %v2534 = vpop.f32.mrb[0].mxu0
      %2535 = vmatprep.mubr.f32.mxu0 0.0
      %2536 = vmatmul.mubr.f32.gmra.mrb[0].mxu0 %v2359
      %v2537 = vpop.f32.mrb[0].mxu0
      %v2538 = vadd.f32 0.0, %v2537
      %v2539 = vpop.f32.mrb[0].mxu0
      %2540 = vmatprep.mubr.f32.mxu0 0.0
      %2541 = vmatmul.mubr.f32.gmra.mrb[0].mxu0 %v2362
      %v2542 = vpop.f32.mrb[0].mxu0
      %v2543 = vadd.f32 0.0, %v2542
      %v2544 = vpop.f32.mrb[0].mxu0
      %2545 = vmatprep.mubr.f32.mxu0 0.0
      %2546 = vmatmul.mubr.f32.gmra.mrb[0].mxu0 %v2365
      %v2547 = vpop.f32.mrb[0].mxu0
      %v2548 = vadd.f32 0.0, %v2547
      %v2549 = vpop.f32.mrb[0].mxu0
      %2550 = vmatprep.mubr.f32.mxu0 0.0
      %2551 = vmatmul.mubr.f32.gmra.mrb[0].mxu0 %v2368
      %v2552 = vpop.f32.mrb[0].mxu0
      %v2553 = vadd.f32 0.0, %v2552
      %v2554 = vpop.f32.mrb[0].mxu0
      %2555 = vmatprep.mubr.f32.mxu0 0.0
      %2556 = vmatmul.mubr.f32.gmra.mrb[0].mxu0 %v2371
      %v2557 = vpop.f32.mrb[0].mxu0
      %v2558 = vadd.f32 0.0, %v2557
      %v2559 = vpop.f32.mrb[0].mxu0
      %2560 = vmatprep.mubr.f32.mxu0 0.0
      %2561 = vmatmul.mubr.f32.gmra.mrb[0].mxu0 %v2374
      %v2562 = vpop.f32.mrb[0].mxu0
      %v2563 = vadd.f32 0.0, %v2562
      %v2564 = vpop.f32.mrb[0].mxu0
      %2565 = vmatprep.mubr.f32.mxu0 0.0
      %2566 = vmatmul.mubr.f32.gmra.mrb[0].mxu0 %v2377
      %v2567 = vpop.f32.mrb[0].mxu0
      %v2568 = vadd.f32 0.0, %v2567
      %v2569 = vpop.f32.mrb[0].mxu0
      %2570 = vmatprep.mubr.f32.mxu0 0.0
      %2571 = vmatmul.mubr.f32.gmra.mrb[0].mxu0 %v2380
      %v2572 = vpop.f32.mrb[0].mxu0
      %v2573 = vadd.f32 0.0, %v2572
      %v2574 = vpop.f32.mrb[0].mxu0
      %2575 = vmatprep.mubr.f32.mxu0 0.0
      %2576 = vmatmul.mubr.f32.gmra.mrb[0].mxu0 %v2383
      %v2577 = vpop.f32.mrb[0].mxu0
      %v2578 = vadd.f32 0.0, %v2577
      %v2579 = vpop.f32.mrb[0].mxu0
      %2580 = vmatprep.mubr.f32.mxu0 0.0
      %2581 = vmatmul.mubr.f32.gmra.mrb[0].mxu0 %v2386
      %v2582 = vpop.f32.mrb[0].mxu0
      %v2583 = vadd.f32 0.0, %v2582
      %v2584 = vpop.f32.mrb[0].mxu0
      %2585 = vmatprep.mubr.f32.mxu0 0.0
      %2586 = vmatmul.mubr.f32.gmra.mrb[0].mxu0 %v2389
      %v2587 = vpop.f32.mrb[0].mxu0
      %v2588 = vadd.f32 0.0, %v2587
      %v2589 = vpop.f32.mrb[0].mxu0
      %2590 = vmatprep.mubr.f32.mxu0 0.0
      %2591 = vmatmul.mubr.f32.gmra.mrb[0].mxu0 %v2392
      %v2592 = vpop.f32.mrb[0].mxu0
      %v2593 = vadd.f32 0.0, %v2592
      %v2594 = vpop.f32.mrb[0].mxu0
      %2595 = vmatprep.mubr.f32.mxu0 0.0
      %2596 = vmatmul.mubr.f32.gmra.mrb[0].mxu0 %v2395
      %v2597 = vpop.f32.mrb[0].mxu0
      %v2598 = vadd.f32 0.0, %v2597
      %v2599 = vpop.f32.mrb[0].mxu0
      %2600 = vmatprep.mubr.f32.mxu0 0.0
      %2601 = vmatmul.mubr.f32.gmra.mrb[0].mxu0 %v2398
      %v2602 = vpop.f32.mrb[0].mxu0
      %v2603 = vadd.f32 0.0, %v2602
      %v2604 = vpop.f32.mrb[0].mxu0
      %2605 = vmatprep.mubr.f32.mxu0 0.0
      %2606 = vmatmul.mubr.f32.gmra.mrb[0].mxu0 %v2401
      %v2607 = vpop.f32.mrb[0].mxu0
      %v2608 = vadd.f32 0.0, %v2607
      %v2609 = vpop.f32.mrb[0].mxu0
      %2610 = vmatprep.mubr.f32.mxu0 0.0
      %2611 = vmatmul.mubr.f32.gmra.mrb[0].mxu0 %v2404
      %v2612 = vpop.f32.mrb[0].mxu0
      %v2613 = vadd.f32 0.0, %v2612
      %v2614 = vpop.f32.mrb[0].mxu0
      %2615 = vmatprep.mubr.f32.mxu0 0.0
      %2616 = vmatmul.mubr.f32.gmra.mrb[0].mxu0 %v2407
      %v2617 = vpop.f32.mrb[0].mxu0
      %v2618 = vadd.f32 0.0, %v2617
      %v2619 = vpop.f32.mrb[0].mxu0
      %2620 = vmatprep.mubr.f32.mxu0 0.0
      %2621 = vmatmul.mubr.f32.gmra.mrb[0].mxu0 %v2410
      %v2622 = vpop.f32.mrb[0].mxu0
      %v2623 = vadd.f32 0.0, %v2622
      %v2624 = vpop.f32.mrb[0].mxu0
      %2625 = vmatprep.mubr.f32.mxu0 0.0
      %2626 = vmatmul.mubr.f32.gmra.mrb[0].mxu0 %v2413
      %v2627 = vpop.f32.mrb[0].mxu0
      %v2628 = vadd.f32 0.0, %v2627
      %v2629 = vpop.f32.mrb[0].mxu0
      %2630 = vmatprep.mubr.f32.mxu0 0.0
      %2631 = vmatmul.mubr.f32.gmra.mrb[0].mxu0 %v2416
      %v2632 = vpop.f32.mrb[0].mxu0
      %v2633 = vadd.f32 0.0, %v2632
      %v2634 = vpop.f32.mrb[0].mxu0
      %2635 = vmatprep.mubr.f32.mxu0 0.0
      %2636 = vmatmul.mubr.f32.gmra.mrb[0].mxu0 %v2419
      %v2637 = vpop.f32.mrb[0].mxu0
      %v2638 = vadd.f32 0.0, %v2637
      %v2639 = vpop.f32.mrb[0].mxu0
      %2640 = vmatprep.mubr.f32.mxu0 0.0
      %2641 = vmatmul.mubr.f32.gmra.mrb[0].mxu0 %v2422
      %v2642 = vpop.f32.mrb[0].mxu0
      %v2643 = vadd.f32 0.0, %v2642
      %v2644 = vpop.f32.mrb[0].mxu0
      %2645 = vmatprep.mubr.f32.mxu0 0.0
      %2646 = vmatmul.mubr.f32.gmra.mrb[0].mxu0 %v2425
      %v2647 = vpop.f32.mrb[0].mxu0
      %v2648 = vadd.f32 0.0, %v2647
      %v2649 = vpop.f32.mrb[0].mxu0
      %2650 = vmatprep.mubr.f32.mxu0 0.0
      %2651 = vmatmul.mubr.f32.gmra.mrb[0].mxu0 %v2428
      %v2652 = vpop.f32.mrb[0].mxu0
      %v2653 = vadd.f32 0.0, %v2652
      %v2654 = vpop.f32.mrb[0].mxu0
      %2655 = vmatprep.mubr.f32.mxu0 0.0
      %2656 = vmatmul.mubr.f32.gmra.mrb[0].mxu0 %v2431
      %v2657 = vpop.f32.mrb[0].mxu0
      %v2658 = vadd.f32 0.0, %v2657
      %v2659 = vpop.f32.mrb[0].mxu0
      %2660 = vdwg.mxu0
      %v2661 = vadd.f32 %v2271, %v2503
      %v2662 = vadd.f32 %v2272, %v2508
      %v2663 = vadd.f32 %v2273, %v2513
      %v2664 = vadd.f32 %v2274, %v2518
      %v2665 = vadd.f32 %v2275, %v2523
      %v2666 = vadd.f32 %v2276, %v2528
      %v2667 = vadd.f32 %v2277, %v2533
      %v2668 = vadd.f32 %v2278, %v2538
      %v2669 = vadd.f32 %v2279, %v2543
      %v2670 = vadd.f32 %v2280, %v2548
      %v2671 = vadd.f32 %v2281, %v2553
      %v2672 = vadd.f32 %v2282, %v2558
      %v2673 = vadd.f32 %v2283, %v2563
      %v2674 = vadd.f32 %v2284, %v2568
      %v2675 = vadd.f32 %v2285, %v2573
      %v2676 = vadd.f32 %v2286, %v2578
      %v2677 = vadd.f32 %v2287, %v2583
      %v2678 = vadd.f32 %v2288, %v2588
      %v2679 = vadd.f32 %v2289, %v2593
      %v2680 = vadd.f32 %v2290, %v2598
      %v2681 = vadd.f32 %v2291, %v2603
      %v2682 = vadd.f32 %v2292, %v2608
      %v2683 = vadd.f32 %v2293, %v2613
      %v2684 = vadd.f32 %v2294, %v2618
      %v2685 = vadd.f32 %v2295, %v2623
      %v2686 = vadd.f32 %v2296, %v2628
      %v2687 = vadd.f32 %v2297, %v2633
      %v2688 = vadd.f32 %v2298, %v2638
      %v2689 = vadd.f32 %v2299, %v2643
      %v2690 = vadd.f32 %v2300, %v2648
      %v2691 = vadd.f32 %v2301, %v2653
      %v2692 = vadd.f32 %v2302, %v2658
      %s2693 = scalar_lea.vmem [#allocation2], 48
      %v2694 = vld [vmem:[%s2693] sm:$0xff]
      %v2695 = vld [vmem:[%s2693 + $0x8] sm:$0xff]
      %v2696 = vld [vmem:[%s2693 + $0x18] sm:$0xff]
      %v2697 = vld [vmem:[%s2693 + $0x20] sm:$0xff]
      %v2698 = vld [vmem:[%s2693 + $0x30] sm:$0xff]
      %v2699 = vld [vmem:[%s2693 + $0x38] sm:$0xff]
      %v2700 = vld [vmem:[%s2693 + $0x48] sm:$0xff]
      %v2701 = vld [vmem:[%s2693 + $0x50] sm:$0xff]
      %v2702 = vld [vmem:[%s2693 + $0x60] sm:$0xff]
      %v2703 = vld [vmem:[%s2693 + $0x68] sm:$0xff]
      %v2704 = vld [vmem:[%s2693 + $0x78] sm:$0xff]
      %v2705 = vld [vmem:[%s2693 + $0x80] sm:$0xff]
      %v2706 = vld [vmem:[%s2693 + $0x90] sm:$0xff]
      %v2707 = vld [vmem:[%s2693 + $0x98] sm:$0xff]
      %v2708 = vld [vmem:[%s2693 + $0xa8] sm:$0xff]
      %v2709 = vld [vmem:[%s2693 + $0xb0] sm:$0xff]
      %v2710 = vld [vmem:[%s2693 + $0xc0] sm:$0xff]
      %v2711 = vld [vmem:[%s2693 + $0xc8] sm:$0xff]
      %v2712 = vld [vmem:[%s2693 + $0xd8] sm:$0xff]
      %v2713 = vld [vmem:[%s2693 + $0xe0] sm:$0xff]
      %v2714 = vld [vmem:[%s2693 + $0xf0] sm:$0xff]
      %v2715 = vld [vmem:[%s2693 + $0xf8] sm:$0xff]
      %v2716 = vld [vmem:[%s2693 + $0x108] sm:$0xff]
      %v2717 = vld [vmem:[%s2693 + $0x110] sm:$0xff]
      %v2718 = vld [vmem:[%s2693 + $0x120] sm:$0xff]
      %v2719 = vld [vmem:[%s2693 + $0x128] sm:$0xff]
      %v2720 = vld [vmem:[%s2693 + $0x138] sm:$0xff]
      %v2721 = vld [vmem:[%s2693 + $0x140] sm:$0xff]
      %v2722 = vld [vmem:[%s2693 + $0x150] sm:$0xff]
      %v2723 = vld [vmem:[%s2693 + $0x158] sm:$0xff]
      %v2724 = vld [vmem:[%s2693 + $0x168] sm:$0xff]
      %v2725 = vld [vmem:[%s2693 + $0x170] sm:$0xff]
      %s2726 = scalar_lea.vmem %s1, 24
      %v2727 = vld [vmem:[%s2726] sm:$0xf]
      %v2729 = vsel %vm225, %v2694, 0
      %v2732 = vsel %vm225, %v2695, 0
      %v2735 = vsel %vm225, %v2696, 0
      %v2738 = vsel %vm225, %v2697, 0
      %v2741 = vsel %vm225, %v2698, 0
      %v2744 = vsel %vm225, %v2699, 0
      %v2747 = vsel %vm225, %v2700, 0
      %v2750 = vsel %vm225, %v2701, 0
      %v2753 = vsel %vm225, %v2702, 0
      %v2756 = vsel %vm225, %v2703, 0
      %v2759 = vsel %vm225, %v2704, 0
      %v2762 = vsel %vm225, %v2705, 0
      %v2765 = vsel %vm225, %v2706, 0
      %v2768 = vsel %vm225, %v2707, 0
      %v2771 = vsel %vm225, %v2708, 0
      %v2774 = vsel %vm225, %v2709, 0
      %v2777 = vsel %vm225, %v2710, 0
      %v2780 = vsel %vm225, %v2711, 0
      %v2783 = vsel %vm225, %v2712, 0
      %v2786 = vsel %vm225, %v2713, 0
      %v2789 = vsel %vm225, %v2714, 0
      %v2792 = vsel %vm225, %v2715, 0
      %v2795 = vsel %vm225, %v2716, 0
      %v2798 = vsel %vm225, %v2717, 0
      %v2801 = vsel %vm225, %v2718, 0
      %v2804 = vsel %vm225, %v2719, 0
      %v2807 = vsel %vm225, %v2720, 0
      %v2810 = vsel %vm225, %v2721, 0
      %v2813 = vsel %vm225, %v2722, 0
      %v2816 = vsel %vm225, %v2723, 0
      %v2819 = vsel %vm225, %v2724, 0
      %v2822 = vsel %vm225, %v2725, 0
      %v2825 = vsel %vm482, %v2727, 0
      %2827 = vmatprep.subr.mxu0 0.0
      %2828 = vmatpush1.msra.mxu0 %v2825
      %2829 = vmatprep.subr.mxu0 0.0
      %2830 = vmatpush1.msra.mxu0 0.0
      %2831 = vmatprep.subr.mxu0 0.0
      %2832 = vmatpush1.msra.mxu0 0.0
      %2833 = vmatprep.subr.mxu0 0.0
      %2834 = vmatpush1.msra.mxu0 0.0
      %2835 = vmatprep.subr.mxu0 0.0
      %2836 = vmatpush1.msra.mxu0 0.0
      %2837 = vmatprep.subr.mxu0 0.0
      %2838 = vmatpush1.msra.mxu0 0.0
      %2839 = vmatprep.subr.mxu0 0.0
      %2840 = vmatpush1.msra.mxu0 0.0
      %2841 = vmatprep.subr.mxu0 0.0
      %2842 = vmatpush1.msra.mxu0 0.0
      %2843 = vmatprep.subr.mxu0 0.0
      %2844 = vmatpush1.msra.mxu0 0.0
      %2845 = vmatprep.subr.mxu0 0.0
      %2846 = vmatpush1.msra.mxu0 0.0
      %2847 = vmatprep.subr.mxu0 0.0
      %2848 = vmatpush1.msra.mxu0 0.0
      %2849 = vmatprep.subr.mxu0 0.0
      %2850 = vmatpush1.msra.mxu0 0.0
      %2851 = vmatprep.subr.mxu0 0.0
      %2852 = vmatpush1.msra.mxu0 0.0
      %2853 = vmatprep.subr.mxu0 0.0
      %2854 = vmatpush1.msra.mxu0 0.0
      %2855 = vmatprep.subr.mxu0 0.0
      %2856 = vmatpush1.msra.mxu0 0.0
      %2857 = vmatprep.subr.mxu0 0.0
      %2858 = vmatpush1.msra.mxu0 0.0
      %2859 = vmatprep.subr.mxu0 0.0
      %2860 = vmatpush1.msra.mxu0 0.0
      %2861 = vmatprep.subr.mxu0 0.0
      %2862 = vmatpush1.msra.mxu0 0.0
      %2863 = vmatprep.subr.mxu0 0.0
      %2864 = vmatpush1.msra.mxu0 0.0
      %2865 = vmatprep.subr.mxu0 0.0
      %2866 = vmatpush1.msra.mxu0 0.0
      %2867 = vmatprep.subr.mxu0 0.0
      %2868 = vmatpush1.msra.mxu0 0.0
      %2869 = vmatprep.subr.mxu0 0.0
      %2870 = vmatpush1.msra.mxu0 0.0
      %2871 = vmatprep.subr.mxu0 0.0
      %2872 = vmatpush1.msra.mxu0 0.0
      %2873 = vmatprep.subr.mxu0 0.0
      %2874 = vmatpush1.msra.mxu0 0.0
      %2875 = vmatprep.subr.mxu0 0.0
      %2876 = vmatpush1.msra.mxu0 0.0
      %2877 = vmatprep.subr.mxu0 0.0
      %2878 = vmatpush1.msra.mxu0 0.0
      %2879 = vmatprep.subr.mxu0 0.0
      %2880 = vmatpush1.msra.mxu0 0.0
      %2881 = vmatprep.subr.mxu0 0.0
      %2882 = vmatpush1.msra.mxu0 0.0
      %2883 = vmatprep.subr.mxu0 0.0
      %2884 = vmatpush1.msra.mxu0 0.0
      %2885 = vmatprep.subr.mxu0 0.0
      %2886 = vmatpush1.msra.mxu0 0.0
      %2887 = vmatprep.subr.mxu0 0.0
      %2888 = vmatpush1.msra.mxu0 0.0
      %2889 = vmatprep.subr.mxu0 0.0
      %2890 = vmatpush1.msra.mxu0 0.0
      %2891 = vmatprep.mubr.f32.mxu0 0.0
      %2892 = vmatmul.mubr.f32.gmra.mrb[0].mxu0 %v2729
      %v2893 = vpop.f32.mrb[0].mxu0
      %v2894 = vadd.f32 0.0, %v2893
      %v2895 = vpop.f32.mrb[0].mxu0
      %2896 = vmatprep.mubr.f32.mxu0 0.0
      %2897 = vmatmul.mubr.f32.gmra.mrb[0].mxu0 %v2732
      %v2898 = vpop.f32.mrb[0].mxu0
      %v2899 = vadd.f32 0.0, %v2898
      %v2900 = vpop.f32.mrb[0].mxu0
      %2901 = vmatprep.mubr.f32.mxu0 0.0
      %2902 = vmatmul.mubr.f32.gmra.mrb[0].mxu0 %v2735
      %v2903 = vpop.f32.mrb[0].mxu0
      %v2904 = vadd.f32 0.0, %v2903
      %v2905 = vpop.f32.mrb[0].mxu0
      %2906 = vmatprep.mubr.f32.mxu0 0.0
      %2907 = vmatmul.mubr.f32.gmra.mrb[0].mxu0 %v2738
      %v2908 = vpop.f32.mrb[0].mxu0
      %v2909 = vadd.f32 0.0, %v2908
      %v2910 = vpop.f32.mrb[0].mxu0
      %2911 = vmatprep.mubr.f32.mxu0 0.0
      %2912 = vmatmul.mubr.f32.gmra.mrb[0].mxu0 %v2741
      %v2913 = vpop.f32.mrb[0].mxu0
      %v2914 = vadd.f32 0.0, %v2913
      %v2915 = vpop.f32.mrb[0].mxu0
      %2916 = vmatprep.mubr.f32.mxu0 0.0
      %2917 = vmatmul.mubr.f32.gmra.mrb[0].mxu0 %v2744
      %v2918 = vpop.f32.mrb[0].mxu0
      %v2919 = vadd.f32 0.0, %v2918
      %v2920 = vpop.f32.mrb[0].mxu0
      %2921 = vmatprep.mubr.f32.mxu0 0.0
      %2922 = vmatmul.mubr.f32.gmra.mrb[0].mxu0 %v2747
      %v2923 = vpop.f32.mrb[0].mxu0
      %v2924 = vadd.f32 0.0, %v2923
      %v2925 = vpop.f32.mrb[0].mxu0
      %2926 = vmatprep.mubr.f32.mxu0 0.0
      %2927 = vmatmul.mubr.f32.gmra.mrb[0].mxu0 %v2750
      %v2928 = vpop.f32.mrb[0].mxu0
      %v2929 = vadd.f32 0.0, %v2928
      %v2930 = vpop.f32.mrb[0].mxu0
      %2931 = vmatprep.mubr.f32.mxu0 0.0
      %2932 = vmatmul.mubr.f32.gmra.mrb[0].mxu0 %v2753
      %v2933 = vpop.f32.mrb[0].mxu0
      %v2934 = vadd.f32 0.0, %v2933
      %v2935 = vpop.f32.mrb[0].mxu0
      %2936 = vmatprep.mubr.f32.mxu0 0.0
      %2937 = vmatmul.mubr.f32.gmra.mrb[0].mxu0 %v2756
      %v2938 = vpop.f32.mrb[0].mxu0
      %v2939 = vadd.f32 0.0, %v2938
      %v2940 = vpop.f32.mrb[0].mxu0
      %2941 = vmatprep.mubr.f32.mxu0 0.0
      %2942 = vmatmul.mubr.f32.gmra.mrb[0].mxu0 %v2759
      %v2943 = vpop.f32.mrb[0].mxu0
      %v2944 = vadd.f32 0.0, %v2943
      %v2945 = vpop.f32.mrb[0].mxu0
      %2946 = vmatprep.mubr.f32.mxu0 0.0
      %2947 = vmatmul.mubr.f32.gmra.mrb[0].mxu0 %v2762
      %v2948 = vpop.f32.mrb[0].mxu0
      %v2949 = vadd.f32 0.0, %v2948
      %v2950 = vpop.f32.mrb[0].mxu0
      %2951 = vmatprep.mubr.f32.mxu0 0.0
      %2952 = vmatmul.mubr.f32.gmra.mrb[0].mxu0 %v2765
      %v2953 = vpop.f32.mrb[0].mxu0
      %v2954 = vadd.f32 0.0, %v2953
      %v2955 = vpop.f32.mrb[0].mxu0
      %2956 = vmatprep.mubr.f32.mxu0 0.0
      %2957 = vmatmul.mubr.f32.gmra.mrb[0].mxu0 %v2768
      %v2958 = vpop.f32.mrb[0].mxu0
      %v2959 = vadd.f32 0.0, %v2958
      %v2960 = vpop.f32.mrb[0].mxu0
      %2961 = vmatprep.mubr.f32.mxu0 0.0
      %2962 = vmatmul.mubr.f32.gmra.mrb[0].mxu0 %v2771
      %v2963 = vpop.f32.mrb[0].mxu0
      %v2964 = vadd.f32 0.0, %v2963
      %v2965 = vpop.f32.mrb[0].mxu0
      %2966 = vmatprep.mubr.f32.mxu0 0.0
      %2967 = vmatmul.mubr.f32.gmra.mrb[0].mxu0 %v2774
      %v2968 = vpop.f32.mrb[0].mxu0
      %v2969 = vadd.f32 0.0, %v2968
      %v2970 = vpop.f32.mrb[0].mxu0
      %2971 = vmatprep.mubr.f32.mxu0 0.0
      %2972 = vmatmul.mubr.f32.gmra.mrb[0].mxu0 %v2777
      %v2973 = vpop.f32.mrb[0].mxu0
      %v2974 = vadd.f32 0.0, %v2973
      %v2975 = vpop.f32.mrb[0].mxu0
      %2976 = vmatprep.mubr.f32.mxu0 0.0
      %2977 = vmatmul.mubr.f32.gmra.mrb[0].mxu0 %v2780
      %v2978 = vpop.f32.mrb[0].mxu0
      %v2979 = vadd.f32 0.0, %v2978
      %v2980 = vpop.f32.mrb[0].mxu0
      %2981 = vmatprep.mubr.f32.mxu0 0.0
      %2982 = vmatmul.mubr.f32.gmra.mrb[0].mxu0 %v2783
      %v2983 = vpop.f32.mrb[0].mxu0
      %v2984 = vadd.f32 0.0, %v2983
      %v2985 = vpop.f32.mrb[0].mxu0
      %2986 = vmatprep.mubr.f32.mxu0 0.0
      %2987 = vmatmul.mubr.f32.gmra.mrb[0].mxu0 %v2786
      %v2988 = vpop.f32.mrb[0].mxu0
      %v2989 = vadd.f32 0.0, %v2988
      %v2990 = vpop.f32.mrb[0].mxu0
      %2991 = vmatprep.mubr.f32.mxu0 0.0
      %2992 = vmatmul.mubr.f32.gmra.mrb[0].mxu0 %v2789
      %v2993 = vpop.f32.mrb[0].mxu0
      %v2994 = vadd.f32 0.0, %v2993
      %v2995 = vpop.f32.mrb[0].mxu0
      %2996 = vmatprep.mubr.f32.mxu0 0.0
      %2997 = vmatmul.mubr.f32.gmra.mrb[0].mxu0 %v2792
      %v2998 = vpop.f32.mrb[0].mxu0
      %v2999 = vadd.f32 0.0, %v2998
      %v3000 = vpop.f32.mrb[0].mxu0
      %3001 = vmatprep.mubr.f32.mxu0 0.0
      %3002 = vmatmul.mubr.f32.gmra.mrb[0].mxu0 %v2795
      %v3003 = vpop.f32.mrb[0].mxu0
      %v3004 = vadd.f32 0.0, %v3003
      %v3005 = vpop.f32.mrb[0].mxu0
      %3006 = vmatprep.mubr.f32.mxu0 0.0
      %3007 = vmatmul.mubr.f32.gmra.mrb[0].mxu0 %v2798
      %v3008 = vpop.f32.mrb[0].mxu0
      %v3009 = vadd.f32 0.0, %v3008
      %v3010 = vpop.f32.mrb[0].mxu0
      %3011 = vmatprep.mubr.f32.mxu0 0.0
      %3012 = vmatmul.mubr.f32.gmra.mrb[0].mxu0 %v2801
      %v3013 = vpop.f32.mrb[0].mxu0
      %v3014 = vadd.f32 0.0, %v3013
      %v3015 = vpop.f32.mrb[0].mxu0
      %3016 = vmatprep.mubr.f32.mxu0 0.0
      %3017 = vmatmul.mubr.f32.gmra.mrb[0].mxu0 %v2804
      %v3018 = vpop.f32.mrb[0].mxu0
      %v3019 = vadd.f32 0.0, %v3018
      %v3020 = vpop.f32.mrb[0].mxu0
      %3021 = vmatprep.mubr.f32.mxu0 0.0
      %3022 = vmatmul.mubr.f32.gmra.mrb[0].mxu0 %v2807
      %v3023 = vpop.f32.mrb[0].mxu0
      %v3024 = vadd.f32 0.0, %v3023
      %v3025 = vpop.f32.mrb[0].mxu0
      %3026 = vmatprep.mubr.f32.mxu0 0.0
      %3027 = vmatmul.mubr.f32.gmra.mrb[0].mxu0 %v2810
      %v3028 = vpop.f32.mrb[0].mxu0
      %v3029 = vadd.f32 0.0, %v3028
      %v3030 = vpop.f32.mrb[0].mxu0
      %3031 = vmatprep.mubr.f32.mxu0 0.0
      %3032 = vmatmul.mubr.f32.gmra.mrb[0].mxu0 %v2813
      %v3033 = vpop.f32.mrb[0].mxu0
      %v3034 = vadd.f32 0.0, %v3033
      %v3035 = vpop.f32.mrb[0].mxu0
      %3036 = vmatprep.mubr.f32.mxu0 0.0
      %3037 = vmatmul.mubr.f32.gmra.mrb[0].mxu0 %v2816
      %v3038 = vpop.f32.mrb[0].mxu0
      %v3039 = vadd.f32 0.0, %v3038
      %v3040 = vpop.f32.mrb[0].mxu0
      %3041 = vmatprep.mubr.f32.mxu0 0.0
      %3042 = vmatmul.mubr.f32.gmra.mrb[0].mxu0 %v2819
      %v3043 = vpop.f32.mrb[0].mxu0
      %v3044 = vadd.f32 0.0, %v3043
      %v3045 = vpop.f32.mrb[0].mxu0
      %3046 = vmatprep.mubr.f32.mxu0 0.0
      %3047 = vmatmul.mubr.f32.gmra.mrb[0].mxu0 %v2822
      %v3048 = vpop.f32.mrb[0].mxu0
      %v3049 = vadd.f32 0.0, %v3048
      %v3050 = vpop.f32.mrb[0].mxu0
      %3051 = vdwg.mxu0
      %v3052 = vadd.f32 %v2661, %v2894
      %v3053 = vadd.f32 %v2662, %v2899
      %v3054 = vadd.f32 %v2663, %v2904
      %v3055 = vadd.f32 %v2664, %v2909
      %v3056 = vadd.f32 %v2665, %v2914
      %v3057 = vadd.f32 %v2666, %v2919
      %v3058 = vadd.f32 %v2667, %v2924
      %v3059 = vadd.f32 %v2668, %v2929
      %v3060 = vadd.f32 %v2669, %v2934
      %v3061 = vadd.f32 %v2670, %v2939
      %v3062 = vadd.f32 %v2671, %v2944
      %v3063 = vadd.f32 %v2672, %v2949
      %v3064 = vadd.f32 %v2673, %v2954
      %v3065 = vadd.f32 %v2674, %v2959
      %v3066 = vadd.f32 %v2675, %v2964
      %v3067 = vadd.f32 %v2676, %v2969
      %v3068 = vadd.f32 %v2677, %v2974
      %v3069 = vadd.f32 %v2678, %v2979
      %v3070 = vadd.f32 %v2679, %v2984
      %v3071 = vadd.f32 %v2680, %v2989
      %v3072 = vadd.f32 %v2681, %v2994
      %v3073 = vadd.f32 %v2682, %v2999
      %v3074 = vadd.f32 %v2683, %v3004
      %v3075 = vadd.f32 %v2684, %v3009
      %v3076 = vadd.f32 %v2685, %v3014
      %v3077 = vadd.f32 %v2686, %v3019
      %v3078 = vadd.f32 %v2687, %v3024
      %v3079 = vadd.f32 %v2688, %v3029
      %v3080 = vadd.f32 %v2689, %v3034
      %v3081 = vadd.f32 %v2690, %v3039
      %v3082 = vadd.f32 %v2691, %v3044
      %v3083 = vadd.f32 %v2692, %v3049
      %v3084 = vld [vmem:[%s2693 + $0x1] sm:$0xff]
      %v3085 = vld [vmem:[%s2693 + $0x9] sm:$0xff]
      %v3086 = vld [vmem:[%s2693 + $0x19] sm:$0xff]
      %v3087 = vld [vmem:[%s2693 + $0x21] sm:$0xff]
      %v3088 = vld [vmem:[%s2693 + $0x31] sm:$0xff]
      %v3089 = vld [vmem:[%s2693 + $0x39] sm:$0xff]
      %v3090 = vld [vmem:[%s2693 + $0x49] sm:$0xff]
      %v3091 = vld [vmem:[%s2693 + $0x51] sm:$0xff]
      %v3092 = vld [vmem:[%s2693 + $0x61] sm:$0xff]
      %v3093 = vld [vmem:[%s2693 + $0x69] sm:$0xff]
      %v3094 = vld [vmem:[%s2693 + $0x79] sm:$0xff]
      %v3095 = vld [vmem:[%s2693 + $0x81] sm:$0xff]
      %v3096 = vld [vmem:[%s2693 + $0x91] sm:$0xff]
      %v3097 = vld [vmem:[%s2693 + $0x99] sm:$0xff]
      %v3098 = vld [vmem:[%s2693 + $0xa9] sm:$0xff]
      %v3099 = vld [vmem:[%s2693 + $0xb1] sm:$0xff]
      %v3100 = vld [vmem:[%s2693 + $0xc1] sm:$0xff]
      %v3101 = vld [vmem:[%s2693 + $0xc9] sm:$0xff]
      %v3102 = vld [vmem:[%s2693 + $0xd9] sm:$0xff]
      %v3103 = vld [vmem:[%s2693 + $0xe1] sm:$0xff]
      %v3104 = vld [vmem:[%s2693 + $0xf1] sm:$0xff]
      %v3105 = vld [vmem:[%s2693 + $0xf9] sm:$0xff]
      %v3106 = vld [vmem:[%s2693 + $0x109] sm:$0xff]
      %v3107 = vld [vmem:[%s2693 + $0x111] sm:$0xff]
      %v3108 = vld [vmem:[%s2693 + $0x121] sm:$0xff]
      %v3109 = vld [vmem:[%s2693 + $0x129] sm:$0xff]
      %v3110 = vld [vmem:[%s2693 + $0x139] sm:$0xff]
      %v3111 = vld [vmem:[%s2693 + $0x141] sm:$0xff]
      %v3112 = vld [vmem:[%s2693 + $0x151] sm:$0xff]
      %v3113 = vld [vmem:[%s2693 + $0x159] sm:$0xff]
      %v3114 = vld [vmem:[%s2693 + $0x169] sm:$0xff]
      %v3115 = vld [vmem:[%s2693 + $0x171] sm:$0xff]
      %s3116 = scalar_lea.vmem %s1, 28
      %v3117 = vld [vmem:[%s3116] sm:$0xf]
      %v3119 = vsel %vm225, %v3084, 0
      %v3122 = vsel %vm225, %v3085, 0
      %v3125 = vsel %vm225, %v3086, 0
      %v3128 = vsel %vm225, %v3087, 0
      %v3131 = vsel %vm225, %v3088, 0
      %v3134 = vsel %vm225, %v3089, 0
      %v3137 = vsel %vm225, %v3090, 0
      %v3140 = vsel %vm225, %v3091, 0
      %v3143 = vsel %vm225, %v3092, 0
      %v3146 = vsel %vm225, %v3093, 0
      %v3149 = vsel %vm225, %v3094, 0
      %v3152 = vsel %vm225, %v3095, 0
      %v3155 = vsel %vm225, %v3096, 0
      %v3158 = vsel %vm225, %v3097, 0
      %v3161 = vsel %vm225, %v3098, 0
      %v3164 = vsel %vm225, %v3099, 0
      %v3167 = vsel %vm225, %v3100, 0
      %v3170 = vsel %vm225, %v3101, 0
      %v3173 = vsel %vm225, %v3102, 0
      %v3176 = vsel %vm225, %v3103, 0
      %v3179 = vsel %vm225, %v3104, 0
      %v3182 = vsel %vm225, %v3105, 0
      %v3185 = vsel %vm225, %v3106, 0
      %v3188 = vsel %vm225, %v3107, 0
      %v3191 = vsel %vm225, %v3108, 0
      %v3194 = vsel %vm225, %v3109, 0
      %v3197 = vsel %vm225, %v3110, 0
      %v3200 = vsel %vm225, %v3111, 0
      %v3203 = vsel %vm225, %v3112, 0
      %v3206 = vsel %vm225, %v3113, 0
      %v3209 = vsel %vm225, %v3114, 0
      %v3212 = vsel %vm225, %v3115, 0
      %v3215 = vsel %vm482, %v3117, 0
      %3217 = vmatprep.subr.mxu0 0.0
      %3218 = vmatpush1.msra.mxu0 %v3215
      %3219 = vmatprep.subr.mxu0 0.0
      %3220 = vmatpush1.msra.mxu0 0.0
      %3221 = vmatprep.subr.mxu0 0.0
      %3222 = vmatpush1.msra.mxu0 0.0
      %3223 = vmatprep.subr.mxu0 0.0
      %3224 = vmatpush1.msra.mxu0 0.0
      %3225 = vmatprep.subr.mxu0 0.0
      %3226 = vmatpush1.msra.mxu0 0.0
      %3227 = vmatprep.subr.mxu0 0.0
      %3228 = vmatpush1.msra.mxu0 0.0
      %3229 = vmatprep.subr.mxu0 0.0
      %3230 = vmatpush1.msra.mxu0 0.0
      %3231 = vmatprep.subr.mxu0 0.0
      %3232 = vmatpush1.msra.mxu0 0.0
      %3233 = vmatprep.subr.mxu0 0.0
      %3234 = vmatpush1.msra.mxu0 0.0
      %3235 = vmatprep.subr.mxu0 0.0
      %3236 = vmatpush1.msra.mxu0 0.0
      %3237 = vmatprep.subr.mxu0 0.0
      %3238 = vmatpush1.msra.mxu0 0.0
      %3239 = vmatprep.subr.mxu0 0.0
      %3240 = vmatpush1.msra.mxu0 0.0
      %3241 = vmatprep.subr.mxu0 0.0
      %3242 = vmatpush1.msra.mxu0 0.0
      %3243 = vmatprep.subr.mxu0 0.0
      %3244 = vmatpush1.msra.mxu0 0.0
      %3245 = vmatprep.subr.mxu0 0.0
      %3246 = vmatpush1.msra.mxu0 0.0
      %3247 = vmatprep.subr.mxu0 0.0
      %3248 = vmatpush1.msra.mxu0 0.0
      %3249 = vmatprep.subr.mxu0 0.0
      %3250 = vmatpush1.msra.mxu0 0.0
      %3251 = vmatprep.subr.mxu0 0.0
      %3252 = vmatpush1.msra.mxu0 0.0
      %3253 = vmatprep.subr.mxu0 0.0
      %3254 = vmatpush1.msra.mxu0 0.0
      %3255 = vmatprep.subr.mxu0 0.0
      %3256 = vmatpush1.msra.mxu0 0.0
      %3257 = vmatprep.subr.mxu0 0.0
      %3258 = vmatpush1.msra.mxu0 0.0
      %3259 = vmatprep.subr.mxu0 0.0
      %3260 = vmatpush1.msra.mxu0 0.0
      %3261 = vmatprep.subr.mxu0 0.0
      %3262 = vmatpush1.msra.mxu0 0.0
      %3263 = vmatprep.subr.mxu0 0.0
      %3264 = vmatpush1.msra.mxu0 0.0
      %3265 = vmatprep.subr.mxu0 0.0
      %3266 = vmatpush1.msra.mxu0 0.0
      %3267 = vmatprep.subr.mxu0 0.0
      %3268 = vmatpush1.msra.mxu0 0.0
      %3269 = vmatprep.subr.mxu0 0.0
      %3270 = vmatpush1.msra.mxu0 0.0
      %3271 = vmatprep.subr.mxu0 0.0
      %3272 = vmatpush1.msra.mxu0 0.0
      %3273 = vmatprep.subr.mxu0 0.0
      %3274 = vmatpush1.msra.mxu0 0.0
      %3275 = vmatprep.subr.mxu0 0.0
      %3276 = vmatpush1.msra.mxu0 0.0
      %3277 = vmatprep.subr.mxu0 0.0
      %3278 = vmatpush1.msra.mxu0 0.0
      %3279 = vmatprep.subr.mxu0 0.0
      %3280 = vmatpush1.msra.mxu0 0.0
      %3281 = vmatprep.mubr.f32.mxu0 0.0
      %3282 = vmatmul.mubr.f32.gmra.mrb[0].mxu0 %v3119
      %v3283 = vpop.f32.mrb[0].mxu0
      %v3284 = vadd.f32 0.0, %v3283
      %v3285 = vpop.f32.mrb[0].mxu0
      %3286 = vmatprep.mubr.f32.mxu0 0.0
      %3287 = vmatmul.mubr.f32.gmra.mrb[0].mxu0 %v3122
      %v3288 = vpop.f32.mrb[0].mxu0
      %v3289 = vadd.f32 0.0, %v3288
      %v3290 = vpop.f32.mrb[0].mxu0
      %3291 = vmatprep.mubr.f32.mxu0 0.0
      %3292 = vmatmul.mubr.f32.gmra.mrb[0].mxu0 %v3125
      %v3293 = vpop.f32.mrb[0].mxu0
      %v3294 = vadd.f32 0.0, %v3293
      %v3295 = vpop.f32.mrb[0].mxu0
      %3296 = vmatprep.mubr.f32.mxu0 0.0
      %3297 = vmatmul.mubr.f32.gmra.mrb[0].mxu0 %v3128
      %v3298 = vpop.f32.mrb[0].mxu0
      %v3299 = vadd.f32 0.0, %v3298
      %v3300 = vpop.f32.mrb[0].mxu0
      %3301 = vmatprep.mubr.f32.mxu0 0.0
      %3302 = vmatmul.mubr.f32.gmra.mrb[0].mxu0 %v3131
      %v3303 = vpop.f32.mrb[0].mxu0
      %v3304 = vadd.f32 0.0, %v3303
      %v3305 = vpop.f32.mrb[0].mxu0
      %3306 = vmatprep.mubr.f32.mxu0 0.0
      %3307 = vmatmul.mubr.f32.gmra.mrb[0].mxu0 %v3134
      %v3308 = vpop.f32.mrb[0].mxu0
      %v3309 = vadd.f32 0.0, %v3308
      %v3310 = vpop.f32.mrb[0].mxu0
      %3311 = vmatprep.mubr.f32.mxu0 0.0
      %3312 = vmatmul.mubr.f32.gmra.mrb[0].mxu0 %v3137
      %v3313 = vpop.f32.mrb[0].mxu0
      %v3314 = vadd.f32 0.0, %v3313
      %v3315 = vpop.f32.mrb[0].mxu0
      %3316 = vmatprep.mubr.f32.mxu0 0.0
      %3317 = vmatmul.mubr.f32.gmra.mrb[0].mxu0 %v3140
      %v3318 = vpop.f32.mrb[0].mxu0
      %v3319 = vadd.f32 0.0, %v3318
      %v3320 = vpop.f32.mrb[0].mxu0
      %3321 = vmatprep.mubr.f32.mxu0 0.0
      %3322 = vmatmul.mubr.f32.gmra.mrb[0].mxu0 %v3143
      %v3323 = vpop.f32.mrb[0].mxu0
      %v3324 = vadd.f32 0.0, %v3323
      %v3325 = vpop.f32.mrb[0].mxu0
      %3326 = vmatprep.mubr.f32.mxu0 0.0
      %3327 = vmatmul.mubr.f32.gmra.mrb[0].mxu0 %v3146
      %v3328 = vpop.f32.mrb[0].mxu0
      %v3329 = vadd.f32 0.0, %v3328
      %v3330 = vpop.f32.mrb[0].mxu0
      %3331 = vmatprep.mubr.f32.mxu0 0.0
      %3332 = vmatmul.mubr.f32.gmra.mrb[0].mxu0 %v3149
      %v3333 = vpop.f32.mrb[0].mxu0
      %v3334 = vadd.f32 0.0, %v3333
      %v3335 = vpop.f32.mrb[0].mxu0
      %3336 = vmatprep.mubr.f32.mxu0 0.0
      %3337 = vmatmul.mubr.f32.gmra.mrb[0].mxu0 %v3152
      %v3338 = vpop.f32.mrb[0].mxu0
      %v3339 = vadd.f32 0.0, %v3338
      %v3340 = vpop.f32.mrb[0].mxu0
      %3341 = vmatprep.mubr.f32.mxu0 0.0
      %3342 = vmatmul.mubr.f32.gmra.mrb[0].mxu0 %v3155
      %v3343 = vpop.f32.mrb[0].mxu0
      %v3344 = vadd.f32 0.0, %v3343
      %v3345 = vpop.f32.mrb[0].mxu0
      %3346 = vmatprep.mubr.f32.mxu0 0.0
      %3347 = vmatmul.mubr.f32.gmra.mrb[0].mxu0 %v3158
      %v3348 = vpop.f32.mrb[0].mxu0
      %v3349 = vadd.f32 0.0, %v3348
      %v3350 = vpop.f32.mrb[0].mxu0
      %3351 = vmatprep.mubr.f32.mxu0 0.0
      %3352 = vmatmul.mubr.f32.gmra.mrb[0].mxu0 %v3161
      %v3353 = vpop.f32.mrb[0].mxu0
      %v3354 = vadd.f32 0.0, %v3353
      %v3355 = vpop.f32.mrb[0].mxu0
      %3356 = vmatprep.mubr.f32.mxu0 0.0
      %3357 = vmatmul.mubr.f32.gmra.mrb[0].mxu0 %v3164
      %v3358 = vpop.f32.mrb[0].mxu0
      %v3359 = vadd.f32 0.0, %v3358
      %v3360 = vpop.f32.mrb[0].mxu0
      %3361 = vmatprep.mubr.f32.mxu0 0.0
      %3362 = vmatmul.mubr.f32.gmra.mrb[0].mxu0 %v3167
      %v3363 = vpop.f32.mrb[0].mxu0
      %v3364 = vadd.f32 0.0, %v3363
      %v3365 = vpop.f32.mrb[0].mxu0
      %3366 = vmatprep.mubr.f32.mxu0 0.0
      %3367 = vmatmul.mubr.f32.gmra.mrb[0].mxu0 %v3170
      %v3368 = vpop.f32.mrb[0].mxu0
      %v3369 = vadd.f32 0.0, %v3368
      %v3370 = vpop.f32.mrb[0].mxu0
      %3371 = vmatprep.mubr.f32.mxu0 0.0
      %3372 = vmatmul.mubr.f32.gmra.mrb[0].mxu0 %v3173
      %v3373 = vpop.f32.mrb[0].mxu0
      %v3374 = vadd.f32 0.0, %v3373
      %v3375 = vpop.f32.mrb[0].mxu0
      %3376 = vmatprep.mubr.f32.mxu0 0.0
      %3377 = vmatmul.mubr.f32.gmra.mrb[0].mxu0 %v3176
      %v3378 = vpop.f32.mrb[0].mxu0
      %v3379 = vadd.f32 0.0, %v3378
      %v3380 = vpop.f32.mrb[0].mxu0
      %3381 = vmatprep.mubr.f32.mxu0 0.0
      %3382 = vmatmul.mubr.f32.gmra.mrb[0].mxu0 %v3179
      %v3383 = vpop.f32.mrb[0].mxu0
      %v3384 = vadd.f32 0.0, %v3383
      %v3385 = vpop.f32.mrb[0].mxu0
      %3386 = vmatprep.mubr.f32.mxu0 0.0
      %3387 = vmatmul.mubr.f32.gmra.mrb[0].mxu0 %v3182
      %v3388 = vpop.f32.mrb[0].mxu0
      %v3389 = vadd.f32 0.0, %v3388
      %v3390 = vpop.f32.mrb[0].mxu0
      %3391 = vmatprep.mubr.f32.mxu0 0.0
      %3392 = vmatmul.mubr.f32.gmra.mrb[0].mxu0 %v3185
      %v3393 = vpop.f32.mrb[0].mxu0
      %v3394 = vadd.f32 0.0, %v3393
      %v3395 = vpop.f32.mrb[0].mxu0
      %3396 = vmatprep.mubr.f32.mxu0 0.0
      %3397 = vmatmul.mubr.f32.gmra.mrb[0].mxu0 %v3188
      %v3398 = vpop.f32.mrb[0].mxu0
      %v3399 = vadd.f32 0.0, %v3398
      %v3400 = vpop.f32.mrb[0].mxu0
      %3401 = vmatprep.mubr.f32.mxu0 0.0
      %3402 = vmatmul.mubr.f32.gmra.mrb[0].mxu0 %v3191
      %v3403 = vpop.f32.mrb[0].mxu0
      %v3404 = vadd.f32 0.0, %v3403
      %v3405 = vpop.f32.mrb[0].mxu0
      %3406 = vmatprep.mubr.f32.mxu0 0.0
      %3407 = vmatmul.mubr.f32.gmra.mrb[0].mxu0 %v3194
      %v3408 = vpop.f32.mrb[0].mxu0
      %v3409 = vadd.f32 0.0, %v3408
      %v3410 = vpop.f32.mrb[0].mxu0
      %3411 = vmatprep.mubr.f32.mxu0 0.0
      %3412 = vmatmul.mubr.f32.gmra.mrb[0].mxu0 %v3197
      %v3413 = vpop.f32.mrb[0].mxu0
      %v3414 = vadd.f32 0.0, %v3413
      %v3415 = vpop.f32.mrb[0].mxu0
      %3416 = vmatprep.mubr.f32.mxu0 0.0
      %3417 = vmatmul.mubr.f32.gmra.mrb[0].mxu0 %v3200
      %v3418 = vpop.f32.mrb[0].mxu0
      %v3419 = vadd.f32 0.0, %v3418
      %v3420 = vpop.f32.mrb[0].mxu0
      %3421 = vmatprep.mubr.f32.mxu0 0.0
      %3422 = vmatmul.mubr.f32.gmra.mrb[0].mxu0 %v3203
      %v3423 = vpop.f32.mrb[0].mxu0
      %v3424 = vadd.f32 0.0, %v3423
      %v3425 = vpop.f32.mrb[0].mxu0
      %3426 = vmatprep.mubr.f32.mxu0 0.0
      %3427 = vmatmul.mubr.f32.gmra.mrb[0].mxu0 %v3206
      %v3428 = vpop.f32.mrb[0].mxu0
      %v3429 = vadd.f32 0.0, %v3428
      %v3430 = vpop.f32.mrb[0].mxu0
      %3431 = vmatprep.mubr.f32.mxu0 0.0
      %3432 = vmatmul.mubr.f32.gmra.mrb[0].mxu0 %v3209
      %v3433 = vpop.f32.mrb[0].mxu0
      %v3434 = vadd.f32 0.0, %v3433
      %v3435 = vpop.f32.mrb[0].mxu0
      %3436 = vmatprep.mubr.f32.mxu0 0.0
      %3437 = vmatmul.mubr.f32.gmra.mrb[0].mxu0 %v3212
      %v3438 = vpop.f32.mrb[0].mxu0
      %v3439 = vadd.f32 0.0, %v3438
      %v3440 = vpop.f32.mrb[0].mxu0
      %3441 = vdwg.mxu0
      %v3442 = vadd.f32 %v3052, %v3284
      %v3443 = vadd.f32 %v3053, %v3289
      %v3444 = vadd.f32 %v3054, %v3294
      %v3445 = vadd.f32 %v3055, %v3299
      %v3446 = vadd.f32 %v3056, %v3304
      %v3447 = vadd.f32 %v3057, %v3309
      %v3448 = vadd.f32 %v3058, %v3314
      %v3449 = vadd.f32 %v3059, %v3319
      %v3450 = vadd.f32 %v3060, %v3324
      %v3451 = vadd.f32 %v3061, %v3329
      %v3452 = vadd.f32 %v3062, %v3334
      %v3453 = vadd.f32 %v3063, %v3339
      %v3454 = vadd.f32 %v3064, %v3344
      %v3455 = vadd.f32 %v3065, %v3349
      %v3456 = vadd.f32 %v3066, %v3354
      %v3457 = vadd.f32 %v3067, %v3359
      %v3458 = vadd.f32 %v3068, %v3364
      %v3459 = vadd.f32 %v3069, %v3369
      %v3460 = vadd.f32 %v3070, %v3374
      %v3461 = vadd.f32 %v3071, %v3379
      %v3462 = vadd.f32 %v3072, %v3384
      %v3463 = vadd.f32 %v3073, %v3389
      %v3464 = vadd.f32 %v3074, %v3394
      %v3465 = vadd.f32 %v3075, %v3399
      %v3466 = vadd.f32 %v3076, %v3404
      %v3467 = vadd.f32 %v3077, %v3409
      %v3468 = vadd.f32 %v3078, %v3414
      %v3469 = vadd.f32 %v3079, %v3419
      %v3470 = vadd.f32 %v3080, %v3424
      %v3471 = vadd.f32 %v3081, %v3429
      %v3472 = vadd.f32 %v3082, %v3434
      %v3473 = vadd.f32 %v3083, %v3439
      %v3474 = vld [vmem:[%s2693 + $0x2] sm:$0xff]
      %v3475 = vld [vmem:[%s2693 + $0xa] sm:$0xff]
      %v3476 = vld [vmem:[%s2693 + $0x1a] sm:$0xff]
      %v3477 = vld [vmem:[%s2693 + $0x22] sm:$0xff]
      %v3478 = vld [vmem:[%s2693 + $0x32] sm:$0xff]
      %v3479 = vld [vmem:[%s2693 + $0x3a] sm:$0xff]
      %v3480 = vld [vmem:[%s2693 + $0x4a] sm:$0xff]
      %v3481 = vld [vmem:[%s2693 + $0x52] sm:$0xff]
      %v3482 = vld [vmem:[%s2693 + $0x62] sm:$0xff]
      %v3483 = vld [vmem:[%s2693 + $0x6a] sm:$0xff]
      %v3484 = vld [vmem:[%s2693 + $0x7a] sm:$0xff]
      %v3485 = vld [vmem:[%s2693 + $0x82] sm:$0xff]
      %v3486 = vld [vmem:[%s2693 + $0x92] sm:$0xff]
      %v3487 = vld [vmem:[%s2693 + $0x9a] sm:$0xff]
      %v3488 = vld [vmem:[%s2693 + $0xaa] sm:$0xff]
      %v3489 = vld [vmem:[%s2693 + $0xb2] sm:$0xff]
      %v3490 = vld [vmem:[%s2693 + $0xc2] sm:$0xff]
      %v3491 = vld [vmem:[%s2693 + $0xca] sm:$0xff]
      %v3492 = vld [vmem:[%s2693 + $0xda] sm:$0xff]
      %v3493 = vld [vmem:[%s2693 + $0xe2] sm:$0xff]
      %v3494 = vld [vmem:[%s2693 + $0xf2] sm:$0xff]
      %v3495 = vld [vmem:[%s2693 + $0xfa] sm:$0xff]
      %v3496 = vld [vmem:[%s2693 + $0x10a] sm:$0xff]
      %v3497 = vld [vmem:[%s2693 + $0x112] sm:$0xff]
      %v3498 = vld [vmem:[%s2693 + $0x122] sm:$0xff]
      %v3499 = vld [vmem:[%s2693 + $0x12a] sm:$0xff]
      %v3500 = vld [vmem:[%s2693 + $0x13a] sm:$0xff]
      %v3501 = vld [vmem:[%s2693 + $0x142] sm:$0xff]
      %v3502 = vld [vmem:[%s2693 + $0x152] sm:$0xff]
      %v3503 = vld [vmem:[%s2693 + $0x15a] sm:$0xff]
      %v3504 = vld [vmem:[%s2693 + $0x16a] sm:$0xff]
      %v3505 = vld [vmem:[%s2693 + $0x172] sm:$0xff]
      %s3506 = scalar_lea.vmem %s1, 32
      %v3507 = vld [vmem:[%s3506] sm:$0xf]
      %v3509 = vsel %vm225, %v3474, 0
      %v3512 = vsel %vm225, %v3475, 0
      %v3515 = vsel %vm225, %v3476, 0
      %v3518 = vsel %vm225, %v3477, 0
      %v3521 = vsel %vm225, %v3478, 0
      %v3524 = vsel %vm225, %v3479, 0
      %v3527 = vsel %vm225, %v3480, 0
      %v3530 = vsel %vm225, %v3481, 0
      %v3533 = vsel %vm225, %v3482, 0
      %v3536 = vsel %vm225, %v3483, 0
      %v3539 = vsel %vm225, %v3484, 0
      %v3542 = vsel %vm225, %v3485, 0
      %v3545 = vsel %vm225, %v3486, 0
      %v3548 = vsel %vm225, %v3487, 0
      %v3551 = vsel %vm225, %v3488, 0
      %v3554 = vsel %vm225, %v3489, 0
      %v3557 = vsel %vm225, %v3490, 0
      %v3560 = vsel %vm225, %v3491, 0
      %v3563 = vsel %vm225, %v3492, 0
      %v3566 = vsel %vm225, %v3493, 0
      %v3569 = vsel %vm225, %v3494, 0
      %v3572 = vsel %vm225, %v3495, 0
      %v3575 = vsel %vm225, %v3496, 0
      %v3578 = vsel %vm225, %v3497, 0
      %v3581 = vsel %vm225, %v3498, 0
      %v3584 = vsel %vm225, %v3499, 0
      %v3587 = vsel %vm225, %v3500, 0
      %v3590 = vsel %vm225, %v3501, 0
      %v3593 = vsel %vm225, %v3502, 0
      %v3596 = vsel %vm225, %v3503, 0
      %v3599 = vsel %vm225, %v3504, 0
      %v3602 = vsel %vm225, %v3505, 0
      %v3605 = vsel %vm482, %v3507, 0
      %3607 = vmatprep.subr.mxu0 0.0
      %3608 = vmatpush1.msra.mxu0 %v3605
      %3609 = vmatprep.subr.mxu0 0.0
      %3610 = vmatpush1.msra.mxu0 0.0
      %3611 = vmatprep.subr.mxu0 0.0
      %3612 = vmatpush1.msra.mxu0 0.0
      %3613 = vmatprep.subr.mxu0 0.0
      %3614 = vmatpush1.msra.mxu0 0.0
      %3615 = vmatprep.subr.mxu0 0.0
      %3616 = vmatpush1.msra.mxu0 0.0
      %3617 = vmatprep.subr.mxu0 0.0
      %3618 = vmatpush1.msra.mxu0 0.0
      %3619 = vmatprep.subr.mxu0 0.0
      %3620 = vmatpush1.msra.mxu0 0.0
      %3621 = vmatprep.subr.mxu0 0.0
      %3622 = vmatpush1.msra.mxu0 0.0
      %3623 = vmatprep.subr.mxu0 0.0
      %3624 = vmatpush1.msra.mxu0 0.0
      %3625 = vmatprep.subr.mxu0 0.0
      %3626 = vmatpush1.msra.mxu0 0.0
      %3627 = vmatprep.subr.mxu0 0.0
      %3628 = vmatpush1.msra.mxu0 0.0
      %3629 = vmatprep.subr.mxu0 0.0
      %3630 = vmatpush1.msra.mxu0 0.0
      %3631 = vmatprep.subr.mxu0 0.0
      %3632 = vmatpush1.msra.mxu0 0.0
      %3633 = vmatprep.subr.mxu0 0.0
      %3634 = vmatpush1.msra.mxu0 0.0
      %3635 = vmatprep.subr.mxu0 0.0
      %3636 = vmatpush1.msra.mxu0 0.0
      %3637 = vmatprep.subr.mxu0 0.0
      %3638 = vmatpush1.msra.mxu0 0.0
      %3639 = vmatprep.subr.mxu0 0.0
      %3640 = vmatpush1.msra.mxu0 0.0
      %3641 = vmatprep.subr.mxu0 0.0
      %3642 = vmatpush1.msra.mxu0 0.0
      %3643 = vmatprep.subr.mxu0 0.0
      %3644 = vmatpush1.msra.mxu0 0.0
      %3645 = vmatprep.subr.mxu0 0.0
      %3646 = vmatpush1.msra.mxu0 0.0
      %3647 = vmatprep.subr.mxu0 0.0
      %3648 = vmatpush1.msra.mxu0 0.0
      %3649 = vmatprep.subr.mxu0 0.0
      %3650 = vmatpush1.msra.mxu0 0.0
      %3651 = vmatprep.subr.mxu0 0.0
      %3652 = vmatpush1.msra.mxu0 0.0
      %3653 = vmatprep.subr.mxu0 0.0
      %3654 = vmatpush1.msra.mxu0 0.0
      %3655 = vmatprep.subr.mxu0 0.0
      %3656 = vmatpush1.msra.mxu0 0.0
      %3657 = vmatprep.subr.mxu0 0.0
      %3658 = vmatpush1.msra.mxu0 0.0
      %3659 = vmatprep.subr.mxu0 0.0
      %3660 = vmatpush1.msra.mxu0 0.0
      %3661 = vmatprep.subr.mxu0 0.0
      %3662 = vmatpush1.msra.mxu0 0.0
      %3663 = vmatprep.subr.mxu0 0.0
      %3664 = vmatpush1.msra.mxu0 0.0
      %3665 = vmatprep.subr.mxu0 0.0
      %3666 = vmatpush1.msra.mxu0 0.0
      %3667 = vmatprep.subr.mxu0 0.0
      %3668 = vmatpush1.msra.mxu0 0.0
      %3669 = vmatprep.subr.mxu0 0.0
      %3670 = vmatpush1.msra.mxu0 0.0
      %3671 = vmatprep.mubr.f32.mxu0 0.0
      %3672 = vmatmul.mubr.f32.gmra.mrb[0].mxu0 %v3509
      %v3673 = vpop.f32.mrb[0].mxu0
      %v3674 = vadd.f32 0.0, %v3673
      %v3675 = vpop.f32.mrb[0].mxu0
      %3676 = vmatprep.mubr.f32.mxu0 0.0
      %3677 = vmatmul.mubr.f32.gmra.mrb[0].mxu0 %v3512
      %v3678 = vpop.f32.mrb[0].mxu0
      %v3679 = vadd.f32 0.0, %v3678
      %v3680 = vpop.f32.mrb[0].mxu0
      %3681 = vmatprep.mubr.f32.mxu0 0.0
      %3682 = vmatmul.mubr.f32.gmra.mrb[0].mxu0 %v3515
      %v3683 = vpop.f32.mrb[0].mxu0
      %v3684 = vadd.f32 0.0, %v3683
      %v3685 = vpop.f32.mrb[0].mxu0
      %3686 = vmatprep.mubr.f32.mxu0 0.0
      %3687 = vmatmul.mubr.f32.gmra.mrb[0].mxu0 %v3518
      %v3688 = vpop.f32.mrb[0].mxu0
      %v3689 = vadd.f32 0.0, %v3688
      %v3690 = vpop.f32.mrb[0].mxu0
      %3691 = vmatprep.mubr.f32.mxu0 0.0
      %3692 = vmatmul.mubr.f32.gmra.mrb[0].mxu0 %v3521
      %v3693 = vpop.f32.mrb[0].mxu0
      %v3694 = vadd.f32 0.0, %v3693
      %v3695 = vpop.f32.mrb[0].mxu0
      %3696 = vmatprep.mubr.f32.mxu0 0.0
      %3697 = vmatmul.mubr.f32.gmra.mrb[0].mxu0 %v3524
      %v3698 = vpop.f32.mrb[0].mxu0
      %v3699 = vadd.f32 0.0, %v3698
      %v3700 = vpop.f32.mrb[0].mxu0
      %3701 = vmatprep.mubr.f32.mxu0 0.0
      %3702 = vmatmul.mubr.f32.gmra.mrb[0].mxu0 %v3527
      %v3703 = vpop.f32.mrb[0].mxu0
      %v3704 = vadd.f32 0.0, %v3703
      %v3705 = vpop.f32.mrb[0].mxu0
      %3706 = vmatprep.mubr.f32.mxu0 0.0
      %3707 = vmatmul.mubr.f32.gmra.mrb[0].mxu0 %v3530
      %v3708 = vpop.f32.mrb[0].mxu0
      %v3709 = vadd.f32 0.0, %v3708
      %v3710 = vpop.f32.mrb[0].mxu0
      %3711 = vmatprep.mubr.f32.mxu0 0.0
      %3712 = vmatmul.mubr.f32.gmra.mrb[0].mxu0 %v3533
      %v3713 = vpop.f32.mrb[0].mxu0
      %v3714 = vadd.f32 0.0, %v3713
      %v3715 = vpop.f32.mrb[0].mxu0
      %3716 = vmatprep.mubr.f32.mxu0 0.0
      %3717 = vmatmul.mubr.f32.gmra.mrb[0].mxu0 %v3536
      %v3718 = vpop.f32.mrb[0].mxu0
      %v3719 = vadd.f32 0.0, %v3718
      %v3720 = vpop.f32.mrb[0].mxu0
      %3721 = vmatprep.mubr.f32.mxu0 0.0
      %3722 = vmatmul.mubr.f32.gmra.mrb[0].mxu0 %v3539
      %v3723 = vpop.f32.mrb[0].mxu0
      %v3724 = vadd.f32 0.0, %v3723
      %v3725 = vpop.f32.mrb[0].mxu0
      %3726 = vmatprep.mubr.f32.mxu0 0.0
      %3727 = vmatmul.mubr.f32.gmra.mrb[0].mxu0 %v3542
      %v3728 = vpop.f32.mrb[0].mxu0
      %v3729 = vadd.f32 0.0, %v3728
      %v3730 = vpop.f32.mrb[0].mxu0
      %3731 = vmatprep.mubr.f32.mxu0 0.0
      %3732 = vmatmul.mubr.f32.gmra.mrb[0].mxu0 %v3545
      %v3733 = vpop.f32.mrb[0].mxu0
      %v3734 = vadd.f32 0.0, %v3733
      %v3735 = vpop.f32.mrb[0].mxu0
      %3736 = vmatprep.mubr.f32.mxu0 0.0
      %3737 = vmatmul.mubr.f32.gmra.mrb[0].mxu0 %v3548
      %v3738 = vpop.f32.mrb[0].mxu0
      %v3739 = vadd.f32 0.0, %v3738
      %v3740 = vpop.f32.mrb[0].mxu0
      %3741 = vmatprep.mubr.f32.mxu0 0.0
      %3742 = vmatmul.mubr.f32.gmra.mrb[0].mxu0 %v3551
      %v3743 = vpop.f32.mrb[0].mxu0
      %v3744 = vadd.f32 0.0, %v3743
      %v3745 = vpop.f32.mrb[0].mxu0
      %3746 = vmatprep.mubr.f32.mxu0 0.0
      %3747 = vmatmul.mubr.f32.gmra.mrb[0].mxu0 %v3554
      %v3748 = vpop.f32.mrb[0].mxu0
      %v3749 = vadd.f32 0.0, %v3748
      %v3750 = vpop.f32.mrb[0].mxu0
      %3751 = vmatprep.mubr.f32.mxu0 0.0
      %3752 = vmatmul.mubr.f32.gmra.mrb[0].mxu0 %v3557
      %v3753 = vpop.f32.mrb[0].mxu0
      %v3754 = vadd.f32 0.0, %v3753
      %v3755 = vpop.f32.mrb[0].mxu0
      %3756 = vmatprep.mubr.f32.mxu0 0.0
      %3757 = vmatmul.mubr.f32.gmra.mrb[0].mxu0 %v3560
      %v3758 = vpop.f32.mrb[0].mxu0
      %v3759 = vadd.f32 0.0, %v3758
      %v3760 = vpop.f32.mrb[0].mxu0
      %3761 = vmatprep.mubr.f32.mxu0 0.0
      %3762 = vmatmul.mubr.f32.gmra.mrb[0].mxu0 %v3563
      %v3763 = vpop.f32.mrb[0].mxu0
      %v3764 = vadd.f32 0.0, %v3763
      %v3765 = vpop.f32.mrb[0].mxu0
      %3766 = vmatprep.mubr.f32.mxu0 0.0
      %3767 = vmatmul.mubr.f32.gmra.mrb[0].mxu0 %v3566
      %v3768 = vpop.f32.mrb[0].mxu0
      %v3769 = vadd.f32 0.0, %v3768
      %v3770 = vpop.f32.mrb[0].mxu0
      %3771 = vmatprep.mubr.f32.mxu0 0.0
      %3772 = vmatmul.mubr.f32.gmra.mrb[0].mxu0 %v3569
      %v3773 = vpop.f32.mrb[0].mxu0
      %v3774 = vadd.f32 0.0, %v3773
      %v3775 = vpop.f32.mrb[0].mxu0
      %3776 = vmatprep.mubr.f32.mxu0 0.0
      %3777 = vmatmul.mubr.f32.gmra.mrb[0].mxu0 %v3572
      %v3778 = vpop.f32.mrb[0].mxu0
      %v3779 = vadd.f32 0.0, %v3778
      %v3780 = vpop.f32.mrb[0].mxu0
      %3781 = vmatprep.mubr.f32.mxu0 0.0
      %3782 = vmatmul.mubr.f32.gmra.mrb[0].mxu0 %v3575
      %v3783 = vpop.f32.mrb[0].mxu0
      %v3784 = vadd.f32 0.0, %v3783
      %v3785 = vpop.f32.mrb[0].mxu0
      %3786 = vmatprep.mubr.f32.mxu0 0.0
      %3787 = vmatmul.mubr.f32.gmra.mrb[0].mxu0 %v3578
      %v3788 = vpop.f32.mrb[0].mxu0
      %v3789 = vadd.f32 0.0, %v3788
      %v3790 = vpop.f32.mrb[0].mxu0
      %3791 = vmatprep.mubr.f32.mxu0 0.0
      %3792 = vmatmul.mubr.f32.gmra.mrb[0].mxu0 %v3581
      %v3793 = vpop.f32.mrb[0].mxu0
      %v3794 = vadd.f32 0.0, %v3793
      %v3795 = vpop.f32.mrb[0].mxu0
      %3796 = vmatprep.mubr.f32.mxu0 0.0
      %3797 = vmatmul.mubr.f32.gmra.mrb[0].mxu0 %v3584
      %v3798 = vpop.f32.mrb[0].mxu0
      %v3799 = vadd.f32 0.0, %v3798
      %v3800 = vpop.f32.mrb[0].mxu0
      %3801 = vmatprep.mubr.f32.mxu0 0.0
      %3802 = vmatmul.mubr.f32.gmra.mrb[0].mxu0 %v3587
      %v3803 = vpop.f32.mrb[0].mxu0
      %v3804 = vadd.f32 0.0, %v3803
      %v3805 = vpop.f32.mrb[0].mxu0
      %3806 = vmatprep.mubr.f32.mxu0 0.0
      %3807 = vmatmul.mubr.f32.gmra.mrb[0].mxu0 %v3590
      %v3808 = vpop.f32.mrb[0].mxu0
      %v3809 = vadd.f32 0.0, %v3808
      %v3810 = vpop.f32.mrb[0].mxu0
      %3811 = vmatprep.mubr.f32.mxu0 0.0
      %3812 = vmatmul.mubr.f32.gmra.mrb[0].mxu0 %v3593
      %v3813 = vpop.f32.mrb[0].mxu0
      %v3814 = vadd.f32 0.0, %v3813
      %v3815 = vpop.f32.mrb[0].mxu0
      %3816 = vmatprep.mubr.f32.mxu0 0.0
      %3817 = vmatmul.mubr.f32.gmra.mrb[0].mxu0 %v3596
      %v3818 = vpop.f32.mrb[0].mxu0
      %v3819 = vadd.f32 0.0, %v3818
      %v3820 = vpop.f32.mrb[0].mxu0
      %3821 = vmatprep.mubr.f32.mxu0 0.0
      %3822 = vmatmul.mubr.f32.gmra.mrb[0].mxu0 %v3599
      %v3823 = vpop.f32.mrb[0].mxu0
      %v3824 = vadd.f32 0.0, %v3823
      %v3825 = vpop.f32.mrb[0].mxu0
      %3826 = vmatprep.mubr.f32.mxu0 0.0
      %3827 = vmatmul.mubr.f32.gmra.mrb[0].mxu0 %v3602
      %v3828 = vpop.f32.mrb[0].mxu0
      %v3829 = vadd.f32 0.0, %v3828
      %v3830 = vpop.f32.mrb[0].mxu0
      %3831 = vdwg.mxu0
      %v3832 = vadd.f32 %v3442, %v3674
      %v3833 = vadd.f32 %v3443, %v3679
      %v3834 = vadd.f32 %v3444, %v3684
      %v3835 = vadd.f32 %v3445, %v3689
      %v3836 = vadd.f32 %v3446, %v3694
      %v3837 = vadd.f32 %v3447, %v3699
      %v3838 = vadd.f32 %v3448, %v3704
      %v3839 = vadd.f32 %v3449, %v3709
      %v3840 = vadd.f32 %v3450, %v3714
      %v3841 = vadd.f32 %v3451, %v3719
      %v3842 = vadd.f32 %v3452, %v3724
      %v3843 = vadd.f32 %v3453, %v3729
      %v3844 = vadd.f32 %v3454, %v3734
      %v3845 = vadd.f32 %v3455, %v3739
      %v3846 = vadd.f32 %v3456, %v3744
      %v3847 = vadd.f32 %v3457, %v3749
      %v3848 = vadd.f32 %v3458, %v3754
      %v3849 = vadd.f32 %v3459, %v3759
      %v3850 = vadd.f32 %v3460, %v3764
      %v3851 = vadd.f32 %v3461, %v3769
      %v3852 = vadd.f32 %v3462, %v3774
      %v3853 = vadd.f32 %v3463, %v3779
      %v3854 = vadd.f32 %v3464, %v3784
      %v3855 = vadd.f32 %v3465, %v3789
      %v3856 = vadd.f32 %v3466, %v3794
      %v3857 = vadd.f32 %v3467, %v3799
      %v3858 = vadd.f32 %v3468, %v3804
      %v3859 = vadd.f32 %v3469, %v3809
      %v3860 = vadd.f32 %v3470, %v3814
      %v3861 = vadd.f32 %v3471, %v3819
      %v3862 = vadd.f32 %v3472, %v3824
      %v3863 = vadd.f32 %v3473, %v3829
      %v3864 = vmax.f32 %v3832, 0.0
      %v3865 = vmax.f32 %v3833, 0.0
      %v3866 = vmax.f32 %v3834, 0.0
      %v3867 = vmax.f32 %v3835, 0.0
      %v3868 = vmax.f32 %v3836, 0.0
      %v3869 = vmax.f32 %v3837, 0.0
      %v3870 = vmax.f32 %v3838, 0.0
      %v3871 = vmax.f32 %v3839, 0.0
      %v3872 = vmax.f32 %v3840, 0.0
      %v3873 = vmax.f32 %v3841, 0.0
      %v3874 = vmax.f32 %v3842, 0.0
      %v3875 = vmax.f32 %v3843, 0.0
      %v3876 = vmax.f32 %v3844, 0.0
      %v3877 = vmax.f32 %v3845, 0.0
      %v3878 = vmax.f32 %v3846, 0.0
      %v3879 = vmax.f32 %v3847, 0.0
      %v3880 = vmax.f32 %v3848, 0.0
      %v3881 = vmax.f32 %v3849, 0.0
      %v3882 = vmax.f32 %v3850, 0.0
      %v3883 = vmax.f32 %v3851, 0.0
      %v3884 = vmax.f32 %v3852, 0.0
      %v3885 = vmax.f32 %v3853, 0.0
      %v3886 = vmax.f32 %v3854, 0.0
      %v3887 = vmax.f32 %v3855, 0.0
      %v3888 = vmax.f32 %v3856, 0.0
      %v3889 = vmax.f32 %v3857, 0.0
      %v3890 = vmax.f32 %v3858, 0.0
      %v3891 = vmax.f32 %v3859, 0.0
      %v3892 = vmax.f32 %v3860, 0.0
      %v3893 = vmax.f32 %v3861, 0.0
      %v3894 = vmax.f32 %v3862, 0.0
      %v3895 = vmax.f32 %v3863, 0.0
      %3896 = vst.msk [vmem:[%s313 + $0x1] sm:$0xff] %vm225, %v3864
      %3897 = vst.msk [vmem:[%s313 + $0x9] sm:$0xff] %vm225, %v3865
      %3898 = vst.msk [vmem:[%s313 + $0x19] sm:$0xff] %vm225, %v3866
      %3899 = vst.msk [vmem:[%s313 + $0x21] sm:$0xff] %vm225, %v3867
      %3900 = vst.msk [vmem:[%s313 + $0x31] sm:$0xff] %vm225, %v3868
      %3901 = vst.msk [vmem:[%s313 + $0x39] sm:$0xff] %vm225, %v3869
      %3902 = vst.msk [vmem:[%s313 + $0x49] sm:$0xff] %vm225, %v3870
      %3903 = vst.msk [vmem:[%s313 + $0x51] sm:$0xff] %vm225, %v3871
      %3904 = vst.msk [vmem:[%s313 + $0x61] sm:$0xff] %vm225, %v3872
      %3905 = vst.msk [vmem:[%s313 + $0x69] sm:$0xff] %vm225, %v3873
      %3906 = vst.msk [vmem:[%s313 + $0x79] sm:$0xff] %vm225, %v3874
      %3907 = vst.msk [vmem:[%s313 + $0x81] sm:$0xff] %vm225, %v3875
      %3908 = vst.msk [vmem:[%s313 + $0x91] sm:$0xff] %vm225, %v3876
      %3909 = vst.msk [vmem:[%s313 + $0x99] sm:$0xff] %vm225, %v3877
      %3910 = vst.msk [vmem:[%s313 + $0xa9] sm:$0xff] %vm225, %v3878
      %3911 = vst.msk [vmem:[%s313 + $0xb1] sm:$0xff] %vm225, %v3879
      %3912 = vst.msk [vmem:[%s313 + $0xc1] sm:$0xff] %vm225, %v3880
      %3913 = vst.msk [vmem:[%s313 + $0xc9] sm:$0xff] %vm225, %v3881
      %3914 = vst.msk [vmem:[%s313 + $0xd9] sm:$0xff] %vm225, %v3882
      %3915 = vst.msk [vmem:[%s313 + $0xe1] sm:$0xff] %vm225, %v3883
      %3916 = vst.msk [vmem:[%s313 + $0xf1] sm:$0xff] %vm225, %v3884
      %3917 = vst.msk [vmem:[%s313 + $0xf9] sm:$0xff] %vm225, %v3885
      %3918 = vst.msk [vmem:[%s313 + $0x109] sm:$0xff] %vm225, %v3886
      %3919 = vst.msk [vmem:[%s313 + $0x111] sm:$0xff] %vm225, %v3887
      %3920 = vst.msk [vmem:[%s313 + $0x121] sm:$0xff] %vm225, %v3888
      %3921 = vst.msk [vmem:[%s313 + $0x129] sm:$0xff] %vm225, %v3889
      %3922 = vst.msk [vmem:[%s313 + $0x139] sm:$0xff] %vm225, %v3890
      %3923 = vst.msk [vmem:[%s313 + $0x141] sm:$0xff] %vm225, %v3891
      %3924 = vst.msk [vmem:[%s313 + $0x151] sm:$0xff] %vm225, %v3892
      %3925 = vst.msk [vmem:[%s313 + $0x159] sm:$0xff] %vm225, %v3893
      %3926 = vst.msk [vmem:[%s313 + $0x169] sm:$0xff] %vm225, %v3894
      %3927 = vst.msk [vmem:[%s313 + $0x171] sm:$0xff] %vm225, %v3895
      %v3928 = vld [vmem:[%s219] sm:$0xff]
      %v3929 = vld [vmem:[%s219 + $0x8] sm:$0xff]
      %v3930 = vld [vmem:[%s219 + $0x10] sm:$0xff]
      %v3931 = vld [vmem:[%s219 + $0x18] sm:$0xff]
      %v3932 = vld [vmem:[%s219 + $0x20] sm:$0xff]
      %v3933 = vld [vmem:[%s219 + $0x28] sm:$0xff]
      %v3934 = vld [vmem:[%s219 + $0x30] sm:$0xff]
      %v3935 = vld [vmem:[%s219 + $0x38] sm:$0xff]
      %v3936 = vld [vmem:[%s219 + $0x40] sm:$0xff]
      %v3937 = vld [vmem:[%s219 + $0x48] sm:$0xff]
      %v3938 = vld [vmem:[%s219 + $0x50] sm:$0xff]
      %v3939 = vld [vmem:[%s219 + $0x58] sm:$0xff]
      %v3940 = vld [vmem:[%s219 + $0x60] sm:$0xff]
      %v3941 = vld [vmem:[%s219 + $0x68] sm:$0xff]
      %v3942 = vld [vmem:[%s219 + $0x70] sm:$0xff]
      %v3943 = vld [vmem:[%s219 + $0x78] sm:$0xff]
      %v3944 = vld [vmem:[%s219 + $0x80] sm:$0xff]
      %v3945 = vld [vmem:[%s219 + $0x88] sm:$0xff]
      %v3946 = vld [vmem:[%s219 + $0x90] sm:$0xff]
      %v3947 = vld [vmem:[%s219 + $0x98] sm:$0xff]
      %v3948 = vld [vmem:[%s219 + $0xa0] sm:$0xff]
      %v3949 = vld [vmem:[%s219 + $0xa8] sm:$0xff]
      %v3950 = vld [vmem:[%s219 + $0xb0] sm:$0xff]
      %v3951 = vld [vmem:[%s219 + $0xb8] sm:$0xff]
      %v3952 = vld [vmem:[%s219 + $0xc0] sm:$0xff]
      %v3953 = vld [vmem:[%s219 + $0xc8] sm:$0xff]
      %v3954 = vld [vmem:[%s219 + $0xd0] sm:$0xff]
      %v3955 = vld [vmem:[%s219 + $0xd8] sm:$0xff]
      %v3956 = vld [vmem:[%s219 + $0xe0] sm:$0xff]
      %v3957 = vld [vmem:[%s219 + $0xe8] sm:$0xff]
      %v3958 = vld [vmem:[%s219 + $0xf0] sm:$0xff]
      %v3959 = vld [vmem:[%s219 + $0xf8] sm:$0xff]
      %v3960 = vld [vmem:[%s4] sm:$0x1]
      %v3962 = vlaneseq
      %v3963 = vshrl.u32 %v3962, 7
      %v3964 = vsub.s32 0, %v3963
      %v3965 = vrot.slane %v3960, %v3964
      %v3967 = vadd.f32 %v3928, %v3965
      %v3968 = vadd.f32 %v3929, %v3965
      %v3969 = vadd.f32 %v3930, %v3965
      %v3970 = vadd.f32 %v3931, %v3965
      %v3971 = vadd.f32 %v3932, %v3965
      %v3972 = vadd.f32 %v3933, %v3965
      %v3973 = vadd.f32 %v3934, %v3965
      %v3974 = vadd.f32 %v3935, %v3965
      %v3975 = vadd.f32 %v3936, %v3965
      %v3976 = vadd.f32 %v3937, %v3965
      %v3977 = vadd.f32 %v3938, %v3965
      %v3978 = vadd.f32 %v3939, %v3965
      %v3979 = vadd.f32 %v3940, %v3965
      %v3980 = vadd.f32 %v3941, %v3965
      %v3981 = vadd.f32 %v3942, %v3965
      %v3982 = vadd.f32 %v3943, %v3965
      %v3983 = vadd.f32 %v3944, %v3965
      %v3984 = vadd.f32 %v3945, %v3965
      %v3985 = vadd.f32 %v3946, %v3965
      %v3986 = vadd.f32 %v3947, %v3965
      %v3987 = vadd.f32 %v3948, %v3965
      %v3988 = vadd.f32 %v3949, %v3965
      %v3989 = vadd.f32 %v3950, %v3965
      %v3990 = vadd.f32 %v3951, %v3965
      %v3991 = vadd.f32 %v3952, %v3965
      %v3992 = vadd.f32 %v3953, %v3965
      %v3993 = vadd.f32 %v3954, %v3965
      %v3994 = vadd.f32 %v3955, %v3965
      %v3995 = vadd.f32 %v3956, %v3965
      %v3996 = vadd.f32 %v3957, %v3965
      %v3997 = vadd.f32 %v3958, %v3965
      %v3998 = vadd.f32 %v3959, %v3965
      %v3999 = vld [vmem:[#allocation2] sm:$0xff]
      %v4000 = vld [vmem:[#allocation2 + $0x8] sm:$0xff]
      %v4001 = vld [vmem:[#allocation2 + $0x18] sm:$0xff]
      %v4002 = vld [vmem:[#allocation2 + $0x20] sm:$0xff]
      %v4003 = vld [vmem:[#allocation2 + $0x30] sm:$0xff]
      %v4004 = vld [vmem:[#allocation2 + $0x38] sm:$0xff]
      %v4005 = vld [vmem:[#allocation2 + $0x48] sm:$0xff]
      %v4006 = vld [vmem:[#allocation2 + $0x50] sm:$0xff]
      %v4007 = vld [vmem:[#allocation2 + $0x60] sm:$0xff]
      %v4008 = vld [vmem:[#allocation2 + $0x68] sm:$0xff]
      %v4009 = vld [vmem:[#allocation2 + $0x78] sm:$0xff]
      %v4010 = vld [vmem:[#allocation2 + $0x80] sm:$0xff]
      %v4011 = vld [vmem:[#allocation2 + $0x90] sm:$0xff]
      %v4012 = vld [vmem:[#allocation2 + $0x98] sm:$0xff]
      %v4013 = vld [vmem:[#allocation2 + $0xa8] sm:$0xff]
      %v4014 = vld [vmem:[#allocation2 + $0xb0] sm:$0xff]
      %v4015 = vld [vmem:[#allocation2 + $0xc0] sm:$0xff]
      %v4016 = vld [vmem:[#allocation2 + $0xc8] sm:$0xff]
      %v4017 = vld [vmem:[#allocation2 + $0xd8] sm:$0xff]
      %v4018 = vld [vmem:[#allocation2 + $0xe0] sm:$0xff]
      %v4019 = vld [vmem:[#allocation2 + $0xf0] sm:$0xff]
      %v4020 = vld [vmem:[#allocation2 + $0xf8] sm:$0xff]
      %v4021 = vld [vmem:[#allocation2 + $0x108] sm:$0xff]
      %v4022 = vld [vmem:[#allocation2 + $0x110] sm:$0xff]
      %v4023 = vld [vmem:[#allocation2 + $0x120] sm:$0xff]
      %v4024 = vld [vmem:[#allocation2 + $0x128] sm:$0xff]
      %v4025 = vld [vmem:[#allocation2 + $0x138] sm:$0xff]
      %v4026 = vld [vmem:[#allocation2 + $0x140] sm:$0xff]
      %v4027 = vld [vmem:[#allocation2 + $0x150] sm:$0xff]
      %v4028 = vld [vmem:[#allocation2 + $0x158] sm:$0xff]
      %v4029 = vld [vmem:[#allocation2 + $0x168] sm:$0xff]
      %v4030 = vld [vmem:[#allocation2 + $0x170] sm:$0xff]
      %v4031 = vld [vmem:[%s3] sm:$0xf]
      %v4033 = vsel %vm225, %v3999, 0
      %v4036 = vsel %vm225, %v4000, 0
      %v4039 = vsel %vm225, %v4001, 0
      %v4042 = vsel %vm225, %v4002, 0
      %v4045 = vsel %vm225, %v4003, 0
      %v4048 = vsel %vm225, %v4004, 0
      %v4051 = vsel %vm225, %v4005, 0
      %v4054 = vsel %vm225, %v4006, 0
      %v4057 = vsel %vm225, %v4007, 0
      %v4060 = vsel %vm225, %v4008, 0
      %v4063 = vsel %vm225, %v4009, 0
      %v4066 = vsel %vm225, %v4010, 0
      %v4069 = vsel %vm225, %v4011, 0
      %v4072 = vsel %vm225, %v4012, 0
      %v4075 = vsel %vm225, %v4013, 0
      %v4078 = vsel %vm225, %v4014, 0
      %v4081 = vsel %vm225, %v4015, 0
      %v4084 = vsel %vm225, %v4016, 0
      %v4087 = vsel %vm225, %v4017, 0
      %v4090 = vsel %vm225, %v4018, 0
      %v4093 = vsel %vm225, %v4019, 0
      %v4096 = vsel %vm225, %v4020, 0
      %v4099 = vsel %vm225, %v4021, 0
      %v4102 = vsel %vm225, %v4022, 0
      %v4105 = vsel %vm225, %v4023, 0
      %v4108 = vsel %vm225, %v4024, 0
      %v4111 = vsel %vm225, %v4025, 0
      %v4114 = vsel %vm225, %v4026, 0
      %v4117 = vsel %vm225, %v4027, 0
      %v4120 = vsel %vm225, %v4028, 0
      %v4123 = vsel %vm225, %v4029, 0
      %v4126 = vsel %vm225, %v4030, 0
      %v4129 = vsel %vm482, %v4031, 0
      %4131 = vmatprep.subr.mxu0 0.0
      %4132 = vmatpush1.msra.mxu0 %v4129
      %4133 = vmatprep.subr.mxu0 0.0
      %4134 = vmatpush1.msra.mxu0 0.0
      %4135 = vmatprep.subr.mxu0 0.0
      %4136 = vmatpush1.msra.mxu0 0.0
      %4137 = vmatprep.subr.mxu0 0.0
      %4138 = vmatpush1.msra.mxu0 0.0
      %4139 = vmatprep.subr.mxu0 0.0
      %4140 = vmatpush1.msra.mxu0 0.0
      %4141 = vmatprep.subr.mxu0 0.0
      %4142 = vmatpush1.msra.mxu0 0.0
      %4143 = vmatprep.subr.mxu0 0.0
      %4144 = vmatpush1.msra.mxu0 0.0
      %4145 = vmatprep.subr.mxu0 0.0
      %4146 = vmatpush1.msra.mxu0 0.0
      %4147 = vmatprep.subr.mxu0 0.0
      %4148 = vmatpush1.msra.mxu0 0.0
      %4149 = vmatprep.subr.mxu0 0.0
      %4150 = vmatpush1.msra.mxu0 0.0
      %4151 = vmatprep.subr.mxu0 0.0
      %4152 = vmatpush1.msra.mxu0 0.0
      %4153 = vmatprep.subr.mxu0 0.0
      %4154 = vmatpush1.msra.mxu0 0.0
      %4155 = vmatprep.subr.mxu0 0.0
      %4156 = vmatpush1.msra.mxu0 0.0
      %4157 = vmatprep.subr.mxu0 0.0
      %4158 = vmatpush1.msra.mxu0 0.0
      %4159 = vmatprep.subr.mxu0 0.0
      %4160 = vmatpush1.msra.mxu0 0.0
      %4161 = vmatprep.subr.mxu0 0.0
      %4162 = vmatpush1.msra.mxu0 0.0
      %4163 = vmatprep.subr.mxu0 0.0
      %4164 = vmatpush1.msra.mxu0 0.0
      %4165 = vmatprep.subr.mxu0 0.0
      %4166 = vmatpush1.msra.mxu0 0.0
      %4167 = vmatprep.subr.mxu0 0.0
      %4168 = vmatpush1.msra.mxu0 0.0
      %4169 = vmatprep.subr.mxu0 0.0
      %4170 = vmatpush1.msra.mxu0 0.0
      %4171 = vmatprep.subr.mxu0 0.0
      %4172 = vmatpush1.msra.mxu0 0.0
      %4173 = vmatprep.subr.mxu0 0.0
      %4174 = vmatpush1.msra.mxu0 0.0
      %4175 = vmatprep.subr.mxu0 0.0
      %4176 = vmatpush1.msra.mxu0 0.0
      %4177 = vmatprep.subr.mxu0 0.0
      %4178 = vmatpush1.msra.mxu0 0.0
      %4179 = vmatprep.subr.mxu0 0.0
      %4180 = vmatpush1.msra.mxu0 0.0
      %4181 = vmatprep.subr.mxu0 0.0
      %4182 = vmatpush1.msra.mxu0 0.0
      %4183 = vmatprep.subr.mxu0 0.0
      %4184 = vmatpush1.msra.mxu0 0.0
      %4185 = vmatprep.subr.mxu0 0.0
      %4186 = vmatpush1.msra.mxu0 0.0
      %4187 = vmatprep.subr.mxu0 0.0
      %4188 = vmatpush1.msra.mxu0 0.0
      %4189 = vmatprep.subr.mxu0 0.0
      %4190 = vmatpush1.msra.mxu0 0.0
      %4191 = vmatprep.subr.mxu0 0.0
      %4192 = vmatpush1.msra.mxu0 0.0
      %4193 = vmatprep.subr.mxu0 0.0
      %4194 = vmatpush1.msra.mxu0 0.0
      %4195 = vmatprep.mubr.f32.mxu0 0.0
      %4196 = vmatmul.mubr.f32.gmra.mrb[0].mxu0 %v4033
      %v4197 = vpop.f32.mrb[0].mxu0
      %v4198 = vadd.f32 0.0, %v4197
      %v4199 = vpop.f32.mrb[0].mxu0
      %4200 = vmatprep.mubr.f32.mxu0 0.0
      %4201 = vmatmul.mubr.f32.gmra.mrb[0].mxu0 %v4036
      %v4202 = vpop.f32.mrb[0].mxu0
      %v4203 = vadd.f32 0.0, %v4202
      %v4204 = vpop.f32.mrb[0].mxu0
      %4205 = vmatprep.mubr.f32.mxu0 0.0
      %4206 = vmatmul.mubr.f32.gmra.mrb[0].mxu0 %v4039
      %v4207 = vpop.f32.mrb[0].mxu0
      %v4208 = vadd.f32 0.0, %v4207
      %v4209 = vpop.f32.mrb[0].mxu0
      %4210 = vmatprep.mubr.f32.mxu0 0.0
      %4211 = vmatmul.mubr.f32.gmra.mrb[0].mxu0 %v4042
      %v4212 = vpop.f32.mrb[0].mxu0
      %v4213 = vadd.f32 0.0, %v4212
      %v4214 = vpop.f32.mrb[0].mxu0
      %4215 = vmatprep.mubr.f32.mxu0 0.0
      %4216 = vmatmul.mubr.f32.gmra.mrb[0].mxu0 %v4045
      %v4217 = vpop.f32.mrb[0].mxu0
      %v4218 = vadd.f32 0.0, %v4217
      %v4219 = vpop.f32.mrb[0].mxu0
      %4220 = vmatprep.mubr.f32.mxu0 0.0
      %4221 = vmatmul.mubr.f32.gmra.mrb[0].mxu0 %v4048
      %v4222 = vpop.f32.mrb[0].mxu0
      %v4223 = vadd.f32 0.0, %v4222
      %v4224 = vpop.f32.mrb[0].mxu0
      %4225 = vmatprep.mubr.f32.mxu0 0.0
      %4226 = vmatmul.mubr.f32.gmra.mrb[0].mxu0 %v4051
      %v4227 = vpop.f32.mrb[0].mxu0
      %v4228 = vadd.f32 0.0, %v4227
      %v4229 = vpop.f32.mrb[0].mxu0
      %4230 = vmatprep.mubr.f32.mxu0 0.0
      %4231 = vmatmul.mubr.f32.gmra.mrb[0].mxu0 %v4054
      %v4232 = vpop.f32.mrb[0].mxu0
      %v4233 = vadd.f32 0.0, %v4232
      %v4234 = vpop.f32.mrb[0].mxu0
      %4235 = vmatprep.mubr.f32.mxu0 0.0
      %4236 = vmatmul.mubr.f32.gmra.mrb[0].mxu0 %v4057
      %v4237 = vpop.f32.mrb[0].mxu0
      %v4238 = vadd.f32 0.0, %v4237
      %v4239 = vpop.f32.mrb[0].mxu0
      %4240 = vmatprep.mubr.f32.mxu0 0.0
      %4241 = vmatmul.mubr.f32.gmra.mrb[0].mxu0 %v4060
      %v4242 = vpop.f32.mrb[0].mxu0
      %v4243 = vadd.f32 0.0, %v4242
      %v4244 = vpop.f32.mrb[0].mxu0
      %4245 = vmatprep.mubr.f32.mxu0 0.0
      %4246 = vmatmul.mubr.f32.gmra.mrb[0].mxu0 %v4063
      %v4247 = vpop.f32.mrb[0].mxu0
      %v4248 = vadd.f32 0.0, %v4247
      %v4249 = vpop.f32.mrb[0].mxu0
      %4250 = vmatprep.mubr.f32.mxu0 0.0
      %4251 = vmatmul.mubr.f32.gmra.mrb[0].mxu0 %v4066
      %v4252 = vpop.f32.mrb[0].mxu0
      %v4253 = vadd.f32 0.0, %v4252
      %v4254 = vpop.f32.mrb[0].mxu0
      %4255 = vmatprep.mubr.f32.mxu0 0.0
      %4256 = vmatmul.mubr.f32.gmra.mrb[0].mxu0 %v4069
      %v4257 = vpop.f32.mrb[0].mxu0
      %v4258 = vadd.f32 0.0, %v4257
      %v4259 = vpop.f32.mrb[0].mxu0
      %4260 = vmatprep.mubr.f32.mxu0 0.0
      %4261 = vmatmul.mubr.f32.gmra.mrb[0].mxu0 %v4072
      %v4262 = vpop.f32.mrb[0].mxu0
      %v4263 = vadd.f32 0.0, %v4262
      %v4264 = vpop.f32.mrb[0].mxu0
      %4265 = vmatprep.mubr.f32.mxu0 0.0
      %4266 = vmatmul.mubr.f32.gmra.mrb[0].mxu0 %v4075
      %v4267 = vpop.f32.mrb[0].mxu0
      %v4268 = vadd.f32 0.0, %v4267
      %v4269 = vpop.f32.mrb[0].mxu0
      %4270 = vmatprep.mubr.f32.mxu0 0.0
      %4271 = vmatmul.mubr.f32.gmra.mrb[0].mxu0 %v4078
      %v4272 = vpop.f32.mrb[0].mxu0
      %v4273 = vadd.f32 0.0, %v4272
      %v4274 = vpop.f32.mrb[0].mxu0
      %4275 = vmatprep.mubr.f32.mxu0 0.0
      %4276 = vmatmul.mubr.f32.gmra.mrb[0].mxu0 %v4081
      %v4277 = vpop.f32.mrb[0].mxu0
      %v4278 = vadd.f32 0.0, %v4277
      %v4279 = vpop.f32.mrb[0].mxu0
      %4280 = vmatprep.mubr.f32.mxu0 0.0
      %4281 = vmatmul.mubr.f32.gmra.mrb[0].mxu0 %v4084
      %v4282 = vpop.f32.mrb[0].mxu0
      %v4283 = vadd.f32 0.0, %v4282
      %v4284 = vpop.f32.mrb[0].mxu0
      %4285 = vmatprep.mubr.f32.mxu0 0.0
      %4286 = vmatmul.mubr.f32.gmra.mrb[0].mxu0 %v4087
      %v4287 = vpop.f32.mrb[0].mxu0
      %v4288 = vadd.f32 0.0, %v4287
      %v4289 = vpop.f32.mrb[0].mxu0
      %4290 = vmatprep.mubr.f32.mxu0 0.0
      %4291 = vmatmul.mubr.f32.gmra.mrb[0].mxu0 %v4090
      %v4292 = vpop.f32.mrb[0].mxu0
      %v4293 = vadd.f32 0.0, %v4292
      %v4294 = vpop.f32.mrb[0].mxu0
      %4295 = vmatprep.mubr.f32.mxu0 0.0
      %4296 = vmatmul.mubr.f32.gmra.mrb[0].mxu0 %v4093
      %v4297 = vpop.f32.mrb[0].mxu0
      %v4298 = vadd.f32 0.0, %v4297
      %v4299 = vpop.f32.mrb[0].mxu0
      %4300 = vmatprep.mubr.f32.mxu0 0.0
      %4301 = vmatmul.mubr.f32.gmra.mrb[0].mxu0 %v4096
      %v4302 = vpop.f32.mrb[0].mxu0
      %v4303 = vadd.f32 0.0, %v4302
      %v4304 = vpop.f32.mrb[0].mxu0
      %4305 = vmatprep.mubr.f32.mxu0 0.0
      %4306 = vmatmul.mubr.f32.gmra.mrb[0].mxu0 %v4099
      %v4307 = vpop.f32.mrb[0].mxu0
      %v4308 = vadd.f32 0.0, %v4307
      %v4309 = vpop.f32.mrb[0].mxu0
      %4310 = vmatprep.mubr.f32.mxu0 0.0
      %4311 = vmatmul.mubr.f32.gmra.mrb[0].mxu0 %v4102
      %v4312 = vpop.f32.mrb[0].mxu0
      %v4313 = vadd.f32 0.0, %v4312
      %v4314 = vpop.f32.mrb[0].mxu0
      %4315 = vmatprep.mubr.f32.mxu0 0.0
      %4316 = vmatmul.mubr.f32.gmra.mrb[0].mxu0 %v4105
      %v4317 = vpop.f32.mrb[0].mxu0
      %v4318 = vadd.f32 0.0, %v4317
      %v4319 = vpop.f32.mrb[0].mxu0
      %4320 = vmatprep.mubr.f32.mxu0 0.0
      %4321 = vmatmul.mubr.f32.gmra.mrb[0].mxu0 %v4108
      %v4322 = vpop.f32.mrb[0].mxu0
      %v4323 = vadd.f32 0.0, %v4322
      %v4324 = vpop.f32.mrb[0].mxu0
      %4325 = vmatprep.mubr.f32.mxu0 0.0
      %4326 = vmatmul.mubr.f32.gmra.mrb[0].mxu0 %v4111
      %v4327 = vpop.f32.mrb[0].mxu0
      %v4328 = vadd.f32 0.0, %v4327
      %v4329 = vpop.f32.mrb[0].mxu0
      %4330 = vmatprep.mubr.f32.mxu0 0.0
      %4331 = vmatmul.mubr.f32.gmra.mrb[0].mxu0 %v4114
      %v4332 = vpop.f32.mrb[0].mxu0
      %v4333 = vadd.f32 0.0, %v4332
      %v4334 = vpop.f32.mrb[0].mxu0
      %4335 = vmatprep.mubr.f32.mxu0 0.0
      %4336 = vmatmul.mubr.f32.gmra.mrb[0].mxu0 %v4117
      %v4337 = vpop.f32.mrb[0].mxu0
      %v4338 = vadd.f32 0.0, %v4337
      %v4339 = vpop.f32.mrb[0].mxu0
      %4340 = vmatprep.mubr.f32.mxu0 0.0
      %4341 = vmatmul.mubr.f32.gmra.mrb[0].mxu0 %v4120
      %v4342 = vpop.f32.mrb[0].mxu0
      %v4343 = vadd.f32 0.0, %v4342
      %v4344 = vpop.f32.mrb[0].mxu0
      %4345 = vmatprep.mubr.f32.mxu0 0.0
      %4346 = vmatmul.mubr.f32.gmra.mrb[0].mxu0 %v4123
      %v4347 = vpop.f32.mrb[0].mxu0
      %v4348 = vadd.f32 0.0, %v4347
      %v4349 = vpop.f32.mrb[0].mxu0
      %4350 = vmatprep.mubr.f32.mxu0 0.0
      %4351 = vmatmul.mubr.f32.gmra.mrb[0].mxu0 %v4126
      %v4352 = vpop.f32.mrb[0].mxu0
      %v4353 = vadd.f32 0.0, %v4352
      %v4354 = vpop.f32.mrb[0].mxu0
      %4355 = vdwg.mxu0
      %v4356 = vadd.f32 %v3967, %v4198
      %v4357 = vadd.f32 %v3968, %v4203
      %v4358 = vadd.f32 %v3969, %v4208
      %v4359 = vadd.f32 %v3970, %v4213
      %v4360 = vadd.f32 %v3971, %v4218
      %v4361 = vadd.f32 %v3972, %v4223
      %v4362 = vadd.f32 %v3973, %v4228
      %v4363 = vadd.f32 %v3974, %v4233
      %v4364 = vadd.f32 %v3975, %v4238
      %v4365 = vadd.f32 %v3976, %v4243
      %v4366 = vadd.f32 %v3977, %v4248
      %v4367 = vadd.f32 %v3978, %v4253
      %v4368 = vadd.f32 %v3979, %v4258
      %v4369 = vadd.f32 %v3980, %v4263
      %v4370 = vadd.f32 %v3981, %v4268
      %v4371 = vadd.f32 %v3982, %v4273
      %v4372 = vadd.f32 %v3983, %v4278
      %v4373 = vadd.f32 %v3984, %v4283
      %v4374 = vadd.f32 %v3985, %v4288
      %v4375 = vadd.f32 %v3986, %v4293
      %v4376 = vadd.f32 %v3987, %v4298
      %v4377 = vadd.f32 %v3988, %v4303
      %v4378 = vadd.f32 %v3989, %v4308
      %v4379 = vadd.f32 %v3990, %v4313
      %v4380 = vadd.f32 %v3991, %v4318
      %v4381 = vadd.f32 %v3992, %v4323
      %v4382 = vadd.f32 %v3993, %v4328
      %v4383 = vadd.f32 %v3994, %v4333
      %v4384 = vadd.f32 %v3995, %v4338
      %v4385 = vadd.f32 %v3996, %v4343
      %v4386 = vadd.f32 %v3997, %v4348
      %v4387 = vadd.f32 %v3998, %v4353
      %v4388 = vld [vmem:[#allocation2 + $0x1] sm:$0xff]
      %v4389 = vld [vmem:[#allocation2 + $0x9] sm:$0xff]
      %v4390 = vld [vmem:[#allocation2 + $0x19] sm:$0xff]
      %v4391 = vld [vmem:[#allocation2 + $0x21] sm:$0xff]
      %v4392 = vld [vmem:[#allocation2 + $0x31] sm:$0xff]
      %v4393 = vld [vmem:[#allocation2 + $0x39] sm:$0xff]
      %v4394 = vld [vmem:[#allocation2 + $0x49] sm:$0xff]
      %v4395 = vld [vmem:[#allocation2 + $0x51] sm:$0xff]
      %v4396 = vld [vmem:[#allocation2 + $0x61] sm:$0xff]
      %v4397 = vld [vmem:[#allocation2 + $0x69] sm:$0xff]
      %v4398 = vld [vmem:[#allocation2 + $0x79] sm:$0xff]
      %v4399 = vld [vmem:[#allocation2 + $0x81] sm:$0xff]
      %v4400 = vld [vmem:[#allocation2 + $0x91] sm:$0xff]
      %v4401 = vld [vmem:[#allocation2 + $0x99] sm:$0xff]
      %v4402 = vld [vmem:[#allocation2 + $0xa9] sm:$0xff]
      %v4403 = vld [vmem:[#allocation2 + $0xb1] sm:$0xff]
      %v4404 = vld [vmem:[#allocation2 + $0xc1] sm:$0xff]
      %v4405 = vld [vmem:[#allocation2 + $0xc9] sm:$0xff]
      %v4406 = vld [vmem:[#allocation2 + $0xd9] sm:$0xff]
      %v4407 = vld [vmem:[#allocation2 + $0xe1] sm:$0xff]
      %v4408 = vld [vmem:[#allocation2 + $0xf1] sm:$0xff]
      %v4409 = vld [vmem:[#allocation2 + $0xf9] sm:$0xff]
      %v4410 = vld [vmem:[#allocation2 + $0x109] sm:$0xff]
      %v4411 = vld [vmem:[#allocation2 + $0x111] sm:$0xff]
      %v4412 = vld [vmem:[#allocation2 + $0x121] sm:$0xff]
      %v4413 = vld [vmem:[#allocation2 + $0x129] sm:$0xff]
      %v4414 = vld [vmem:[#allocation2 + $0x139] sm:$0xff]
      %v4415 = vld [vmem:[#allocation2 + $0x141] sm:$0xff]
      %v4416 = vld [vmem:[#allocation2 + $0x151] sm:$0xff]
      %v4417 = vld [vmem:[#allocation2 + $0x159] sm:$0xff]
      %v4418 = vld [vmem:[#allocation2 + $0x169] sm:$0xff]
      %v4419 = vld [vmem:[#allocation2 + $0x171] sm:$0xff]
      %s4420 = scalar_lea.vmem %s3, 4
      %v4421 = vld [vmem:[%s4420] sm:$0xf]
      %v4423 = vsel %vm225, %v4388, 0
      %v4426 = vsel %vm225, %v4389, 0
      %v4429 = vsel %vm225, %v4390, 0
      %v4432 = vsel %vm225, %v4391, 0
      %v4435 = vsel %vm225, %v4392, 0
      %v4438 = vsel %vm225, %v4393, 0
      %v4441 = vsel %vm225, %v4394, 0
      %v4444 = vsel %vm225, %v4395, 0
      %v4447 = vsel %vm225, %v4396, 0
      %v4450 = vsel %vm225, %v4397, 0
      %v4453 = vsel %vm225, %v4398, 0
      %v4456 = vsel %vm225, %v4399, 0
      %v4459 = vsel %vm225, %v4400, 0
      %v4462 = vsel %vm225, %v4401, 0
      %v4465 = vsel %vm225, %v4402, 0
      %v4468 = vsel %vm225, %v4403, 0
      %v4471 = vsel %vm225, %v4404, 0
      %v4474 = vsel %vm225, %v4405, 0
      %v4477 = vsel %vm225, %v4406, 0
      %v4480 = vsel %vm225, %v4407, 0
      %v4483 = vsel %vm225, %v4408, 0
      %v4486 = vsel %vm225, %v4409, 0
      %v4489 = vsel %vm225, %v4410, 0
      %v4492 = vsel %vm225, %v4411, 0
      %v4495 = vsel %vm225, %v4412, 0
      %v4498 = vsel %vm225, %v4413, 0
      %v4501 = vsel %vm225, %v4414, 0
      %v4504 = vsel %vm225, %v4415, 0
      %v4507 = vsel %vm225, %v4416, 0
      %v4510 = vsel %vm225, %v4417, 0
      %v4513 = vsel %vm225, %v4418, 0
      %v4516 = vsel %vm225, %v4419, 0
      %v4519 = vsel %vm482, %v4421, 0
      %4521 = vmatprep.subr.mxu0 0.0
      %4522 = vmatpush1.msra.mxu0 %v4519
      %4523 = vmatprep.subr.mxu0 0.0
      %4524 = vmatpush1.msra.mxu0 0.0
      %4525 = vmatprep.subr.mxu0 0.0
      %4526 = vmatpush1.msra.mxu0 0.0
      %4527 = vmatprep.subr.mxu0 0.0
      %4528 = vmatpush1.msra.mxu0 0.0
      %4529 = vmatprep.subr.mxu0 0.0
      %4530 = vmatpush1.msra.mxu0 0.0
      %4531 = vmatprep.subr.mxu0 0.0
      %4532 = vmatpush1.msra.mxu0 0.0
      %4533 = vmatprep.subr.mxu0 0.0
      %4534 = vmatpush1.msra.mxu0 0.0
      %4535 = vmatprep.subr.mxu0 0.0
      %4536 = vmatpush1.msra.mxu0 0.0
      %4537 = vmatprep.subr.mxu0 0.0
      %4538 = vmatpush1.msra.mxu0 0.0
      %4539 = vmatprep.subr.mxu0 0.0
      %4540 = vmatpush1.msra.mxu0 0.0
      %4541 = vmatprep.subr.mxu0 0.0
      %4542 = vmatpush1.msra.mxu0 0.0
      %4543 = vmatprep.subr.mxu0 0.0
      %4544 = vmatpush1.msra.mxu0 0.0
      %4545 = vmatprep.subr.mxu0 0.0
      %4546 = vmatpush1.msra.mxu0 0.0
      %4547 = vmatprep.subr.mxu0 0.0
      %4548 = vmatpush1.msra.mxu0 0.0
      %4549 = vmatprep.subr.mxu0 0.0
      %4550 = vmatpush1.msra.mxu0 0.0
      %4551 = vmatprep.subr.mxu0 0.0
      %4552 = vmatpush1.msra.mxu0 0.0
      %4553 = vmatprep.subr.mxu0 0.0
      %4554 = vmatpush1.msra.mxu0 0.0
      %4555 = vmatprep.subr.mxu0 0.0
      %4556 = vmatpush1.msra.mxu0 0.0
      %4557 = vmatprep.subr.mxu0 0.0
      %4558 = vmatpush1.msra.mxu0 0.0
      %4559 = vmatprep.subr.mxu0 0.0
      %4560 = vmatpush1.msra.mxu0 0.0
      %4561 = vmatprep.subr.mxu0 0.0
      %4562 = vmatpush1.msra.mxu0 0.0
      %4563 = vmatprep.subr.mxu0 0.0
      %4564 = vmatpush1.msra.mxu0 0.0
      %4565 = vmatprep.subr.mxu0 0.0
      %4566 = vmatpush1.msra.mxu0 0.0
      %4567 = vmatprep.subr.mxu0 0.0
      %4568 = vmatpush1.msra.mxu0 0.0
      %4569 = vmatprep.subr.mxu0 0.0
      %4570 = vmatpush1.msra.mxu0 0.0
      %4571 = vmatprep.subr.mxu0 0.0
      %4572 = vmatpush1.msra.mxu0 0.0
      %4573 = vmatprep.subr.mxu0 0.0
      %4574 = vmatpush1.msra.mxu0 0.0
      %4575 = vmatprep.subr.mxu0 0.0
      %4576 = vmatpush1.msra.mxu0 0.0
      %4577 = vmatprep.subr.mxu0 0.0
      %4578 = vmatpush1.msra.mxu0 0.0
      %4579 = vmatprep.subr.mxu0 0.0
      %4580 = vmatpush1.msra.mxu0 0.0
      %4581 = vmatprep.subr.mxu0 0.0
      %4582 = vmatpush1.msra.mxu0 0.0
      %4583 = vmatprep.subr.mxu0 0.0
      %4584 = vmatpush1.msra.mxu0 0.0
      %4585 = vmatprep.mubr.f32.mxu0 0.0
      %4586 = vmatmul.mubr.f32.gmra.mrb[0].mxu0 %v4423
      %v4587 = vpop.f32.mrb[0].mxu0
      %v4588 = vadd.f32 0.0, %v4587
      %v4589 = vpop.f32.mrb[0].mxu0
      %4590 = vmatprep.mubr.f32.mxu0 0.0
      %4591 = vmatmul.mubr.f32.gmra.mrb[0].mxu0 %v4426
      %v4592 = vpop.f32.mrb[0].mxu0
      %v4593 = vadd.f32 0.0, %v4592
      %v4594 = vpop.f32.mrb[0].mxu0
      %4595 = vmatprep.mubr.f32.mxu0 0.0
      %4596 = vmatmul.mubr.f32.gmra.mrb[0].mxu0 %v4429
      %v4597 = vpop.f32.mrb[0].mxu0
      %v4598 = vadd.f32 0.0, %v4597
      %v4599 = vpop.f32.mrb[0].mxu0
      %4600 = vmatprep.mubr.f32.mxu0 0.0
      %4601 = vmatmul.mubr.f32.gmra.mrb[0].mxu0 %v4432
      %v4602 = vpop.f32.mrb[0].mxu0
      %v4603 = vadd.f32 0.0, %v4602
      %v4604 = vpop.f32.mrb[0].mxu0
      %4605 = vmatprep.mubr.f32.mxu0 0.0
      %4606 = vmatmul.mubr.f32.gmra.mrb[0].mxu0 %v4435
      %v4607 = vpop.f32.mrb[0].mxu0
      %v4608 = vadd.f32 0.0, %v4607
      %v4609 = vpop.f32.mrb[0].mxu0
      %4610 = vmatprep.mubr.f32.mxu0 0.0
      %4611 = vmatmul.mubr.f32.gmra.mrb[0].mxu0 %v4438
      %v4612 = vpop.f32.mrb[0].mxu0
      %v4613 = vadd.f32 0.0, %v4612
      %v4614 = vpop.f32.mrb[0].mxu0
      %4615 = vmatprep.mubr.f32.mxu0 0.0
      %4616 = vmatmul.mubr.f32.gmra.mrb[0].mxu0 %v4441
      %v4617 = vpop.f32.mrb[0].mxu0
      %v4618 = vadd.f32 0.0, %v4617
      %v4619 = vpop.f32.mrb[0].mxu0
      %4620 = vmatprep.mubr.f32.mxu0 0.0
      %4621 = vmatmul.mubr.f32.gmra.mrb[0].mxu0 %v4444
      %v4622 = vpop.f32.mrb[0].mxu0
      %v4623 = vadd.f32 0.0, %v4622
      %v4624 = vpop.f32.mrb[0].mxu0
      %4625 = vmatprep.mubr.f32.mxu0 0.0
      %4626 = vmatmul.mubr.f32.gmra.mrb[0].mxu0 %v4447
      %v4627 = vpop.f32.mrb[0].mxu0
      %v4628 = vadd.f32 0.0, %v4627
      %v4629 = vpop.f32.mrb[0].mxu0
      %4630 = vmatprep.mubr.f32.mxu0 0.0
      %4631 = vmatmul.mubr.f32.gmra.mrb[0].mxu0 %v4450
      %v4632 = vpop.f32.mrb[0].mxu0
      %v4633 = vadd.f32 0.0, %v4632
      %v4634 = vpop.f32.mrb[0].mxu0
      %4635 = vmatprep.mubr.f32.mxu0 0.0
      %4636 = vmatmul.mubr.f32.gmra.mrb[0].mxu0 %v4453
      %v4637 = vpop.f32.mrb[0].mxu0
      %v4638 = vadd.f32 0.0, %v4637
      %v4639 = vpop.f32.mrb[0].mxu0
      %4640 = vmatprep.mubr.f32.mxu0 0.0
      %4641 = vmatmul.mubr.f32.gmra.mrb[0].mxu0 %v4456
      %v4642 = vpop.f32.mrb[0].mxu0
      %v4643 = vadd.f32 0.0, %v4642
      %v4644 = vpop.f32.mrb[0].mxu0
      %4645 = vmatprep.mubr.f32.mxu0 0.0
      %4646 = vmatmul.mubr.f32.gmra.mrb[0].mxu0 %v4459
      %v4647 = vpop.f32.mrb[0].mxu0
      %v4648 = vadd.f32 0.0, %v4647
      %v4649 = vpop.f32.mrb[0].mxu0
      %4650 = vmatprep.mubr.f32.mxu0 0.0
      %4651 = vmatmul.mubr.f32.gmra.mrb[0].mxu0 %v4462
      %v4652 = vpop.f32.mrb[0].mxu0
      %v4653 = vadd.f32 0.0, %v4652
      %v4654 = vpop.f32.mrb[0].mxu0
      %4655 = vmatprep.mubr.f32.mxu0 0.0
      %4656 = vmatmul.mubr.f32.gmra.mrb[0].mxu0 %v4465
      %v4657 = vpop.f32.mrb[0].mxu0
      %v4658 = vadd.f32 0.0, %v4657
      %v4659 = vpop.f32.mrb[0].mxu0
      %4660 = vmatprep.mubr.f32.mxu0 0.0
      %4661 = vmatmul.mubr.f32.gmra.mrb[0].mxu0 %v4468
      %v4662 = vpop.f32.mrb[0].mxu0
      %v4663 = vadd.f32 0.0, %v4662
      %v4664 = vpop.f32.mrb[0].mxu0
      %4665 = vmatprep.mubr.f32.mxu0 0.0
      %4666 = vmatmul.mubr.f32.gmra.mrb[0].mxu0 %v4471
      %v4667 = vpop.f32.mrb[0].mxu0
      %v4668 = vadd.f32 0.0, %v4667
      %v4669 = vpop.f32.mrb[0].mxu0
      %4670 = vmatprep.mubr.f32.mxu0 0.0
      %4671 = vmatmul.mubr.f32.gmra.mrb[0].mxu0 %v4474
      %v4672 = vpop.f32.mrb[0].mxu0
      %v4673 = vadd.f32 0.0, %v4672
      %v4674 = vpop.f32.mrb[0].mxu0
      %4675 = vmatprep.mubr.f32.mxu0 0.0
      %4676 = vmatmul.mubr.f32.gmra.mrb[0].mxu0 %v4477
      %v4677 = vpop.f32.mrb[0].mxu0
      %v4678 = vadd.f32 0.0, %v4677
      %v4679 = vpop.f32.mrb[0].mxu0
      %4680 = vmatprep.mubr.f32.mxu0 0.0
      %4681 = vmatmul.mubr.f32.gmra.mrb[0].mxu0 %v4480
      %v4682 = vpop.f32.mrb[0].mxu0
      %v4683 = vadd.f32 0.0, %v4682
      %v4684 = vpop.f32.mrb[0].mxu0
      %4685 = vmatprep.mubr.f32.mxu0 0.0
      %4686 = vmatmul.mubr.f32.gmra.mrb[0].mxu0 %v4483
      %v4687 = vpop.f32.mrb[0].mxu0
      %v4688 = vadd.f32 0.0, %v4687
      %v4689 = vpop.f32.mrb[0].mxu0
      %4690 = vmatprep.mubr.f32.mxu0 0.0
      %4691 = vmatmul.mubr.f32.gmra.mrb[0].mxu0 %v4486
      %v4692 = vpop.f32.mrb[0].mxu0
      %v4693 = vadd.f32 0.0, %v4692
      %v4694 = vpop.f32.mrb[0].mxu0
      %4695 = vmatprep.mubr.f32.mxu0 0.0
      %4696 = vmatmul.mubr.f32.gmra.mrb[0].mxu0 %v4489
      %v4697 = vpop.f32.mrb[0].mxu0
      %v4698 = vadd.f32 0.0, %v4697
      %v4699 = vpop.f32.mrb[0].mxu0
      %4700 = vmatprep.mubr.f32.mxu0 0.0
      %4701 = vmatmul.mubr.f32.gmra.mrb[0].mxu0 %v4492
      %v4702 = vpop.f32.mrb[0].mxu0
      %v4703 = vadd.f32 0.0, %v4702
      %v4704 = vpop.f32.mrb[0].mxu0
      %4705 = vmatprep.mubr.f32.mxu0 0.0
      %4706 = vmatmul.mubr.f32.gmra.mrb[0].mxu0 %v4495
      %v4707 = vpop.f32.mrb[0].mxu0
      %v4708 = vadd.f32 0.0, %v4707
      %v4709 = vpop.f32.mrb[0].mxu0
      %4710 = vmatprep.mubr.f32.mxu0 0.0
      %4711 = vmatmul.mubr.f32.gmra.mrb[0].mxu0 %v4498
      %v4712 = vpop.f32.mrb[0].mxu0
      %v4713 = vadd.f32 0.0, %v4712
      %v4714 = vpop.f32.mrb[0].mxu0
      %4715 = vmatprep.mubr.f32.mxu0 0.0
      %4716 = vmatmul.mubr.f32.gmra.mrb[0].mxu0 %v4501
      %v4717 = vpop.f32.mrb[0].mxu0
      %v4718 = vadd.f32 0.0, %v4717
      %v4719 = vpop.f32.mrb[0].mxu0
      %4720 = vmatprep.mubr.f32.mxu0 0.0
      %4721 = vmatmul.mubr.f32.gmra.mrb[0].mxu0 %v4504
      %v4722 = vpop.f32.mrb[0].mxu0
      %v4723 = vadd.f32 0.0, %v4722
      %v4724 = vpop.f32.mrb[0].mxu0
      %4725 = vmatprep.mubr.f32.mxu0 0.0
      %4726 = vmatmul.mubr.f32.gmra.mrb[0].mxu0 %v4507
      %v4727 = vpop.f32.mrb[0].mxu0
      %v4728 = vadd.f32 0.0, %v4727
      %v4729 = vpop.f32.mrb[0].mxu0
      %4730 = vmatprep.mubr.f32.mxu0 0.0
      %4731 = vmatmul.mubr.f32.gmra.mrb[0].mxu0 %v4510
      %v4732 = vpop.f32.mrb[0].mxu0
      %v4733 = vadd.f32 0.0, %v4732
      %v4734 = vpop.f32.mrb[0].mxu0
      %4735 = vmatprep.mubr.f32.mxu0 0.0
      %4736 = vmatmul.mubr.f32.gmra.mrb[0].mxu0 %v4513
      %v4737 = vpop.f32.mrb[0].mxu0
      %v4738 = vadd.f32 0.0, %v4737
      %v4739 = vpop.f32.mrb[0].mxu0
      %4740 = vmatprep.mubr.f32.mxu0 0.0
      %4741 = vmatmul.mubr.f32.gmra.mrb[0].mxu0 %v4516
      %v4742 = vpop.f32.mrb[0].mxu0
      %v4743 = vadd.f32 0.0, %v4742
      %v4744 = vpop.f32.mrb[0].mxu0
      %4745 = vdwg.mxu0
      %v4746 = vadd.f32 %v4356, %v4588
      %v4747 = vadd.f32 %v4357, %v4593
      %v4748 = vadd.f32 %v4358, %v4598
      %v4749 = vadd.f32 %v4359, %v4603
      %v4750 = vadd.f32 %v4360, %v4608
      %v4751 = vadd.f32 %v4361, %v4613
      %v4752 = vadd.f32 %v4362, %v4618
      %v4753 = vadd.f32 %v4363, %v4623
      %v4754 = vadd.f32 %v4364, %v4628
      %v4755 = vadd.f32 %v4365, %v4633
      %v4756 = vadd.f32 %v4366, %v4638
      %v4757 = vadd.f32 %v4367, %v4643
      %v4758 = vadd.f32 %v4368, %v4648
      %v4759 = vadd.f32 %v4369, %v4653
      %v4760 = vadd.f32 %v4370, %v4658
      %v4761 = vadd.f32 %v4371, %v4663
      %v4762 = vadd.f32 %v4372, %v4668
      %v4763 = vadd.f32 %v4373, %v4673
      %v4764 = vadd.f32 %v4374, %v4678
      %v4765 = vadd.f32 %v4375, %v4683
      %v4766 = vadd.f32 %v4376, %v4688
      %v4767 = vadd.f32 %v4377, %v4693
      %v4768 = vadd.f32 %v4378, %v4698
      %v4769 = vadd.f32 %v4379, %v4703
      %v4770 = vadd.f32 %v4380, %v4708
      %v4771 = vadd.f32 %v4381, %v4713
      %v4772 = vadd.f32 %v4382, %v4718
      %v4773 = vadd.f32 %v4383, %v4723
      %v4774 = vadd.f32 %v4384, %v4728
      %v4775 = vadd.f32 %v4385, %v4733
      %v4776 = vadd.f32 %v4386, %v4738
      %v4777 = vadd.f32 %v4387, %v4743
      %v4778 = vld [vmem:[#allocation2 + $0x2] sm:$0xff]
      %v4779 = vld [vmem:[#allocation2 + $0xa] sm:$0xff]
      %v4780 = vld [vmem:[#allocation2 + $0x1a] sm:$0xff]
      %v4781 = vld [vmem:[#allocation2 + $0x22] sm:$0xff]
      %v4782 = vld [vmem:[#allocation2 + $0x32] sm:$0xff]
      %v4783 = vld [vmem:[#allocation2 + $0x3a] sm:$0xff]
      %v4784 = vld [vmem:[#allocation2 + $0x4a] sm:$0xff]
      %v4785 = vld [vmem:[#allocation2 + $0x52] sm:$0xff]
      %v4786 = vld [vmem:[#allocation2 + $0x62] sm:$0xff]
      %v4787 = vld [vmem:[#allocation2 + $0x6a] sm:$0xff]
      %v4788 = vld [vmem:[#allocation2 + $0x7a] sm:$0xff]
      %v4789 = vld [vmem:[#allocation2 + $0x82] sm:$0xff]
      %v4790 = vld [vmem:[#allocation2 + $0x92] sm:$0xff]
      %v4791 = vld [vmem:[#allocation2 + $0x9a] sm:$0xff]
      %v4792 = vld [vmem:[#allocation2 + $0xaa] sm:$0xff]
      %v4793 = vld [vmem:[#allocation2 + $0xb2] sm:$0xff]
      %v4794 = vld [vmem:[#allocation2 + $0xc2] sm:$0xff]
      %v4795 = vld [vmem:[#allocation2 + $0xca] sm:$0xff]
      %v4796 = vld [vmem:[#allocation2 + $0xda] sm:$0xff]
      %v4797 = vld [vmem:[#allocation2 + $0xe2] sm:$0xff]
      %v4798 = vld [vmem:[#allocation2 + $0xf2] sm:$0xff]
      %v4799 = vld [vmem:[#allocation2 + $0xfa] sm:$0xff]
      %v4800 = vld [vmem:[#allocation2 + $0x10a] sm:$0xff]
      %v4801 = vld [vmem:[#allocation2 + $0x112] sm:$0xff]
      %v4802 = vld [vmem:[#allocation2 + $0x122] sm:$0xff]
      %v4803 = vld [vmem:[#allocation2 + $0x12a] sm:$0xff]
      %v4804 = vld [vmem:[#allocation2 + $0x13a] sm:$0xff]
      %v4805 = vld [vmem:[#allocation2 + $0x142] sm:$0xff]
      %v4806 = vld [vmem:[#allocation2 + $0x152] sm:$0xff]
      %v4807 = vld [vmem:[#allocation2 + $0x15a] sm:$0xff]
      %v4808 = vld [vmem:[#allocation2 + $0x16a] sm:$0xff]
      %v4809 = vld [vmem:[#allocation2 + $0x172] sm:$0xff]
      %s4810 = scalar_lea.vmem %s3, 8
      %v4811 = vld [vmem:[%s4810] sm:$0xf]
      %v4813 = vsel %vm225, %v4778, 0
      %v4816 = vsel %vm225, %v4779, 0
      %v4819 = vsel %vm225, %v4780, 0
      %v4822 = vsel %vm225, %v4781, 0
      %v4825 = vsel %vm225, %v4782, 0
      %v4828 = vsel %vm225, %v4783, 0
      %v4831 = vsel %vm225, %v4784, 0
      %v4834 = vsel %vm225, %v4785, 0
      %v4837 = vsel %vm225, %v4786, 0
      %v4840 = vsel %vm225, %v4787, 0
      %v4843 = vsel %vm225, %v4788, 0
      %v4846 = vsel %vm225, %v4789, 0
      %v4849 = vsel %vm225, %v4790, 0
      %v4852 = vsel %vm225, %v4791, 0
      %v4855 = vsel %vm225, %v4792, 0
      %v4858 = vsel %vm225, %v4793, 0
      %v4861 = vsel %vm225, %v4794, 0
      %v4864 = vsel %vm225, %v4795, 0
      %v4867 = vsel %vm225, %v4796, 0
      %v4870 = vsel %vm225, %v4797, 0
      %v4873 = vsel %vm225, %v4798, 0
      %v4876 = vsel %vm225, %v4799, 0
      %v4879 = vsel %vm225, %v4800, 0
      %v4882 = vsel %vm225, %v4801, 0
      %v4885 = vsel %vm225, %v4802, 0
      %v4888 = vsel %vm225, %v4803, 0
      %v4891 = vsel %vm225, %v4804, 0
      %v4894 = vsel %vm225, %v4805, 0
      %v4897 = vsel %vm225, %v4806, 0
      %v4900 = vsel %vm225, %v4807, 0
      %v4903 = vsel %vm225, %v4808, 0
      %v4906 = vsel %vm225, %v4809, 0
      %v4909 = vsel %vm482, %v4811, 0
      %4911 = vmatprep.subr.mxu0 0.0
      %4912 = vmatpush1.msra.mxu0 %v4909
      %4913 = vmatprep.subr.mxu0 0.0
      %4914 = vmatpush1.msra.mxu0 0.0
      %4915 = vmatprep.subr.mxu0 0.0
      %4916 = vmatpush1.msra.mxu0 0.0
      %4917 = vmatprep.subr.mxu0 0.0
      %4918 = vmatpush1.msra.mxu0 0.0
      %4919 = vmatprep.subr.mxu0 0.0
      %4920 = vmatpush1.msra.mxu0 0.0
      %4921 = vmatprep.subr.mxu0 0.0
      %4922 = vmatpush1.msra.mxu0 0.0
      %4923 = vmatprep.subr.mxu0 0.0
      %4924 = vmatpush1.msra.mxu0 0.0
      %4925 = vmatprep.subr.mxu0 0.0
      %4926 = vmatpush1.msra.mxu0 0.0
      %4927 = vmatprep.subr.mxu0 0.0
      %4928 = vmatpush1.msra.mxu0 0.0
      %4929 = vmatprep.subr.mxu0 0.0
      %4930 = vmatpush1.msra.mxu0 0.0
      %4931 = vmatprep.subr.mxu0 0.0
      %4932 = vmatpush1.msra.mxu0 0.0
      %4933 = vmatprep.subr.mxu0 0.0
      %4934 = vmatpush1.msra.mxu0 0.0
      %4935 = vmatprep.subr.mxu0 0.0
      %4936 = vmatpush1.msra.mxu0 0.0
      %4937 = vmatprep.subr.mxu0 0.0
      %4938 = vmatpush1.msra.mxu0 0.0
      %4939 = vmatprep.subr.mxu0 0.0
      %4940 = vmatpush1.msra.mxu0 0.0
      %4941 = vmatprep.subr.mxu0 0.0
      %4942 = vmatpush1.msra.mxu0 0.0
      %4943 = vmatprep.subr.mxu0 0.0
      %4944 = vmatpush1.msra.mxu0 0.0
      %4945 = vmatprep.subr.mxu0 0.0
      %4946 = vmatpush1.msra.mxu0 0.0
      %4947 = vmatprep.subr.mxu0 0.0
      %4948 = vmatpush1.msra.mxu0 0.0
      %4949 = vmatprep.subr.mxu0 0.0
      %4950 = vmatpush1.msra.mxu0 0.0
      %4951 = vmatprep.subr.mxu0 0.0
      %4952 = vmatpush1.msra.mxu0 0.0
      %4953 = vmatprep.subr.mxu0 0.0
      %4954 = vmatpush1.msra.mxu0 0.0
      %4955 = vmatprep.subr.mxu0 0.0
      %4956 = vmatpush1.msra.mxu0 0.0
      %4957 = vmatprep.subr.mxu0 0.0
      %4958 = vmatpush1.msra.mxu0 0.0
      %4959 = vmatprep.subr.mxu0 0.0
      %4960 = vmatpush1.msra.mxu0 0.0
      %4961 = vmatprep.subr.mxu0 0.0
      %4962 = vmatpush1.msra.mxu0 0.0
      %4963 = vmatprep.subr.mxu0 0.0
      %4964 = vmatpush1.msra.mxu0 0.0
      %4965 = vmatprep.subr.mxu0 0.0
      %4966 = vmatpush1.msra.mxu0 0.0
      %4967 = vmatprep.subr.mxu0 0.0
      %4968 = vmatpush1.msra.mxu0 0.0
      %4969 = vmatprep.subr.mxu0 0.0
      %4970 = vmatpush1.msra.mxu0 0.0
      %4971 = vmatprep.subr.mxu0 0.0
      %4972 = vmatpush1.msra.mxu0 0.0
      %4973 = vmatprep.subr.mxu0 0.0
      %4974 = vmatpush1.msra.mxu0 0.0
      %4975 = vmatprep.mubr.f32.mxu0 0.0
      %4976 = vmatmul.mubr.f32.gmra.mrb[0].mxu0 %v4813
      %v4977 = vpop.f32.mrb[0].mxu0
      %v4978 = vadd.f32 0.0, %v4977
      %v4979 = vpop.f32.mrb[0].mxu0
      %4980 = vmatprep.mubr.f32.mxu0 0.0
      %4981 = vmatmul.mubr.f32.gmra.mrb[0].mxu0 %v4816
      %v4982 = vpop.f32.mrb[0].mxu0
      %v4983 = vadd.f32 0.0, %v4982
      %v4984 = vpop.f32.mrb[0].mxu0
      %4985 = vmatprep.mubr.f32.mxu0 0.0
      %4986 = vmatmul.mubr.f32.gmra.mrb[0].mxu0 %v4819
      %v4987 = vpop.f32.mrb[0].mxu0
      %v4988 = vadd.f32 0.0, %v4987
      %v4989 = vpop.f32.mrb[0].mxu0
      %4990 = vmatprep.mubr.f32.mxu0 0.0
      %4991 = vmatmul.mubr.f32.gmra.mrb[0].mxu0 %v4822
      %v4992 = vpop.f32.mrb[0].mxu0
      %v4993 = vadd.f32 0.0, %v4992
      %v4994 = vpop.f32.mrb[0].mxu0
      %4995 = vmatprep.mubr.f32.mxu0 0.0
      %4996 = vmatmul.mubr.f32.gmra.mrb[0].mxu0 %v4825
      %v4997 = vpop.f32.mrb[0].mxu0
      %v4998 = vadd.f32 0.0, %v4997
      %v4999 = vpop.f32.mrb[0].mxu0
      %5000 = vmatprep.mubr.f32.mxu0 0.0
      %5001 = vmatmul.mubr.f32.gmra.mrb[0].mxu0 %v4828
      %v5002 = vpop.f32.mrb[0].mxu0
      %v5003 = vadd.f32 0.0, %v5002
      %v5004 = vpop.f32.mrb[0].mxu0
      %5005 = vmatprep.mubr.f32.mxu0 0.0
      %5006 = vmatmul.mubr.f32.gmra.mrb[0].mxu0 %v4831
      %v5007 = vpop.f32.mrb[0].mxu0
      %v5008 = vadd.f32 0.0, %v5007
      %v5009 = vpop.f32.mrb[0].mxu0
      %5010 = vmatprep.mubr.f32.mxu0 0.0
      %5011 = vmatmul.mubr.f32.gmra.mrb[0].mxu0 %v4834
      %v5012 = vpop.f32.mrb[0].mxu0
      %v5013 = vadd.f32 0.0, %v5012
      %v5014 = vpop.f32.mrb[0].mxu0
      %5015 = vmatprep.mubr.f32.mxu0 0.0
      %5016 = vmatmul.mubr.f32.gmra.mrb[0].mxu0 %v4837
      %v5017 = vpop.f32.mrb[0].mxu0
      %v5018 = vadd.f32 0.0, %v5017
      %v5019 = vpop.f32.mrb[0].mxu0
      %5020 = vmatprep.mubr.f32.mxu0 0.0
      %5021 = vmatmul.mubr.f32.gmra.mrb[0].mxu0 %v4840
      %v5022 = vpop.f32.mrb[0].mxu0
      %v5023 = vadd.f32 0.0, %v5022
      %v5024 = vpop.f32.mrb[0].mxu0
      %5025 = vmatprep.mubr.f32.mxu0 0.0
      %5026 = vmatmul.mubr.f32.gmra.mrb[0].mxu0 %v4843
      %v5027 = vpop.f32.mrb[0].mxu0
      %v5028 = vadd.f32 0.0, %v5027
      %v5029 = vpop.f32.mrb[0].mxu0
      %5030 = vmatprep.mubr.f32.mxu0 0.0
      %5031 = vmatmul.mubr.f32.gmra.mrb[0].mxu0 %v4846
      %v5032 = vpop.f32.mrb[0].mxu0
      %v5033 = vadd.f32 0.0, %v5032
      %v5034 = vpop.f32.mrb[0].mxu0
      %5035 = vmatprep.mubr.f32.mxu0 0.0
      %5036 = vmatmul.mubr.f32.gmra.mrb[0].mxu0 %v4849
      %v5037 = vpop.f32.mrb[0].mxu0
      %v5038 = vadd.f32 0.0, %v5037
      %v5039 = vpop.f32.mrb[0].mxu0
      %5040 = vmatprep.mubr.f32.mxu0 0.0
      %5041 = vmatmul.mubr.f32.gmra.mrb[0].mxu0 %v4852
      %v5042 = vpop.f32.mrb[0].mxu0
      %v5043 = vadd.f32 0.0, %v5042
      %v5044 = vpop.f32.mrb[0].mxu0
      %5045 = vmatprep.mubr.f32.mxu0 0.0
      %5046 = vmatmul.mubr.f32.gmra.mrb[0].mxu0 %v4855
      %v5047 = vpop.f32.mrb[0].mxu0
      %v5048 = vadd.f32 0.0, %v5047
      %v5049 = vpop.f32.mrb[0].mxu0
      %5050 = vmatprep.mubr.f32.mxu0 0.0
      %5051 = vmatmul.mubr.f32.gmra.mrb[0].mxu0 %v4858
      %v5052 = vpop.f32.mrb[0].mxu0
      %v5053 = vadd.f32 0.0, %v5052
      %v5054 = vpop.f32.mrb[0].mxu0
      %5055 = vmatprep.mubr.f32.mxu0 0.0
      %5056 = vmatmul.mubr.f32.gmra.mrb[0].mxu0 %v4861
      %v5057 = vpop.f32.mrb[0].mxu0
      %v5058 = vadd.f32 0.0, %v5057
      %v5059 = vpop.f32.mrb[0].mxu0
      %5060 = vmatprep.mubr.f32.mxu0 0.0
      %5061 = vmatmul.mubr.f32.gmra.mrb[0].mxu0 %v4864
      %v5062 = vpop.f32.mrb[0].mxu0
      %v5063 = vadd.f32 0.0, %v5062
      %v5064 = vpop.f32.mrb[0].mxu0
      %5065 = vmatprep.mubr.f32.mxu0 0.0
      %5066 = vmatmul.mubr.f32.gmra.mrb[0].mxu0 %v4867
      %v5067 = vpop.f32.mrb[0].mxu0
      %v5068 = vadd.f32 0.0, %v5067
      %v5069 = vpop.f32.mrb[0].mxu0
      %5070 = vmatprep.mubr.f32.mxu0 0.0
      %5071 = vmatmul.mubr.f32.gmra.mrb[0].mxu0 %v4870
      %v5072 = vpop.f32.mrb[0].mxu0
      %v5073 = vadd.f32 0.0, %v5072
      %v5074 = vpop.f32.mrb[0].mxu0
      %5075 = vmatprep.mubr.f32.mxu0 0.0
      %5076 = vmatmul.mubr.f32.gmra.mrb[0].mxu0 %v4873
      %v5077 = vpop.f32.mrb[0].mxu0
      %v5078 = vadd.f32 0.0, %v5077
      %v5079 = vpop.f32.mrb[0].mxu0
      %5080 = vmatprep.mubr.f32.mxu0 0.0
      %5081 = vmatmul.mubr.f32.gmra.mrb[0].mxu0 %v4876
      %v5082 = vpop.f32.mrb[0].mxu0
      %v5083 = vadd.f32 0.0, %v5082
      %v5084 = vpop.f32.mrb[0].mxu0
      %5085 = vmatprep.mubr.f32.mxu0 0.0
      %5086 = vmatmul.mubr.f32.gmra.mrb[0].mxu0 %v4879
      %v5087 = vpop.f32.mrb[0].mxu0
      %v5088 = vadd.f32 0.0, %v5087
      %v5089 = vpop.f32.mrb[0].mxu0
      %5090 = vmatprep.mubr.f32.mxu0 0.0
      %5091 = vmatmul.mubr.f32.gmra.mrb[0].mxu0 %v4882
      %v5092 = vpop.f32.mrb[0].mxu0
      %v5093 = vadd.f32 0.0, %v5092
      %v5094 = vpop.f32.mrb[0].mxu0
      %5095 = vmatprep.mubr.f32.mxu0 0.0
      %5096 = vmatmul.mubr.f32.gmra.mrb[0].mxu0 %v4885
      %v5097 = vpop.f32.mrb[0].mxu0
      %v5098 = vadd.f32 0.0, %v5097
      %v5099 = vpop.f32.mrb[0].mxu0
      %5100 = vmatprep.mubr.f32.mxu0 0.0
      %5101 = vmatmul.mubr.f32.gmra.mrb[0].mxu0 %v4888
      %v5102 = vpop.f32.mrb[0].mxu0
      %v5103 = vadd.f32 0.0, %v5102
      %v5104 = vpop.f32.mrb[0].mxu0
      %5105 = vmatprep.mubr.f32.mxu0 0.0
      %5106 = vmatmul.mubr.f32.gmra.mrb[0].mxu0 %v4891
      %v5107 = vpop.f32.mrb[0].mxu0
      %v5108 = vadd.f32 0.0, %v5107
      %v5109 = vpop.f32.mrb[0].mxu0
      %5110 = vmatprep.mubr.f32.mxu0 0.0
      %5111 = vmatmul.mubr.f32.gmra.mrb[0].mxu0 %v4894
      %v5112 = vpop.f32.mrb[0].mxu0
      %v5113 = vadd.f32 0.0, %v5112
      %v5114 = vpop.f32.mrb[0].mxu0
      %5115 = vmatprep.mubr.f32.mxu0 0.0
      %5116 = vmatmul.mubr.f32.gmra.mrb[0].mxu0 %v4897
      %v5117 = vpop.f32.mrb[0].mxu0
      %v5118 = vadd.f32 0.0, %v5117
      %v5119 = vpop.f32.mrb[0].mxu0
      %5120 = vmatprep.mubr.f32.mxu0 0.0
      %5121 = vmatmul.mubr.f32.gmra.mrb[0].mxu0 %v4900
      %v5122 = vpop.f32.mrb[0].mxu0
      %v5123 = vadd.f32 0.0, %v5122
      %v5124 = vpop.f32.mrb[0].mxu0
      %5125 = vmatprep.mubr.f32.mxu0 0.0
      %5126 = vmatmul.mubr.f32.gmra.mrb[0].mxu0 %v4903
      %v5127 = vpop.f32.mrb[0].mxu0
      %v5128 = vadd.f32 0.0, %v5127
      %v5129 = vpop.f32.mrb[0].mxu0
      %5130 = vmatprep.mubr.f32.mxu0 0.0
      %5131 = vmatmul.mubr.f32.gmra.mrb[0].mxu0 %v4906
      %v5132 = vpop.f32.mrb[0].mxu0
      %v5133 = vadd.f32 0.0, %v5132
      %v5134 = vpop.f32.mrb[0].mxu0
      %5135 = vdwg.mxu0
      %v5136 = vadd.f32 %v4746, %v4978
      %v5137 = vadd.f32 %v4747, %v4983
      %v5138 = vadd.f32 %v4748, %v4988
      %v5139 = vadd.f32 %v4749, %v4993
      %v5140 = vadd.f32 %v4750, %v4998
      %v5141 = vadd.f32 %v4751, %v5003
      %v5142 = vadd.f32 %v4752, %v5008
      %v5143 = vadd.f32 %v4753, %v5013
      %v5144 = vadd.f32 %v4754, %v5018
      %v5145 = vadd.f32 %v4755, %v5023
      %v5146 = vadd.f32 %v4756, %v5028
      %v5147 = vadd.f32 %v4757, %v5033
      %v5148 = vadd.f32 %v4758, %v5038
      %v5149 = vadd.f32 %v4759, %v5043
      %v5150 = vadd.f32 %v4760, %v5048
      %v5151 = vadd.f32 %v4761, %v5053
      %v5152 = vadd.f32 %v4762, %v5058
      %v5153 = vadd.f32 %v4763, %v5063
      %v5154 = vadd.f32 %v4764, %v5068
      %v5155 = vadd.f32 %v4765, %v5073
      %v5156 = vadd.f32 %v4766, %v5078
      %v5157 = vadd.f32 %v4767, %v5083
      %v5158 = vadd.f32 %v4768, %v5088
      %v5159 = vadd.f32 %v4769, %v5093
      %v5160 = vadd.f32 %v4770, %v5098
      %v5161 = vadd.f32 %v4771, %v5103
      %v5162 = vadd.f32 %v4772, %v5108
      %v5163 = vadd.f32 %v4773, %v5113
      %v5164 = vadd.f32 %v4774, %v5118
      %v5165 = vadd.f32 %v4775, %v5123
      %v5166 = vadd.f32 %v4776, %v5128
      %v5167 = vadd.f32 %v4777, %v5133
      %v5168 = vld [vmem:[%s313] sm:$0xff]
      %v5169 = vld [vmem:[%s313 + $0x8] sm:$0xff]
      %v5170 = vld [vmem:[%s313 + $0x18] sm:$0xff]
      %v5171 = vld [vmem:[%s313 + $0x20] sm:$0xff]
      %v5172 = vld [vmem:[%s313 + $0x30] sm:$0xff]
      %v5173 = vld [vmem:[%s313 + $0x38] sm:$0xff]
      %v5174 = vld [vmem:[%s313 + $0x48] sm:$0xff]
      %v5175 = vld [vmem:[%s313 + $0x50] sm:$0xff]
      %v5176 = vld [vmem:[%s313 + $0x60] sm:$0xff]
      %v5177 = vld [vmem:[%s313 + $0x68] sm:$0xff]
      %v5178 = vld [vmem:[%s313 + $0x78] sm:$0xff]
      %v5179 = vld [vmem:[%s313 + $0x80] sm:$0xff]
      %v5180 = vld [vmem:[%s313 + $0x90] sm:$0xff]
      %v5181 = vld [vmem:[%s313 + $0x98] sm:$0xff]
      %v5182 = vld [vmem:[%s313 + $0xa8] sm:$0xff]
      %v5183 = vld [vmem:[%s313 + $0xb0] sm:$0xff]
      %v5184 = vld [vmem:[%s313 + $0xc0] sm:$0xff]
      %v5185 = vld [vmem:[%s313 + $0xc8] sm:$0xff]
      %v5186 = vld [vmem:[%s313 + $0xd8] sm:$0xff]
      %v5187 = vld [vmem:[%s313 + $0xe0] sm:$0xff]
      %v5188 = vld [vmem:[%s313 + $0xf0] sm:$0xff]
      %v5189 = vld [vmem:[%s313 + $0xf8] sm:$0xff]
      %v5190 = vld [vmem:[%s313 + $0x108] sm:$0xff]
      %v5191 = vld [vmem:[%s313 + $0x110] sm:$0xff]
      %v5192 = vld [vmem:[%s313 + $0x120] sm:$0xff]
      %v5193 = vld [vmem:[%s313 + $0x128] sm:$0xff]
      %v5194 = vld [vmem:[%s313 + $0x138] sm:$0xff]
      %v5195 = vld [vmem:[%s313 + $0x140] sm:$0xff]
      %v5196 = vld [vmem:[%s313 + $0x150] sm:$0xff]
      %v5197 = vld [vmem:[%s313 + $0x158] sm:$0xff]
      %v5198 = vld [vmem:[%s313 + $0x168] sm:$0xff]
      %v5199 = vld [vmem:[%s313 + $0x170] sm:$0xff]
      %s5200 = scalar_lea.vmem %s3, 12
      %v5201 = vld [vmem:[%s5200] sm:$0xf]
      %v5203 = vsel %vm225, %v5168, 0
      %v5206 = vsel %vm225, %v5169, 0
      %v5209 = vsel %vm225, %v5170, 0
      %v5212 = vsel %vm225, %v5171, 0
      %v5215 = vsel %vm225, %v5172, 0
      %v5218 = vsel %vm225, %v5173, 0
      %v5221 = vsel %vm225, %v5174, 0
      %v5224 = vsel %vm225, %v5175, 0
      %v5227 = vsel %vm225, %v5176, 0
      %v5230 = vsel %vm225, %v5177, 0
      %v5233 = vsel %vm225, %v5178, 0
      %v5236 = vsel %vm225, %v5179, 0
      %v5239 = vsel %vm225, %v5180, 0
      %v5242 = vsel %vm225, %v5181, 0
      %v5245 = vsel %vm225, %v5182, 0
      %v5248 = vsel %vm225, %v5183, 0
      %v5251 = vsel %vm225, %v5184, 0
      %v5254 = vsel %vm225, %v5185, 0
      %v5257 = vsel %vm225, %v5186, 0
      %v5260 = vsel %vm225, %v5187, 0
      %v5263 = vsel %vm225, %v5188, 0
      %v5266 = vsel %vm225, %v5189, 0
      %v5269 = vsel %vm225, %v5190, 0
      %v5272 = vsel %vm225, %v5191, 0
      %v5275 = vsel %vm225, %v5192, 0
      %v5278 = vsel %vm225, %v5193, 0
      %v5281 = vsel %vm225, %v5194, 0
      %v5284 = vsel %vm225, %v5195, 0
      %v5287 = vsel %vm225, %v5196, 0
      %v5290 = vsel %vm225, %v5197, 0
      %v5293 = vsel %vm225, %v5198, 0
      %v5296 = vsel %vm225, %v5199, 0
      %v5299 = vsel %vm482, %v5201, 0
      %5301 = vmatprep.subr.mxu0 0.0
      %5302 = vmatpush1.msra.mxu0 %v5299
      %5303 = vmatprep.subr.mxu0 0.0
      %5304 = vmatpush1.msra.mxu0 0.0
      %5305 = vmatprep.subr.mxu0 0.0
      %5306 = vmatpush1.msra.mxu0 0.0
      %5307 = vmatprep.subr.mxu0 0.0
      %5308 = vmatpush1.msra.mxu0 0.0
      %5309 = vmatprep.subr.mxu0 0.0
      %5310 = vmatpush1.msra.mxu0 0.0
      %5311 = vmatprep.subr.mxu0 0.0
      %5312 = vmatpush1.msra.mxu0 0.0
      %5313 = vmatprep.subr.mxu0 0.0
      %5314 = vmatpush1.msra.mxu0 0.0
      %5315 = vmatprep.subr.mxu0 0.0
      %5316 = vmatpush1.msra.mxu0 0.0
      %5317 = vmatprep.subr.mxu0 0.0
      %5318 = vmatpush1.msra.mxu0 0.0
      %5319 = vmatprep.subr.mxu0 0.0
      %5320 = vmatpush1.msra.mxu0 0.0
      %5321 = vmatprep.subr.mxu0 0.0
      %5322 = vmatpush1.msra.mxu0 0.0
      %5323 = vmatprep.subr.mxu0 0.0
      %5324 = vmatpush1.msra.mxu0 0.0
      %5325 = vmatprep.subr.mxu0 0.0
      %5326 = vmatpush1.msra.mxu0 0.0
      %5327 = vmatprep.subr.mxu0 0.0
      %5328 = vmatpush1.msra.mxu0 0.0
      %5329 = vmatprep.subr.mxu0 0.0
      %5330 = vmatpush1.msra.mxu0 0.0
      %5331 = vmatprep.subr.mxu0 0.0
      %5332 = vmatpush1.msra.mxu0 0.0
      %5333 = vmatprep.subr.mxu0 0.0
      %5334 = vmatpush1.msra.mxu0 0.0
      %5335 = vmatprep.subr.mxu0 0.0
      %5336 = vmatpush1.msra.mxu0 0.0
      %5337 = vmatprep.subr.mxu0 0.0
      %5338 = vmatpush1.msra.mxu0 0.0
      %5339 = vmatprep.subr.mxu0 0.0
      %5340 = vmatpush1.msra.mxu0 0.0
      %5341 = vmatprep.subr.mxu0 0.0
      %5342 = vmatpush1.msra.mxu0 0.0
      %5343 = vmatprep.subr.mxu0 0.0
      %5344 = vmatpush1.msra.mxu0 0.0
      %5345 = vmatprep.subr.mxu0 0.0
      %5346 = vmatpush1.msra.mxu0 0.0
      %5347 = vmatprep.subr.mxu0 0.0
      %5348 = vmatpush1.msra.mxu0 0.0
      %5349 = vmatprep.subr.mxu0 0.0
      %5350 = vmatpush1.msra.mxu0 0.0
      %5351 = vmatprep.subr.mxu0 0.0
      %5352 = vmatpush1.msra.mxu0 0.0
      %5353 = vmatprep.subr.mxu0 0.0
      %5354 = vmatpush1.msra.mxu0 0.0
      %5355 = vmatprep.subr.mxu0 0.0
      %5356 = vmatpush1.msra.mxu0 0.0
      %5357 = vmatprep.subr.mxu0 0.0
      %5358 = vmatpush1.msra.mxu0 0.0
      %5359 = vmatprep.subr.mxu0 0.0
      %5360 = vmatpush1.msra.mxu0 0.0
      %5361 = vmatprep.subr.mxu0 0.0
      %5362 = vmatpush1.msra.mxu0 0.0
      %5363 = vmatprep.subr.mxu0 0.0
      %5364 = vmatpush1.msra.mxu0 0.0
      %5365 = vmatprep.mubr.f32.mxu0 0.0
      %5366 = vmatmul.mubr.f32.gmra.mrb[0].mxu0 %v5203
      %v5367 = vpop.f32.mrb[0].mxu0
      %v5368 = vadd.f32 0.0, %v5367
      %v5369 = vpop.f32.mrb[0].mxu0
      %5370 = vmatprep.mubr.f32.mxu0 0.0
      %5371 = vmatmul.mubr.f32.gmra.mrb[0].mxu0 %v5206
      %v5372 = vpop.f32.mrb[0].mxu0
      %v5373 = vadd.f32 0.0, %v5372
      %v5374 = vpop.f32.mrb[0].mxu0
      %5375 = vmatprep.mubr.f32.mxu0 0.0
      %5376 = vmatmul.mubr.f32.gmra.mrb[0].mxu0 %v5209
      %v5377 = vpop.f32.mrb[0].mxu0
      %v5378 = vadd.f32 0.0, %v5377
      %v5379 = vpop.f32.mrb[0].mxu0
      %5380 = vmatprep.mubr.f32.mxu0 0.0
      %5381 = vmatmul.mubr.f32.gmra.mrb[0].mxu0 %v5212
      %v5382 = vpop.f32.mrb[0].mxu0
      %v5383 = vadd.f32 0.0, %v5382
      %v5384 = vpop.f32.mrb[0].mxu0
      %5385 = vmatprep.mubr.f32.mxu0 0.0
      %5386 = vmatmul.mubr.f32.gmra.mrb[0].mxu0 %v5215
      %v5387 = vpop.f32.mrb[0].mxu0
      %v5388 = vadd.f32 0.0, %v5387
      %v5389 = vpop.f32.mrb[0].mxu0
      %5390 = vmatprep.mubr.f32.mxu0 0.0
      %5391 = vmatmul.mubr.f32.gmra.mrb[0].mxu0 %v5218
      %v5392 = vpop.f32.mrb[0].mxu0
      %v5393 = vadd.f32 0.0, %v5392
      %v5394 = vpop.f32.mrb[0].mxu0
      %5395 = vmatprep.mubr.f32.mxu0 0.0
      %5396 = vmatmul.mubr.f32.gmra.mrb[0].mxu0 %v5221
      %v5397 = vpop.f32.mrb[0].mxu0
      %v5398 = vadd.f32 0.0, %v5397
      %v5399 = vpop.f32.mrb[0].mxu0
      %5400 = vmatprep.mubr.f32.mxu0 0.0
      %5401 = vmatmul.mubr.f32.gmra.mrb[0].mxu0 %v5224
      %v5402 = vpop.f32.mrb[0].mxu0
      %v5403 = vadd.f32 0.0, %v5402
      %v5404 = vpop.f32.mrb[0].mxu0
      %5405 = vmatprep.mubr.f32.mxu0 0.0
      %5406 = vmatmul.mubr.f32.gmra.mrb[0].mxu0 %v5227
      %v5407 = vpop.f32.mrb[0].mxu0
      %v5408 = vadd.f32 0.0, %v5407
      %v5409 = vpop.f32.mrb[0].mxu0
      %5410 = vmatprep.mubr.f32.mxu0 0.0
      %5411 = vmatmul.mubr.f32.gmra.mrb[0].mxu0 %v5230
      %v5412 = vpop.f32.mrb[0].mxu0
      %v5413 = vadd.f32 0.0, %v5412
      %v5414 = vpop.f32.mrb[0].mxu0
      %5415 = vmatprep.mubr.f32.mxu0 0.0
      %5416 = vmatmul.mubr.f32.gmra.mrb[0].mxu0 %v5233
      %v5417 = vpop.f32.mrb[0].mxu0
      %v5418 = vadd.f32 0.0, %v5417
      %v5419 = vpop.f32.mrb[0].mxu0
      %5420 = vmatprep.mubr.f32.mxu0 0.0
      %5421 = vmatmul.mubr.f32.gmra.mrb[0].mxu0 %v5236
      %v5422 = vpop.f32.mrb[0].mxu0
      %v5423 = vadd.f32 0.0, %v5422
      %v5424 = vpop.f32.mrb[0].mxu0
      %5425 = vmatprep.mubr.f32.mxu0 0.0
      %5426 = vmatmul.mubr.f32.gmra.mrb[0].mxu0 %v5239
      %v5427 = vpop.f32.mrb[0].mxu0
      %v5428 = vadd.f32 0.0, %v5427
      %v5429 = vpop.f32.mrb[0].mxu0
      %5430 = vmatprep.mubr.f32.mxu0 0.0
      %5431 = vmatmul.mubr.f32.gmra.mrb[0].mxu0 %v5242
      %v5432 = vpop.f32.mrb[0].mxu0
      %v5433 = vadd.f32 0.0, %v5432
      %v5434 = vpop.f32.mrb[0].mxu0
      %5435 = vmatprep.mubr.f32.mxu0 0.0
      %5436 = vmatmul.mubr.f32.gmra.mrb[0].mxu0 %v5245
      %v5437 = vpop.f32.mrb[0].mxu0
      %v5438 = vadd.f32 0.0, %v5437
      %v5439 = vpop.f32.mrb[0].mxu0
      %5440 = vmatprep.mubr.f32.mxu0 0.0
      %5441 = vmatmul.mubr.f32.gmra.mrb[0].mxu0 %v5248
      %v5442 = vpop.f32.mrb[0].mxu0
      %v5443 = vadd.f32 0.0, %v5442
      %v5444 = vpop.f32.mrb[0].mxu0
      %5445 = vmatprep.mubr.f32.mxu0 0.0
      %5446 = vmatmul.mubr.f32.gmra.mrb[0].mxu0 %v5251
      %v5447 = vpop.f32.mrb[0].mxu0
      %v5448 = vadd.f32 0.0, %v5447
      %v5449 = vpop.f32.mrb[0].mxu0
      %5450 = vmatprep.mubr.f32.mxu0 0.0
      %5451 = vmatmul.mubr.f32.gmra.mrb[0].mxu0 %v5254
      %v5452 = vpop.f32.mrb[0].mxu0
      %v5453 = vadd.f32 0.0, %v5452
      %v5454 = vpop.f32.mrb[0].mxu0
      %5455 = vmatprep.mubr.f32.mxu0 0.0
      %5456 = vmatmul.mubr.f32.gmra.mrb[0].mxu0 %v5257
      %v5457 = vpop.f32.mrb[0].mxu0
      %v5458 = vadd.f32 0.0, %v5457
      %v5459 = vpop.f32.mrb[0].mxu0
      %5460 = vmatprep.mubr.f32.mxu0 0.0
      %5461 = vmatmul.mubr.f32.gmra.mrb[0].mxu0 %v5260
      %v5462 = vpop.f32.mrb[0].mxu0
      %v5463 = vadd.f32 0.0, %v5462
      %v5464 = vpop.f32.mrb[0].mxu0
      %5465 = vmatprep.mubr.f32.mxu0 0.0
      %5466 = vmatmul.mubr.f32.gmra.mrb[0].mxu0 %v5263
      %v5467 = vpop.f32.mrb[0].mxu0
      %v5468 = vadd.f32 0.0, %v5467
      %v5469 = vpop.f32.mrb[0].mxu0
      %5470 = vmatprep.mubr.f32.mxu0 0.0
      %5471 = vmatmul.mubr.f32.gmra.mrb[0].mxu0 %v5266
      %v5472 = vpop.f32.mrb[0].mxu0
      %v5473 = vadd.f32 0.0, %v5472
      %v5474 = vpop.f32.mrb[0].mxu0
      %5475 = vmatprep.mubr.f32.mxu0 0.0
      %5476 = vmatmul.mubr.f32.gmra.mrb[0].mxu0 %v5269
      %v5477 = vpop.f32.mrb[0].mxu0
      %v5478 = vadd.f32 0.0, %v5477
      %v5479 = vpop.f32.mrb[0].mxu0
      %5480 = vmatprep.mubr.f32.mxu0 0.0
      %5481 = vmatmul.mubr.f32.gmra.mrb[0].mxu0 %v5272
      %v5482 = vpop.f32.mrb[0].mxu0
      %v5483 = vadd.f32 0.0, %v5482
      %v5484 = vpop.f32.mrb[0].mxu0
      %5485 = vmatprep.mubr.f32.mxu0 0.0
      %5486 = vmatmul.mubr.f32.gmra.mrb[0].mxu0 %v5275
      %v5487 = vpop.f32.mrb[0].mxu0
      %v5488 = vadd.f32 0.0, %v5487
      %v5489 = vpop.f32.mrb[0].mxu0
      %5490 = vmatprep.mubr.f32.mxu0 0.0
      %5491 = vmatmul.mubr.f32.gmra.mrb[0].mxu0 %v5278
      %v5492 = vpop.f32.mrb[0].mxu0
      %v5493 = vadd.f32 0.0, %v5492
      %v5494 = vpop.f32.mrb[0].mxu0
      %5495 = vmatprep.mubr.f32.mxu0 0.0
      %5496 = vmatmul.mubr.f32.gmra.mrb[0].mxu0 %v5281
      %v5497 = vpop.f32.mrb[0].mxu0
      %v5498 = vadd.f32 0.0, %v5497
      %v5499 = vpop.f32.mrb[0].mxu0
      %5500 = vmatprep.mubr.f32.mxu0 0.0
      %5501 = vmatmul.mubr.f32.gmra.mrb[0].mxu0 %v5284
      %v5502 = vpop.f32.mrb[0].mxu0
      %v5503 = vadd.f32 0.0, %v5502
      %v5504 = vpop.f32.mrb[0].mxu0
      %5505 = vmatprep.mubr.f32.mxu0 0.0
      %5506 = vmatmul.mubr.f32.gmra.mrb[0].mxu0 %v5287
      %v5507 = vpop.f32.mrb[0].mxu0
      %v5508 = vadd.f32 0.0, %v5507
      %v5509 = vpop.f32.mrb[0].mxu0
      %5510 = vmatprep.mubr.f32.mxu0 0.0
      %5511 = vmatmul.mubr.f32.gmra.mrb[0].mxu0 %v5290
      %v5512 = vpop.f32.mrb[0].mxu0
      %v5513 = vadd.f32 0.0, %v5512
      %v5514 = vpop.f32.mrb[0].mxu0
      %5515 = vmatprep.mubr.f32.mxu0 0.0
      %5516 = vmatmul.mubr.f32.gmra.mrb[0].mxu0 %v5293
      %v5517 = vpop.f32.mrb[0].mxu0
      %v5518 = vadd.f32 0.0, %v5517
      %v5519 = vpop.f32.mrb[0].mxu0
      %5520 = vmatprep.mubr.f32.mxu0 0.0
      %5521 = vmatmul.mubr.f32.gmra.mrb[0].mxu0 %v5296
      %v5522 = vpop.f32.mrb[0].mxu0
      %v5523 = vadd.f32 0.0, %v5522
      %v5524 = vpop.f32.mrb[0].mxu0
      %5525 = vdwg.mxu0
      %v5526 = vadd.f32 %v5136, %v5368
      %v5527 = vadd.f32 %v5137, %v5373
      %v5528 = vadd.f32 %v5138, %v5378
      %v5529 = vadd.f32 %v5139, %v5383
      %v5530 = vadd.f32 %v5140, %v5388
      %v5531 = vadd.f32 %v5141, %v5393
      %v5532 = vadd.f32 %v5142, %v5398
      %v5533 = vadd.f32 %v5143, %v5403
      %v5534 = vadd.f32 %v5144, %v5408
      %v5535 = vadd.f32 %v5145, %v5413
      %v5536 = vadd.f32 %v5146, %v5418
      %v5537 = vadd.f32 %v5147, %v5423
      %v5538 = vadd.f32 %v5148, %v5428
      %v5539 = vadd.f32 %v5149, %v5433
      %v5540 = vadd.f32 %v5150, %v5438
      %v5541 = vadd.f32 %v5151, %v5443
      %v5542 = vadd.f32 %v5152, %v5448
      %v5543 = vadd.f32 %v5153, %v5453
      %v5544 = vadd.f32 %v5154, %v5458
      %v5545 = vadd.f32 %v5155, %v5463
      %v5546 = vadd.f32 %v5156, %v5468
      %v5547 = vadd.f32 %v5157, %v5473
      %v5548 = vadd.f32 %v5158, %v5478
      %v5549 = vadd.f32 %v5159, %v5483
      %v5550 = vadd.f32 %v5160, %v5488
      %v5551 = vadd.f32 %v5161, %v5493
      %v5552 = vadd.f32 %v5162, %v5498
      %v5553 = vadd.f32 %v5163, %v5503
      %v5554 = vadd.f32 %v5164, %v5508
      %v5555 = vadd.f32 %v5165, %v5513
      %v5556 = vadd.f32 %v5166, %v5518
      %v5557 = vadd.f32 %v5167, %v5523
      %v5558 = vld [vmem:[%s313 + $0x1] sm:$0xff]
      %v5559 = vld [vmem:[%s313 + $0x9] sm:$0xff]
      %v5560 = vld [vmem:[%s313 + $0x19] sm:$0xff]
      %v5561 = vld [vmem:[%s313 + $0x21] sm:$0xff]
      %v5562 = vld [vmem:[%s313 + $0x31] sm:$0xff]
      %v5563 = vld [vmem:[%s313 + $0x39] sm:$0xff]
      %v5564 = vld [vmem:[%s313 + $0x49] sm:$0xff]
      %v5565 = vld [vmem:[%s313 + $0x51] sm:$0xff]
      %v5566 = vld [vmem:[%s313 + $0x61] sm:$0xff]
      %v5567 = vld [vmem:[%s313 + $0x69] sm:$0xff]
      %v5568 = vld [vmem:[%s313 + $0x79] sm:$0xff]
      %v5569 = vld [vmem:[%s313 + $0x81] sm:$0xff]
      %v5570 = vld [vmem:[%s313 + $0x91] sm:$0xff]
      %v5571 = vld [vmem:[%s313 + $0x99] sm:$0xff]
      %v5572 = vld [vmem:[%s313 + $0xa9] sm:$0xff]
      %v5573 = vld [vmem:[%s313 + $0xb1] sm:$0xff]
      %v5574 = vld [vmem:[%s313 + $0xc1] sm:$0xff]
      %v5575 = vld [vmem:[%s313 + $0xc9] sm:$0xff]
      %v5576 = vld [vmem:[%s313 + $0xd9] sm:$0xff]
      %v5577 = vld [vmem:[%s313 + $0xe1] sm:$0xff]
      %v5578 = vld [vmem:[%s313 + $0xf1] sm:$0xff]
      %v5579 = vld [vmem:[%s313 + $0xf9] sm:$0xff]
      %v5580 = vld [vmem:[%s313 + $0x109] sm:$0xff]
      %v5581 = vld [vmem:[%s313 + $0x111] sm:$0xff]
      %v5582 = vld [vmem:[%s313 + $0x121] sm:$0xff]
      %v5583 = vld [vmem:[%s313 + $0x129] sm:$0xff]
      %v5584 = vld [vmem:[%s313 + $0x139] sm:$0xff]
      %v5585 = vld [vmem:[%s313 + $0x141] sm:$0xff]
      %v5586 = vld [vmem:[%s313 + $0x151] sm:$0xff]
      %v5587 = vld [vmem:[%s313 + $0x159] sm:$0xff]
      %v5588 = vld [vmem:[%s313 + $0x169] sm:$0xff]
      %v5589 = vld [vmem:[%s313 + $0x171] sm:$0xff]
      %s5590 = scalar_lea.vmem %s3, 16
      %v5591 = vld [vmem:[%s5590] sm:$0xf]
      %v5593 = vsel %vm225, %v5558, 0
      %v5596 = vsel %vm225, %v5559, 0
      %v5599 = vsel %vm225, %v5560, 0
      %v5602 = vsel %vm225, %v5561, 0
      %v5605 = vsel %vm225, %v5562, 0
      %v5608 = vsel %vm225, %v5563, 0
      %v5611 = vsel %vm225, %v5564, 0
      %v5614 = vsel %vm225, %v5565, 0
      %v5617 = vsel %vm225, %v5566, 0
      %v5620 = vsel %vm225, %v5567, 0
      %v5623 = vsel %vm225, %v5568, 0
      %v5626 = vsel %vm225, %v5569, 0
      %v5629 = vsel %vm225, %v5570, 0
      %v5632 = vsel %vm225, %v5571, 0
      %v5635 = vsel %vm225, %v5572, 0
      %v5638 = vsel %vm225, %v5573, 0
      %v5641 = vsel %vm225, %v5574, 0
      %v5644 = vsel %vm225, %v5575, 0
      %v5647 = vsel %vm225, %v5576, 0
      %v5650 = vsel %vm225, %v5577, 0
      %v5653 = vsel %vm225, %v5578, 0
      %v5656 = vsel %vm225, %v5579, 0
      %v5659 = vsel %vm225, %v5580, 0
      %v5662 = vsel %vm225, %v5581, 0
      %v5665 = vsel %vm225, %v5582, 0
      %v5668 = vsel %vm225, %v5583, 0
      %v5671 = vsel %vm225, %v5584, 0
      %v5674 = vsel %vm225, %v5585, 0
      %v5677 = vsel %vm225, %v5586, 0
      %v5680 = vsel %vm225, %v5587, 0
      %v5683 = vsel %vm225, %v5588, 0
      %v5686 = vsel %vm225, %v5589, 0
      %v5689 = vsel %vm482, %v5591, 0
      %5691 = vmatprep.subr.mxu0 0.0
      %5692 = vmatpush1.msra.mxu0 %v5689
      %5693 = vmatprep.subr.mxu0 0.0
      %5694 = vmatpush1.msra.mxu0 0.0
      %5695 = vmatprep.subr.mxu0 0.0
      %5696 = vmatpush1.msra.mxu0 0.0
      %5697 = vmatprep.subr.mxu0 0.0
      %5698 = vmatpush1.msra.mxu0 0.0
      %5699 = vmatprep.subr.mxu0 0.0
      %5700 = vmatpush1.msra.mxu0 0.0
      %5701 = vmatprep.subr.mxu0 0.0
      %5702 = vmatpush1.msra.mxu0 0.0
      %5703 = vmatprep.subr.mxu0 0.0
      %5704 = vmatpush1.msra.mxu0 0.0
      %5705 = vmatprep.subr.mxu0 0.0
      %5706 = vmatpush1.msra.mxu0 0.0
      %5707 = vmatprep.subr.mxu0 0.0
      %5708 = vmatpush1.msra.mxu0 0.0
      %5709 = vmatprep.subr.mxu0 0.0
      %5710 = vmatpush1.msra.mxu0 0.0
      %5711 = vmatprep.subr.mxu0 0.0
      %5712 = vmatpush1.msra.mxu0 0.0
      %5713 = vmatprep.subr.mxu0 0.0
      %5714 = vmatpush1.msra.mxu0 0.0
      %5715 = vmatprep.subr.mxu0 0.0
      %5716 = vmatpush1.msra.mxu0 0.0
      %5717 = vmatprep.subr.mxu0 0.0
      %5718 = vmatpush1.msra.mxu0 0.0
      %5719 = vmatprep.subr.mxu0 0.0
      %5720 = vmatpush1.msra.mxu0 0.0
      %5721 = vmatprep.subr.mxu0 0.0
      %5722 = vmatpush1.msra.mxu0 0.0
      %5723 = vmatprep.subr.mxu0 0.0
      %5724 = vmatpush1.msra.mxu0 0.0
      %5725 = vmatprep.subr.mxu0 0.0
      %5726 = vmatpush1.msra.mxu0 0.0
      %5727 = vmatprep.subr.mxu0 0.0
      %5728 = vmatpush1.msra.mxu0 0.0
      %5729 = vmatprep.subr.mxu0 0.0
      %5730 = vmatpush1.msra.mxu0 0.0
      %5731 = vmatprep.subr.mxu0 0.0
      %5732 = vmatpush1.msra.mxu0 0.0
      %5733 = vmatprep.subr.mxu0 0.0
      %5734 = vmatpush1.msra.mxu0 0.0
      %5735 = vmatprep.subr.mxu0 0.0
      %5736 = vmatpush1.msra.mxu0 0.0
      %5737 = vmatprep.subr.mxu0 0.0
      %5738 = vmatpush1.msra.mxu0 0.0
      %5739 = vmatprep.subr.mxu0 0.0
      %5740 = vmatpush1.msra.mxu0 0.0
      %5741 = vmatprep.subr.mxu0 0.0
      %5742 = vmatpush1.msra.mxu0 0.0
      %5743 = vmatprep.subr.mxu0 0.0
      %5744 = vmatpush1.msra.mxu0 0.0
      %5745 = vmatprep.subr.mxu0 0.0
      %5746 = vmatpush1.msra.mxu0 0.0
      %5747 = vmatprep.subr.mxu0 0.0
      %5748 = vmatpush1.msra.mxu0 0.0
      %5749 = vmatprep.subr.mxu0 0.0
      %5750 = vmatpush1.msra.mxu0 0.0
      %5751 = vmatprep.subr.mxu0 0.0
      %5752 = vmatpush1.msra.mxu0 0.0
      %5753 = vmatprep.subr.mxu0 0.0
      %5754 = vmatpush1.msra.mxu0 0.0
      %5755 = vmatprep.mubr.f32.mxu0 0.0
      %5756 = vmatmul.mubr.f32.gmra.mrb[0].mxu0 %v5593
      %v5757 = vpop.f32.mrb[0].mxu0
      %v5758 = vadd.f32 0.0, %v5757
      %v5759 = vpop.f32.mrb[0].mxu0
      %5760 = vmatprep.mubr.f32.mxu0 0.0
      %5761 = vmatmul.mubr.f32.gmra.mrb[0].mxu0 %v5596
      %v5762 = vpop.f32.mrb[0].mxu0
      %v5763 = vadd.f32 0.0, %v5762
      %v5764 = vpop.f32.mrb[0].mxu0
      %5765 = vmatprep.mubr.f32.mxu0 0.0
      %5766 = vmatmul.mubr.f32.gmra.mrb[0].mxu0 %v5599
      %v5767 = vpop.f32.mrb[0].mxu0
      %v5768 = vadd.f32 0.0, %v5767
      %v5769 = vpop.f32.mrb[0].mxu0
      %5770 = vmatprep.mubr.f32.mxu0 0.0
      %5771 = vmatmul.mubr.f32.gmra.mrb[0].mxu0 %v5602
      %v5772 = vpop.f32.mrb[0].mxu0
      %v5773 = vadd.f32 0.0, %v5772
      %v5774 = vpop.f32.mrb[0].mxu0
      %5775 = vmatprep.mubr.f32.mxu0 0.0
      %5776 = vmatmul.mubr.f32.gmra.mrb[0].mxu0 %v5605
      %v5777 = vpop.f32.mrb[0].mxu0
      %v5778 = vadd.f32 0.0, %v5777
      %v5779 = vpop.f32.mrb[0].mxu0
      %5780 = vmatprep.mubr.f32.mxu0 0.0
      %5781 = vmatmul.mubr.f32.gmra.mrb[0].mxu0 %v5608
      %v5782 = vpop.f32.mrb[0].mxu0
      %v5783 = vadd.f32 0.0, %v5782
      %v5784 = vpop.f32.mrb[0].mxu0
      %5785 = vmatprep.mubr.f32.mxu0 0.0
      %5786 = vmatmul.mubr.f32.gmra.mrb[0].mxu0 %v5611
      %v5787 = vpop.f32.mrb[0].mxu0
      %v5788 = vadd.f32 0.0, %v5787
      %v5789 = vpop.f32.mrb[0].mxu0
      %5790 = vmatprep.mubr.f32.mxu0 0.0
      %5791 = vmatmul.mubr.f32.gmra.mrb[0].mxu0 %v5614
      %v5792 = vpop.f32.mrb[0].mxu0
      %v5793 = vadd.f32 0.0, %v5792
      %v5794 = vpop.f32.mrb[0].mxu0
      %5795 = vmatprep.mubr.f32.mxu0 0.0
      %5796 = vmatmul.mubr.f32.gmra.mrb[0].mxu0 %v5617
      %v5797 = vpop.f32.mrb[0].mxu0
      %v5798 = vadd.f32 0.0, %v5797
      %v5799 = vpop.f32.mrb[0].mxu0
      %5800 = vmatprep.mubr.f32.mxu0 0.0
      %5801 = vmatmul.mubr.f32.gmra.mrb[0].mxu0 %v5620
      %v5802 = vpop.f32.mrb[0].mxu0
      %v5803 = vadd.f32 0.0, %v5802
      %v5804 = vpop.f32.mrb[0].mxu0
      %5805 = vmatprep.mubr.f32.mxu0 0.0
      %5806 = vmatmul.mubr.f32.gmra.mrb[0].mxu0 %v5623
      %v5807 = vpop.f32.mrb[0].mxu0
      %v5808 = vadd.f32 0.0, %v5807
      %v5809 = vpop.f32.mrb[0].mxu0
      %5810 = vmatprep.mubr.f32.mxu0 0.0
      %5811 = vmatmul.mubr.f32.gmra.mrb[0].mxu0 %v5626
      %v5812 = vpop.f32.mrb[0].mxu0
      %v5813 = vadd.f32 0.0, %v5812
      %v5814 = vpop.f32.mrb[0].mxu0
      %5815 = vmatprep.mubr.f32.mxu0 0.0
      %5816 = vmatmul.mubr.f32.gmra.mrb[0].mxu0 %v5629
      %v5817 = vpop.f32.mrb[0].mxu0
      %v5818 = vadd.f32 0.0, %v5817
      %v5819 = vpop.f32.mrb[0].mxu0
      %5820 = vmatprep.mubr.f32.mxu0 0.0
      %5821 = vmatmul.mubr.f32.gmra.mrb[0].mxu0 %v5632
      %v5822 = vpop.f32.mrb[0].mxu0
      %v5823 = vadd.f32 0.0, %v5822
      %v5824 = vpop.f32.mrb[0].mxu0
      %5825 = vmatprep.mubr.f32.mxu0 0.0
      %5826 = vmatmul.mubr.f32.gmra.mrb[0].mxu0 %v5635
      %v5827 = vpop.f32.mrb[0].mxu0
      %v5828 = vadd.f32 0.0, %v5827
      %v5829 = vpop.f32.mrb[0].mxu0
      %5830 = vmatprep.mubr.f32.mxu0 0.0
      %5831 = vmatmul.mubr.f32.gmra.mrb[0].mxu0 %v5638
      %v5832 = vpop.f32.mrb[0].mxu0
      %v5833 = vadd.f32 0.0, %v5832
      %v5834 = vpop.f32.mrb[0].mxu0
      %5835 = vmatprep.mubr.f32.mxu0 0.0
      %5836 = vmatmul.mubr.f32.gmra.mrb[0].mxu0 %v5641
      %v5837 = vpop.f32.mrb[0].mxu0
      %v5838 = vadd.f32 0.0, %v5837
      %v5839 = vpop.f32.mrb[0].mxu0
      %5840 = vmatprep.mubr.f32.mxu0 0.0
      %5841 = vmatmul.mubr.f32.gmra.mrb[0].mxu0 %v5644
      %v5842 = vpop.f32.mrb[0].mxu0
      %v5843 = vadd.f32 0.0, %v5842
      %v5844 = vpop.f32.mrb[0].mxu0
      %5845 = vmatprep.mubr.f32.mxu0 0.0
      %5846 = vmatmul.mubr.f32.gmra.mrb[0].mxu0 %v5647
      %v5847 = vpop.f32.mrb[0].mxu0
      %v5848 = vadd.f32 0.0, %v5847
      %v5849 = vpop.f32.mrb[0].mxu0
      %5850 = vmatprep.mubr.f32.mxu0 0.0
      %5851 = vmatmul.mubr.f32.gmra.mrb[0].mxu0 %v5650
      %v5852 = vpop.f32.mrb[0].mxu0
      %v5853 = vadd.f32 0.0, %v5852
      %v5854 = vpop.f32.mrb[0].mxu0
      %5855 = vmatprep.mubr.f32.mxu0 0.0
      %5856 = vmatmul.mubr.f32.gmra.mrb[0].mxu0 %v5653
      %v5857 = vpop.f32.mrb[0].mxu0
      %v5858 = vadd.f32 0.0, %v5857
      %v5859 = vpop.f32.mrb[0].mxu0
      %5860 = vmatprep.mubr.f32.mxu0 0.0
      %5861 = vmatmul.mubr.f32.gmra.mrb[0].mxu0 %v5656
      %v5862 = vpop.f32.mrb[0].mxu0
      %v5863 = vadd.f32 0.0, %v5862
      %v5864 = vpop.f32.mrb[0].mxu0
      %5865 = vmatprep.mubr.f32.mxu0 0.0
      %5866 = vmatmul.mubr.f32.gmra.mrb[0].mxu0 %v5659
      %v5867 = vpop.f32.mrb[0].mxu0
      %v5868 = vadd.f32 0.0, %v5867
      %v5869 = vpop.f32.mrb[0].mxu0
      %5870 = vmatprep.mubr.f32.mxu0 0.0
      %5871 = vmatmul.mubr.f32.gmra.mrb[0].mxu0 %v5662
      %v5872 = vpop.f32.mrb[0].mxu0
      %v5873 = vadd.f32 0.0, %v5872
      %v5874 = vpop.f32.mrb[0].mxu0
      %5875 = vmatprep.mubr.f32.mxu0 0.0
      %5876 = vmatmul.mubr.f32.gmra.mrb[0].mxu0 %v5665
      %v5877 = vpop.f32.mrb[0].mxu0
      %v5878 = vadd.f32 0.0, %v5877
      %v5879 = vpop.f32.mrb[0].mxu0
      %5880 = vmatprep.mubr.f32.mxu0 0.0
      %5881 = vmatmul.mubr.f32.gmra.mrb[0].mxu0 %v5668
      %v5882 = vpop.f32.mrb[0].mxu0
      %v5883 = vadd.f32 0.0, %v5882
      %v5884 = vpop.f32.mrb[0].mxu0
      %5885 = vmatprep.mubr.f32.mxu0 0.0
      %5886 = vmatmul.mubr.f32.gmra.mrb[0].mxu0 %v5671
      %v5887 = vpop.f32.mrb[0].mxu0
      %v5888 = vadd.f32 0.0, %v5887
      %v5889 = vpop.f32.mrb[0].mxu0
      %5890 = vmatprep.mubr.f32.mxu0 0.0
      %5891 = vmatmul.mubr.f32.gmra.mrb[0].mxu0 %v5674
      %v5892 = vpop.f32.mrb[0].mxu0
      %v5893 = vadd.f32 0.0, %v5892
      %v5894 = vpop.f32.mrb[0].mxu0
      %5895 = vmatprep.mubr.f32.mxu0 0.0
      %5896 = vmatmul.mubr.f32.gmra.mrb[0].mxu0 %v5677
      %v5897 = vpop.f32.mrb[0].mxu0
      %v5898 = vadd.f32 0.0, %v5897
      %v5899 = vpop.f32.mrb[0].mxu0
      %5900 = vmatprep.mubr.f32.mxu0 0.0
      %5901 = vmatmul.mubr.f32.gmra.mrb[0].mxu0 %v5680
      %v5902 = vpop.f32.mrb[0].mxu0
      %v5903 = vadd.f32 0.0, %v5902
      %v5904 = vpop.f32.mrb[0].mxu0
      %5905 = vmatprep.mubr.f32.mxu0 0.0
      %5906 = vmatmul.mubr.f32.gmra.mrb[0].mxu0 %v5683
      %v5907 = vpop.f32.mrb[0].mxu0
      %v5908 = vadd.f32 0.0, %v5907
      %v5909 = vpop.f32.mrb[0].mxu0
      %5910 = vmatprep.mubr.f32.mxu0 0.0
      %5911 = vmatmul.mubr.f32.gmra.mrb[0].mxu0 %v5686
      %v5912 = vpop.f32.mrb[0].mxu0
      %v5913 = vadd.f32 0.0, %v5912
      %v5914 = vpop.f32.mrb[0].mxu0
      %5915 = vdwg.mxu0
      %v5916 = vadd.f32 %v5526, %v5758
      %v5917 = vadd.f32 %v5527, %v5763
      %v5918 = vadd.f32 %v5528, %v5768
      %v5919 = vadd.f32 %v5529, %v5773
      %v5920 = vadd.f32 %v5530, %v5778
      %v5921 = vadd.f32 %v5531, %v5783
      %v5922 = vadd.f32 %v5532, %v5788
      %v5923 = vadd.f32 %v5533, %v5793
      %v5924 = vadd.f32 %v5534, %v5798
      %v5925 = vadd.f32 %v5535, %v5803
      %v5926 = vadd.f32 %v5536, %v5808
      %v5927 = vadd.f32 %v5537, %v5813
      %v5928 = vadd.f32 %v5538, %v5818
      %v5929 = vadd.f32 %v5539, %v5823
      %v5930 = vadd.f32 %v5540, %v5828
      %v5931 = vadd.f32 %v5541, %v5833
      %v5932 = vadd.f32 %v5542, %v5838
      %v5933 = vadd.f32 %v5543, %v5843
      %v5934 = vadd.f32 %v5544, %v5848
      %v5935 = vadd.f32 %v5545, %v5853
      %v5936 = vadd.f32 %v5546, %v5858
      %v5937 = vadd.f32 %v5547, %v5863
      %v5938 = vadd.f32 %v5548, %v5868
      %v5939 = vadd.f32 %v5549, %v5873
      %v5940 = vadd.f32 %v5550, %v5878
      %v5941 = vadd.f32 %v5551, %v5883
      %v5942 = vadd.f32 %v5552, %v5888
      %v5943 = vadd.f32 %v5553, %v5893
      %v5944 = vadd.f32 %v5554, %v5898
      %v5945 = vadd.f32 %v5555, %v5903
      %v5946 = vadd.f32 %v5556, %v5908
      %v5947 = vadd.f32 %v5557, %v5913
      %v5948 = vld [vmem:[%s313 + $0x2] sm:$0xff]
      %v5949 = vld [vmem:[%s313 + $0xa] sm:$0xff]
      %v5950 = vld [vmem:[%s313 + $0x1a] sm:$0xff]
      %v5951 = vld [vmem:[%s313 + $0x22] sm:$0xff]
      %v5952 = vld [vmem:[%s313 + $0x32] sm:$0xff]
      %v5953 = vld [vmem:[%s313 + $0x3a] sm:$0xff]
      %v5954 = vld [vmem:[%s313 + $0x4a] sm:$0xff]
      %v5955 = vld [vmem:[%s313 + $0x52] sm:$0xff]
      %v5956 = vld [vmem:[%s313 + $0x62] sm:$0xff]
      %v5957 = vld [vmem:[%s313 + $0x6a] sm:$0xff]
      %v5958 = vld [vmem:[%s313 + $0x7a] sm:$0xff]
      %v5959 = vld [vmem:[%s313 + $0x82] sm:$0xff]
      %v5960 = vld [vmem:[%s313 + $0x92] sm:$0xff]
      %v5961 = vld [vmem:[%s313 + $0x9a] sm:$0xff]
      %v5962 = vld [vmem:[%s313 + $0xaa] sm:$0xff]
      %v5963 = vld [vmem:[%s313 + $0xb2] sm:$0xff]
      %v5964 = vld [vmem:[%s313 + $0xc2] sm:$0xff]
      %v5965 = vld [vmem:[%s313 + $0xca] sm:$0xff]
      %v5966 = vld [vmem:[%s313 + $0xda] sm:$0xff]
      %v5967 = vld [vmem:[%s313 + $0xe2] sm:$0xff]
      %v5968 = vld [vmem:[%s313 + $0xf2] sm:$0xff]
      %v5969 = vld [vmem:[%s313 + $0xfa] sm:$0xff]
      %v5970 = vld [vmem:[%s313 + $0x10a] sm:$0xff]
      %v5971 = vld [vmem:[%s313 + $0x112] sm:$0xff]
      %v5972 = vld [vmem:[%s313 + $0x122] sm:$0xff]
      %v5973 = vld [vmem:[%s313 + $0x12a] sm:$0xff]
      %v5974 = vld [vmem:[%s313 + $0x13a] sm:$0xff]
      %v5975 = vld [vmem:[%s313 + $0x142] sm:$0xff]
      %v5976 = vld [vmem:[%s313 + $0x152] sm:$0xff]
      %v5977 = vld [vmem:[%s313 + $0x15a] sm:$0xff]
      %v5978 = vld [vmem:[%s313 + $0x16a] sm:$0xff]
      %v5979 = vld [vmem:[%s313 + $0x172] sm:$0xff]
      %s5980 = scalar_lea.vmem %s3, 20
      %v5981 = vld [vmem:[%s5980] sm:$0xf]
      %v5983 = vsel %vm225, %v5948, 0
      %v5986 = vsel %vm225, %v5949, 0
      %v5989 = vsel %vm225, %v5950, 0
      %v5992 = vsel %vm225, %v5951, 0
      %v5995 = vsel %vm225, %v5952, 0
      %v5998 = vsel %vm225, %v5953, 0
      %v6001 = vsel %vm225, %v5954, 0
      %v6004 = vsel %vm225, %v5955, 0
      %v6007 = vsel %vm225, %v5956, 0
      %v6010 = vsel %vm225, %v5957, 0
      %v6013 = vsel %vm225, %v5958, 0
      %v6016 = vsel %vm225, %v5959, 0
      %v6019 = vsel %vm225, %v5960, 0
      %v6022 = vsel %vm225, %v5961, 0
      %v6025 = vsel %vm225, %v5962, 0
      %v6028 = vsel %vm225, %v5963, 0
      %v6031 = vsel %vm225, %v5964, 0
      %v6034 = vsel %vm225, %v5965, 0
      %v6037 = vsel %vm225, %v5966, 0
      %v6040 = vsel %vm225, %v5967, 0
      %v6043 = vsel %vm225, %v5968, 0
      %v6046 = vsel %vm225, %v5969, 0
      %v6049 = vsel %vm225, %v5970, 0
      %v6052 = vsel %vm225, %v5971, 0
      %v6055 = vsel %vm225, %v5972, 0
      %v6058 = vsel %vm225, %v5973, 0
      %v6061 = vsel %vm225, %v5974, 0
      %v6064 = vsel %vm225, %v5975, 0
      %v6067 = vsel %vm225, %v5976, 0
      %v6070 = vsel %vm225, %v5977, 0
      %v6073 = vsel %vm225, %v5978, 0
      %v6076 = vsel %vm225, %v5979, 0
      %v6079 = vsel %vm482, %v5981, 0
      %6081 = vmatprep.subr.mxu0 0.0
      %6082 = vmatpush1.msra.mxu0 %v6079
      %6083 = vmatprep.subr.mxu0 0.0
      %6084 = vmatpush1.msra.mxu0 0.0
      %6085 = vmatprep.subr.mxu0 0.0
      %6086 = vmatpush1.msra.mxu0 0.0
      %6087 = vmatprep.subr.mxu0 0.0
      %6088 = vmatpush1.msra.mxu0 0.0
      %6089 = vmatprep.subr.mxu0 0.0
      %6090 = vmatpush1.msra.mxu0 0.0
      %6091 = vmatprep.subr.mxu0 0.0
      %6092 = vmatpush1.msra.mxu0 0.0
      %6093 = vmatprep.subr.mxu0 0.0
      %6094 = vmatpush1.msra.mxu0 0.0
      %6095 = vmatprep.subr.mxu0 0.0
      %6096 = vmatpush1.msra.mxu0 0.0
      %6097 = vmatprep.subr.mxu0 0.0
      %6098 = vmatpush1.msra.mxu0 0.0
      %6099 = vmatprep.subr.mxu0 0.0
      %6100 = vmatpush1.msra.mxu0 0.0
      %6101 = vmatprep.subr.mxu0 0.0
      %6102 = vmatpush1.msra.mxu0 0.0
      %6103 = vmatprep.subr.mxu0 0.0
      %6104 = vmatpush1.msra.mxu0 0.0
      %6105 = vmatprep.subr.mxu0 0.0
      %6106 = vmatpush1.msra.mxu0 0.0
      %6107 = vmatprep.subr.mxu0 0.0
      %6108 = vmatpush1.msra.mxu0 0.0
      %6109 = vmatprep.subr.mxu0 0.0
      %6110 = vmatpush1.msra.mxu0 0.0
      %6111 = vmatprep.subr.mxu0 0.0
      %6112 = vmatpush1.msra.mxu0 0.0
      %6113 = vmatprep.subr.mxu0 0.0
      %6114 = vmatpush1.msra.mxu0 0.0
      %6115 = vmatprep.subr.mxu0 0.0
      %6116 = vmatpush1.msra.mxu0 0.0
      %6117 = vmatprep.subr.mxu0 0.0
      %6118 = vmatpush1.msra.mxu0 0.0
      %6119 = vmatprep.subr.mxu0 0.0
      %6120 = vmatpush1.msra.mxu0 0.0
      %6121 = vmatprep.subr.mxu0 0.0
      %6122 = vmatpush1.msra.mxu0 0.0
      %6123 = vmatprep.subr.mxu0 0.0
      %6124 = vmatpush1.msra.mxu0 0.0
      %6125 = vmatprep.subr.mxu0 0.0
      %6126 = vmatpush1.msra.mxu0 0.0
      %6127 = vmatprep.subr.mxu0 0.0
      %6128 = vmatpush1.msra.mxu0 0.0
      %6129 = vmatprep.subr.mxu0 0.0
      %6130 = vmatpush1.msra.mxu0 0.0
      %6131 = vmatprep.subr.mxu0 0.0
      %6132 = vmatpush1.msra.mxu0 0.0
      %6133 = vmatprep.subr.mxu0 0.0
      %6134 = vmatpush1.msra.mxu0 0.0
      %6135 = vmatprep.subr.mxu0 0.0
      %6136 = vmatpush1.msra.mxu0 0.0
      %6137 = vmatprep.subr.mxu0 0.0
      %6138 = vmatpush1.msra.mxu0 0.0
      %6139 = vmatprep.subr.mxu0 0.0
      %6140 = vmatpush1.msra.mxu0 0.0
      %6141 = vmatprep.subr.mxu0 0.0
      %6142 = vmatpush1.msra.mxu0 0.0
      %6143 = vmatprep.subr.mxu0 0.0
      %6144 = vmatpush1.msra.mxu0 0.0
      %6145 = vmatprep.mubr.f32.mxu0 0.0
      %6146 = vmatmul.mubr.f32.gmra.mrb[0].mxu0 %v5983
      %v6147 = vpop.f32.mrb[0].mxu0
      %v6148 = vadd.f32 0.0, %v6147
      %v6149 = vpop.f32.mrb[0].mxu0
      %6150 = vmatprep.mubr.f32.mxu0 0.0
      %6151 = vmatmul.mubr.f32.gmra.mrb[0].mxu0 %v5986
      %v6152 = vpop.f32.mrb[0].mxu0
      %v6153 = vadd.f32 0.0, %v6152
      %v6154 = vpop.f32.mrb[0].mxu0
      %6155 = vmatprep.mubr.f32.mxu0 0.0
      %6156 = vmatmul.mubr.f32.gmra.mrb[0].mxu0 %v5989
      %v6157 = vpop.f32.mrb[0].mxu0
      %v6158 = vadd.f32 0.0, %v6157
      %v6159 = vpop.f32.mrb[0].mxu0
      %6160 = vmatprep.mubr.f32.mxu0 0.0
      %6161 = vmatmul.mubr.f32.gmra.mrb[0].mxu0 %v5992
      %v6162 = vpop.f32.mrb[0].mxu0
      %v6163 = vadd.f32 0.0, %v6162
      %v6164 = vpop.f32.mrb[0].mxu0
      %6165 = vmatprep.mubr.f32.mxu0 0.0
      %6166 = vmatmul.mubr.f32.gmra.mrb[0].mxu0 %v5995
      %v6167 = vpop.f32.mrb[0].mxu0
      %v6168 = vadd.f32 0.0, %v6167
      %v6169 = vpop.f32.mrb[0].mxu0
      %6170 = vmatprep.mubr.f32.mxu0 0.0
      %6171 = vmatmul.mubr.f32.gmra.mrb[0].mxu0 %v5998
      %v6172 = vpop.f32.mrb[0].mxu0
      %v6173 = vadd.f32 0.0, %v6172
      %v6174 = vpop.f32.mrb[0].mxu0
      %6175 = vmatprep.mubr.f32.mxu0 0.0
      %6176 = vmatmul.mubr.f32.gmra.mrb[0].mxu0 %v6001
      %v6177 = vpop.f32.mrb[0].mxu0
      %v6178 = vadd.f32 0.0, %v6177
      %v6179 = vpop.f32.mrb[0].mxu0
      %6180 = vmatprep.mubr.f32.mxu0 0.0
      %6181 = vmatmul.mubr.f32.gmra.mrb[0].mxu0 %v6004
      %v6182 = vpop.f32.mrb[0].mxu0
      %v6183 = vadd.f32 0.0, %v6182
      %v6184 = vpop.f32.mrb[0].mxu0
      %6185 = vmatprep.mubr.f32.mxu0 0.0
      %6186 = vmatmul.mubr.f32.gmra.mrb[0].mxu0 %v6007
      %v6187 = vpop.f32.mrb[0].mxu0
      %v6188 = vadd.f32 0.0, %v6187
      %v6189 = vpop.f32.mrb[0].mxu0
      %6190 = vmatprep.mubr.f32.mxu0 0.0
      %6191 = vmatmul.mubr.f32.gmra.mrb[0].mxu0 %v6010
      %v6192 = vpop.f32.mrb[0].mxu0
      %v6193 = vadd.f32 0.0, %v6192
      %v6194 = vpop.f32.mrb[0].mxu0
      %6195 = vmatprep.mubr.f32.mxu0 0.0
      %6196 = vmatmul.mubr.f32.gmra.mrb[0].mxu0 %v6013
      %v6197 = vpop.f32.mrb[0].mxu0
      %v6198 = vadd.f32 0.0, %v6197
      %v6199 = vpop.f32.mrb[0].mxu0
      %6200 = vmatprep.mubr.f32.mxu0 0.0
      %6201 = vmatmul.mubr.f32.gmra.mrb[0].mxu0 %v6016
      %v6202 = vpop.f32.mrb[0].mxu0
      %v6203 = vadd.f32 0.0, %v6202
      %v6204 = vpop.f32.mrb[0].mxu0
      %6205 = vmatprep.mubr.f32.mxu0 0.0
      %6206 = vmatmul.mubr.f32.gmra.mrb[0].mxu0 %v6019
      %v6207 = vpop.f32.mrb[0].mxu0
      %v6208 = vadd.f32 0.0, %v6207
      %v6209 = vpop.f32.mrb[0].mxu0
      %6210 = vmatprep.mubr.f32.mxu0 0.0
      %6211 = vmatmul.mubr.f32.gmra.mrb[0].mxu0 %v6022
      %v6212 = vpop.f32.mrb[0].mxu0
      %v6213 = vadd.f32 0.0, %v6212
      %v6214 = vpop.f32.mrb[0].mxu0
      %6215 = vmatprep.mubr.f32.mxu0 0.0
      %6216 = vmatmul.mubr.f32.gmra.mrb[0].mxu0 %v6025
      %v6217 = vpop.f32.mrb[0].mxu0
      %v6218 = vadd.f32 0.0, %v6217
      %v6219 = vpop.f32.mrb[0].mxu0
      %6220 = vmatprep.mubr.f32.mxu0 0.0
      %6221 = vmatmul.mubr.f32.gmra.mrb[0].mxu0 %v6028
      %v6222 = vpop.f32.mrb[0].mxu0
      %v6223 = vadd.f32 0.0, %v6222
      %v6224 = vpop.f32.mrb[0].mxu0
      %6225 = vmatprep.mubr.f32.mxu0 0.0
      %6226 = vmatmul.mubr.f32.gmra.mrb[0].mxu0 %v6031
      %v6227 = vpop.f32.mrb[0].mxu0
      %v6228 = vadd.f32 0.0, %v6227
      %v6229 = vpop.f32.mrb[0].mxu0
      %6230 = vmatprep.mubr.f32.mxu0 0.0
      %6231 = vmatmul.mubr.f32.gmra.mrb[0].mxu0 %v6034
      %v6232 = vpop.f32.mrb[0].mxu0
      %v6233 = vadd.f32 0.0, %v6232
      %v6234 = vpop.f32.mrb[0].mxu0
      %6235 = vmatprep.mubr.f32.mxu0 0.0
      %6236 = vmatmul.mubr.f32.gmra.mrb[0].mxu0 %v6037
      %v6237 = vpop.f32.mrb[0].mxu0
      %v6238 = vadd.f32 0.0, %v6237
      %v6239 = vpop.f32.mrb[0].mxu0
      %6240 = vmatprep.mubr.f32.mxu0 0.0
      %6241 = vmatmul.mubr.f32.gmra.mrb[0].mxu0 %v6040
      %v6242 = vpop.f32.mrb[0].mxu0
      %v6243 = vadd.f32 0.0, %v6242
      %v6244 = vpop.f32.mrb[0].mxu0
      %6245 = vmatprep.mubr.f32.mxu0 0.0
      %6246 = vmatmul.mubr.f32.gmra.mrb[0].mxu0 %v6043
      %v6247 = vpop.f32.mrb[0].mxu0
      %v6248 = vadd.f32 0.0, %v6247
      %v6249 = vpop.f32.mrb[0].mxu0
      %6250 = vmatprep.mubr.f32.mxu0 0.0
      %6251 = vmatmul.mubr.f32.gmra.mrb[0].mxu0 %v6046
      %v6252 = vpop.f32.mrb[0].mxu0
      %v6253 = vadd.f32 0.0, %v6252
      %v6254 = vpop.f32.mrb[0].mxu0
      %6255 = vmatprep.mubr.f32.mxu0 0.0
      %6256 = vmatmul.mubr.f32.gmra.mrb[0].mxu0 %v6049
      %v6257 = vpop.f32.mrb[0].mxu0
      %v6258 = vadd.f32 0.0, %v6257
      %v6259 = vpop.f32.mrb[0].mxu0
      %6260 = vmatprep.mubr.f32.mxu0 0.0
      %6261 = vmatmul.mubr.f32.gmra.mrb[0].mxu0 %v6052
      %v6262 = vpop.f32.mrb[0].mxu0
      %v6263 = vadd.f32 0.0, %v6262
      %v6264 = vpop.f32.mrb[0].mxu0
      %6265 = vmatprep.mubr.f32.mxu0 0.0
      %6266 = vmatmul.mubr.f32.gmra.mrb[0].mxu0 %v6055
      %v6267 = vpop.f32.mrb[0].mxu0
      %v6268 = vadd.f32 0.0, %v6267
      %v6269 = vpop.f32.mrb[0].mxu0
      %6270 = vmatprep.mubr.f32.mxu0 0.0
      %6271 = vmatmul.mubr.f32.gmra.mrb[0].mxu0 %v6058
      %v6272 = vpop.f32.mrb[0].mxu0
      %v6273 = vadd.f32 0.0, %v6272
      %v6274 = vpop.f32.mrb[0].mxu0
      %6275 = vmatprep.mubr.f32.mxu0 0.0
      %6276 = vmatmul.mubr.f32.gmra.mrb[0].mxu0 %v6061
      %v6277 = vpop.f32.mrb[0].mxu0
      %v6278 = vadd.f32 0.0, %v6277
      %v6279 = vpop.f32.mrb[0].mxu0
      %6280 = vmatprep.mubr.f32.mxu0 0.0
      %6281 = vmatmul.mubr.f32.gmra.mrb[0].mxu0 %v6064
      %v6282 = vpop.f32.mrb[0].mxu0
      %v6283 = vadd.f32 0.0, %v6282
      %v6284 = vpop.f32.mrb[0].mxu0
      %6285 = vmatprep.mubr.f32.mxu0 0.0
      %6286 = vmatmul.mubr.f32.gmra.mrb[0].mxu0 %v6067
      %v6287 = vpop.f32.mrb[0].mxu0
      %v6288 = vadd.f32 0.0, %v6287
      %v6289 = vpop.f32.mrb[0].mxu0
      %6290 = vmatprep.mubr.f32.mxu0 0.0
      %6291 = vmatmul.mubr.f32.gmra.mrb[0].mxu0 %v6070
      %v6292 = vpop.f32.mrb[0].mxu0
      %v6293 = vadd.f32 0.0, %v6292
      %v6294 = vpop.f32.mrb[0].mxu0
      %6295 = vmatprep.mubr.f32.mxu0 0.0
      %6296 = vmatmul.mubr.f32.gmra.mrb[0].mxu0 %v6073
      %v6297 = vpop.f32.mrb[0].mxu0
      %v6298 = vadd.f32 0.0, %v6297
      %v6299 = vpop.f32.mrb[0].mxu0
      %6300 = vmatprep.mubr.f32.mxu0 0.0
      %6301 = vmatmul.mubr.f32.gmra.mrb[0].mxu0 %v6076
      %v6302 = vpop.f32.mrb[0].mxu0
      %v6303 = vadd.f32 0.0, %v6302
      %v6304 = vpop.f32.mrb[0].mxu0
      %6305 = vdwg.mxu0
      %v6306 = vadd.f32 %v5916, %v6148
      %v6307 = vadd.f32 %v5917, %v6153
      %v6308 = vadd.f32 %v5918, %v6158
      %v6309 = vadd.f32 %v5919, %v6163
      %v6310 = vadd.f32 %v5920, %v6168
      %v6311 = vadd.f32 %v5921, %v6173
      %v6312 = vadd.f32 %v5922, %v6178
      %v6313 = vadd.f32 %v5923, %v6183
      %v6314 = vadd.f32 %v5924, %v6188
      %v6315 = vadd.f32 %v5925, %v6193
      %v6316 = vadd.f32 %v5926, %v6198
      %v6317 = vadd.f32 %v5927, %v6203
      %v6318 = vadd.f32 %v5928, %v6208
      %v6319 = vadd.f32 %v5929, %v6213
      %v6320 = vadd.f32 %v5930, %v6218
      %v6321 = vadd.f32 %v5931, %v6223
      %v6322 = vadd.f32 %v5932, %v6228
      %v6323 = vadd.f32 %v5933, %v6233
      %v6324 = vadd.f32 %v5934, %v6238
      %v6325 = vadd.f32 %v5935, %v6243
      %v6326 = vadd.f32 %v5936, %v6248
      %v6327 = vadd.f32 %v5937, %v6253
      %v6328 = vadd.f32 %v5938, %v6258
      %v6329 = vadd.f32 %v5939, %v6263
      %v6330 = vadd.f32 %v5940, %v6268
      %v6331 = vadd.f32 %v5941, %v6273
      %v6332 = vadd.f32 %v5942, %v6278
      %v6333 = vadd.f32 %v5943, %v6283
      %v6334 = vadd.f32 %v5944, %v6288
      %v6335 = vadd.f32 %v5945, %v6293
      %v6336 = vadd.f32 %v5946, %v6298
      %v6337 = vadd.f32 %v5947, %v6303
      %v6338 = vld [vmem:[%s2693] sm:$0xff]
      %v6339 = vld [vmem:[%s2693 + $0x8] sm:$0xff]
      %v6340 = vld [vmem:[%s2693 + $0x18] sm:$0xff]
      %v6341 = vld [vmem:[%s2693 + $0x20] sm:$0xff]
      %v6342 = vld [vmem:[%s2693 + $0x30] sm:$0xff]
      %v6343 = vld [vmem:[%s2693 + $0x38] sm:$0xff]
      %v6344 = vld [vmem:[%s2693 + $0x48] sm:$0xff]
      %v6345 = vld [vmem:[%s2693 + $0x50] sm:$0xff]
      %v6346 = vld [vmem:[%s2693 + $0x60] sm:$0xff]
      %v6347 = vld [vmem:[%s2693 + $0x68] sm:$0xff]
      %v6348 = vld [vmem:[%s2693 + $0x78] sm:$0xff]
      %v6349 = vld [vmem:[%s2693 + $0x80] sm:$0xff]
      %v6350 = vld [vmem:[%s2693 + $0x90] sm:$0xff]
      %v6351 = vld [vmem:[%s2693 + $0x98] sm:$0xff]
      %v6352 = vld [vmem:[%s2693 + $0xa8] sm:$0xff]
      %v6353 = vld [vmem:[%s2693 + $0xb0] sm:$0xff]
      %v6354 = vld [vmem:[%s2693 + $0xc0] sm:$0xff]
      %v6355 = vld [vmem:[%s2693 + $0xc8] sm:$0xff]
      %v6356 = vld [vmem:[%s2693 + $0xd8] sm:$0xff]
      %v6357 = vld [vmem:[%s2693 + $0xe0] sm:$0xff]
      %v6358 = vld [vmem:[%s2693 + $0xf0] sm:$0xff]
      %v6359 = vld [vmem:[%s2693 + $0xf8] sm:$0xff]
      %v6360 = vld [vmem:[%s2693 + $0x108] sm:$0xff]
      %v6361 = vld [vmem:[%s2693 + $0x110] sm:$0xff]
      %v6362 = vld [vmem:[%s2693 + $0x120] sm:$0xff]
      %v6363 = vld [vmem:[%s2693 + $0x128] sm:$0xff]
      %v6364 = vld [vmem:[%s2693 + $0x138] sm:$0xff]
      %v6365 = vld [vmem:[%s2693 + $0x140] sm:$0xff]
      %v6366 = vld [vmem:[%s2693 + $0x150] sm:$0xff]
      %v6367 = vld [vmem:[%s2693 + $0x158] sm:$0xff]
      %v6368 = vld [vmem:[%s2693 + $0x168] sm:$0xff]
      %v6369 = vld [vmem:[%s2693 + $0x170] sm:$0xff]
      %s6370 = scalar_lea.vmem %s3, 24
      %v6371 = vld [vmem:[%s6370] sm:$0xf]
      %v6373 = vsel %vm225, %v6338, 0
      %v6376 = vsel %vm225, %v6339, 0
      %v6379 = vsel %vm225, %v6340, 0
      %v6382 = vsel %vm225, %v6341, 0
      %v6385 = vsel %vm225, %v6342, 0
      %v6388 = vsel %vm225, %v6343, 0
      %v6391 = vsel %vm225, %v6344, 0
      %v6394 = vsel %vm225, %v6345, 0
      %v6397 = vsel %vm225, %v6346, 0
      %v6400 = vsel %vm225, %v6347, 0
      %v6403 = vsel %vm225, %v6348, 0
      %v6406 = vsel %vm225, %v6349, 0
      %v6409 = vsel %vm225, %v6350, 0
      %v6412 = vsel %vm225, %v6351, 0
      %v6415 = vsel %vm225, %v6352, 0
      %v6418 = vsel %vm225, %v6353, 0
      %v6421 = vsel %vm225, %v6354, 0
      %v6424 = vsel %vm225, %v6355, 0
      %v6427 = vsel %vm225, %v6356, 0
      %v6430 = vsel %vm225, %v6357, 0
      %v6433 = vsel %vm225, %v6358, 0
      %v6436 = vsel %vm225, %v6359, 0
      %v6439 = vsel %vm225, %v6360, 0
      %v6442 = vsel %vm225, %v6361, 0
      %v6445 = vsel %vm225, %v6362, 0
      %v6448 = vsel %vm225, %v6363, 0
      %v6451 = vsel %vm225, %v6364, 0
      %v6454 = vsel %vm225, %v6365, 0
      %v6457 = vsel %vm225, %v6366, 0
      %v6460 = vsel %vm225, %v6367, 0
      %v6463 = vsel %vm225, %v6368, 0
      %v6466 = vsel %vm225, %v6369, 0
      %v6469 = vsel %vm482, %v6371, 0
      %6471 = vmatprep.subr.mxu0 0.0
      %6472 = vmatpush1.msra.mxu0 %v6469
      %6473 = vmatprep.subr.mxu0 0.0
      %6474 = vmatpush1.msra.mxu0 0.0
      %6475 = vmatprep.subr.mxu0 0.0
      %6476 = vmatpush1.msra.mxu0 0.0
      %6477 = vmatprep.subr.mxu0 0.0
      %6478 = vmatpush1.msra.mxu0 0.0
      %6479 = vmatprep.subr.mxu0 0.0
      %6480 = vmatpush1.msra.mxu0 0.0
      %6481 = vmatprep.subr.mxu0 0.0
      %6482 = vmatpush1.msra.mxu0 0.0
      %6483 = vmatprep.subr.mxu0 0.0
      %6484 = vmatpush1.msra.mxu0 0.0
      %6485 = vmatprep.subr.mxu0 0.0
      %6486 = vmatpush1.msra.mxu0 0.0
      %6487 = vmatprep.subr.mxu0 0.0
      %6488 = vmatpush1.msra.mxu0 0.0
      %6489 = vmatprep.subr.mxu0 0.0
      %6490 = vmatpush1.msra.mxu0 0.0
      %6491 = vmatprep.subr.mxu0 0.0
      %6492 = vmatpush1.msra.mxu0 0.0
      %6493 = vmatprep.subr.mxu0 0.0
      %6494 = vmatpush1.msra.mxu0 0.0
      %6495 = vmatprep.subr.mxu0 0.0
      %6496 = vmatpush1.msra.mxu0 0.0
      %6497 = vmatprep.subr.mxu0 0.0
      %6498 = vmatpush1.msra.mxu0 0.0
      %6499 = vmatprep.subr.mxu0 0.0
      %6500 = vmatpush1.msra.mxu0 0.0
      %6501 = vmatprep.subr.mxu0 0.0
      %6502 = vmatpush1.msra.mxu0 0.0
      %6503 = vmatprep.subr.mxu0 0.0
      %6504 = vmatpush1.msra.mxu0 0.0
      %6505 = vmatprep.subr.mxu0 0.0
      %6506 = vmatpush1.msra.mxu0 0.0
      %6507 = vmatprep.subr.mxu0 0.0
      %6508 = vmatpush1.msra.mxu0 0.0
      %6509 = vmatprep.subr.mxu0 0.0
      %6510 = vmatpush1.msra.mxu0 0.0
      %6511 = vmatprep.subr.mxu0 0.0
      %6512 = vmatpush1.msra.mxu0 0.0
      %6513 = vmatprep.subr.mxu0 0.0
      %6514 = vmatpush1.msra.mxu0 0.0
      %6515 = vmatprep.subr.mxu0 0.0
      %6516 = vmatpush1.msra.mxu0 0.0
      %6517 = vmatprep.subr.mxu0 0.0
      %6518 = vmatpush1.msra.mxu0 0.0
      %6519 = vmatprep.subr.mxu0 0.0
      %6520 = vmatpush1.msra.mxu0 0.0
      %6521 = vmatprep.subr.mxu0 0.0
      %6522 = vmatpush1.msra.mxu0 0.0
      %6523 = vmatprep.subr.mxu0 0.0
      %6524 = vmatpush1.msra.mxu0 0.0
      %6525 = vmatprep.subr.mxu0 0.0
      %6526 = vmatpush1.msra.mxu0 0.0
      %6527 = vmatprep.subr.mxu0 0.0
      %6528 = vmatpush1.msra.mxu0 0.0
      %6529 = vmatprep.subr.mxu0 0.0
      %6530 = vmatpush1.msra.mxu0 0.0
      %6531 = vmatprep.subr.mxu0 0.0
      %6532 = vmatpush1.msra.mxu0 0.0
      %6533 = vmatprep.subr.mxu0 0.0
      %6534 = vmatpush1.msra.mxu0 0.0
      %6535 = vmatprep.mubr.f32.mxu0 0.0
      %6536 = vmatmul.mubr.f32.gmra.mrb[0].mxu0 %v6373
      %v6537 = vpop.f32.mrb[0].mxu0
      %v6538 = vadd.f32 0.0, %v6537
      %v6539 = vpop.f32.mrb[0].mxu0
      %6540 = vmatprep.mubr.f32.mxu0 0.0
      %6541 = vmatmul.mubr.f32.gmra.mrb[0].mxu0 %v6376
      %v6542 = vpop.f32.mrb[0].mxu0
      %v6543 = vadd.f32 0.0, %v6542
      %v6544 = vpop.f32.mrb[0].mxu0
      %6545 = vmatprep.mubr.f32.mxu0 0.0
      %6546 = vmatmul.mubr.f32.gmra.mrb[0].mxu0 %v6379
      %v6547 = vpop.f32.mrb[0].mxu0
      %v6548 = vadd.f32 0.0, %v6547
      %v6549 = vpop.f32.mrb[0].mxu0
      %6550 = vmatprep.mubr.f32.mxu0 0.0
      %6551 = vmatmul.mubr.f32.gmra.mrb[0].mxu0 %v6382
      %v6552 = vpop.f32.mrb[0].mxu0
      %v6553 = vadd.f32 0.0, %v6552
      %v6554 = vpop.f32.mrb[0].mxu0
      %6555 = vmatprep.mubr.f32.mxu0 0.0
      %6556 = vmatmul.mubr.f32.gmra.mrb[0].mxu0 %v6385
      %v6557 = vpop.f32.mrb[0].mxu0
      %v6558 = vadd.f32 0.0, %v6557
      %v6559 = vpop.f32.mrb[0].mxu0
      %6560 = vmatprep.mubr.f32.mxu0 0.0
      %6561 = vmatmul.mubr.f32.gmra.mrb[0].mxu0 %v6388
      %v6562 = vpop.f32.mrb[0].mxu0
      %v6563 = vadd.f32 0.0, %v6562
      %v6564 = vpop.f32.mrb[0].mxu0
      %6565 = vmatprep.mubr.f32.mxu0 0.0
      %6566 = vmatmul.mubr.f32.gmra.mrb[0].mxu0 %v6391
      %v6567 = vpop.f32.mrb[0].mxu0
      %v6568 = vadd.f32 0.0, %v6567
      %v6569 = vpop.f32.mrb[0].mxu0
      %6570 = vmatprep.mubr.f32.mxu0 0.0
      %6571 = vmatmul.mubr.f32.gmra.mrb[0].mxu0 %v6394
      %v6572 = vpop.f32.mrb[0].mxu0
      %v6573 = vadd.f32 0.0, %v6572
      %v6574 = vpop.f32.mrb[0].mxu0
      %6575 = vmatprep.mubr.f32.mxu0 0.0
      %6576 = vmatmul.mubr.f32.gmra.mrb[0].mxu0 %v6397
      %v6577 = vpop.f32.mrb[0].mxu0
      %v6578 = vadd.f32 0.0, %v6577
      %v6579 = vpop.f32.mrb[0].mxu0
      %6580 = vmatprep.mubr.f32.mxu0 0.0
      %6581 = vmatmul.mubr.f32.gmra.mrb[0].mxu0 %v6400
      %v6582 = vpop.f32.mrb[0].mxu0
      %v6583 = vadd.f32 0.0, %v6582
      %v6584 = vpop.f32.mrb[0].mxu0
      %6585 = vmatprep.mubr.f32.mxu0 0.0
      %6586 = vmatmul.mubr.f32.gmra.mrb[0].mxu0 %v6403
      %v6587 = vpop.f32.mrb[0].mxu0
      %v6588 = vadd.f32 0.0, %v6587
      %v6589 = vpop.f32.mrb[0].mxu0
      %6590 = vmatprep.mubr.f32.mxu0 0.0
      %6591 = vmatmul.mubr.f32.gmra.mrb[0].mxu0 %v6406
      %v6592 = vpop.f32.mrb[0].mxu0
      %v6593 = vadd.f32 0.0, %v6592
      %v6594 = vpop.f32.mrb[0].mxu0
      %6595 = vmatprep.mubr.f32.mxu0 0.0
      %6596 = vmatmul.mubr.f32.gmra.mrb[0].mxu0 %v6409
      %v6597 = vpop.f32.mrb[0].mxu0
      %v6598 = vadd.f32 0.0, %v6597
      %v6599 = vpop.f32.mrb[0].mxu0
      %6600 = vmatprep.mubr.f32.mxu0 0.0
      %6601 = vmatmul.mubr.f32.gmra.mrb[0].mxu0 %v6412
      %v6602 = vpop.f32.mrb[0].mxu0
      %v6603 = vadd.f32 0.0, %v6602
      %v6604 = vpop.f32.mrb[0].mxu0
      %6605 = vmatprep.mubr.f32.mxu0 0.0
      %6606 = vmatmul.mubr.f32.gmra.mrb[0].mxu0 %v6415
      %v6607 = vpop.f32.mrb[0].mxu0
      %v6608 = vadd.f32 0.0, %v6607
      %v6609 = vpop.f32.mrb[0].mxu0
      %6610 = vmatprep.mubr.f32.mxu0 0.0
      %6611 = vmatmul.mubr.f32.gmra.mrb[0].mxu0 %v6418
      %v6612 = vpop.f32.mrb[0].mxu0
      %v6613 = vadd.f32 0.0, %v6612
      %v6614 = vpop.f32.mrb[0].mxu0
      %6615 = vmatprep.mubr.f32.mxu0 0.0
      %6616 = vmatmul.mubr.f32.gmra.mrb[0].mxu0 %v6421
      %v6617 = vpop.f32.mrb[0].mxu0
      %v6618 = vadd.f32 0.0, %v6617
      %v6619 = vpop.f32.mrb[0].mxu0
      %6620 = vmatprep.mubr.f32.mxu0 0.0
      %6621 = vmatmul.mubr.f32.gmra.mrb[0].mxu0 %v6424
      %v6622 = vpop.f32.mrb[0].mxu0
      %v6623 = vadd.f32 0.0, %v6622
      %v6624 = vpop.f32.mrb[0].mxu0
      %6625 = vmatprep.mubr.f32.mxu0 0.0
      %6626 = vmatmul.mubr.f32.gmra.mrb[0].mxu0 %v6427
      %v6627 = vpop.f32.mrb[0].mxu0
      %v6628 = vadd.f32 0.0, %v6627
      %v6629 = vpop.f32.mrb[0].mxu0
      %6630 = vmatprep.mubr.f32.mxu0 0.0
      %6631 = vmatmul.mubr.f32.gmra.mrb[0].mxu0 %v6430
      %v6632 = vpop.f32.mrb[0].mxu0
      %v6633 = vadd.f32 0.0, %v6632
      %v6634 = vpop.f32.mrb[0].mxu0
      %6635 = vmatprep.mubr.f32.mxu0 0.0
      %6636 = vmatmul.mubr.f32.gmra.mrb[0].mxu0 %v6433
      %v6637 = vpop.f32.mrb[0].mxu0
      %v6638 = vadd.f32 0.0, %v6637
      %v6639 = vpop.f32.mrb[0].mxu0
      %6640 = vmatprep.mubr.f32.mxu0 0.0
      %6641 = vmatmul.mubr.f32.gmra.mrb[0].mxu0 %v6436
      %v6642 = vpop.f32.mrb[0].mxu0
      %v6643 = vadd.f32 0.0, %v6642
      %v6644 = vpop.f32.mrb[0].mxu0
      %6645 = vmatprep.mubr.f32.mxu0 0.0
      %6646 = vmatmul.mubr.f32.gmra.mrb[0].mxu0 %v6439
      %v6647 = vpop.f32.mrb[0].mxu0
      %v6648 = vadd.f32 0.0, %v6647
      %v6649 = vpop.f32.mrb[0].mxu0
      %6650 = vmatprep.mubr.f32.mxu0 0.0
      %6651 = vmatmul.mubr.f32.gmra.mrb[0].mxu0 %v6442
      %v6652 = vpop.f32.mrb[0].mxu0
      %v6653 = vadd.f32 0.0, %v6652
      %v6654 = vpop.f32.mrb[0].mxu0
      %6655 = vmatprep.mubr.f32.mxu0 0.0
      %6656 = vmatmul.mubr.f32.gmra.mrb[0].mxu0 %v6445
      %v6657 = vpop.f32.mrb[0].mxu0
      %v6658 = vadd.f32 0.0, %v6657
      %v6659 = vpop.f32.mrb[0].mxu0
      %6660 = vmatprep.mubr.f32.mxu0 0.0
      %6661 = vmatmul.mubr.f32.gmra.mrb[0].mxu0 %v6448
      %v6662 = vpop.f32.mrb[0].mxu0
      %v6663 = vadd.f32 0.0, %v6662
      %v6664 = vpop.f32.mrb[0].mxu0
      %6665 = vmatprep.mubr.f32.mxu0 0.0
      %6666 = vmatmul.mubr.f32.gmra.mrb[0].mxu0 %v6451
      %v6667 = vpop.f32.mrb[0].mxu0
      %v6668 = vadd.f32 0.0, %v6667
      %v6669 = vpop.f32.mrb[0].mxu0
      %6670 = vmatprep.mubr.f32.mxu0 0.0
      %6671 = vmatmul.mubr.f32.gmra.mrb[0].mxu0 %v6454
      %v6672 = vpop.f32.mrb[0].mxu0
      %v6673 = vadd.f32 0.0, %v6672
      %v6674 = vpop.f32.mrb[0].mxu0
      %6675 = vmatprep.mubr.f32.mxu0 0.0
      %6676 = vmatmul.mubr.f32.gmra.mrb[0].mxu0 %v6457
      %v6677 = vpop.f32.mrb[0].mxu0
      %v6678 = vadd.f32 0.0, %v6677
      %v6679 = vpop.f32.mrb[0].mxu0
      %6680 = vmatprep.mubr.f32.mxu0 0.0
      %6681 = vmatmul.mubr.f32.gmra.mrb[0].mxu0 %v6460
      %v6682 = vpop.f32.mrb[0].mxu0
      %v6683 = vadd.f32 0.0, %v6682
      %v6684 = vpop.f32.mrb[0].mxu0
      %6685 = vmatprep.mubr.f32.mxu0 0.0
      %6686 = vmatmul.mubr.f32.gmra.mrb[0].mxu0 %v6463
      %v6687 = vpop.f32.mrb[0].mxu0
      %v6688 = vadd.f32 0.0, %v6687
      %v6689 = vpop.f32.mrb[0].mxu0
      %6690 = vmatprep.mubr.f32.mxu0 0.0
      %6691 = vmatmul.mubr.f32.gmra.mrb[0].mxu0 %v6466
      %v6692 = vpop.f32.mrb[0].mxu0
      %v6693 = vadd.f32 0.0, %v6692
      %v6694 = vpop.f32.mrb[0].mxu0
      %6695 = vdwg.mxu0
      %v6696 = vadd.f32 %v6306, %v6538
      %v6697 = vadd.f32 %v6307, %v6543
      %v6698 = vadd.f32 %v6308, %v6548
      %v6699 = vadd.f32 %v6309, %v6553
      %v6700 = vadd.f32 %v6310, %v6558
      %v6701 = vadd.f32 %v6311, %v6563
      %v6702 = vadd.f32 %v6312, %v6568
      %v6703 = vadd.f32 %v6313, %v6573
      %v6704 = vadd.f32 %v6314, %v6578
      %v6705 = vadd.f32 %v6315, %v6583
      %v6706 = vadd.f32 %v6316, %v6588
      %v6707 = vadd.f32 %v6317, %v6593
      %v6708 = vadd.f32 %v6318, %v6598
      %v6709 = vadd.f32 %v6319, %v6603
      %v6710 = vadd.f32 %v6320, %v6608
      %v6711 = vadd.f32 %v6321, %v6613
      %v6712 = vadd.f32 %v6322, %v6618
      %v6713 = vadd.f32 %v6323, %v6623
      %v6714 = vadd.f32 %v6324, %v6628
      %v6715 = vadd.f32 %v6325, %v6633
      %v6716 = vadd.f32 %v6326, %v6638
      %v6717 = vadd.f32 %v6327, %v6643
      %v6718 = vadd.f32 %v6328, %v6648
      %v6719 = vadd.f32 %v6329, %v6653
      %v6720 = vadd.f32 %v6330, %v6658
      %v6721 = vadd.f32 %v6331, %v6663
      %v6722 = vadd.f32 %v6332, %v6668
      %v6723 = vadd.f32 %v6333, %v6673
      %v6724 = vadd.f32 %v6334, %v6678
      %v6725 = vadd.f32 %v6335, %v6683
      %v6726 = vadd.f32 %v6336, %v6688
      %v6727 = vadd.f32 %v6337, %v6693
      %v6728 = vld [vmem:[%s2693 + $0x1] sm:$0xff]
      %v6729 = vld [vmem:[%s2693 + $0x9] sm:$0xff]
      %v6730 = vld [vmem:[%s2693 + $0x19] sm:$0xff]
      %v6731 = vld [vmem:[%s2693 + $0x21] sm:$0xff]
      %v6732 = vld [vmem:[%s2693 + $0x31] sm:$0xff]
      %v6733 = vld [vmem:[%s2693 + $0x39] sm:$0xff]
      %v6734 = vld [vmem:[%s2693 + $0x49] sm:$0xff]
      %v6735 = vld [vmem:[%s2693 + $0x51] sm:$0xff]
      %v6736 = vld [vmem:[%s2693 + $0x61] sm:$0xff]
      %v6737 = vld [vmem:[%s2693 + $0x69] sm:$0xff]
      %v6738 = vld [vmem:[%s2693 + $0x79] sm:$0xff]
      %v6739 = vld [vmem:[%s2693 + $0x81] sm:$0xff]
      %v6740 = vld [vmem:[%s2693 + $0x91] sm:$0xff]
      %v6741 = vld [vmem:[%s2693 + $0x99] sm:$0xff]
      %v6742 = vld [vmem:[%s2693 + $0xa9] sm:$0xff]
      %v6743 = vld [vmem:[%s2693 + $0xb1] sm:$0xff]
      %v6744 = vld [vmem:[%s2693 + $0xc1] sm:$0xff]
      %v6745 = vld [vmem:[%s2693 + $0xc9] sm:$0xff]
      %v6746 = vld [vmem:[%s2693 + $0xd9] sm:$0xff]
      %v6747 = vld [vmem:[%s2693 + $0xe1] sm:$0xff]
      %v6748 = vld [vmem:[%s2693 + $0xf1] sm:$0xff]
      %v6749 = vld [vmem:[%s2693 + $0xf9] sm:$0xff]
      %v6750 = vld [vmem:[%s2693 + $0x109] sm:$0xff]
      %v6751 = vld [vmem:[%s2693 + $0x111] sm:$0xff]
      %v6752 = vld [vmem:[%s2693 + $0x121] sm:$0xff]
      %v6753 = vld [vmem:[%s2693 + $0x129] sm:$0xff]
      %v6754 = vld [vmem:[%s2693 + $0x139] sm:$0xff]
      %v6755 = vld [vmem:[%s2693 + $0x141] sm:$0xff]
      %v6756 = vld [vmem:[%s2693 + $0x151] sm:$0xff]
      %v6757 = vld [vmem:[%s2693 + $0x159] sm:$0xff]
      %v6758 = vld [vmem:[%s2693 + $0x169] sm:$0xff]
      %v6759 = vld [vmem:[%s2693 + $0x171] sm:$0xff]
      %s6760 = scalar_lea.vmem %s3, 28
      %v6761 = vld [vmem:[%s6760] sm:$0xf]
      %v6763 = vsel %vm225, %v6728, 0
      %v6766 = vsel %vm225, %v6729, 0
      %v6769 = vsel %vm225, %v6730, 0
      %v6772 = vsel %vm225, %v6731, 0
      %v6775 = vsel %vm225, %v6732, 0
      %v6778 = vsel %vm225, %v6733, 0
      %v6781 = vsel %vm225, %v6734, 0
      %v6784 = vsel %vm225, %v6735, 0
      %v6787 = vsel %vm225, %v6736, 0
      %v6790 = vsel %vm225, %v6737, 0
      %v6793 = vsel %vm225, %v6738, 0
      %v6796 = vsel %vm225, %v6739, 0
      %v6799 = vsel %vm225, %v6740, 0
      %v6802 = vsel %vm225, %v6741, 0
      %v6805 = vsel %vm225, %v6742, 0
      %v6808 = vsel %vm225, %v6743, 0
      %v6811 = vsel %vm225, %v6744, 0
      %v6814 = vsel %vm225, %v6745, 0
      %v6817 = vsel %vm225, %v6746, 0
      %v6820 = vsel %vm225, %v6747, 0
      %v6823 = vsel %vm225, %v6748, 0
      %v6826 = vsel %vm225, %v6749, 0
      %v6829 = vsel %vm225, %v6750, 0
      %v6832 = vsel %vm225, %v6751, 0
      %v6835 = vsel %vm225, %v6752, 0
      %v6838 = vsel %vm225, %v6753, 0
      %v6841 = vsel %vm225, %v6754, 0
      %v6844 = vsel %vm225, %v6755, 0
      %v6847 = vsel %vm225, %v6756, 0
      %v6850 = vsel %vm225, %v6757, 0
      %v6853 = vsel %vm225, %v6758, 0
      %v6856 = vsel %vm225, %v6759, 0
      %v6859 = vsel %vm482, %v6761, 0
      %6861 = vmatprep.subr.mxu0 0.0
      %6862 = vmatpush1.msra.mxu0 %v6859
      %6863 = vmatprep.subr.mxu0 0.0
      %6864 = vmatpush1.msra.mxu0 0.0
      %6865 = vmatprep.subr.mxu0 0.0
      %6866 = vmatpush1.msra.mxu0 0.0
      %6867 = vmatprep.subr.mxu0 0.0
      %6868 = vmatpush1.msra.mxu0 0.0
      %6869 = vmatprep.subr.mxu0 0.0
      %6870 = vmatpush1.msra.mxu0 0.0
      %6871 = vmatprep.subr.mxu0 0.0
      %6872 = vmatpush1.msra.mxu0 0.0
      %6873 = vmatprep.subr.mxu0 0.0
      %6874 = vmatpush1.msra.mxu0 0.0
      %6875 = vmatprep.subr.mxu0 0.0
      %6876 = vmatpush1.msra.mxu0 0.0
      %6877 = vmatprep.subr.mxu0 0.0
      %6878 = vmatpush1.msra.mxu0 0.0
      %6879 = vmatprep.subr.mxu0 0.0
      %6880 = vmatpush1.msra.mxu0 0.0
      %6881 = vmatprep.subr.mxu0 0.0
      %6882 = vmatpush1.msra.mxu0 0.0
      %6883 = vmatprep.subr.mxu0 0.0
      %6884 = vmatpush1.msra.mxu0 0.0
      %6885 = vmatprep.subr.mxu0 0.0
      %6886 = vmatpush1.msra.mxu0 0.0
      %6887 = vmatprep.subr.mxu0 0.0
      %6888 = vmatpush1.msra.mxu0 0.0
      %6889 = vmatprep.subr.mxu0 0.0
      %6890 = vmatpush1.msra.mxu0 0.0
      %6891 = vmatprep.subr.mxu0 0.0
      %6892 = vmatpush1.msra.mxu0 0.0
      %6893 = vmatprep.subr.mxu0 0.0
      %6894 = vmatpush1.msra.mxu0 0.0
      %6895 = vmatprep.subr.mxu0 0.0
      %6896 = vmatpush1.msra.mxu0 0.0
      %6897 = vmatprep.subr.mxu0 0.0
      %6898 = vmatpush1.msra.mxu0 0.0
      %6899 = vmatprep.subr.mxu0 0.0
      %6900 = vmatpush1.msra.mxu0 0.0
      %6901 = vmatprep.subr.mxu0 0.0
      %6902 = vmatpush1.msra.mxu0 0.0
      %6903 = vmatprep.subr.mxu0 0.0
      %6904 = vmatpush1.msra.mxu0 0.0
      %6905 = vmatprep.subr.mxu0 0.0
      %6906 = vmatpush1.msra.mxu0 0.0
      %6907 = vmatprep.subr.mxu0 0.0
      %6908 = vmatpush1.msra.mxu0 0.0
      %6909 = vmatprep.subr.mxu0 0.0
      %6910 = vmatpush1.msra.mxu0 0.0
      %6911 = vmatprep.subr.mxu0 0.0
      %6912 = vmatpush1.msra.mxu0 0.0
      %6913 = vmatprep.subr.mxu0 0.0
      %6914 = vmatpush1.msra.mxu0 0.0
      %6915 = vmatprep.subr.mxu0 0.0
      %6916 = vmatpush1.msra.mxu0 0.0
      %6917 = vmatprep.subr.mxu0 0.0
      %6918 = vmatpush1.msra.mxu0 0.0
      %6919 = vmatprep.subr.mxu0 0.0
      %6920 = vmatpush1.msra.mxu0 0.0
      %6921 = vmatprep.subr.mxu0 0.0
      %6922 = vmatpush1.msra.mxu0 0.0
      %6923 = vmatprep.subr.mxu0 0.0
      %6924 = vmatpush1.msra.mxu0 0.0
      %6925 = vmatprep.mubr.f32.mxu0 0.0
      %6926 = vmatmul.mubr.f32.gmra.mrb[0].mxu0 %v6763
      %v6927 = vpop.f32.mrb[0].mxu0
      %v6928 = vadd.f32 0.0, %v6927
      %v6929 = vpop.f32.mrb[0].mxu0
      %6930 = vmatprep.mubr.f32.mxu0 0.0
      %6931 = vmatmul.mubr.f32.gmra.mrb[0].mxu0 %v6766
      %v6932 = vpop.f32.mrb[0].mxu0
      %v6933 = vadd.f32 0.0, %v6932
      %v6934 = vpop.f32.mrb[0].mxu0
      %6935 = vmatprep.mubr.f32.mxu0 0.0
      %6936 = vmatmul.mubr.f32.gmra.mrb[0].mxu0 %v6769
      %v6937 = vpop.f32.mrb[0].mxu0
      %v6938 = vadd.f32 0.0, %v6937
      %v6939 = vpop.f32.mrb[0].mxu0
      %6940 = vmatprep.mubr.f32.mxu0 0.0
      %6941 = vmatmul.mubr.f32.gmra.mrb[0].mxu0 %v6772
      %v6942 = vpop.f32.mrb[0].mxu0
      %v6943 = vadd.f32 0.0, %v6942
      %v6944 = vpop.f32.mrb[0].mxu0
      %6945 = vmatprep.mubr.f32.mxu0 0.0
      %6946 = vmatmul.mubr.f32.gmra.mrb[0].mxu0 %v6775
      %v6947 = vpop.f32.mrb[0].mxu0
      %v6948 = vadd.f32 0.0, %v6947
      %v6949 = vpop.f32.mrb[0].mxu0
      %6950 = vmatprep.mubr.f32.mxu0 0.0
      %6951 = vmatmul.mubr.f32.gmra.mrb[0].mxu0 %v6778
      %v6952 = vpop.f32.mrb[0].mxu0
      %v6953 = vadd.f32 0.0, %v6952
      %v6954 = vpop.f32.mrb[0].mxu0
      %6955 = vmatprep.mubr.f32.mxu0 0.0
      %6956 = vmatmul.mubr.f32.gmra.mrb[0].mxu0 %v6781
      %v6957 = vpop.f32.mrb[0].mxu0
      %v6958 = vadd.f32 0.0, %v6957
      %v6959 = vpop.f32.mrb[0].mxu0
      %6960 = vmatprep.mubr.f32.mxu0 0.0
      %6961 = vmatmul.mubr.f32.gmra.mrb[0].mxu0 %v6784
      %v6962 = vpop.f32.mrb[0].mxu0
      %v6963 = vadd.f32 0.0, %v6962
      %v6964 = vpop.f32.mrb[0].mxu0
      %6965 = vmatprep.mubr.f32.mxu0 0.0
      %6966 = vmatmul.mubr.f32.gmra.mrb[0].mxu0 %v6787
      %v6967 = vpop.f32.mrb[0].mxu0
      %v6968 = vadd.f32 0.0, %v6967
      %v6969 = vpop.f32.mrb[0].mxu0
      %6970 = vmatprep.mubr.f32.mxu0 0.0
      %6971 = vmatmul.mubr.f32.gmra.mrb[0].mxu0 %v6790
      %v6972 = vpop.f32.mrb[0].mxu0
      %v6973 = vadd.f32 0.0, %v6972
      %v6974 = vpop.f32.mrb[0].mxu0
      %6975 = vmatprep.mubr.f32.mxu0 0.0
      %6976 = vmatmul.mubr.f32.gmra.mrb[0].mxu0 %v6793
      %v6977 = vpop.f32.mrb[0].mxu0
      %v6978 = vadd.f32 0.0, %v6977
      %v6979 = vpop.f32.mrb[0].mxu0
      %6980 = vmatprep.mubr.f32.mxu0 0.0
      %6981 = vmatmul.mubr.f32.gmra.mrb[0].mxu0 %v6796
      %v6982 = vpop.f32.mrb[0].mxu0
      %v6983 = vadd.f32 0.0, %v6982
      %v6984 = vpop.f32.mrb[0].mxu0
      %6985 = vmatprep.mubr.f32.mxu0 0.0
      %6986 = vmatmul.mubr.f32.gmra.mrb[0].mxu0 %v6799
      %v6987 = vpop.f32.mrb[0].mxu0
      %v6988 = vadd.f32 0.0, %v6987
      %v6989 = vpop.f32.mrb[0].mxu0
      %6990 = vmatprep.mubr.f32.mxu0 0.0
      %6991 = vmatmul.mubr.f32.gmra.mrb[0].mxu0 %v6802
      %v6992 = vpop.f32.mrb[0].mxu0
      %v6993 = vadd.f32 0.0, %v6992
      %v6994 = vpop.f32.mrb[0].mxu0
      %6995 = vmatprep.mubr.f32.mxu0 0.0
      %6996 = vmatmul.mubr.f32.gmra.mrb[0].mxu0 %v6805
      %v6997 = vpop.f32.mrb[0].mxu0
      %v6998 = vadd.f32 0.0, %v6997
      %v6999 = vpop.f32.mrb[0].mxu0
      %7000 = vmatprep.mubr.f32.mxu0 0.0
      %7001 = vmatmul.mubr.f32.gmra.mrb[0].mxu0 %v6808
      %v7002 = vpop.f32.mrb[0].mxu0
      %v7003 = vadd.f32 0.0, %v7002
      %v7004 = vpop.f32.mrb[0].mxu0
      %7005 = vmatprep.mubr.f32.mxu0 0.0
      %7006 = vmatmul.mubr.f32.gmra.mrb[0].mxu0 %v6811
      %v7007 = vpop.f32.mrb[0].mxu0
      %v7008 = vadd.f32 0.0, %v7007
      %v7009 = vpop.f32.mrb[0].mxu0
      %7010 = vmatprep.mubr.f32.mxu0 0.0
      %7011 = vmatmul.mubr.f32.gmra.mrb[0].mxu0 %v6814
      %v7012 = vpop.f32.mrb[0].mxu0
      %v7013 = vadd.f32 0.0, %v7012
      %v7014 = vpop.f32.mrb[0].mxu0
      %7015 = vmatprep.mubr.f32.mxu0 0.0
      %7016 = vmatmul.mubr.f32.gmra.mrb[0].mxu0 %v6817
      %v7017 = vpop.f32.mrb[0].mxu0
      %v7018 = vadd.f32 0.0, %v7017
      %v7019 = vpop.f32.mrb[0].mxu0
      %7020 = vmatprep.mubr.f32.mxu0 0.0
      %7021 = vmatmul.mubr.f32.gmra.mrb[0].mxu0 %v6820
      %v7022 = vpop.f32.mrb[0].mxu0
      %v7023 = vadd.f32 0.0, %v7022
      %v7024 = vpop.f32.mrb[0].mxu0
      %7025 = vmatprep.mubr.f32.mxu0 0.0
      %7026 = vmatmul.mubr.f32.gmra.mrb[0].mxu0 %v6823
      %v7027 = vpop.f32.mrb[0].mxu0
      %v7028 = vadd.f32 0.0, %v7027
      %v7029 = vpop.f32.mrb[0].mxu0
      %7030 = vmatprep.mubr.f32.mxu0 0.0
      %7031 = vmatmul.mubr.f32.gmra.mrb[0].mxu0 %v6826
      %v7032 = vpop.f32.mrb[0].mxu0
      %v7033 = vadd.f32 0.0, %v7032
      %v7034 = vpop.f32.mrb[0].mxu0
      %7035 = vmatprep.mubr.f32.mxu0 0.0
      %7036 = vmatmul.mubr.f32.gmra.mrb[0].mxu0 %v6829
      %v7037 = vpop.f32.mrb[0].mxu0
      %v7038 = vadd.f32 0.0, %v7037
      %v7039 = vpop.f32.mrb[0].mxu0
      %7040 = vmatprep.mubr.f32.mxu0 0.0
      %7041 = vmatmul.mubr.f32.gmra.mrb[0].mxu0 %v6832
      %v7042 = vpop.f32.mrb[0].mxu0
      %v7043 = vadd.f32 0.0, %v7042
      %v7044 = vpop.f32.mrb[0].mxu0
      %7045 = vmatprep.mubr.f32.mxu0 0.0
      %7046 = vmatmul.mubr.f32.gmra.mrb[0].mxu0 %v6835
      %v7047 = vpop.f32.mrb[0].mxu0
      %v7048 = vadd.f32 0.0, %v7047
      %v7049 = vpop.f32.mrb[0].mxu0
      %7050 = vmatprep.mubr.f32.mxu0 0.0
      %7051 = vmatmul.mubr.f32.gmra.mrb[0].mxu0 %v6838
      %v7052 = vpop.f32.mrb[0].mxu0
      %v7053 = vadd.f32 0.0, %v7052
      %v7054 = vpop.f32.mrb[0].mxu0
      %7055 = vmatprep.mubr.f32.mxu0 0.0
      %7056 = vmatmul.mubr.f32.gmra.mrb[0].mxu0 %v6841
      %v7057 = vpop.f32.mrb[0].mxu0
      %v7058 = vadd.f32 0.0, %v7057
      %v7059 = vpop.f32.mrb[0].mxu0
      %7060 = vmatprep.mubr.f32.mxu0 0.0
      %7061 = vmatmul.mubr.f32.gmra.mrb[0].mxu0 %v6844
      %v7062 = vpop.f32.mrb[0].mxu0
      %v7063 = vadd.f32 0.0, %v7062
      %v7064 = vpop.f32.mrb[0].mxu0
      %7065 = vmatprep.mubr.f32.mxu0 0.0
      %7066 = vmatmul.mubr.f32.gmra.mrb[0].mxu0 %v6847
      %v7067 = vpop.f32.mrb[0].mxu0
      %v7068 = vadd.f32 0.0, %v7067
      %v7069 = vpop.f32.mrb[0].mxu0
      %7070 = vmatprep.mubr.f32.mxu0 0.0
      %7071 = vmatmul.mubr.f32.gmra.mrb[0].mxu0 %v6850
      %v7072 = vpop.f32.mrb[0].mxu0
      %v7073 = vadd.f32 0.0, %v7072
      %v7074 = vpop.f32.mrb[0].mxu0
      %7075 = vmatprep.mubr.f32.mxu0 0.0
      %7076 = vmatmul.mubr.f32.gmra.mrb[0].mxu0 %v6853
      %v7077 = vpop.f32.mrb[0].mxu0
      %v7078 = vadd.f32 0.0, %v7077
      %v7079 = vpop.f32.mrb[0].mxu0
      %7080 = vmatprep.mubr.f32.mxu0 0.0
      %7081 = vmatmul.mubr.f32.gmra.mrb[0].mxu0 %v6856
      %v7082 = vpop.f32.mrb[0].mxu0
      %v7083 = vadd.f32 0.0, %v7082
      %v7084 = vpop.f32.mrb[0].mxu0
      %7085 = vdwg.mxu0
      %v7086 = vadd.f32 %v6696, %v6928
      %v7087 = vadd.f32 %v6697, %v6933
      %v7088 = vadd.f32 %v6698, %v6938
      %v7089 = vadd.f32 %v6699, %v6943
      %v7090 = vadd.f32 %v6700, %v6948
      %v7091 = vadd.f32 %v6701, %v6953
      %v7092 = vadd.f32 %v6702, %v6958
      %v7093 = vadd.f32 %v6703, %v6963
      %v7094 = vadd.f32 %v6704, %v6968
      %v7095 = vadd.f32 %v6705, %v6973
      %v7096 = vadd.f32 %v6706, %v6978
      %v7097 = vadd.f32 %v6707, %v6983
      %v7098 = vadd.f32 %v6708, %v6988
      %v7099 = vadd.f32 %v6709, %v6993
      %v7100 = vadd.f32 %v6710, %v6998
      %v7101 = vadd.f32 %v6711, %v7003
      %v7102 = vadd.f32 %v6712, %v7008
      %v7103 = vadd.f32 %v6713, %v7013
      %v7104 = vadd.f32 %v6714, %v7018
      %v7105 = vadd.f32 %v6715, %v7023
      %v7106 = vadd.f32 %v6716, %v7028
      %v7107 = vadd.f32 %v6717, %v7033
      %v7108 = vadd.f32 %v6718, %v7038
      %v7109 = vadd.f32 %v6719, %v7043
      %v7110 = vadd.f32 %v6720, %v7048
      %v7111 = vadd.f32 %v6721, %v7053
      %v7112 = vadd.f32 %v6722, %v7058
      %v7113 = vadd.f32 %v6723, %v7063
      %v7114 = vadd.f32 %v6724, %v7068
      %v7115 = vadd.f32 %v6725, %v7073
      %v7116 = vadd.f32 %v6726, %v7078
      %v7117 = vadd.f32 %v6727, %v7083
      %v7118 = vld [vmem:[%s2693 + $0x2] sm:$0xff]
      %v7119 = vld [vmem:[%s2693 + $0xa] sm:$0xff]
      %v7120 = vld [vmem:[%s2693 + $0x1a] sm:$0xff]
      %v7121 = vld [vmem:[%s2693 + $0x22] sm:$0xff]
      %v7122 = vld [vmem:[%s2693 + $0x32] sm:$0xff]
      %v7123 = vld [vmem:[%s2693 + $0x3a] sm:$0xff]
      %v7124 = vld [vmem:[%s2693 + $0x4a] sm:$0xff]
      %v7125 = vld [vmem:[%s2693 + $0x52] sm:$0xff]
      %v7126 = vld [vmem:[%s2693 + $0x62] sm:$0xff]
      %v7127 = vld [vmem:[%s2693 + $0x6a] sm:$0xff]
      %v7128 = vld [vmem:[%s2693 + $0x7a] sm:$0xff]
      %v7129 = vld [vmem:[%s2693 + $0x82] sm:$0xff]
      %v7130 = vld [vmem:[%s2693 + $0x92] sm:$0xff]
      %v7131 = vld [vmem:[%s2693 + $0x9a] sm:$0xff]
      %v7132 = vld [vmem:[%s2693 + $0xaa] sm:$0xff]
      %v7133 = vld [vmem:[%s2693 + $0xb2] sm:$0xff]
      %v7134 = vld [vmem:[%s2693 + $0xc2] sm:$0xff]
      %v7135 = vld [vmem:[%s2693 + $0xca] sm:$0xff]
      %v7136 = vld [vmem:[%s2693 + $0xda] sm:$0xff]
      %v7137 = vld [vmem:[%s2693 + $0xe2] sm:$0xff]
      %v7138 = vld [vmem:[%s2693 + $0xf2] sm:$0xff]
      %v7139 = vld [vmem:[%s2693 + $0xfa] sm:$0xff]
      %v7140 = vld [vmem:[%s2693 + $0x10a] sm:$0xff]
      %v7141 = vld [vmem:[%s2693 + $0x112] sm:$0xff]
      %v7142 = vld [vmem:[%s2693 + $0x122] sm:$0xff]
      %v7143 = vld [vmem:[%s2693 + $0x12a] sm:$0xff]
      %v7144 = vld [vmem:[%s2693 + $0x13a] sm:$0xff]
      %v7145 = vld [vmem:[%s2693 + $0x142] sm:$0xff]
      %v7146 = vld [vmem:[%s2693 + $0x152] sm:$0xff]
      %v7147 = vld [vmem:[%s2693 + $0x15a] sm:$0xff]
      %v7148 = vld [vmem:[%s2693 + $0x16a] sm:$0xff]
      %v7149 = vld [vmem:[%s2693 + $0x172] sm:$0xff]
      %s7150 = scalar_lea.vmem %s3, 32
      %v7151 = vld [vmem:[%s7150] sm:$0xf]
      %v7153 = vsel %vm225, %v7118, 0
      %v7156 = vsel %vm225, %v7119, 0
      %v7159 = vsel %vm225, %v7120, 0
      %v7162 = vsel %vm225, %v7121, 0
      %v7165 = vsel %vm225, %v7122, 0
      %v7168 = vsel %vm225, %v7123, 0
      %v7171 = vsel %vm225, %v7124, 0
      %v7174 = vsel %vm225, %v7125, 0
      %v7177 = vsel %vm225, %v7126, 0
      %v7180 = vsel %vm225, %v7127, 0
      %v7183 = vsel %vm225, %v7128, 0
      %v7186 = vsel %vm225, %v7129, 0
      %v7189 = vsel %vm225, %v7130, 0
      %v7192 = vsel %vm225, %v7131, 0
      %v7195 = vsel %vm225, %v7132, 0
      %v7198 = vsel %vm225, %v7133, 0
      %v7201 = vsel %vm225, %v7134, 0
      %v7204 = vsel %vm225, %v7135, 0
      %v7207 = vsel %vm225, %v7136, 0
      %v7210 = vsel %vm225, %v7137, 0
      %v7213 = vsel %vm225, %v7138, 0
      %v7216 = vsel %vm225, %v7139, 0
      %v7219 = vsel %vm225, %v7140, 0
      %v7222 = vsel %vm225, %v7141, 0
      %v7225 = vsel %vm225, %v7142, 0
      %v7228 = vsel %vm225, %v7143, 0
      %v7231 = vsel %vm225, %v7144, 0
      %v7234 = vsel %vm225, %v7145, 0
      %v7237 = vsel %vm225, %v7146, 0
      %v7240 = vsel %vm225, %v7147, 0
      %v7243 = vsel %vm225, %v7148, 0
      %v7246 = vsel %vm225, %v7149, 0
      %v7249 = vsel %vm482, %v7151, 0
      %7251 = vmatprep.subr.mxu0 0.0
      %7252 = vmatpush1.msra.mxu0 %v7249
      %7253 = vmatprep.subr.mxu0 0.0
      %7254 = vmatpush1.msra.mxu0 0.0
      %7255 = vmatprep.subr.mxu0 0.0
      %7256 = vmatpush1.msra.mxu0 0.0
      %7257 = vmatprep.subr.mxu0 0.0
      %7258 = vmatpush1.msra.mxu0 0.0
      %7259 = vmatprep.subr.mxu0 0.0
      %7260 = vmatpush1.msra.mxu0 0.0
      %7261 = vmatprep.subr.mxu0 0.0
      %7262 = vmatpush1.msra.mxu0 0.0
      %7263 = vmatprep.subr.mxu0 0.0
      %7264 = vmatpush1.msra.mxu0 0.0
      %7265 = vmatprep.subr.mxu0 0.0
      %7266 = vmatpush1.msra.mxu0 0.0
      %7267 = vmatprep.subr.mxu0 0.0
      %7268 = vmatpush1.msra.mxu0 0.0
      %7269 = vmatprep.subr.mxu0 0.0
      %7270 = vmatpush1.msra.mxu0 0.0
      %7271 = vmatprep.subr.mxu0 0.0
      %7272 = vmatpush1.msra.mxu0 0.0
      %7273 = vmatprep.subr.mxu0 0.0
      %7274 = vmatpush1.msra.mxu0 0.0
      %7275 = vmatprep.subr.mxu0 0.0
      %7276 = vmatpush1.msra.mxu0 0.0
      %7277 = vmatprep.subr.mxu0 0.0
      %7278 = vmatpush1.msra.mxu0 0.0
      %7279 = vmatprep.subr.mxu0 0.0
      %7280 = vmatpush1.msra.mxu0 0.0
      %7281 = vmatprep.subr.mxu0 0.0
      %7282 = vmatpush1.msra.mxu0 0.0
      %7283 = vmatprep.subr.mxu0 0.0
      %7284 = vmatpush1.msra.mxu0 0.0
      %7285 = vmatprep.subr.mxu0 0.0
      %7286 = vmatpush1.msra.mxu0 0.0
      %7287 = vmatprep.subr.mxu0 0.0
      %7288 = vmatpush1.msra.mxu0 0.0
      %7289 = vmatprep.subr.mxu0 0.0
      %7290 = vmatpush1.msra.mxu0 0.0
      %7291 = vmatprep.subr.mxu0 0.0
      %7292 = vmatpush1.msra.mxu0 0.0
      %7293 = vmatprep.subr.mxu0 0.0
      %7294 = vmatpush1.msra.mxu0 0.0
      %7295 = vmatprep.subr.mxu0 0.0
      %7296 = vmatpush1.msra.mxu0 0.0
      %7297 = vmatprep.subr.mxu0 0.0
      %7298 = vmatpush1.msra.mxu0 0.0
      %7299 = vmatprep.subr.mxu0 0.0
      %7300 = vmatpush1.msra.mxu0 0.0
      %7301 = vmatprep.subr.mxu0 0.0
      %7302 = vmatpush1.msra.mxu0 0.0
      %7303 = vmatprep.subr.mxu0 0.0
      %7304 = vmatpush1.msra.mxu0 0.0
      %7305 = vmatprep.subr.mxu0 0.0
      %7306 = vmatpush1.msra.mxu0 0.0
      %7307 = vmatprep.subr.mxu0 0.0
      %7308 = vmatpush1.msra.mxu0 0.0
      %7309 = vmatprep.subr.mxu0 0.0
      %7310 = vmatpush1.msra.mxu0 0.0
      %7311 = vmatprep.subr.mxu0 0.0
      %7312 = vmatpush1.msra.mxu0 0.0
      %7313 = vmatprep.subr.mxu0 0.0
      %7314 = vmatpush1.msra.mxu0 0.0
      %7315 = vmatprep.mubr.f32.mxu0 0.0
      %7316 = vmatmul.mubr.f32.gmra.mrb[0].mxu0 %v7153
      %v7317 = vpop.f32.mrb[0].mxu0
      %v7318 = vadd.f32 0.0, %v7317
      %v7319 = vpop.f32.mrb[0].mxu0
      %7320 = vmatprep.mubr.f32.mxu0 0.0
      %7321 = vmatmul.mubr.f32.gmra.mrb[0].mxu0 %v7156
      %v7322 = vpop.f32.mrb[0].mxu0
      %v7323 = vadd.f32 0.0, %v7322
      %v7324 = vpop.f32.mrb[0].mxu0
      %7325 = vmatprep.mubr.f32.mxu0 0.0
      %7326 = vmatmul.mubr.f32.gmra.mrb[0].mxu0 %v7159
      %v7327 = vpop.f32.mrb[0].mxu0
      %v7328 = vadd.f32 0.0, %v7327
      %v7329 = vpop.f32.mrb[0].mxu0
      %7330 = vmatprep.mubr.f32.mxu0 0.0
      %7331 = vmatmul.mubr.f32.gmra.mrb[0].mxu0 %v7162
      %v7332 = vpop.f32.mrb[0].mxu0
      %v7333 = vadd.f32 0.0, %v7332
      %v7334 = vpop.f32.mrb[0].mxu0
      %7335 = vmatprep.mubr.f32.mxu0 0.0
      %7336 = vmatmul.mubr.f32.gmra.mrb[0].mxu0 %v7165
      %v7337 = vpop.f32.mrb[0].mxu0
      %v7338 = vadd.f32 0.0, %v7337
      %v7339 = vpop.f32.mrb[0].mxu0
      %7340 = vmatprep.mubr.f32.mxu0 0.0
      %7341 = vmatmul.mubr.f32.gmra.mrb[0].mxu0 %v7168
      %v7342 = vpop.f32.mrb[0].mxu0
      %v7343 = vadd.f32 0.0, %v7342
      %v7344 = vpop.f32.mrb[0].mxu0
      %7345 = vmatprep.mubr.f32.mxu0 0.0
      %7346 = vmatmul.mubr.f32.gmra.mrb[0].mxu0 %v7171
      %v7347 = vpop.f32.mrb[0].mxu0
      %v7348 = vadd.f32 0.0, %v7347
      %v7349 = vpop.f32.mrb[0].mxu0
      %7350 = vmatprep.mubr.f32.mxu0 0.0
      %7351 = vmatmul.mubr.f32.gmra.mrb[0].mxu0 %v7174
      %v7352 = vpop.f32.mrb[0].mxu0
      %v7353 = vadd.f32 0.0, %v7352
      %v7354 = vpop.f32.mrb[0].mxu0
      %7355 = vmatprep.mubr.f32.mxu0 0.0
      %7356 = vmatmul.mubr.f32.gmra.mrb[0].mxu0 %v7177
      %v7357 = vpop.f32.mrb[0].mxu0
      %v7358 = vadd.f32 0.0, %v7357
      %v7359 = vpop.f32.mrb[0].mxu0
      %7360 = vmatprep.mubr.f32.mxu0 0.0
      %7361 = vmatmul.mubr.f32.gmra.mrb[0].mxu0 %v7180
      %v7362 = vpop.f32.mrb[0].mxu0
      %v7363 = vadd.f32 0.0, %v7362
      %v7364 = vpop.f32.mrb[0].mxu0
      %7365 = vmatprep.mubr.f32.mxu0 0.0
      %7366 = vmatmul.mubr.f32.gmra.mrb[0].mxu0 %v7183
      %v7367 = vpop.f32.mrb[0].mxu0
      %v7368 = vadd.f32 0.0, %v7367
      %v7369 = vpop.f32.mrb[0].mxu0
      %7370 = vmatprep.mubr.f32.mxu0 0.0
      %7371 = vmatmul.mubr.f32.gmra.mrb[0].mxu0 %v7186
      %v7372 = vpop.f32.mrb[0].mxu0
      %v7373 = vadd.f32 0.0, %v7372
      %v7374 = vpop.f32.mrb[0].mxu0
      %7375 = vmatprep.mubr.f32.mxu0 0.0
      %7376 = vmatmul.mubr.f32.gmra.mrb[0].mxu0 %v7189
      %v7377 = vpop.f32.mrb[0].mxu0
      %v7378 = vadd.f32 0.0, %v7377
      %v7379 = vpop.f32.mrb[0].mxu0
      %7380 = vmatprep.mubr.f32.mxu0 0.0
      %7381 = vmatmul.mubr.f32.gmra.mrb[0].mxu0 %v7192
      %v7382 = vpop.f32.mrb[0].mxu0
      %v7383 = vadd.f32 0.0, %v7382
      %v7384 = vpop.f32.mrb[0].mxu0
      %7385 = vmatprep.mubr.f32.mxu0 0.0
      %7386 = vmatmul.mubr.f32.gmra.mrb[0].mxu0 %v7195
      %v7387 = vpop.f32.mrb[0].mxu0
      %v7388 = vadd.f32 0.0, %v7387
      %v7389 = vpop.f32.mrb[0].mxu0
      %7390 = vmatprep.mubr.f32.mxu0 0.0
      %7391 = vmatmul.mubr.f32.gmra.mrb[0].mxu0 %v7198
      %v7392 = vpop.f32.mrb[0].mxu0
      %v7393 = vadd.f32 0.0, %v7392
      %v7394 = vpop.f32.mrb[0].mxu0
      %7395 = vmatprep.mubr.f32.mxu0 0.0
      %7396 = vmatmul.mubr.f32.gmra.mrb[0].mxu0 %v7201
      %v7397 = vpop.f32.mrb[0].mxu0
      %v7398 = vadd.f32 0.0, %v7397
      %v7399 = vpop.f32.mrb[0].mxu0
      %7400 = vmatprep.mubr.f32.mxu0 0.0
      %7401 = vmatmul.mubr.f32.gmra.mrb[0].mxu0 %v7204
      %v7402 = vpop.f32.mrb[0].mxu0
      %v7403 = vadd.f32 0.0, %v7402
      %v7404 = vpop.f32.mrb[0].mxu0
      %7405 = vmatprep.mubr.f32.mxu0 0.0
      %7406 = vmatmul.mubr.f32.gmra.mrb[0].mxu0 %v7207
      %v7407 = vpop.f32.mrb[0].mxu0
      %v7408 = vadd.f32 0.0, %v7407
      %v7409 = vpop.f32.mrb[0].mxu0
      %7410 = vmatprep.mubr.f32.mxu0 0.0
      %7411 = vmatmul.mubr.f32.gmra.mrb[0].mxu0 %v7210
      %v7412 = vpop.f32.mrb[0].mxu0
      %v7413 = vadd.f32 0.0, %v7412
      %v7414 = vpop.f32.mrb[0].mxu0
      %7415 = vmatprep.mubr.f32.mxu0 0.0
      %7416 = vmatmul.mubr.f32.gmra.mrb[0].mxu0 %v7213
      %v7417 = vpop.f32.mrb[0].mxu0
      %v7418 = vadd.f32 0.0, %v7417
      %v7419 = vpop.f32.mrb[0].mxu0
      %7420 = vmatprep.mubr.f32.mxu0 0.0
      %7421 = vmatmul.mubr.f32.gmra.mrb[0].mxu0 %v7216
      %v7422 = vpop.f32.mrb[0].mxu0
      %v7423 = vadd.f32 0.0, %v7422
      %v7424 = vpop.f32.mrb[0].mxu0
      %7425 = vmatprep.mubr.f32.mxu0 0.0
      %7426 = vmatmul.mubr.f32.gmra.mrb[0].mxu0 %v7219
      %v7427 = vpop.f32.mrb[0].mxu0
      %v7428 = vadd.f32 0.0, %v7427
      %v7429 = vpop.f32.mrb[0].mxu0
      %7430 = vmatprep.mubr.f32.mxu0 0.0
      %7431 = vmatmul.mubr.f32.gmra.mrb[0].mxu0 %v7222
      %v7432 = vpop.f32.mrb[0].mxu0
      %v7433 = vadd.f32 0.0, %v7432
      %v7434 = vpop.f32.mrb[0].mxu0
      %7435 = vmatprep.mubr.f32.mxu0 0.0
      %7436 = vmatmul.mubr.f32.gmra.mrb[0].mxu0 %v7225
      %v7437 = vpop.f32.mrb[0].mxu0
      %v7438 = vadd.f32 0.0, %v7437
      %v7439 = vpop.f32.mrb[0].mxu0
      %7440 = vmatprep.mubr.f32.mxu0 0.0
      %7441 = vmatmul.mubr.f32.gmra.mrb[0].mxu0 %v7228
      %v7442 = vpop.f32.mrb[0].mxu0
      %v7443 = vadd.f32 0.0, %v7442
      %v7444 = vpop.f32.mrb[0].mxu0
      %7445 = vmatprep.mubr.f32.mxu0 0.0
      %7446 = vmatmul.mubr.f32.gmra.mrb[0].mxu0 %v7231
      %v7447 = vpop.f32.mrb[0].mxu0
      %v7448 = vadd.f32 0.0, %v7447
      %v7449 = vpop.f32.mrb[0].mxu0
      %7450 = vmatprep.mubr.f32.mxu0 0.0
      %7451 = vmatmul.mubr.f32.gmra.mrb[0].mxu0 %v7234
      %v7452 = vpop.f32.mrb[0].mxu0
      %v7453 = vadd.f32 0.0, %v7452
      %v7454 = vpop.f32.mrb[0].mxu0
      %7455 = vmatprep.mubr.f32.mxu0 0.0
      %7456 = vmatmul.mubr.f32.gmra.mrb[0].mxu0 %v7237
      %v7457 = vpop.f32.mrb[0].mxu0
      %v7458 = vadd.f32 0.0, %v7457
      %v7459 = vpop.f32.mrb[0].mxu0
      %7460 = vmatprep.mubr.f32.mxu0 0.0
      %7461 = vmatmul.mubr.f32.gmra.mrb[0].mxu0 %v7240
      %v7462 = vpop.f32.mrb[0].mxu0
      %v7463 = vadd.f32 0.0, %v7462
      %v7464 = vpop.f32.mrb[0].mxu0
      %7465 = vmatprep.mubr.f32.mxu0 0.0
      %7466 = vmatmul.mubr.f32.gmra.mrb[0].mxu0 %v7243
      %v7467 = vpop.f32.mrb[0].mxu0
      %v7468 = vadd.f32 0.0, %v7467
      %v7469 = vpop.f32.mrb[0].mxu0
      %7470 = vmatprep.mubr.f32.mxu0 0.0
      %7471 = vmatmul.mubr.f32.gmra.mrb[0].mxu0 %v7246
      %v7472 = vpop.f32.mrb[0].mxu0
      %v7473 = vadd.f32 0.0, %v7472
      %v7474 = vpop.f32.mrb[0].mxu0
      %7475 = vdwg.mxu0
      %v7476 = vadd.f32 %v7086, %v7318
      %v7477 = vadd.f32 %v7087, %v7323
      %v7478 = vadd.f32 %v7088, %v7328
      %v7479 = vadd.f32 %v7089, %v7333
      %v7480 = vadd.f32 %v7090, %v7338
      %v7481 = vadd.f32 %v7091, %v7343
      %v7482 = vadd.f32 %v7092, %v7348
      %v7483 = vadd.f32 %v7093, %v7353
      %v7484 = vadd.f32 %v7094, %v7358
      %v7485 = vadd.f32 %v7095, %v7363
      %v7486 = vadd.f32 %v7096, %v7368
      %v7487 = vadd.f32 %v7097, %v7373
      %v7488 = vadd.f32 %v7098, %v7378
      %v7489 = vadd.f32 %v7099, %v7383
      %v7490 = vadd.f32 %v7100, %v7388
      %v7491 = vadd.f32 %v7101, %v7393
      %v7492 = vadd.f32 %v7102, %v7398
      %v7493 = vadd.f32 %v7103, %v7403
      %v7494 = vadd.f32 %v7104, %v7408
      %v7495 = vadd.f32 %v7105, %v7413
      %v7496 = vadd.f32 %v7106, %v7418
      %v7497 = vadd.f32 %v7107, %v7423
      %v7498 = vadd.f32 %v7108, %v7428
      %v7499 = vadd.f32 %v7109, %v7433
      %v7500 = vadd.f32 %v7110, %v7438
      %v7501 = vadd.f32 %v7111, %v7443
      %v7502 = vadd.f32 %v7112, %v7448
      %v7503 = vadd.f32 %v7113, %v7453
      %v7504 = vadd.f32 %v7114, %v7458
      %v7505 = vadd.f32 %v7115, %v7463
      %v7506 = vadd.f32 %v7116, %v7468
      %v7507 = vadd.f32 %v7117, %v7473
      %7508 = vst.msk [vmem:[%s224] sm:$0xff] %vm225, %v7476
      %7509 = vst.msk [vmem:[%s224 + $0x8] sm:$0xff] %vm225, %v7477
      %7510 = vst.msk [vmem:[%s224 + $0x10] sm:$0xff] %vm225, %v7478
      %7511 = vst.msk [vmem:[%s224 + $0x18] sm:$0xff] %vm225, %v7479
      %7512 = vst.msk [vmem:[%s224 + $0x20] sm:$0xff] %vm225, %v7480
      %7513 = vst.msk [vmem:[%s224 + $0x28] sm:$0xff] %vm225, %v7481
      %7514 = vst.msk [vmem:[%s224 + $0x30] sm:$0xff] %vm225, %v7482
      %7515 = vst.msk [vmem:[%s224 + $0x38] sm:$0xff] %vm225, %v7483
      %7516 = vst.msk [vmem:[%s224 + $0x40] sm:$0xff] %vm225, %v7484
      %7517 = vst.msk [vmem:[%s224 + $0x48] sm:$0xff] %vm225, %v7485
      %7518 = vst.msk [vmem:[%s224 + $0x50] sm:$0xff] %vm225, %v7486
      %7519 = vst.msk [vmem:[%s224 + $0x58] sm:$0xff] %vm225, %v7487
      %7520 = vst.msk [vmem:[%s224 + $0x60] sm:$0xff] %vm225, %v7488
      %7521 = vst.msk [vmem:[%s224 + $0x68] sm:$0xff] %vm225, %v7489
      %7522 = vst.msk [vmem:[%s224 + $0x70] sm:$0xff] %vm225, %v7490
      %7523 = vst.msk [vmem:[%s224 + $0x78] sm:$0xff] %vm225, %v7491
      %7524 = vst.msk [vmem:[%s224 + $0x80] sm:$0xff] %vm225, %v7492
      %7525 = vst.msk [vmem:[%s224 + $0x88] sm:$0xff] %vm225, %v7493
      %7526 = vst.msk [vmem:[%s224 + $0x90] sm:$0xff] %vm225, %v7494
      %7527 = vst.msk [vmem:[%s224 + $0x98] sm:$0xff] %vm225, %v7495
      %7528 = vst.msk [vmem:[%s224 + $0xa0] sm:$0xff] %vm225, %v7496
      %7529 = vst.msk [vmem:[%s224 + $0xa8] sm:$0xff] %vm225, %v7497
      %7530 = vst.msk [vmem:[%s224 + $0xb0] sm:$0xff] %vm225, %v7498
      %7531 = vst.msk [vmem:[%s224 + $0xb8] sm:$0xff] %vm225, %v7499
      %7532 = vst.msk [vmem:[%s224 + $0xc0] sm:$0xff] %vm225, %v7500
      %7533 = vst.msk [vmem:[%s224 + $0xc8] sm:$0xff] %vm225, %v7501
      %7534 = vst.msk [vmem:[%s224 + $0xd0] sm:$0xff] %vm225, %v7502
      %7535 = vst.msk [vmem:[%s224 + $0xd8] sm:$0xff] %vm225, %v7503
      %7536 = vst.msk [vmem:[%s224 + $0xe0] sm:$0xff] %vm225, %v7504
      %7537 = vst.msk [vmem:[%s224 + $0xe8] sm:$0xff] %vm225, %v7505
      %7538 = vst.msk [vmem:[%s224 + $0xf0] sm:$0xff] %vm225, %v7506
      %7539 = vst.msk [vmem:[%s224 + $0xf8] sm:$0xff] %vm225, %v7507
      %p7540 = scmp.lt.s32.totalorder %s16, 1
      %s7541 = scalar_select %p7540, %s16, 1
      %s7542 = smul.addr %s7541, 32
      %s7543 = smul.addr %s7542, 8
      %s7544 = scalar_lea.vmem %s5, %s7543
      // Predicated region
      $region41: #{tpu_custom_call.1} parent=39 // pred_check
        %p7545 = pneg %p144
      $region42: #{tpu_custom_call.1} parent=39 // pred_check_branch
        %7547 = sbr.rel (%p7545) target = $region44
      $region43: #{tpu_custom_call.1} parent=39 // pred_region
        _
      $region44: #{tpu_custom_call.1} parent=39 // pred_fallthru
        _
    $region40: #{tpu_custom_call.1} parent=5 // pred_fallthru
      _
    %p7548 = scmp.le.s32.totalorder 2, %s11
    // Predicated region
    $region45: #{tpu_custom_call.1} parent=5 // pred_check
      %p7549 = pneg %p7548
    $region46: #{tpu_custom_call.1} parent=5 // pred_check_branch
      %7551 = sbr.rel (%p7549) target = $region48
    $region47: #{tpu_custom_call.1} parent=5 // pred_region
      %s7552 = ssub.s32 %s11, 2
      // Predicated region
      $region49: #{tpu_custom_call.1} parent=47 // pred_check
        %p7553 = pneg %p150
      $region50: #{tpu_custom_call.1} parent=47 // pred_check_branch
        %7555 = sbr.rel (%p7553) target = $region52
      $region51: #{tpu_custom_call.1} parent=47 // pred_region
        %p7556 = scmp.lt.s32.totalorder %s17, 1
        %s7557 = scalar_select %p7556, %s17, 1
        %s7558 = smul.addr %s7557, 32
        %s7559 = smul.addr %s7558, 8
        %s7560 = scalar_lea.vmem %s5, %s7559
      $region52: #{tpu_custom_call.1} parent=47 // pred_fallthru
        _
    $region48: #{tpu_custom_call.1} parent=5 // pred_fallthru
      _
  $region6: #{tpu_custom_call.1} parent=0 // loop_footer
    %s15 = sadd.s32 1, %s11
  $region7: #{tpu_custom_call.1} parent=0 // loop_footer_branch
    %10 = sbr.rel target = $region3
  $region8: #{tpu_custom_call.1} parent=0 // loop_exit
    _

</llo_original>
